<compile_context>
chip_gen: v7x
topology: tpu7x:2x2x1
jax: 0.10.0
libtpu: 0.0.40
codegen_flags: <defaults>
</compile_context>

<pallas_src>
import functools

import jax
import jax.numpy as jnp
from jax.experimental import pallas as pl
from jax.experimental.pallas import tpu as pltpu

f32 = jnp.float32
bf16 = jnp.bfloat16

# 3x3 taps in (dy, dx) order, matching weight layout k = (dy+1)*3 + (dx+1).
TAPS = tuple((dy, dx) for dy in (-1, 0, 1) for dx in (-1, 0, 1))


# --------------------------------------------------------------------------
# In-kernel helpers
# --------------------------------------------------------------------------
def _shift_rows(x, shift):
    """tap[r] = x[r + shift]; rows shifted past the block edge become zero."""
    if shift == 0:
        return x
    rows, cols = x.shape
    pad = jnp.zeros((abs(shift), cols), x.dtype)
    if shift > 0:
        return jnp.concatenate([x[shift:], pad], axis=0)
    return jnp.concatenate([pad, x[: rows + shift]], axis=0)


def _conv3x3_gates(combined, w_ref, b_ref, mask_ref, W):
    """3x3 'same' conv as 9 accumulated bf16 MXU matmuls over shifted views.

    combined : (rows, Cin_total) f32, rows ordered (batch, h, w)
    w_ref    : (9, Cin_total, Cout) bf16, tap k = (dy+1)*3 + (dx+1)
    b_ref    : (1, Cout) f32
    mask_ref : (rows, 9) f32 per-tap validity mask (handles H/W borders)
    """
    rows = combined.shape[0]
    n_out = w_ref.shape[-1]
    acc = jnp.zeros((rows, n_out), f32)
    for k, (dy, dx) in enumerate(TAPS):
        shift = dy * W + dx
        tap = _shift_rows(combined, shift)
        if not (dy == 0 and dx == 0):
            tap = tap * mask_ref[:, k:k + 1]
        acc = acc + jnp.dot(tap.astype(w_ref.dtype), w_ref[k],
                            preferred_element_type=f32)
    return acc + b_ref[...]


def _lstm_gates(acc, c_prev, Ch):
    i = jax.nn.sigmoid(acc[:, 0 * Ch:1 * Ch])
    f = jax.nn.sigmoid(acc[:, 1 * Ch:2 * Ch])
    o = jax.nn.sigmoid(acc[:, 2 * Ch:3 * Ch])
    g = jnp.tanh(acc[:, 3 * Ch:4 * Ch])
    c_next = f * c_prev + i * g
    h_next = o * jnp.tanh(c_next)
    return h_next, c_next


# --------------------------------------------------------------------------
# Kernel 1: fused encoder ConvLSTM over the whole sequence.
#   grid = (batch_blocks, S); h/c carried in VMEM scratch; weights resident.
#   Also emits enc_t @ w1e + b1 (h-independent attention projection).
# --------------------------------------------------------------------------
def _encoder_kernel(x_ref, w_ref, b_ref, w1e_ref, b1_ref, mask_ref,
                    ench_ref, encp_ref, c_out_ref, h_s, c_s, *, W):
    t = pl.program_id(1)

    @pl.when(t == 0)
    def _init():
        h_s[...] = jnp.zeros_like(h_s)
        c_s[...] = jnp.zeros_like(c_s)

    Ch = h_s.shape[-1]
    combined = jnp.concatenate([x_ref[0], h_s[...]], axis=-1)       # (rows, Cin+Ch)
    acc = _conv3x3_gates(combined, w_ref, b_ref, mask_ref, W)
    h_next, c_next = _lstm_gates(acc, c_s[...], Ch)
    h_s[...] = h_next
    c_s[...] = c_next

    ench_ref[0] = h_next
    encp_ref[0] = (jnp.dot(h_next, w1e_ref[...], preferred_element_type=f32)
                   + b1_ref[...])
    c_out_ref[...] = c_next   # revisited block; final write-back holds c at t=S-1


# --------------------------------------------------------------------------
# Kernel 2: fused decoder step (attention + ConvLSTM cell + 1x1 conv + sigmoid).
#   grid = (batch_blocks, target_len); enc_h / enc_proj resident across steps;
#   h, c and the autoregressive decoder input carried in VMEM scratch.
# --------------------------------------------------------------------------
def _decoder_kernel(xl_ref, c0_ref, ench_ref, encp_ref,
                    w1h_ref, w2_ref, b2_ref,
                    wd_ref, bd_ref, wout_ref, bout_ref, mask_ref,
                    frame_ref, h_s, c_s, din_s, *, W, HW):
    t = pl.program_id(1)
    S = ench_ref.shape[0]
    rows, Ch = h_s.shape
    bb = rows // HW                                   # whole batches per block

    @pl.when(t == 0)
    def _init():
        h_s[...] = ench_ref[S - 1]
        c_s[...] = c0_ref[...]
        din_s[...] = xl_ref[...]

    h = h_s[...]

    # ---------------- attention ----------------
    hW = jnp.dot(h, w1h_ref[...], preferred_element_type=f32)       # (rows, A)
    inv_hw = 1.0 / HW
    cols = []
    for s in range(S):
        e = jnp.tanh(hW + encp_ref[s])                              # (rows, A)
        if bb == 1:
            e_mean = jnp.sum(e, axis=0, keepdims=True) * inv_hw     # (1, A)
        else:
            e_mean = jnp.sum(e.reshape(bb, HW, -1), axis=1) * inv_hw
        # 1x1 conv (A -> 1) on the VPU: multiply by w2 row + lane reduction.
        cols.append(jnp.sum(e_mean * w2_ref[...], axis=1, keepdims=True)
                    + b2_ref[...])                                  # (bb, 1)
    energy = jnp.concatenate(cols, axis=1)                          # (bb, S)
    m = jnp.max(energy, axis=1, keepdims=True)
    ew = jnp.exp(energy - m)
    attn = ew / jnp.sum(ew, axis=1, keepdims=True)                  # (bb, S)

    ctx = jnp.zeros((rows, Ch), f32)
    for s in range(S):
        a_s = attn[:, s:s + 1]                                      # (bb, 1)
        if bb == 1:
            ctx = ctx + ench_ref[s] * a_s
        else:
            ctx = ctx + (ench_ref[s].reshape(bb, HW, Ch)
                         * a_s.reshape(bb, 1, 1)).reshape(rows, Ch)

    # ---------------- decoder ConvLSTM cell ----------------
    combined = jnp.concatenate([din_s[...], ctx, h], axis=-1)       # (rows, Cin+2Ch)
    acc = _conv3x3_gates(combined, wd_ref, bd_ref, mask_ref, W)
    h_next, c_next = _lstm_gates(acc, c_s[...], Ch)
    h_s[...] = h_next
    c_s[...] = c_next

    # ---------------- 1x1 output conv + sigmoid ----------------
    frame = jax.nn.sigmoid(
        jnp.dot(h_next, wout_ref[...], preferred_element_type=f32) + bout_ref[...])
    din_s[...] = frame                                              # next-step input
    # TODO(synk): with Cin=1 this store is 1 lane wide (masked vst); a lane-dense
    # (Cin, rows) layout would need a degenerate in-kernel transpose, skipped here.
    frame_ref[0] = frame


# --------------------------------------------------------------------------
# Plain-JAX glue: masks, weight-layout conversion, parameter init, forward.
# --------------------------------------------------------------------------
def _tap_masks(B, H, W):
    r = jnp.arange(B * H * W)
    w_i = r % W
    h_i = (r // W) % H
    cols = []
    for dy, dx in TAPS:
        ok = ((h_i + dy >= 0) & (h_i + dy < H) & (w_i + dx >= 0) & (w_i + dx < W))
        cols.append(ok.astype(f32))
    return jnp.stack(cols, axis=1)          # (BHW, 9)


def _conv3_to_taps(w):
    # torch (Cout, Cin, 3, 3) -> (9, Cin, Cout); tap k = ky*3 + kx = (dy+1)*3+(dx+1)
    cout, cin = w.shape[0], w.shape[1]
    return jnp.transpose(w, (2, 3, 1, 0)).reshape(9, cin, cout)


def init_params(key, input_dim, hidden_dim, attn_dim):
    def uconv(k, cout, cin, ks):
        fan_in = cin * ks * ks
        bound = 1.0 / (fan_in ** 0.5)
        kw, kb = jax.random.split(k)
        w = jax.random.uniform(kw, (cout, cin, ks, ks), f32, -bound, bound)
        b = jax.random.uniform(kb, (cout,), f32, -bound, bound)
        return w, b

    keys = jax.random.split(key, 5)
    enc_w, enc_b = uconv(keys[0], 4 * hidden_dim, input_dim + hidden_dim, 3)
    dec_w, dec_b = uconv(keys[1], 4 * hidden_dim, input_dim + 2 * hidden_dim, 3)
    a1_w, a1_b = uconv(keys[2], attn_dim, 2 * hidden_dim, 1)
    a2_w, a2_b = uconv(keys[3], 1, attn_dim, 1)
    out_w, out_b = uconv(keys[4], input_dim, hidden_dim, 1)

    w1 = jnp.transpose(a1_w[:, :, 0, 0])              # (2*hidden, attn_dim)
    return {
        "enc_w": _conv3_to_taps(enc_w).astype(bf16), "enc_b": enc_b.reshape(1, -1),
        "dec_w": _conv3_to_taps(dec_w).astype(bf16), "dec_b": dec_b.reshape(1, -1),
        "w1h": w1[:hidden_dim], "w1e": w1[hidden_dim:], "b1": a1_b.reshape(1, -1),
        "w2r": a2_w[:, :, 0, 0],                       # (1, attn_dim) row
        "b2": a2_b.reshape(1, 1),
        "wout": jnp.transpose(out_w[:, :, 0, 0]),      # (hidden, Cin)
        "bout": out_b.reshape(1, -1),
    }


def forward(params, x, target_len, batch_block=1):
    B, S, Cin, H, W = x.shape
    HW = H * W
    BHW = B * HW
    Ch = params["w1h"].shape[0]
    A = params["w1h"].shape[1]
    assert B % batch_block == 0
    nb = B // batch_block
    rows = batch_block * HW                    # row tile = whole batches

    # NCHW -> (S, B*H*W, Cin); rows ordered (batch, h, w)
    x_flat = jnp.transpose(x, (1, 0, 3, 4, 2)).reshape(S, BHW, Cin)
    masks = _tap_masks(B, H, W)

    cparams = pltpu.CompilerParams(dimension_semantics=("parallel", "arbitrary"))

    # ---------------- fused encoder: grid = (batch blocks, S) ----------------
    enc_h, enc_proj, c_fin = pl.pallas_call(
        functools.partial(_encoder_kernel, W=W),
        grid=(nb, S),
        in_specs=[
            pl.BlockSpec((1, rows, Cin), lambda b, t: (t, b, 0)),            # x_t
            pl.BlockSpec((9, Cin + Ch, 4 * Ch), lambda b, t: (0, 0, 0)),     # conv w
            pl.BlockSpec((1, 4 * Ch), lambda b, t: (0, 0)),                  # conv b
            pl.BlockSpec((Ch, A), lambda b, t: (0, 0)),                      # w1e
            pl.BlockSpec((1, A), lambda b, t: (0, 0)),                       # b1
            pl.BlockSpec((rows, 9), lambda b, t: (b, 0)),                    # tap masks
        ],
        out_specs=[
            pl.BlockSpec((1, rows, Ch), lambda b, t: (t, b, 0)),             # enc h_t
            pl.BlockSpec((1, rows, A), lambda b, t: (t, b, 0)),              # enc proj_t
            pl.BlockSpec((rows, Ch), lambda b, t: (b, 0)),                   # final c
        ],
        out_shape=[
            jax.ShapeDtypeStruct((S, BHW, Ch), f32),
            jax.ShapeDtypeStruct((S, BHW, A), f32),
            jax.ShapeDtypeStruct((BHW, Ch), f32),
        ],
        scratch_shapes=[pltpu.VMEM((rows, Ch), f32),
                        pltpu.VMEM((rows, Ch), f32)],
        compiler_params=cparams,
    )(x_flat, params["enc_w"], params["enc_b"], params["w1e"], params["b1"], masks)

    # ---------------- fused decoder: grid = (batch blocks, target_len) -------
    x_last = x_flat[S - 1]
    frames = pl.pallas_call(
        functools.partial(_decoder_kernel, W=W, HW=HW),
        grid=(nb, target_len),
        in_specs=[
            pl.BlockSpec((rows, Cin), lambda b, t: (b, 0)),                  # x_last
            pl.BlockSpec((rows, Ch), lambda b, t: (b, 0)),                   # c0
            pl.BlockSpec((S, rows, Ch), lambda b, t: (0, b, 0)),             # enc h (resident)
            pl.BlockSpec((S, rows, A), lambda b, t: (0, b, 0)),              # enc proj (resident)
            pl.BlockSpec((Ch, A), lambda b, t: (0, 0)),                      # w1h
            pl.BlockSpec((1, A), lambda b, t: (0, 0)),                       # w2 row
            pl.BlockSpec((1, 1), lambda b, t: (0, 0)),                       # b2
            pl.BlockSpec((9, Cin + 2 * Ch, 4 * Ch), lambda b, t: (0, 0, 0)),  # dec conv w
            pl.BlockSpec((1, 4 * Ch), lambda b, t: (0, 0)),                  # dec conv b
            pl.BlockSpec((Ch, Cin), lambda b, t: (0, 0)),                    # out conv w
            pl.BlockSpec((1, Cin), lambda b, t: (0, 0)),                     # out conv b
            pl.BlockSpec((rows, 9), lambda b, t: (b, 0)),                    # tap masks
        ],
        out_specs=pl.BlockSpec((1, rows, Cin), lambda b, t: (t, b, 0)),
        out_shape=jax.ShapeDtypeStruct((target_len, BHW, Cin), f32),
        scratch_shapes=[pltpu.VMEM((rows, Ch), f32),
                        pltpu.VMEM((rows, Ch), f32),
                        pltpu.VMEM((rows, Cin), f32)],
        compiler_params=cparams,
    )(x_last, c_fin, enc_h, enc_proj,
      params["w1h"], params["w2r"], params["b2"],
      params["dec_w"], params["dec_b"], params["wout"], params["bout"], masks)

    out = frames.reshape(target_len, B, H, W, Cin)
    return jnp.transpose(out, (1, 0, 4, 2, 3))        # (B, T, Cin, H, W) like torch


if __name__ == "__main__":
    # Small shapes consistent with the module defaults (hidden=64, attn=32, Cin=1).
    B, S, Cin, H, W = 2, 4, 1, 8, 8
    hidden_dim, attn_dim = 64, 32
    target_len = 3

    key = jax.random.PRNGKey(0)
    k_param, k_x = jax.random.split(key)
    params = init_params(k_param, Cin, hidden_dim, attn_dim)
    x = jax.random.normal(k_x, (B, S, Cin, H, W), f32)

    fwd = jax.jit(functools.partial(forward, target_len=target_len, batch_block=1))
    out = jax.block_until_ready(fwd(params, x))

    assert out.shape == (B, target_len, Cin, H, W), out.shape
    assert bool(jnp.all(jnp.isfinite(out)))
    assert bool(jnp.all((out >= 0.0) & (out <= 1.0)))  # sigmoid output head
    print("KERNEL_OK")
</pallas_src>

<mosaic_0001>
module attributes {stable_mosaic.version = 11 : i64} {
  func.func @_encoder_kernel(%arg0: i32, %arg1: i32, %arg2: memref<1x64x1xf32, #tpu.memory_space<vmem>>, %arg3: memref<9x65x256xbf16, #tpu.memory_space<vmem>>, %arg4: memref<1x256xf32, #tpu.memory_space<vmem>>, %arg5: memref<64x32xf32, #tpu.memory_space<vmem>>, %arg6: memref<1x32xf32, #tpu.memory_space<vmem>>, %arg7: memref<64x9xf32, #tpu.memory_space<vmem>>, %arg8: memref<1x64x64xf32, #tpu.memory_space<vmem>>, %arg9: memref<1x64x32xf32, #tpu.memory_space<vmem>>, %arg10: memref<64x64xf32, #tpu.memory_space<vmem>>, %arg11: memref<64x64xf32, #tpu.memory_space<vmem>>, %arg12: memref<64x64xf32, #tpu.memory_space<vmem>>) attributes {dimension_semantics = [#tpu.dimension_semantics<parallel>, #tpu.dimension_semantics<arbitrary>], iteration_bounds = array<i64: 2, 4>, scalar_prefetch = 0 : i64, scratch_operands = 2 : i64, tpu.core_type = #tpu.core_type<tc>, window_params = [{transform_indices = @transform_0, window_bounds = array<i64: 1, 64, 1>}, {pipeline_mode = #tpu.pipeline_mode<synchronous>, transform_indices = @transform_1, window_bounds = array<i64: 9, 65, 256>}, {pipeline_mode = #tpu.pipeline_mode<synchronous>, transform_indices = @transform_2, window_bounds = array<i64: 1, 256>}, {pipeline_mode = #tpu.pipeline_mode<synchronous>, transform_indices = @transform_3, window_bounds = array<i64: 64, 32>}, {pipeline_mode = #tpu.pipeline_mode<synchronous>, transform_indices = @transform_4, window_bounds = array<i64: 1, 32>}, {transform_indices = @transform_5, window_bounds = array<i64: 64, 9>}, {transform_indices = @transform_6, window_bounds = array<i64: 1, 64, 64>}, {transform_indices = @transform_7, window_bounds = array<i64: 1, 64, 32>}, {transform_indices = @transform_8, window_bounds = array<i64: 64, 64>}]} {
    %c0_i32 = arith.constant 0 : i32
    %0 = arith.cmpi eq, %arg1, %c0_i32 : i32
    %1 = arith.extui %0 : i1 to i32
    %c0_i32_0 = arith.constant 0 : i32
    %2 = arith.cmpi ne, %1, %c0_i32_0 : i32
    scf.if %2 {
      %cst_81 = arith.constant 0.000000e+00 : f32
      %144 = vector.broadcast %cst_81 : f32 to vector<64x64xf32>
      %c0_82 = arith.constant 0 : index
      %c0_83 = arith.constant 0 : index
      %145 = vector.load %arg11[%c0_82, %c0_83] : memref<64x64xf32, #tpu.memory_space<vmem>>, vector<64x64xf32>
      tpu.vector_store %arg11[%c0_82, %c0_83], %144 {strides = array<i32>} : memref<64x64xf32, #tpu.memory_space<vmem>>, vector<64x64xf32>,
      %cst_84 = arith.constant 0.000000e+00 : f32
      %146 = vector.broadcast %cst_84 : f32 to vector<64x64xf32>
      %c0_85 = arith.constant 0 : index
      %c0_86 = arith.constant 0 : index
      %147 = vector.load %arg12[%c0_85, %c0_86] : memref<64x64xf32, #tpu.memory_space<vmem>>, vector<64x64xf32>
      tpu.vector_store %arg12[%c0_85, %c0_86], %146 {strides = array<i32>} : memref<64x64xf32, #tpu.memory_space<vmem>>, vector<64x64xf32>,
    } else {
    }
    %c0 = arith.constant 0 : index
    %c0_1 = arith.constant 0 : index
    %c0_2 = arith.constant 0 : index
    %3 = vector.load %arg2[%c0, %c0_1, %c0_2] : memref<1x64x1xf32, #tpu.memory_space<vmem>>, vector<1x64x1xf32>
    %4 = vector.shape_cast %3 : vector<1x64x1xf32> to vector<64x1xf32>
    %c0_3 = arith.constant 0 : index
    %c0_4 = arith.constant 0 : index
    %5 = vector.load %arg11[%c0_3, %c0_4] : memref<64x64xf32, #tpu.memory_space<vmem>>, vector<64x64xf32>
    %6 = tpu.concatenate %4, %5 in 1 : vector<64x1xf32>, vector<64x64xf32> -> vector<64x65xf32>
    %cst = arith.constant 0.000000e+00 : f32
    %7 = vector.broadcast %cst : f32 to vector<64x256xf32>
    %cst_5 = arith.constant 0.000000e+00 : f32
    %8 = vector.broadcast %cst_5 : f32 to vector<9x65xf32>
    %9 = vector.extract_strided_slice %6 {offsets = [0, 0], sizes = [55, 65], strides = [1, 1]} : vector<64x65xf32> to vector<55x65xf32>
    %10 = tpu.concatenate %8, %9 in 0 : vector<9x65xf32>, vector<55x65xf32> -> vector<64x65xf32>
    %c0_6 = arith.constant 0 : index
    %c0_7 = arith.constant 0 : index
    %11 = vector.load %arg7[%c0_6, %c0_7] : memref<64x9xf32, #tpu.memory_space<vmem>>, vector<64x1xf32>
    %12 = vector.broadcast %11 : vector<64x1xf32> to vector<64x65xf32>
    %13 = arith.mulf %10, %12 : vector<64x65xf32>
    %14 = arith.truncf %13 : vector<64x65xf32> to vector<64x65xbf16>
    %c0_8 = arith.constant 0 : index
    %c0_9 = arith.constant 0 : index
    %c0_10 = arith.constant 0 : index
    %15 = vector.load %arg3[%c0_8, %c0_9, %c0_10] : memref<9x65x256xbf16, #tpu.memory_space<vmem>>, vector<1x65x256xbf16>
    %16 = vector.shape_cast %15 : vector<1x65x256xbf16> to vector<65x256xbf16>
    %cst_11 = arith.constant dense<0.000000e+00> : vector<64x256xf32>
    %17 = tpu.matmul %14, %16, %cst_11 {dimension_numbers = #tpu.dot_dimension_numbers<[1], [0], [0], [1], [0, 0, 1, 1], [], []>} : vector<64x65xbf16>, vector<65x256xbf16>, vector<64x256xf32> -> vector<64x256xf32>
    %18 = arith.addf %7, %17 : vector<64x256xf32>
    %cst_12 = arith.constant 0.000000e+00 : f32
    %19 = vector.broadcast %cst_12 : f32 to vector<8x65xf32>
    %20 = vector.extract_strided_slice %6 {offsets = [0, 0], sizes = [56, 65], strides = [1, 1]} : vector<64x65xf32> to vector<56x65xf32>
    %21 = tpu.concatenate %19, %20 in 0 : vector<8x65xf32>, vector<56x65xf32> -> vector<64x65xf32>
    %c0_13 = arith.constant 0 : index
    %c1 = arith.constant 1 : index
    %22 = vector.load %arg7[%c0_13, %c1] : memref<64x9xf32, #tpu.memory_space<vmem>>, vector<64x1xf32>
    %23 = vector.broadcast %22 : vector<64x1xf32> to vector<64x65xf32>
    %24 = arith.mulf %21, %23 : vector<64x65xf32>
    %25 = arith.truncf %24 : vector<64x65xf32> to vector<64x65xbf16>
    %c1_14 = arith.constant 1 : index
    %c0_15 = arith.constant 0 : index
    %c0_16 = arith.constant 0 : index
    %26 = vector.load %arg3[%c1_14, %c0_15, %c0_16] : memref<9x65x256xbf16, #tpu.memory_space<vmem>>, vector<1x65x256xbf16>
    %27 = vector.shape_cast %26 : vector<1x65x256xbf16> to vector<65x256xbf16>
    %cst_17 = arith.constant dense<0.000000e+00> : vector<64x256xf32>
    %28 = tpu.matmul %25, %27, %cst_17 {dimension_numbers = #tpu.dot_dimension_numbers<[1], [0], [0], [1], [0, 0, 1, 1], [], []>} : vector<64x65xbf16>, vector<65x256xbf16>, vector<64x256xf32> -> vector<64x256xf32>
    %29 = arith.addf %18, %28 : vector<64x256xf32>
    %cst_18 = arith.constant 0.000000e+00 : f32
    %30 = vector.broadcast %cst_18 : f32 to vector<7x65xf32>
    %31 = vector.extract_strided_slice %6 {offsets = [0, 0], sizes = [57, 65], strides = [1, 1]} : vector<64x65xf32> to vector<57x65xf32>
    %32 = tpu.concatenate %30, %31 in 0 : vector<7x65xf32>, vector<57x65xf32> -> vector<64x65xf32>
    %c0_19 = arith.constant 0 : index
    %c2 = arith.constant 2 : index
    %33 = vector.load %arg7[%c0_19, %c2] : memref<64x9xf32, #tpu.memory_space<vmem>>, vector<64x1xf32>
    %34 = vector.broadcast %33 : vector<64x1xf32> to vector<64x65xf32>
    %35 = arith.mulf %32, %34 : vector<64x65xf32>
    %36 = arith.truncf %35 : vector<64x65xf32> to vector<64x65xbf16>
    %c2_20 = arith.constant 2 : index
    %c0_21 = arith.constant 0 : index
    %c0_22 = arith.constant 0 : index
    %37 = vector.load %arg3[%c2_20, %c0_21, %c0_22] : memref<9x65x256xbf16, #tpu.memory_space<vmem>>, vector<1x65x256xbf16>
    %38 = vector.shape_cast %37 : vector<1x65x256xbf16> to vector<65x256xbf16>
    %cst_23 = arith.constant dense<0.000000e+00> : vector<64x256xf32>
    %39 = tpu.matmul %36, %38, %cst_23 {dimension_numbers = #tpu.dot_dimension_numbers<[1], [0], [0], [1], [0, 0, 1, 1], [], []>} : vector<64x65xbf16>, vector<65x256xbf16>, vector<64x256xf32> -> vector<64x256xf32>
    %40 = arith.addf %29, %39 : vector<64x256xf32>
    %cst_24 = arith.constant 0.000000e+00 : f32
    %41 = vector.broadcast %cst_24 : f32 to vector<1x65xf32>
    %42 = vector.extract_strided_slice %6 {offsets = [0, 0], sizes = [63, 65], strides = [1, 1]} : vector<64x65xf32> to vector<63x65xf32>
    %43 = tpu.concatenate %41, %42 in 0 : vector<1x65xf32>, vector<63x65xf32> -> vector<64x65xf32>
    %c0_25 = arith.constant 0 : index
    %c3 = arith.constant 3 : index
    %44 = vector.load %arg7[%c0_25, %c3] : memref<64x9xf32, #tpu.memory_space<vmem>>, vector<64x1xf32>
    %45 = vector.broadcast %44 : vector<64x1xf32> to vector<64x65xf32>
    %46 = arith.mulf %43, %45 : vector<64x65xf32>
    %47 = arith.truncf %46 : vector<64x65xf32> to vector<64x65xbf16>
    %c3_26 = arith.constant 3 : index
    %c0_27 = arith.constant 0 : index
    %c0_28 = arith.constant 0 : index
    %48 = vector.load %arg3[%c3_26, %c0_27, %c0_28] : memref<9x65x256xbf16, #tpu.memory_space<vmem>>, vector<1x65x256xbf16>
    %49 = vector.shape_cast %48 : vector<1x65x256xbf16> to vector<65x256xbf16>
    %cst_29 = arith.constant dense<0.000000e+00> : vector<64x256xf32>
    %50 = tpu.matmul %47, %49, %cst_29 {dimension_numbers = #tpu.dot_dimension_numbers<[1], [0], [0], [1], [0, 0, 1, 1], [], []>} : vector<64x65xbf16>, vector<65x256xbf16>, vector<64x256xf32> -> vector<64x256xf32>
    %51 = arith.addf %40, %50 : vector<64x256xf32>
    %52 = arith.truncf %6 : vector<64x65xf32> to vector<64x65xbf16>
    %c4 = arith.constant 4 : index
    %c0_30 = arith.constant 0 : index
    %c0_31 = arith.constant 0 : index
    %53 = vector.load %arg3[%c4, %c0_30, %c0_31] : memref<9x65x256xbf16, #tpu.memory_space<vmem>>, vector<1x65x256xbf16>
    %54 = vector.shape_cast %53 : vector<1x65x256xbf16> to vector<65x256xbf16>
    %cst_32 = arith.constant dense<0.000000e+00> : vector<64x256xf32>
    %55 = tpu.matmul %52, %54, %cst_32 {dimension_numbers = #tpu.dot_dimension_numbers<[1], [0], [0], [1], [0, 0, 1, 1], [], []>} : vector<64x65xbf16>, vector<65x256xbf16>, vector<64x256xf32> -> vector<64x256xf32>
    %56 = arith.addf %51, %55 : vector<64x256xf32>
    %cst_33 = arith.constant 0.000000e+00 : f32
    %57 = vector.broadcast %cst_33 : f32 to vector<1x65xf32>
    %58 = vector.extract_strided_slice %6 {offsets = [1, 0], sizes = [63, 65], strides = [1, 1]} : vector<64x65xf32> to vector<63x65xf32>
    %59 = tpu.concatenate %58, %57 in 0 : vector<63x65xf32>, vector<1x65xf32> -> vector<64x65xf32>
    %c0_34 = arith.constant 0 : index
    %c5 = arith.constant 5 : index
    %60 = vector.load %arg7[%c0_34, %c5] : memref<64x9xf32, #tpu.memory_space<vmem>>, vector<64x1xf32>
    %61 = vector.broadcast %60 : vector<64x1xf32> to vector<64x65xf32>
    %62 = arith.mulf %59, %61 : vector<64x65xf32>
    %63 = arith.truncf %62 : vector<64x65xf32> to vector<64x65xbf16>
    %c5_35 = arith.constant 5 : index
    %c0_36 = arith.constant 0 : index
    %c0_37 = arith.constant 0 : index
    %64 = vector.load %arg3[%c5_35, %c0_36, %c0_37] : memref<9x65x256xbf16, #tpu.memory_space<vmem>>, vector<1x65x256xbf16>
    %65 = vector.shape_cast %64 : vector<1x65x256xbf16> to vector<65x256xbf16>
    %cst_38 = arith.constant dense<0.000000e+00> : vector<64x256xf32>
    %66 = tpu.matmul %63, %65, %cst_38 {dimension_numbers = #tpu.dot_dimension_numbers<[1], [0], [0], [1], [0, 0, 1, 1], [], []>} : vector<64x65xbf16>, vector<65x256xbf16>, vector<64x256xf32> -> vector<64x256xf32>
    %67 = arith.addf %56, %66 : vector<64x256xf32>
    %cst_39 = arith.constant 0.000000e+00 : f32
    %68 = vector.broadcast %cst_39 : f32 to vector<7x65xf32>
    %69 = vector.extract_strided_slice %6 {offsets = [7, 0], sizes = [57, 65], strides = [1, 1]} : vector<64x65xf32> to vector<57x65xf32>
    %70 = tpu.concatenate %69, %68 in 0 : vector<57x65xf32>, vector<7x65xf32> -> vector<64x65xf32>
    %c0_40 = arith.constant 0 : index
    %c6 = arith.constant 6 : index
    %71 = vector.load %arg7[%c0_40, %c6] : memref<64x9xf32, #tpu.memory_space<vmem>>, vector<64x1xf32>
    %72 = vector.broadcast %71 : vector<64x1xf32> to vector<64x65xf32>
    %73 = arith.mulf %70, %72 : vector<64x65xf32>
    %74 = arith.truncf %73 : vector<64x65xf32> to vector<64x65xbf16>
    %c6_41 = arith.constant 6 : index
    %c0_42 = arith.constant 0 : index
    %c0_43 = arith.constant 0 : index
    %75 = vector.load %arg3[%c6_41, %c0_42, %c0_43] : memref<9x65x256xbf16, #tpu.memory_space<vmem>>, vector<1x65x256xbf16>
    %76 = vector.shape_cast %75 : vector<1x65x256xbf16> to vector<65x256xbf16>
    %cst_44 = arith.constant dense<0.000000e+00> : vector<64x256xf32>
    %77 = tpu.matmul %74, %76, %cst_44 {dimension_numbers = #tpu.dot_dimension_numbers<[1], [0], [0], [1], [0, 0, 1, 1], [], []>} : vector<64x65xbf16>, vector<65x256xbf16>, vector<64x256xf32> -> vector<64x256xf32>
    %78 = arith.addf %67, %77 : vector<64x256xf32>
    %cst_45 = arith.constant 0.000000e+00 : f32
    %79 = vector.broadcast %cst_45 : f32 to vector<8x65xf32>
    %80 = vector.extract_strided_slice %6 {offsets = [8, 0], sizes = [56, 65], strides = [1, 1]} : vector<64x65xf32> to vector<56x65xf32>
    %81 = tpu.concatenate %80, %79 in 0 : vector<56x65xf32>, vector<8x65xf32> -> vector<64x65xf32>
    %c0_46 = arith.constant 0 : index
    %c7 = arith.constant 7 : index
    %82 = vector.load %arg7[%c0_46, %c7] : memref<64x9xf32, #tpu.memory_space<vmem>>, vector<64x1xf32>
    %83 = vector.broadcast %82 : vector<64x1xf32> to vector<64x65xf32>
    %84 = arith.mulf %81, %83 : vector<64x65xf32>
    %85 = arith.truncf %84 : vector<64x65xf32> to vector<64x65xbf16>
    %c7_47 = arith.constant 7 : index
    %c0_48 = arith.constant 0 : index
    %c0_49 = arith.constant 0 : index
    %86 = vector.load %arg3[%c7_47, %c0_48, %c0_49] : memref<9x65x256xbf16, #tpu.memory_space<vmem>>, vector<1x65x256xbf16>
    %87 = vector.shape_cast %86 : vector<1x65x256xbf16> to vector<65x256xbf16>
    %cst_50 = arith.constant dense<0.000000e+00> : vector<64x256xf32>
    %88 = tpu.matmul %85, %87, %cst_50 {dimension_numbers = #tpu.dot_dimension_numbers<[1], [0], [0], [1], [0, 0, 1, 1], [], []>} : vector<64x65xbf16>, vector<65x256xbf16>, vector<64x256xf32> -> vector<64x256xf32>
    %89 = arith.addf %78, %88 : vector<64x256xf32>
    %cst_51 = arith.constant 0.000000e+00 : f32
    %90 = vector.broadcast %cst_51 : f32 to vector<9x65xf32>
    %91 = vector.extract_strided_slice %6 {offsets = [9, 0], sizes = [55, 65], strides = [1, 1]} : vector<64x65xf32> to vector<55x65xf32>
    %92 = tpu.concatenate %91, %90 in 0 : vector<55x65xf32>, vector<9x65xf32> -> vector<64x65xf32>
    %c0_52 = arith.constant 0 : index
    %c8 = arith.constant 8 : index
    %93 = vector.load %arg7[%c0_52, %c8] : memref<64x9xf32, #tpu.memory_space<vmem>>, vector<64x1xf32>
    %94 = vector.broadcast %93 : vector<64x1xf32> to vector<64x65xf32>
    %95 = arith.mulf %92, %94 : vector<64x65xf32>
    %96 = arith.truncf %95 : vector<64x65xf32> to vector<64x65xbf16>
    %c8_53 = arith.constant 8 : index
    %c0_54 = arith.constant 0 : index
    %c0_55 = arith.constant 0 : index
    %97 = vector.load %arg3[%c8_53, %c0_54, %c0_55] : memref<9x65x256xbf16, #tpu.memory_space<vmem>>, vector<1x65x256xbf16>
    %98 = vector.shape_cast %97 : vector<1x65x256xbf16> to vector<65x256xbf16>
    %cst_56 = arith.constant dense<0.000000e+00> : vector<64x256xf32>
    %99 = tpu.matmul %96, %98, %cst_56 {dimension_numbers = #tpu.dot_dimension_numbers<[1], [0], [0], [1], [0, 0, 1, 1], [], []>} : vector<64x65xbf16>, vector<65x256xbf16>, vector<64x256xf32> -> vector<64x256xf32>
    %100 = arith.addf %89, %99 : vector<64x256xf32>
    %c0_57 = arith.constant 0 : index
    %c0_58 = arith.constant 0 : index
    %101 = vector.load %arg4[%c0_57, %c0_58] : memref<1x256xf32, #tpu.memory_space<vmem>>, vector<1x256xf32>
    %102 = vector.broadcast %101 : vector<1x256xf32> to vector<64x256xf32>
    %103 = arith.addf %100, %102 : vector<64x256xf32>
    %c0_59 = arith.constant 0 : index
    %c0_60 = arith.constant 0 : index
    %104 = vector.load %arg12[%c0_59, %c0_60] : memref<64x64xf32, #tpu.memory_space<vmem>>, vector<64x64xf32>
    %105 = vector.extract_strided_slice %103 {offsets = [0, 0], sizes = [64, 64], strides = [1, 1]} : vector<64x256xf32> to vector<64x64xf32>
    %106 = arith.negf %105 : vector<64x64xf32>
    %107 = math.exp %106 : vector<64x64xf32>
    %cst_61 = arith.constant 1.000000e+00 : f32
    %108 = vector.broadcast %cst_61 : f32 to vector<64x64xf32>
    %109 = arith.addf %108, %107 : vector<64x64xf32>
    %110 = arith.divf %108, %109 : vector<64x64xf32>
    %111 = vector.extract_strided_slice %103 {offsets = [0, 64], sizes = [64, 64], strides = [1, 1]} : vector<64x256xf32> to vector<64x64xf32>
    %112 = arith.negf %111 : vector<64x64xf32>
    %113 = math.exp %112 : vector<64x64xf32>
    %cst_62 = arith.constant 1.000000e+00 : f32
    %114 = vector.broadcast %cst_62 : f32 to vector<64x64xf32>
    %115 = arith.addf %114, %113 : vector<64x64xf32>
    %116 = arith.divf %114, %115 : vector<64x64xf32>
    %117 = vector.extract_strided_slice %103 {offsets = [0, 128], sizes = [64, 64], strides = [1, 1]} : vector<64x256xf32> to vector<64x64xf32>
    %118 = arith.negf %117 : vector<64x64xf32>
    %119 = math.exp %118 : vector<64x64xf32>
    %cst_63 = arith.constant 1.000000e+00 : f32
    %120 = vector.broadcast %cst_63 : f32 to vector<64x64xf32>
    %121 = arith.addf %120, %119 : vector<64x64xf32>
    %122 = arith.divf %120, %121 : vector<64x64xf32>
    %123 = vector.extract_strided_slice %103 {offsets = [0, 192], sizes = [64, 64], strides = [1, 1]} : vector<64x256xf32> to vector<64x64xf32>
    %124 = math.tanh %123 : vector<64x64xf32>
    %125 = arith.mulf %116, %104 : vector<64x64xf32>
    %126 = arith.mulf %110, %124 : vector<64x64xf32>
    %127 = arith.addf %125, %126 : vector<64x64xf32>
    %128 = math.tanh %127 : vector<64x64xf32>
    %129 = arith.mulf %122, %128 : vector<64x64xf32>
    %c0_64 = arith.constant 0 : index
    %c0_65 = arith.constant 0 : index
    %130 = vector.load %arg11[%c0_64, %c0_65] : memref<64x64xf32, #tpu.memory_space<vmem>>, vector<64x64xf32>
    tpu.vector_store %arg11[%c0_64, %c0_65], %129 {strides = array<i32>} : memref<64x64xf32, #tpu.memory_space<vmem>>, vector<64x64xf32>,
    %c0_66 = arith.constant 0 : index
    %c0_67 = arith.constant 0 : index
    %131 = vector.load %arg12[%c0_66, %c0_67] : memref<64x64xf32, #tpu.memory_space<vmem>>, vector<64x64xf32>
    tpu.vector_store %arg12[%c0_66, %c0_67], %127 {strides = array<i32>} : memref<64x64xf32, #tpu.memory_space<vmem>>, vector<64x64xf32>,
    %c0_68 = arith.constant 0 : index
    %c0_69 = arith.constant 0 : index
    %c0_70 = arith.constant 0 : index
    %132 = vector.load %arg8[%c0_68, %c0_69, %c0_70] : memref<1x64x64xf32, #tpu.memory_space<vmem>>, vector<1x64x64xf32>
    %133 = vector.shape_cast %132 : vector<1x64x64xf32> to vector<64x64xf32>
    %134 = vector.shape_cast %129 : vector<64x64xf32> to vector<1x64x64xf32>
    tpu.vector_store %arg8[%c0_68, %c0_69, %c0_70], %134 {strides = array<i32>} : memref<1x64x64xf32, #tpu.memory_space<vmem>>, vector<1x64x64xf32>,
    %c0_71 = arith.constant 0 : index
    %c0_72 = arith.constant 0 : index
    %135 = vector.load %arg5[%c0_71, %c0_72] : memref<64x32xf32, #tpu.memory_space<vmem>>, vector<64x32xf32>
    %cst_73 = arith.constant dense<0.000000e+00> : vector<64x32xf32>
    %136 = tpu.matmul %129, %135, %cst_73 {dimension_numbers = #tpu.dot_dimension_numbers<[1], [0], [0], [1], [0, 0, 1, 1], [], []>} : vector<64x64xf32>, vector<64x32xf32>, vector<64x32xf32> -> vector<64x32xf32>
    %c0_74 = arith.constant 0 : index
    %c0_75 = arith.constant 0 : index
    %137 = vector.load %arg6[%c0_74, %c0_75] : memref<1x32xf32, #tpu.memory_space<vmem>>, vector<1x32xf32>
    %138 = vector.broadcast %137 : vector<1x32xf32> to vector<64x32xf32>
    %139 = arith.addf %136, %138 : vector<64x32xf32>
    %c0_76 = arith.constant 0 : index
    %c0_77 = arith.constant 0 : index
    %c0_78 = arith.constant 0 : index
    %140 = vector.load %arg9[%c0_76, %c0_77, %c0_78] : memref<1x64x32xf32, #tpu.memory_space<vmem>>, vector<1x64x32xf32>
    %141 = vector.shape_cast %140 : vector<1x64x32xf32> to vector<64x32xf32>
    %142 = vector.shape_cast %139 : vector<64x32xf32> to vector<1x64x32xf32>
    tpu.vector_store %arg9[%c0_76, %c0_77, %c0_78], %142 {strides = array<i32>} : memref<1x64x32xf32, #tpu.memory_space<vmem>>, vector<1x64x32xf32>,
    %c0_79 = arith.constant 0 : index
    %c0_80 = arith.constant 0 : index
    %143 = vector.load %arg10[%c0_79, %c0_80] : memref<64x64xf32, #tpu.memory_space<vmem>>, vector<64x64xf32>
    tpu.vector_store %arg10[%c0_79, %c0_80], %127 {strides = array<i32>} : memref<64x64xf32, #tpu.memory_space<vmem>>, vector<64x64xf32>,
    return
  }
  func.func @transform_0(%arg0: i32, %arg1: i32) -> (i32, i32, i32) {
    %c0_i32 = arith.constant 0 : i32
    %c0_i32_0 = arith.constant 0 : i32
    return %arg1, %arg0, %c0_i32 : i32, i32, i32
  }
  func.func @transform_1(%arg0: i32, %arg1: i32) -> (i32, i32, i32) {
    %c0_i32 = arith.constant 0 : i32
    %c0_i32_0 = arith.constant 0 : i32
    %c0_i32_1 = arith.constant 0 : i32
    %c0_i32_2 = arith.constant 0 : i32
    return %c0_i32, %c0_i32_0, %c0_i32_1 : i32, i32, i32
  }
  func.func @transform_2(%arg0: i32, %arg1: i32) -> (i32, i32) {
    %c0_i32 = arith.constant 0 : i32
    %c0_i32_0 = arith.constant 0 : i32
    %c0_i32_1 = arith.constant 0 : i32
    return %c0_i32, %c0_i32_0 : i32, i32
  }
  func.func @transform_3(%arg0: i32, %arg1: i32) -> (i32, i32) {
    %c0_i32 = arith.constant 0 : i32
    %c0_i32_0 = arith.constant 0 : i32
    %c0_i32_1 = arith.constant 0 : i32
    return %c0_i32, %c0_i32_0 : i32, i32
  }
  func.func @transform_4(%arg0: i32, %arg1: i32) -> (i32, i32) {
    %c0_i32 = arith.constant 0 : i32
    %c0_i32_0 = arith.constant 0 : i32
    %c0_i32_1 = arith.constant 0 : i32
    return %c0_i32, %c0_i32_0 : i32, i32
  }
  func.func @transform_5(%arg0: i32, %arg1: i32) -> (i32, i32) {
    %c0_i32 = arith.constant 0 : i32
    %c0_i32_0 = arith.constant 0 : i32
    return %arg0, %c0_i32 : i32, i32
  }
  func.func @transform_6(%arg0: i32, %arg1: i32) -> (i32, i32, i32) {
    %c0_i32 = arith.constant 0 : i32
    %c0_i32_0 = arith.constant 0 : i32
    return %arg1, %arg0, %c0_i32 : i32, i32, i32
  }
  func.func @transform_7(%arg0: i32, %arg1: i32) -> (i32, i32, i32) {
    %c0_i32 = arith.constant 0 : i32
    %c0_i32_0 = arith.constant 0 : i32
    return %arg1, %arg0, %c0_i32 : i32, i32, i32
  }
  func.func @transform_8(%arg0: i32, %arg1: i32) -> (i32, i32) {
    %c0_i32 = arith.constant 0 : i32
    %c0_i32_0 = arith.constant 0 : i32
    return %arg0, %c0_i32 : i32, i32
  }
}

module attributes {stable_mosaic.version = 11 : i64} {
  func.func @_decoder_kernel(%arg0: i32, %arg1: i32, %arg2: memref<64x1xf32, #tpu.memory_space<vmem>>, %arg3: memref<64x64xf32, #tpu.memory_space<vmem>>, %arg4: memref<4x64x64xf32, #tpu.memory_space<vmem>>, %arg5: memref<4x64x32xf32, #tpu.memory_space<vmem>>, %arg6: memref<64x32xf32, #tpu.memory_space<vmem>>, %arg7: memref<1x32xf32, #tpu.memory_space<vmem>>, %arg8: memref<1x1xf32, #tpu.memory_space<vmem>>, %arg9: memref<9x129x256xbf16, #tpu.memory_space<vmem>>, %arg10: memref<1x256xf32, #tpu.memory_space<vmem>>, %arg11: memref<64x1xf32, #tpu.memory_space<vmem>>, %arg12: memref<1x1xf32, #tpu.memory_space<vmem>>, %arg13: memref<64x9xf32, #tpu.memory_space<vmem>>, %arg14: memref<1x64x1xf32, #tpu.memory_space<vmem>>, %arg15: memref<64x64xf32, #tpu.memory_space<vmem>>, %arg16: memref<64x64xf32, #tpu.memory_space<vmem>>, %arg17: memref<64x1xf32, #tpu.memory_space<vmem>>) attributes {dimension_semantics = [#tpu.dimension_semantics<parallel>, #tpu.dimension_semantics<arbitrary>], iteration_bounds = array<i64: 2, 3>, scalar_prefetch = 0 : i64, scratch_operands = 3 : i64, tpu.core_type = #tpu.core_type<tc>, window_params = [{transform_indices = @transform_0, window_bounds = array<i64: 64, 1>}, {transform_indices = @transform_1, window_bounds = array<i64: 64, 64>}, {transform_indices = @transform_2, window_bounds = array<i64: 4, 64, 64>}, {transform_indices = @transform_3, window_bounds = array<i64: 4, 64, 32>}, {pipeline_mode = #tpu.pipeline_mode<synchronous>, transform_indices = @transform_4, window_bounds = array<i64: 64, 32>}, {pipeline_mode = #tpu.pipeline_mode<synchronous>, transform_indices = @transform_5, window_bounds = array<i64: 1, 32>}, {pipeline_mode = #tpu.pipeline_mode<synchronous>, transform_indices = @transform_6, window_bounds = array<i64: 1, 1>}, {pipeline_mode = #tpu.pipeline_mode<synchronous>, transform_indices = @transform_7, window_bounds = array<i64: 9, 129, 256>}, {pipeline_mode = #tpu.pipeline_mode<synchronous>, transform_indices = @transform_8, window_bounds = array<i64: 1, 256>}, {pipeline_mode = #tpu.pipeline_mode<synchronous>, transform_indices = @transform_9, window_bounds = array<i64: 64, 1>}, {pipeline_mode = #tpu.pipeline_mode<synchronous>, transform_indices = @transform_10, window_bounds = array<i64: 1, 1>}, {transform_indices = @transform_11, window_bounds = array<i64: 64, 9>}, {transform_indices = @transform_12, window_bounds = array<i64: 1, 64, 1>}]} {
    %c0_i32 = arith.constant 0 : i32
    %0 = arith.cmpi eq, %arg1, %c0_i32 : i32
    %1 = arith.extui %0 : i1 to i32
    %c0_i32_0 = arith.constant 0 : i32
    %2 = arith.cmpi ne, %1, %c0_i32_0 : i32
    scf.if %2 {
      %c3_136 = arith.constant 3 : index
      %c0_137 = arith.constant 0 : index
      %c0_138 = arith.constant 0 : index
      %238 = vector.load %arg4[%c3_136, %c0_137, %c0_138] : memref<4x64x64xf32, #tpu.memory_space<vmem>>, vector<1x64x64xf32>
      %239 = vector.shape_cast %238 : vector<1x64x64xf32> to vector<64x64xf32>
      %c0_139 = arith.constant 0 : index
      %c0_140 = arith.constant 0 : index
      %240 = vector.load %arg15[%c0_139, %c0_140] : memref<64x64xf32, #tpu.memory_space<vmem>>, vector<64x64xf32>
      tpu.vector_store %arg15[%c0_139, %c0_140], %239 {strides = array<i32>} : memref<64x64xf32, #tpu.memory_space<vmem>>, vector<64x64xf32>,
      %c0_141 = arith.constant 0 : index
      %c0_142 = arith.constant 0 : index
      %241 = vector.load %arg3[%c0_141, %c0_142] : memref<64x64xf32, #tpu.memory_space<vmem>>, vector<64x64xf32>
      %c0_143 = arith.constant 0 : index
      %c0_144 = arith.constant 0 : index
      %242 = vector.load %arg16[%c0_143, %c0_144] : memref<64x64xf32, #tpu.memory_space<vmem>>, vector<64x64xf32>
      tpu.vector_store %arg16[%c0_143, %c0_144], %241 {strides = array<i32>} : memref<64x64xf32, #tpu.memory_space<vmem>>, vector<64x64xf32>,
      %c0_145 = arith.constant 0 : index
      %c0_146 = arith.constant 0 : index
      %243 = vector.load %arg2[%c0_145, %c0_146] : memref<64x1xf32, #tpu.memory_space<vmem>>, vector<64x1xf32>
      %c0_147 = arith.constant 0 : index
      %c0_148 = arith.constant 0 : index
      %244 = vector.load %arg17[%c0_147, %c0_148] : memref<64x1xf32, #tpu.memory_space<vmem>>, vector<64x1xf32>
      tpu.vector_store %arg17[%c0_147, %c0_148], %243 {strides = array<i32>} : memref<64x1xf32, #tpu.memory_space<vmem>>, vector<64x1xf32>,
    } else {
    }
    %c0 = arith.constant 0 : index
    %c0_1 = arith.constant 0 : index
    %3 = vector.load %arg15[%c0, %c0_1] : memref<64x64xf32, #tpu.memory_space<vmem>>, vector<64x64xf32>
    %c0_2 = arith.constant 0 : index
    %c0_3 = arith.constant 0 : index
    %4 = vector.load %arg6[%c0_2, %c0_3] : memref<64x32xf32, #tpu.memory_space<vmem>>, vector<64x32xf32>
    %cst = arith.constant dense<0.000000e+00> : vector<64x32xf32>
    %5 = tpu.matmul %3, %4, %cst {dimension_numbers = #tpu.dot_dimension_numbers<[1], [0], [0], [1], [0, 0, 1, 1], [], []>} : vector<64x64xf32>, vector<64x32xf32>, vector<64x32xf32> -> vector<64x32xf32>
    %c0_4 = arith.constant 0 : index
    %c0_5 = arith.constant 0 : index
    %c0_6 = arith.constant 0 : index
    %6 = vector.load %arg5[%c0_4, %c0_5, %c0_6] : memref<4x64x32xf32, #tpu.memory_space<vmem>>, vector<1x64x32xf32>
    %7 = vector.shape_cast %6 : vector<1x64x32xf32> to vector<64x32xf32>
    %8 = arith.addf %5, %7 : vector<64x32xf32>
    %9 = math.tanh %8 : vector<64x32xf32>
    %cst_7 = arith.constant dense<0.000000e+00> : vector<32xf32>
    %10 = vector.multi_reduction <add>, %9, %cst_7 [0] : vector<64x32xf32> to vector<32xf32>
    %11 = vector.shape_cast %10 : vector<32xf32> to vector<1x32xf32>
    %cst_8 = arith.constant 1.562500e-02 : f32
    %12 = vector.broadcast %cst_8 : f32 to vector<1x32xf32>
    %13 = arith.mulf %11, %12 : vector<1x32xf32>
    %c0_9 = arith.constant 0 : index
    %c0_10 = arith.constant 0 : index
    %14 = vector.load %arg7[%c0_9, %c0_10] : memref<1x32xf32, #tpu.memory_space<vmem>>, vector<1x32xf32>
    %15 = arith.mulf %13, %14 : vector<1x32xf32>
    %cst_11 = arith.constant dense<0.000000e+00> : vector<1xf32>
    %16 = vector.multi_reduction <add>, %15, %cst_11 [1] : vector<1x32xf32> to vector<1xf32>
    %17 = vector.shape_cast %16 : vector<1xf32> to vector<1x1xf32>
    %c0_12 = arith.constant 0 : index
    %c0_13 = arith.constant 0 : index
    %18 = vector.load %arg8[%c0_12, %c0_13] : memref<1x1xf32, #tpu.memory_space<vmem>>, vector<1x1xf32>
    %19 = arith.addf %17, %18 : vector<1x1xf32>
    %c1 = arith.constant 1 : index
    %c0_14 = arith.constant 0 : index
    %c0_15 = arith.constant 0 : index
    %20 = vector.load %arg5[%c1, %c0_14, %c0_15] : memref<4x64x32xf32, #tpu.memory_space<vmem>>, vector<1x64x32xf32>
    %21 = vector.shape_cast %20 : vector<1x64x32xf32> to vector<64x32xf32>
    %22 = arith.addf %5, %21 : vector<64x32xf32>
    %23 = math.tanh %22 : vector<64x32xf32>
    %cst_16 = arith.constant dense<0.000000e+00> : vector<32xf32>
    %24 = vector.multi_reduction <add>, %23, %cst_16 [0] : vector<64x32xf32> to vector<32xf32>
    %25 = vector.shape_cast %24 : vector<32xf32> to vector<1x32xf32>
    %cst_17 = arith.constant 1.562500e-02 : f32
    %26 = vector.broadcast %cst_17 : f32 to vector<1x32xf32>
    %27 = arith.mulf %25, %26 : vector<1x32xf32>
    %c0_18 = arith.constant 0 : index
    %c0_19 = arith.constant 0 : index
    %28 = vector.load %arg7[%c0_18, %c0_19] : memref<1x32xf32, #tpu.memory_space<vmem>>, vector<1x32xf32>
    %29 = arith.mulf %27, %28 : vector<1x32xf32>
    %cst_20 = arith.constant dense<0.000000e+00> : vector<1xf32>
    %30 = vector.multi_reduction <add>, %29, %cst_20 [1] : vector<1x32xf32> to vector<1xf32>
    %31 = vector.shape_cast %30 : vector<1xf32> to vector<1x1xf32>
    %c0_21 = arith.constant 0 : index
    %c0_22 = arith.constant 0 : index
    %32 = vector.load %arg8[%c0_21, %c0_22] : memref<1x1xf32, #tpu.memory_space<vmem>>, vector<1x1xf32>
    %33 = arith.addf %31, %32 : vector<1x1xf32>
    %c2 = arith.constant 2 : index
    %c0_23 = arith.constant 0 : index
    %c0_24 = arith.constant 0 : index
    %34 = vector.load %arg5[%c2, %c0_23, %c0_24] : memref<4x64x32xf32, #tpu.memory_space<vmem>>, vector<1x64x32xf32>
    %35 = vector.shape_cast %34 : vector<1x64x32xf32> to vector<64x32xf32>
    %36 = arith.addf %5, %35 : vector<64x32xf32>
    %37 = math.tanh %36 : vector<64x32xf32>
    %cst_25 = arith.constant dense<0.000000e+00> : vector<32xf32>
    %38 = vector.multi_reduction <add>, %37, %cst_25 [0] : vector<64x32xf32> to vector<32xf32>
    %39 = vector.shape_cast %38 : vector<32xf32> to vector<1x32xf32>
    %cst_26 = arith.constant 1.562500e-02 : f32
    %40 = vector.broadcast %cst_26 : f32 to vector<1x32xf32>
    %41 = arith.mulf %39, %40 : vector<1x32xf32>
    %c0_27 = arith.constant 0 : index
    %c0_28 = arith.constant 0 : index
    %42 = vector.load %arg7[%c0_27, %c0_28] : memref<1x32xf32, #tpu.memory_space<vmem>>, vector<1x32xf32>
    %43 = arith.mulf %41, %42 : vector<1x32xf32>
    %cst_29 = arith.constant dense<0.000000e+00> : vector<1xf32>
    %44 = vector.multi_reduction <add>, %43, %cst_29 [1] : vector<1x32xf32> to vector<1xf32>
    %45 = vector.shape_cast %44 : vector<1xf32> to vector<1x1xf32>
    %c0_30 = arith.constant 0 : index
    %c0_31 = arith.constant 0 : index
    %46 = vector.load %arg8[%c0_30, %c0_31] : memref<1x1xf32, #tpu.memory_space<vmem>>, vector<1x1xf32>
    %47 = arith.addf %45, %46 : vector<1x1xf32>
    %c3 = arith.constant 3 : index
    %c0_32 = arith.constant 0 : index
    %c0_33 = arith.constant 0 : index
    %48 = vector.load %arg5[%c3, %c0_32, %c0_33] : memref<4x64x32xf32, #tpu.memory_space<vmem>>, vector<1x64x32xf32>
    %49 = vector.shape_cast %48 : vector<1x64x32xf32> to vector<64x32xf32>
    %50 = arith.addf %5, %49 : vector<64x32xf32>
    %51 = math.tanh %50 : vector<64x32xf32>
    %cst_34 = arith.constant dense<0.000000e+00> : vector<32xf32>
    %52 = vector.multi_reduction <add>, %51, %cst_34 [0] : vector<64x32xf32> to vector<32xf32>
    %53 = vector.shape_cast %52 : vector<32xf32> to vector<1x32xf32>
    %cst_35 = arith.constant 1.562500e-02 : f32
    %54 = vector.broadcast %cst_35 : f32 to vector<1x32xf32>
    %55 = arith.mulf %53, %54 : vector<1x32xf32>
    %c0_36 = arith.constant 0 : index
    %c0_37 = arith.constant 0 : index
    %56 = vector.load %arg7[%c0_36, %c0_37] : memref<1x32xf32, #tpu.memory_space<vmem>>, vector<1x32xf32>
    %57 = arith.mulf %55, %56 : vector<1x32xf32>
    %cst_38 = arith.constant dense<0.000000e+00> : vector<1xf32>
    %58 = vector.multi_reduction <add>, %57, %cst_38 [1] : vector<1x32xf32> to vector<1xf32>
    %59 = vector.shape_cast %58 : vector<1xf32> to vector<1x1xf32>
    %c0_39 = arith.constant 0 : index
    %c0_40 = arith.constant 0 : index
    %60 = vector.load %arg8[%c0_39, %c0_40] : memref<1x1xf32, #tpu.memory_space<vmem>>, vector<1x1xf32>
    %61 = arith.addf %59, %60 : vector<1x1xf32>
    %62 = tpu.concatenate %19, %33, %47, %61 in 1 : vector<1x1xf32>, vector<1x1xf32>, vector<1x1xf32>, vector<1x1xf32> -> vector<1x4xf32>
    %cst_41 = arith.constant dense<0xFF800000> : vector<1xf32>
    %63 = vector.multi_reduction <maximumf>, %62, %cst_41 [1] : vector<1x4xf32> to vector<1xf32>
    %64 = vector.shape_cast %63 : vector<1xf32> to vector<1x1xf32>
    %65 = vector.broadcast %64 : vector<1x1xf32> to vector<1x4xf32>
    %66 = arith.subf %62, %65 : vector<1x4xf32>
    %67 = math.exp %66 : vector<1x4xf32>
    %cst_42 = arith.constant dense<0.000000e+00> : vector<1xf32>
    %68 = vector.multi_reduction <add>, %67, %cst_42 [1] : vector<1x4xf32> to vector<1xf32>
    %69 = vector.shape_cast %68 : vector<1xf32> to vector<1x1xf32>
    %70 = vector.broadcast %69 : vector<1x1xf32> to vector<1x4xf32>
    %71 = arith.divf %67, %70 : vector<1x4xf32>
    %cst_43 = arith.constant 0.000000e+00 : f32
    %72 = vector.broadcast %cst_43 : f32 to vector<64x64xf32>
    %73 = vector.extract_strided_slice %71 {offsets = [0, 0], sizes = [1, 1], strides = [1, 1]} : vector<1x4xf32> to vector<1x1xf32>
    %c0_44 = arith.constant 0 : index
    %c0_45 = arith.constant 0 : index
    %c0_46 = arith.constant 0 : index
    %74 = vector.load %arg4[%c0_44, %c0_45, %c0_46] : memref<4x64x64xf32, #tpu.memory_space<vmem>>, vector<1x64x64xf32>
    %75 = vector.shape_cast %74 : vector<1x64x64xf32> to vector<64x64xf32>
    %76 = vector.broadcast %73 : vector<1x1xf32> to vector<64x64xf32>
    %77 = arith.mulf %75, %76 : vector<64x64xf32>
    %78 = arith.addf %72, %77 : vector<64x64xf32>
    %79 = vector.extract_strided_slice %71 {offsets = [0, 1], sizes = [1, 1], strides = [1, 1]} : vector<1x4xf32> to vector<1x1xf32>
    %c1_47 = arith.constant 1 : index
    %c0_48 = arith.constant 0 : index
    %c0_49 = arith.constant 0 : index
    %80 = vector.load %arg4[%c1_47, %c0_48, %c0_49] : memref<4x64x64xf32, #tpu.memory_space<vmem>>, vector<1x64x64xf32>
    %81 = vector.shape_cast %80 : vector<1x64x64xf32> to vector<64x64xf32>
    %82 = vector.broadcast %79 : vector<1x1xf32> to vector<64x64xf32>
    %83 = arith.mulf %81, %82 : vector<64x64xf32>
    %84 = arith.addf %78, %83 : vector<64x64xf32>
    %85 = vector.extract_strided_slice %71 {offsets = [0, 2], sizes = [1, 1], strides = [1, 1]} : vector<1x4xf32> to vector<1x1xf32>
    %c2_50 = arith.constant 2 : index
    %c0_51 = arith.constant 0 : index
    %c0_52 = arith.constant 0 : index
    %86 = vector.load %arg4[%c2_50, %c0_51, %c0_52] : memref<4x64x64xf32, #tpu.memory_space<vmem>>, vector<1x64x64xf32>
    %87 = vector.shape_cast %86 : vector<1x64x64xf32> to vector<64x64xf32>
    %88 = vector.broadcast %85 : vector<1x1xf32> to vector<64x64xf32>
    %89 = arith.mulf %87, %88 : vector<64x64xf32>
    %90 = arith.addf %84, %89 : vector<64x64xf32>
    %91 = vector.extract_strided_slice %71 {offsets = [0, 3], sizes = [1, 1], strides = [1, 1]} : vector<1x4xf32> to vector<1x1xf32>
    %c3_53 = arith.constant 3 : index
    %c0_54 = arith.constant 0 : index
    %c0_55 = arith.constant 0 : index
    %92 = vector.load %arg4[%c3_53, %c0_54, %c0_55] : memref<4x64x64xf32, #tpu.memory_space<vmem>>, vector<1x64x64xf32>
    %93 = vector.shape_cast %92 : vector<1x64x64xf32> to vector<64x64xf32>
    %94 = vector.broadcast %91 : vector<1x1xf32> to vector<64x64xf32>
    %95 = arith.mulf %93, %94 : vector<64x64xf32>
    %96 = arith.addf %90, %95 : vector<64x64xf32>
    %c0_56 = arith.constant 0 : index
    %c0_57 = arith.constant 0 : index
    %97 = vector.load %arg17[%c0_56, %c0_57] : memref<64x1xf32, #tpu.memory_space<vmem>>, vector<64x1xf32>
    %98 = tpu.concatenate %97, %96, %3 in 1 : vector<64x1xf32>, vector<64x64xf32>, vector<64x64xf32> -> vector<64x129xf32>
    %cst_58 = arith.constant 0.000000e+00 : f32
    %99 = vector.broadcast %cst_58 : f32 to vector<64x256xf32>
    %cst_59 = arith.constant 0.000000e+00 : f32
    %100 = vector.broadcast %cst_59 : f32 to vector<9x129xf32>
    %101 = vector.extract_strided_slice %98 {offsets = [0, 0], sizes = [55, 129], strides = [1, 1]} : vector<64x129xf32> to vector<55x129xf32>
    %102 = tpu.concatenate %100, %101 in 0 : vector<9x129xf32>, vector<55x129xf32> -> vector<64x129xf32>
    %c0_60 = arith.constant 0 : index
    %c0_61 = arith.constant 0 : index
    %103 = vector.load %arg13[%c0_60, %c0_61] : memref<64x9xf32, #tpu.memory_space<vmem>>, vector<64x1xf32>
    %104 = vector.broadcast %103 : vector<64x1xf32> to vector<64x129xf32>
    %105 = arith.mulf %102, %104 : vector<64x129xf32>
    %106 = arith.truncf %105 : vector<64x129xf32> to vector<64x129xbf16>
    %c0_62 = arith.constant 0 : index
    %c0_63 = arith.constant 0 : index
    %c0_64 = arith.constant 0 : index
    %107 = vector.load %arg9[%c0_62, %c0_63, %c0_64] : memref<9x129x256xbf16, #tpu.memory_space<vmem>>, vector<1x129x256xbf16>
    %108 = vector.shape_cast %107 : vector<1x129x256xbf16> to vector<129x256xbf16>
    %cst_65 = arith.constant dense<0.000000e+00> : vector<64x256xf32>
    %109 = tpu.matmul %106, %108, %cst_65 {dimension_numbers = #tpu.dot_dimension_numbers<[1], [0], [0], [1], [0, 0, 1, 1], [], []>} : vector<64x129xbf16>, vector<129x256xbf16>, vector<64x256xf32> -> vector<64x256xf32>
    %110 = arith.addf %99, %109 : vector<64x256xf32>
    %cst_66 = arith.constant 0.000000e+00 : f32
    %111 = vector.broadcast %cst_66 : f32 to vector<8x129xf32>
    %112 = vector.extract_strided_slice %98 {offsets = [0, 0], sizes = [56, 129], strides = [1, 1]} : vector<64x129xf32> to vector<56x129xf32>
    %113 = tpu.concatenate %111, %112 in 0 : vector<8x129xf32>, vector<56x129xf32> -> vector<64x129xf32>
    %c0_67 = arith.constant 0 : index
    %c1_68 = arith.constant 1 : index
    %114 = vector.load %arg13[%c0_67, %c1_68] : memref<64x9xf32, #tpu.memory_space<vmem>>, vector<64x1xf32>
    %115 = vector.broadcast %114 : vector<64x1xf32> to vector<64x129xf32>
    %116 = arith.mulf %113, %115 : vector<64x129xf32>
    %117 = arith.truncf %116 : vector<64x129xf32> to vector<64x129xbf16>
    %c1_69 = arith.constant 1 : index
    %c0_70 = arith.constant 0 : index
    %c0_71 = arith.constant 0 : index
    %118 = vector.load %arg9[%c1_69, %c0_70, %c0_71] : memref<9x129x256xbf16, #tpu.memory_space<vmem>>, vector<1x129x256xbf16>
    %119 = vector.shape_cast %118 : vector<1x129x256xbf16> to vector<129x256xbf16>
    %cst_72 = arith.constant dense<0.000000e+00> : vector<64x256xf32>
    %120 = tpu.matmul %117, %119, %cst_72 {dimension_numbers = #tpu.dot_dimension_numbers<[1], [0], [0], [1], [0, 0, 1, 1], [], []>} : vector<64x129xbf16>, vector<129x256xbf16>, vector<64x256xf32> -> vector<64x256xf32>
    %121 = arith.addf %110, %120 : vector<64x256xf32>
    %cst_73 = arith.constant 0.000000e+00 : f32
    %122 = vector.broadcast %cst_73 : f32 to vector<7x129xf32>
    %123 = vector.extract_strided_slice %98 {offsets = [0, 0], sizes = [57, 129], strides = [1, 1]} : vector<64x129xf32> to vector<57x129xf32>
    %124 = tpu.concatenate %122, %123 in 0 : vector<7x129xf32>, vector<57x129xf32> -> vector<64x129xf32>
    %c0_74 = arith.constant 0 : index
    %c2_75 = arith.constant 2 : index
    %125 = vector.load %arg13[%c0_74, %c2_75] : memref<64x9xf32, #tpu.memory_space<vmem>>, vector<64x1xf32>
    %126 = vector.broadcast %125 : vector<64x1xf32> to vector<64x129xf32>
    %127 = arith.mulf %124, %126 : vector<64x129xf32>
    %128 = arith.truncf %127 : vector<64x129xf32> to vector<64x129xbf16>
    %c2_76 = arith.constant 2 : index
    %c0_77 = arith.constant 0 : index
    %c0_78 = arith.constant 0 : index
    %129 = vector.load %arg9[%c2_76, %c0_77, %c0_78] : memref<9x129x256xbf16, #tpu.memory_space<vmem>>, vector<1x129x256xbf16>
    %130 = vector.shape_cast %129 : vector<1x129x256xbf16> to vector<129x256xbf16>
    %cst_79 = arith.constant dense<0.000000e+00> : vector<64x256xf32>
    %131 = tpu.matmul %128, %130, %cst_79 {dimension_numbers = #tpu.dot_dimension_numbers<[1], [0], [0], [1], [0, 0, 1, 1], [], []>} : vector<64x129xbf16>, vector<129x256xbf16>, vector<64x256xf32> -> vector<64x256xf32>
    %132 = arith.addf %121, %131 : vector<64x256xf32>
    %cst_80 = arith.constant 0.000000e+00 : f32
    %133 = vector.broadcast %cst_80 : f32 to vector<1x129xf32>
    %134 = vector.extract_strided_slice %98 {offsets = [0, 0], sizes = [63, 129], strides = [1, 1]} : vector<64x129xf32> to vector<63x129xf32>
    %135 = tpu.concatenate %133, %134 in 0 : vector<1x129xf32>, vector<63x129xf32> -> vector<64x129xf32>
    %c0_81 = arith.constant 0 : index
    %c3_82 = arith.constant 3 : index
    %136 = vector.load %arg13[%c0_81, %c3_82] : memref<64x9xf32, #tpu.memory_space<vmem>>, vector<64x1xf32>
    %137 = vector.broadcast %136 : vector<64x1xf32> to vector<64x129xf32>
    %138 = arith.mulf %135, %137 : vector<64x129xf32>
    %139 = arith.truncf %138 : vector<64x129xf32> to vector<64x129xbf16>
    %c3_83 = arith.constant 3 : index
    %c0_84 = arith.constant 0 : index
    %c0_85 = arith.constant 0 : index
    %140 = vector.load %arg9[%c3_83, %c0_84, %c0_85] : memref<9x129x256xbf16, #tpu.memory_space<vmem>>, vector<1x129x256xbf16>
    %141 = vector.shape_cast %140 : vector<1x129x256xbf16> to vector<129x256xbf16>
    %cst_86 = arith.constant dense<0.000000e+00> : vector<64x256xf32>
    %142 = tpu.matmul %139, %141, %cst_86 {dimension_numbers = #tpu.dot_dimension_numbers<[1], [0], [0], [1], [0, 0, 1, 1], [], []>} : vector<64x129xbf16>, vector<129x256xbf16>, vector<64x256xf32> -> vector<64x256xf32>
    %143 = arith.addf %132, %142 : vector<64x256xf32>
    %144 = arith.truncf %98 : vector<64x129xf32> to vector<64x129xbf16>
    %c4 = arith.constant 4 : index
    %c0_87 = arith.constant 0 : index
    %c0_88 = arith.constant 0 : index
    %145 = vector.load %arg9[%c4, %c0_87, %c0_88] : memref<9x129x256xbf16, #tpu.memory_space<vmem>>, vector<1x129x256xbf16>
    %146 = vector.shape_cast %145 : vector<1x129x256xbf16> to vector<129x256xbf16>
    %cst_89 = arith.constant dense<0.000000e+00> : vector<64x256xf32>
    %147 = tpu.matmul %144, %146, %cst_89 {dimension_numbers = #tpu.dot_dimension_numbers<[1], [0], [0], [1], [0, 0, 1, 1], [], []>} : vector<64x129xbf16>, vector<129x256xbf16>, vector<64x256xf32> -> vector<64x256xf32>
    %148 = arith.addf %143, %147 : vector<64x256xf32>
    %cst_90 = arith.constant 0.000000e+00 : f32
    %149 = vector.broadcast %cst_90 : f32 to vector<1x129xf32>
    %150 = vector.extract_strided_slice %98 {offsets = [1, 0], sizes = [63, 129], strides = [1, 1]} : vector<64x129xf32> to vector<63x129xf32>
    %151 = tpu.concatenate %150, %149 in 0 : vector<63x129xf32>, vector<1x129xf32> -> vector<64x129xf32>
    %c0_91 = arith.constant 0 : index
    %c5 = arith.constant 5 : index
    %152 = vector.load %arg13[%c0_91, %c5] : memref<64x9xf32, #tpu.memory_space<vmem>>, vector<64x1xf32>
    %153 = vector.broadcast %152 : vector<64x1xf32> to vector<64x129xf32>
    %154 = arith.mulf %151, %153 : vector<64x129xf32>
    %155 = arith.truncf %154 : vector<64x129xf32> to vector<64x129xbf16>
    %c5_92 = arith.constant 5 : index
    %c0_93 = arith.constant 0 : index
    %c0_94 = arith.constant 0 : index
    %156 = vector.load %arg9[%c5_92, %c0_93, %c0_94] : memref<9x129x256xbf16, #tpu.memory_space<vmem>>, vector<1x129x256xbf16>
    %157 = vector.shape_cast %156 : vector<1x129x256xbf16> to vector<129x256xbf16>
    %cst_95 = arith.constant dense<0.000000e+00> : vector<64x256xf32>
    %158 = tpu.matmul %155, %157, %cst_95 {dimension_numbers = #tpu.dot_dimension_numbers<[1], [0], [0], [1], [0, 0, 1, 1], [], []>} : vector<64x129xbf16>, vector<129x256xbf16>, vector<64x256xf32> -> vector<64x256xf32>
    %159 = arith.addf %148, %158 : vector<64x256xf32>
    %cst_96 = arith.constant 0.000000e+00 : f32
    %160 = vector.broadcast %cst_96 : f32 to vector<7x129xf32>
    %161 = vector.extract_strided_slice %98 {offsets = [7, 0], sizes = [57, 129], strides = [1, 1]} : vector<64x129xf32> to vector<57x129xf32>
    %162 = tpu.concatenate %161, %160 in 0 : vector<57x129xf32>, vector<7x129xf32> -> vector<64x129xf32>
    %c0_97 = arith.constant 0 : index
    %c6 = arith.constant 6 : index
    %163 = vector.load %arg13[%c0_97, %c6] : memref<64x9xf32, #tpu.memory_space<vmem>>, vector<64x1xf32>
    %164 = vector.broadcast %163 : vector<64x1xf32> to vector<64x129xf32>
    %165 = arith.mulf %162, %164 : vector<64x129xf32>
    %166 = arith.truncf %165 : vector<64x129xf32> to vector<64x129xbf16>
    %c6_98 = arith.constant 6 : index
    %c0_99 = arith.constant 0 : index
    %c0_100 = arith.constant 0 : index
    %167 = vector.load %arg9[%c6_98, %c0_99, %c0_100] : memref<9x129x256xbf16, #tpu.memory_space<vmem>>, vector<1x129x256xbf16>
    %168 = vector.shape_cast %167 : vector<1x129x256xbf16> to vector<129x256xbf16>
    %cst_101 = arith.constant dense<0.000000e+00> : vector<64x256xf32>
    %169 = tpu.matmul %166, %168, %cst_101 {dimension_numbers = #tpu.dot_dimension_numbers<[1], [0], [0], [1], [0, 0, 1, 1], [], []>} : vector<64x129xbf16>, vector<129x256xbf16>, vector<64x256xf32> -> vector<64x256xf32>
    %170 = arith.addf %159, %169 : vector<64x256xf32>
    %cst_102 = arith.constant 0.000000e+00 : f32
    %171 = vector.broadcast %cst_102 : f32 to vector<8x129xf32>
    %172 = vector.extract_strided_slice %98 {offsets = [8, 0], sizes = [56, 129], strides = [1, 1]} : vector<64x129xf32> to vector<56x129xf32>
    %173 = tpu.concatenate %172, %171 in 0 : vector<56x129xf32>, vector<8x129xf32> -> vector<64x129xf32>
    %c0_103 = arith.constant 0 : index
    %c7 = arith.constant 7 : index
    %174 = vector.load %arg13[%c0_103, %c7] : memref<64x9xf32, #tpu.memory_space<vmem>>, vector<64x1xf32>
    %175 = vector.broadcast %174 : vector<64x1xf32> to vector<64x129xf32>
    %176 = arith.mulf %173, %175 : vector<64x129xf32>
    %177 = arith.truncf %176 : vector<64x129xf32> to vector<64x129xbf16>
    %c7_104 = arith.constant 7 : index
    %c0_105 = arith.constant 0 : index
    %c0_106 = arith.constant 0 : index
    %178 = vector.load %arg9[%c7_104, %c0_105, %c0_106] : memref<9x129x256xbf16, #tpu.memory_space<vmem>>, vector<1x129x256xbf16>
    %179 = vector.shape_cast %178 : vector<1x129x256xbf16> to vector<129x256xbf16>
    %cst_107 = arith.constant dense<0.000000e+00> : vector<64x256xf32>
    %180 = tpu.matmul %177, %179, %cst_107 {dimension_numbers = #tpu.dot_dimension_numbers<[1], [0], [0], [1], [0, 0, 1, 1], [], []>} : vector<64x129xbf16>, vector<129x256xbf16>, vector<64x256xf32> -> vector<64x256xf32>
    %181 = arith.addf %170, %180 : vector<64x256xf32>
    %cst_108 = arith.constant 0.000000e+00 : f32
    %182 = vector.broadcast %cst_108 : f32 to vector<9x129xf32>
    %183 = vector.extract_strided_slice %98 {offsets = [9, 0], sizes = [55, 129], strides = [1, 1]} : vector<64x129xf32> to vector<55x129xf32>
    %184 = tpu.concatenate %183, %182 in 0 : vector<55x129xf32>, vector<9x129xf32> -> vector<64x129xf32>
    %c0_109 = arith.constant 0 : index
    %c8 = arith.constant 8 : index
    %185 = vector.load %arg13[%c0_109, %c8] : memref<64x9xf32, #tpu.memory_space<vmem>>, vector<64x1xf32>
    %186 = vector.broadcast %185 : vector<64x1xf32> to vector<64x129xf32>
    %187 = arith.mulf %184, %186 : vector<64x129xf32>
    %188 = arith.truncf %187 : vector<64x129xf32> to vector<64x129xbf16>
    %c8_110 = arith.constant 8 : index
    %c0_111 = arith.constant 0 : index
    %c0_112 = arith.constant 0 : index
    %189 = vector.load %arg9[%c8_110, %c0_111, %c0_112] : memref<9x129x256xbf16, #tpu.memory_space<vmem>>, vector<1x129x256xbf16>
    %190 = vector.shape_cast %189 : vector<1x129x256xbf16> to vector<129x256xbf16>
    %cst_113 = arith.constant dense<0.000000e+00> : vector<64x256xf32>
    %191 = tpu.matmul %188, %190, %cst_113 {dimension_numbers = #tpu.dot_dimension_numbers<[1], [0], [0], [1], [0, 0, 1, 1], [], []>} : vector<64x129xbf16>, vector<129x256xbf16>, vector<64x256xf32> -> vector<64x256xf32>
    %192 = arith.addf %181, %191 : vector<64x256xf32>
    %c0_114 = arith.constant 0 : index
    %c0_115 = arith.constant 0 : index
    %193 = vector.load %arg10[%c0_114, %c0_115] : memref<1x256xf32, #tpu.memory_space<vmem>>, vector<1x256xf32>
    %194 = vector.broadcast %193 : vector<1x256xf32> to vector<64x256xf32>
    %195 = arith.addf %192, %194 : vector<64x256xf32>
    %c0_116 = arith.constant 0 : index
    %c0_117 = arith.constant 0 : index
    %196 = vector.load %arg16[%c0_116, %c0_117] : memref<64x64xf32, #tpu.memory_space<vmem>>, vector<64x64xf32>
    %197 = vector.extract_strided_slice %195 {offsets = [0, 0], sizes = [64, 64], strides = [1, 1]} : vector<64x256xf32> to vector<64x64xf32>
    %198 = arith.negf %197 : vector<64x64xf32>
    %199 = math.exp %198 : vector<64x64xf32>
    %cst_118 = arith.constant 1.000000e+00 : f32
    %200 = vector.broadcast %cst_118 : f32 to vector<64x64xf32>
    %201 = arith.addf %200, %199 : vector<64x64xf32>
    %202 = arith.divf %200, %201 : vector<64x64xf32>
    %203 = vector.extract_strided_slice %195 {offsets = [0, 64], sizes = [64, 64], strides = [1, 1]} : vector<64x256xf32> to vector<64x64xf32>
    %204 = arith.negf %203 : vector<64x64xf32>
    %205 = math.exp %204 : vector<64x64xf32>
    %cst_119 = arith.constant 1.000000e+00 : f32
    %206 = vector.broadcast %cst_119 : f32 to vector<64x64xf32>
    %207 = arith.addf %206, %205 : vector<64x64xf32>
    %208 = arith.divf %206, %207 : vector<64x64xf32>
    %209 = vector.extract_strided_slice %195 {offsets = [0, 128], sizes = [64, 64], strides = [1, 1]} : vector<64x256xf32> to vector<64x64xf32>
    %210 = arith.negf %209 : vector<64x64xf32>
    %211 = math.exp %210 : vector<64x64xf32>
    %cst_120 = arith.constant 1.000000e+00 : f32
    %212 = vector.broadcast %cst_120 : f32 to vector<64x64xf32>
    %213 = arith.addf %212, %211 : vector<64x64xf32>
    %214 = arith.divf %212, %213 : vector<64x64xf32>
    %215 = vector.extract_strided_slice %195 {offsets = [0, 192], sizes = [64, 64], strides = [1, 1]} : vector<64x256xf32> to vector<64x64xf32>
    %216 = math.tanh %215 : vector<64x64xf32>
    %217 = arith.mulf %208, %196 : vector<64x64xf32>
    %218 = arith.mulf %202, %216 : vector<64x64xf32>
    %219 = arith.addf %217, %218 : vector<64x64xf32>
    %220 = math.tanh %219 : vector<64x64xf32>
    %221 = arith.mulf %214, %220 : vector<64x64xf32>
    %c0_121 = arith.constant 0 : index
    %c0_122 = arith.constant 0 : index
    %222 = vector.load %arg15[%c0_121, %c0_122] : memref<64x64xf32, #tpu.memory_space<vmem>>, vector<64x64xf32>
    tpu.vector_store %arg15[%c0_121, %c0_122], %221 {strides = array<i32>} : memref<64x64xf32, #tpu.memory_space<vmem>>, vector<64x64xf32>,
    %c0_123 = arith.constant 0 : index
    %c0_124 = arith.constant 0 : index
    %223 = vector.load %arg16[%c0_123, %c0_124] : memref<64x64xf32, #tpu.memory_space<vmem>>, vector<64x64xf32>
    tpu.vector_store %arg16[%c0_123, %c0_124], %219 {strides = array<i32>} : memref<64x64xf32, #tpu.memory_space<vmem>>, vector<64x64xf32>,
    %c0_125 = arith.constant 0 : index
    %c0_126 = arith.constant 0 : index
    %224 = vector.load %arg11[%c0_125, %c0_126] : memref<64x1xf32, #tpu.memory_space<vmem>>, vector<64x1xf32>
    %cst_127 = arith.constant dense<0.000000e+00> : vector<64x1xf32>
    %225 = tpu.matmul %221, %224, %cst_127 {dimension_numbers = #tpu.dot_dimension_numbers<[1], [0], [0], [1], [0, 0, 1, 1], [], []>} : vector<64x64xf32>, vector<64x1xf32>, vector<64x1xf32> -> vector<64x1xf32>
    %c0_128 = arith.constant 0 : index
    %c0_129 = arith.constant 0 : index
    %226 = vector.load %arg12[%c0_128, %c0_129] : memref<1x1xf32, #tpu.memory_space<vmem>>, vector<1x1xf32>
    %227 = vector.broadcast %226 : vector<1x1xf32> to vector<64x1xf32>
    %228 = arith.addf %225, %227 : vector<64x1xf32>
    %229 = arith.negf %228 : vector<64x1xf32>
    %230 = math.exp %229 : vector<64x1xf32>
    %cst_130 = arith.constant 1.000000e+00 : f32
    %231 = vector.broadcast %cst_130 : f32 to vector<64x1xf32>
    %232 = arith.addf %231, %230 : vector<64x1xf32>
    %233 = arith.divf %231, %232 : vector<64x1xf32>
    %c0_131 = arith.constant 0 : index
    %c0_132 = arith.constant 0 : index
    %234 = vector.load %arg17[%c0_131, %c0_132] : memref<64x1xf32, #tpu.memory_space<vmem>>, vector<64x1xf32>
    tpu.vector_store %arg17[%c0_131, %c0_132], %233 {strides = array<i32>} : memref<64x1xf32, #tpu.memory_space<vmem>>, vector<64x1xf32>,
    %c0_133 = arith.constant 0 : index
    %c0_134 = arith.constant 0 : index
    %c0_135 = arith.constant 0 : index
    %235 = vector.load %arg14[%c0_133, %c0_134, %c0_135] : memref<1x64x1xf32, #tpu.memory_space<vmem>>, vector<1x64x1xf32>
    %236 = vector.shape_cast %235 : vector<1x64x1xf32> to vector<64x1xf32>
    %237 = vector.shape_cast %233 : vector<64x1xf32> to vector<1x64x1xf32>
    tpu.vector_store %arg14[%c0_133, %c0_134, %c0_135], %237 {strides = array<i32>} : memref<1x64x1xf32, #tpu.memory_space<vmem>>, vector<1x64x1xf32>,
    return
  }
  func.func @transform_0(%arg0: i32, %arg1: i32) -> (i32, i32) {
    %c0_i32 = arith.constant 0 : i32
    %c0_i32_0 = arith.constant 0 : i32
    return %arg0, %c0_i32 : i32, i32
  }
  func.func @transform_1(%arg0: i32, %arg1: i32) -> (i32, i32) {
    %c0_i32 = arith.constant 0 : i32
    %c0_i32_0 = arith.constant 0 : i32
    return %arg0, %c0_i32 : i32, i32
  }
  func.func @transform_2(%arg0: i32, %arg1: i32) -> (i32, i32, i32) {
    %c0_i32 = arith.constant 0 : i32
    %c0_i32_0 = arith.constant 0 : i32
    %c0_i32_1 = arith.constant 0 : i32
    return %c0_i32, %arg0, %c0_i32_0 : i32, i32, i32
  }
  func.func @transform_3(%arg0: i32, %arg1: i32) -> (i32, i32, i32) {
    %c0_i32 = arith.constant 0 : i32
    %c0_i32_0 = arith.constant 0 : i32
    %c0_i32_1 = arith.constant 0 : i32
    return %c0_i32, %arg0, %c0_i32_0 : i32, i32, i32
  }
  func.func @transform_4(%arg0: i32, %arg1: i32) -> (i32, i32) {
    %c0_i32 = arith.constant 0 : i32
    %c0_i32_0 = arith.constant 0 : i32
    %c0_i32_1 = arith.constant 0 : i32
    return %c0_i32, %c0_i32_0 : i32, i32
  }
  func.func @transform_5(%arg0: i32, %arg1: i32) -> (i32, i32) {
    %c0_i32 = arith.constant 0 : i32
    %c0_i32_0 = arith.constant 0 : i32
    %c0_i32_1 = arith.constant 0 : i32
    return %c0_i32, %c0_i32_0 : i32, i32
  }
  func.func @transform_6(%arg0: i32, %arg1: i32) -> (i32, i32) {
    %c0_i32 = arith.constant 0 : i32
    %c0_i32_0 = arith.constant 0 : i32
    %c0_i32_1 = arith.constant 0 : i32
    return %c0_i32, %c0_i32_0 : i32, i32
  }
  func.func @transform_7(%arg0: i32, %arg1: i32) -> (i32, i32, i32) {
    %c0_i32 = arith.constant 0 : i32
    %c0_i32_0 = arith.constant 0 : i32
    %c0_i32_1 = arith.constant 0 : i32
    %c0_i32_2 = arith.constant 0 : i32
    return %c0_i32, %c0_i32_0, %c0_i32_1 : i32, i32, i32
  }
  func.func @transform_8(%arg0: i32, %arg1: i32) -> (i32, i32) {
    %c0_i32 = arith.constant 0 : i32
    %c0_i32_0 = arith.constant 0 : i32
    %c0_i32_1 = arith.constant 0 : i32
    return %c0_i32, %c0_i32_0 : i32, i32
  }
  func.func @transform_9(%arg0: i32, %arg1: i32) -> (i32, i32) {
    %c0_i32 = arith.constant 0 : i32
    %c0_i32_0 = arith.constant 0 : i32
    %c0_i32_1 = arith.constant 0 : i32
    return %c0_i32, %c0_i32_0 : i32, i32
  }
  func.func @transform_10(%arg0: i32, %arg1: i32) -> (i32, i32) {
    %c0_i32 = arith.constant 0 : i32
    %c0_i32_0 = arith.constant 0 : i32
    %c0_i32_1 = arith.constant 0 : i32
    return %c0_i32, %c0_i32_0 : i32, i32
  }
  func.func @transform_11(%arg0: i32, %arg1: i32) -> (i32, i32) {
    %c0_i32 = arith.constant 0 : i32
    %c0_i32_0 = arith.constant 0 : i32
    return %arg0, %c0_i32 : i32, i32
  }
  func.func @transform_12(%arg0: i32, %arg1: i32) -> (i32, i32, i32) {
    %c0_i32 = arith.constant 0 : i32
    %c0_i32_0 = arith.constant 0 : i32
    return %arg1, %arg0, %c0_i32 : i32, i32, i32
  }
}

</mosaic_0001>

<llo_original>
// kernel: forward.2
$region0: #{forward.2}
  #allocation0 [shape = 'u32[]', space=smem, size = 0x4, offset = 0x4, fixed_abs, tag = 'smem constant byte address 0x4 - core index']
  #allocation1 [shape = 'u32[144,128]{1,0:T(1,128)}', space=vmem, size = 0x12000, scoped, tag = 'internal scratch']
  #allocation2 [shape = 'f32[64,64]{1,0:T(8,128)}', space=vmem, size = 0x8000, scoped, tag = 'scratch operand']
  #allocation3 [shape = 'f32[64,64]{1,0:T(8,128)}', space=vmem, size = 0x8000, scoped, tag = 'scratch operand']
  %s0 = inlined_call_operand.vmem [shape: f32[4,128,1], index: 0, kind: input, shape index: {}]
  %s1 = inlined_call_operand.vmem [shape: bf16[9,65,256], index: 1, kind: input, shape index: {}]
  %s2 = inlined_call_operand.vmem [shape: f32[1,256], index: 2, kind: input, shape index: {}]
  %s3 = inlined_call_operand.vmem [shape: f32[64,32], index: 3, kind: input, shape index: {}]
  %s4 = inlined_call_operand.vmem [shape: f32[1,32], index: 4, kind: input, shape index: {}]
  %s5 = inlined_call_operand.vmem [shape: f32[128,9], index: 5, kind: input, shape index: {}]
  %s6 = inlined_call_operand.vmem [shape: f32[4,128,64], index: 6, kind: output, shape index: {0}]
  %s7 = inlined_call_operand.vmem [shape: f32[4,128,32], index: 7, kind: output, shape index: {1}]
  %s8 = inlined_call_operand.vmem [shape: f32[128,64], index: 8, kind: output, shape index: {2}]
  %9 = xla_tuple %s6, %s7, %s8
  %s10 = sld [smem:[#allocation0]]
  $region77: #{forward.2} parent=0
    _
  %s12 = ssub.s32 1, %s10
  %s13 = scalar_select 0, %s12, %s10
  loop: start=0, step=1, limit=10
  $region2: #{forward.2} parent=0 // loop_pre_header
    _
  $region3: #{forward.2} parent=0 // loop_header
    %s15 = sphi 0, %s19
    %p16 = scmp.ge.s32.totalorder %s15, 10
    %s22 = sphi 0, %s34
    %s23 = sphi 0, %s30
    %s24 = sphi 0, %s22
    %s25 = sphi 0, %s23
    %s26 = sphi 0, %s24
    %s27 = sphi 0, %s25
    %s39 = sphi 0, %s41
    %s42 = sphi 0, %s39
    %s43 = sphi 0, %s42
    %s59 = sphi 0, %s43
    %s63 = sphi 0, %s63
    %s65 = sphi 0, %s63
    %s66 = sphi 0, %s65
    %s80 = sphi 0, %s66
    %s84 = sphi 0, %s84
    %s86 = sphi 0, %s84
    %s87 = sphi 0, %s86
    %s101 = sphi 0, %s87
    %s105 = sphi 0, %s105
    %s107 = sphi 0, %s105
    %s108 = sphi 0, %s107
    %s122 = sphi 0, %s108
    %s126 = sphi 0, %s126
    %s128 = sphi 0, %s126
    %s129 = sphi 0, %s128
    %s143 = sphi 0, %s129
    %s149 = sphi 0, %s151
    %s152 = sphi 0, %s149
    %s153 = sphi 0, %s152
    %s169 = sphi 0, %s153
    %s177 = sphi 0, %s179
    %s180 = sphi 0, %s177
    %s181 = sphi 0, %s180
    %s197 = sphi 0, %s181
    %s205 = sphi 0, %s207
    %s208 = sphi 0, %s205
    %s209 = sphi 0, %s208
    %s225 = sphi 0, %s209
    %s231 = sphi 0, %s233
    %s234 = sphi 0, %s231
    %s235 = sphi 0, %s234
    %s251 = sphi 0, %s235
  $region4: #{forward.2} parent=0 // loop_header_branch
    %18 = sbr.rel (%p16) target = $region8
  $region5: #{forward.2} parent=0 // loop_body
    %s20 = ssub.s32 %s15, 1
    %s21 = ssub.s32 %s15, 2
    %s28 = sadd.s32 1, %s23
    %p29 = scmp.ge.s32.totalorder %s28, 4
    %s30 = scalar_select %p29, 0, %s28
    %s31 = sadd.s32 1, %s22
    %s32 = scalar_select %p29, %s31, %s22
    %p33 = scmp.ge.s32.totalorder %s32, 2
    %s34 = scalar_select %p33, 0, %s32
    %s35 = ssub.s32 %s23, %s30
    %s36 = ssub.s32 %s22, %s34
    %s37 = sor.u32 %s35, %s36
    %p38 = scmp.eq.s32.totalorder %s37, 0
    %s40 = sadd.s32 %s39, 1
    %s41 = scalar_select %p38, %s39, %s40
    %p44 = pneg %p38
    %p45 = scmp.eq.s32.totalorder %s15, 7
    %p46 = por %p44, %p45
    %p47 = scmp.ne.s32.totalorder %s39, %s42
    %p48 = scmp.eq.s32.totalorder %s15, 0
    %p49 = por %p47, %p48
    %p50 = scmp.ne.s32.totalorder %s39, %s42
    %p51 = scmp.eq.s32.totalorder %s20, 7
    %p52 = por %p50, %p51
    %p53 = scmp.ne.s32.totalorder %s42, %s43
    %p54 = scmp.eq.s32.totalorder %s20, 0
    %p55 = por %p53, %p54
    %p56 = scmp.ne.s32.totalorder %s42, %s43
    %p57 = scmp.eq.s32.totalorder %s21, 7
    %p58 = por %p56, %p57
    %p60 = scmp.ne.s32.totalorder %s43, %s59
    %p61 = scmp.eq.s32.totalorder %s21, 0
    %p62 = por %p60, %p61
    %s64 = sadd.s32 %s63, 1
    %p67 = scmp.eq.s32.totalorder %s15, 7
    %p68 = scmp.ne.s32.totalorder %s63, %s65
    %p69 = scmp.eq.s32.totalorder %s15, 0
    %p70 = por %p68, %p69
    %p71 = scmp.ne.s32.totalorder %s63, %s65
    %p72 = scmp.eq.s32.totalorder %s20, 7
    %p73 = por %p71, %p72
    %p74 = scmp.ne.s32.totalorder %s65, %s66
    %p75 = scmp.eq.s32.totalorder %s20, 0
    %p76 = por %p74, %p75
    %p77 = scmp.ne.s32.totalorder %s65, %s66
    %p78 = scmp.eq.s32.totalorder %s21, 7
    %p79 = por %p77, %p78
    %p81 = scmp.ne.s32.totalorder %s66, %s80
    %p82 = scmp.eq.s32.totalorder %s21, 0
    %p83 = por %p81, %p82
    %s85 = sadd.s32 %s84, 1
    %p88 = scmp.eq.s32.totalorder %s15, 7
    %p89 = scmp.ne.s32.totalorder %s84, %s86
    %p90 = scmp.eq.s32.totalorder %s15, 0
    %p91 = por %p89, %p90
    %p92 = scmp.ne.s32.totalorder %s84, %s86
    %p93 = scmp.eq.s32.totalorder %s20, 7
    %p94 = por %p92, %p93
    %p95 = scmp.ne.s32.totalorder %s86, %s87
    %p96 = scmp.eq.s32.totalorder %s20, 0
    %p97 = por %p95, %p96
    %p98 = scmp.ne.s32.totalorder %s86, %s87
    %p99 = scmp.eq.s32.totalorder %s21, 7
    %p100 = por %p98, %p99
    %p102 = scmp.ne.s32.totalorder %s87, %s101
    %p103 = scmp.eq.s32.totalorder %s21, 0
    %p104 = por %p102, %p103
    %s106 = sadd.s32 %s105, 1
    %p109 = scmp.eq.s32.totalorder %s15, 7
    %p110 = scmp.ne.s32.totalorder %s105, %s107
    %p111 = scmp.eq.s32.totalorder %s15, 0
    %p112 = por %p110, %p111
    %p113 = scmp.ne.s32.totalorder %s105, %s107
    %p114 = scmp.eq.s32.totalorder %s20, 7
    %p115 = por %p113, %p114
    %p116 = scmp.ne.s32.totalorder %s107, %s108
    %p117 = scmp.eq.s32.totalorder %s20, 0
    %p118 = por %p116, %p117
    %p119 = scmp.ne.s32.totalorder %s107, %s108
    %p120 = scmp.eq.s32.totalorder %s21, 7
    %p121 = por %p119, %p120
    %p123 = scmp.ne.s32.totalorder %s108, %s122
    %p124 = scmp.eq.s32.totalorder %s21, 0
    %p125 = por %p123, %p124
    %s127 = sadd.s32 %s126, 1
    %p130 = scmp.eq.s32.totalorder %s15, 7
    %p131 = scmp.ne.s32.totalorder %s126, %s128
    %p132 = scmp.eq.s32.totalorder %s15, 0
    %p133 = por %p131, %p132
    %p134 = scmp.ne.s32.totalorder %s126, %s128
    %p135 = scmp.eq.s32.totalorder %s20, 7
    %p136 = por %p134, %p135
    %p137 = scmp.ne.s32.totalorder %s128, %s129
    %p138 = scmp.eq.s32.totalorder %s20, 0
    %p139 = por %p137, %p138
    %p140 = scmp.ne.s32.totalorder %s128, %s129
    %p141 = scmp.eq.s32.totalorder %s21, 7
    %p142 = por %p140, %p141
    %p144 = scmp.ne.s32.totalorder %s129, %s143
    %p145 = scmp.eq.s32.totalorder %s21, 0
    %p146 = por %p144, %p145
    %s147 = ssub.s32 %s22, %s34
    %p148 = scmp.eq.s32.totalorder %s147, 0
    %s150 = sadd.s32 %s149, 1
    %s151 = scalar_select %p148, %s149, %s150
    %p154 = pneg %p148
    %p155 = scmp.eq.s32.totalorder %s15, 7
    %p156 = por %p154, %p155
    %p157 = scmp.ne.s32.totalorder %s149, %s152
    %p158 = scmp.eq.s32.totalorder %s15, 0
    %p159 = por %p157, %p158
    %p160 = scmp.ne.s32.totalorder %s149, %s152
    %p161 = scmp.eq.s32.totalorder %s20, 7
    %p162 = por %p160, %p161
    %p163 = scmp.ne.s32.totalorder %s152, %s153
    %p164 = scmp.eq.s32.totalorder %s20, 0
    %p165 = por %p163, %p164
    %p166 = scmp.ne.s32.totalorder %s152, %s153
    %p167 = scmp.eq.s32.totalorder %s21, 7
    %p168 = por %p166, %p167
    %p170 = scmp.ne.s32.totalorder %s153, %s169
    %p171 = scmp.eq.s32.totalorder %s21, 0
    %p172 = por %p170, %p171
    %s173 = ssub.s32 %s23, %s30
    %s174 = ssub.s32 %s22, %s34
    %s175 = sor.u32 %s173, %s174
    %p176 = scmp.eq.s32.totalorder %s175, 0
    %s178 = sadd.s32 %s177, 1
    %s179 = scalar_select %p176, %s177, %s178
    %p182 = pneg %p176
    %p183 = scmp.eq.s32.totalorder %s15, 7
    %p184 = por %p182, %p183
    %p185 = scmp.ne.s32.totalorder %s177, %s180
    %p186 = scmp.eq.s32.totalorder %s15, 0
    %p187 = por %p185, %p186
    %p188 = scmp.ne.s32.totalorder %s177, %s180
    %p189 = scmp.eq.s32.totalorder %s20, 7
    %p190 = por %p188, %p189
    %p191 = scmp.ne.s32.totalorder %s180, %s181
    %p192 = scmp.eq.s32.totalorder %s20, 0
    %p193 = por %p191, %p192
    %p194 = scmp.ne.s32.totalorder %s180, %s181
    %p195 = scmp.eq.s32.totalorder %s21, 7
    %p196 = por %p194, %p195
    %p198 = scmp.ne.s32.totalorder %s181, %s197
    %p199 = scmp.eq.s32.totalorder %s21, 0
    %p200 = por %p198, %p199
    %s201 = ssub.s32 %s23, %s30
    %s202 = ssub.s32 %s22, %s34
    %s203 = sor.u32 %s201, %s202
    %p204 = scmp.eq.s32.totalorder %s203, 0
    %s206 = sadd.s32 %s205, 1
    %s207 = scalar_select %p204, %s205, %s206
    %p210 = pneg %p204
    %p211 = scmp.eq.s32.totalorder %s15, 7
    %p212 = por %p210, %p211
    %p213 = scmp.ne.s32.totalorder %s205, %s208
    %p214 = scmp.eq.s32.totalorder %s15, 0
    %p215 = por %p213, %p214
    %p216 = scmp.ne.s32.totalorder %s205, %s208
    %p217 = scmp.eq.s32.totalorder %s20, 7
    %p218 = por %p216, %p217
    %p219 = scmp.ne.s32.totalorder %s208, %s209
    %p220 = scmp.eq.s32.totalorder %s20, 0
    %p221 = por %p219, %p220
    %p222 = scmp.ne.s32.totalorder %s208, %s209
    %p223 = scmp.eq.s32.totalorder %s21, 7
    %p224 = por %p222, %p223
    %p226 = scmp.ne.s32.totalorder %s209, %s225
    %p227 = scmp.eq.s32.totalorder %s21, 0
    %p228 = por %p226, %p227
    %s229 = ssub.s32 %s22, %s34
    %p230 = scmp.eq.s32.totalorder %s229, 0
    %s232 = sadd.s32 %s231, 1
    %s233 = scalar_select %p230, %s231, %s232
    %p236 = pneg %p230
    %p237 = scmp.eq.s32.totalorder %s15, 7
    %p238 = por %p236, %p237
    %p239 = scmp.ne.s32.totalorder %s231, %s234
    %p240 = scmp.eq.s32.totalorder %s15, 0
    %p241 = por %p239, %p240
    %p242 = scmp.ne.s32.totalorder %s231, %s234
    %p243 = scmp.eq.s32.totalorder %s20, 7
    %p244 = por %p242, %p243
    %p245 = scmp.ne.s32.totalorder %s234, %s235
    %p246 = scmp.eq.s32.totalorder %s20, 0
    %p247 = por %p245, %p246
    %p248 = scmp.ne.s32.totalorder %s234, %s235
    %p249 = scmp.eq.s32.totalorder %s21, 7
    %p250 = por %p248, %p249
    %p252 = scmp.ne.s32.totalorder %s235, %s251
    %p253 = scmp.eq.s32.totalorder %s21, 0
    %p254 = por %p252, %p253
    %p255 = scmp.le.s32.totalorder 1, %s15
    %p256 = scmp.lt.s32.totalorder %s15, 9
    %p257 = pnand %p255, %p256
    %p258 = pneg %p257
    // Predicated region
    $region9: #{forward.2} parent=5 // pred_check
      _
    $region10: #{forward.2} parent=5 // pred_check_branch
      %260 = sbr.rel (%p257) target = $region12
    $region11: #{forward.2} parent=5 // pred_region
      %s261 = ssub.s32 %s15, 1
      // Predicated region
      $region13: #{forward.2} parent=11 // pred_check
        %p262 = pneg %p76
      $region14: #{forward.2} parent=11 // pred_check_branch
        %264 = sbr.rel (%p262) target = $region16
      $region15: #{forward.2} parent=11 // pred_region
        _
      $region16: #{forward.2} parent=11 // pred_fallthru
        _
      // Predicated region
      $region17: #{forward.2} parent=11 // pred_check
        %p265 = pneg %p97
      $region18: #{forward.2} parent=11 // pred_check_branch
        %267 = sbr.rel (%p265) target = $region20
      $region19: #{forward.2} parent=11 // pred_region
        _
      $region20: #{forward.2} parent=11 // pred_fallthru
        _
      // Predicated region
      $region21: #{forward.2} parent=11 // pred_check
        %p268 = pneg %p118
      $region22: #{forward.2} parent=11 // pred_check_branch
        %270 = sbr.rel (%p268) target = $region24
      $region23: #{forward.2} parent=11 // pred_region
        _
      $region24: #{forward.2} parent=11 // pred_fallthru
        _
      // Predicated region
      $region25: #{forward.2} parent=11 // pred_check
        %p271 = pneg %p139
      $region26: #{forward.2} parent=11 // pred_check_branch
        %273 = sbr.rel (%p271) target = $region28
      $region27: #{forward.2} parent=11 // pred_region
        _
      $region28: #{forward.2} parent=11 // pred_fallthru
        _
    $region12: #{forward.2} parent=5 // pred_fallthru
      _
    %p274 = scmp.lt.s32.totalorder %s15, 8
    // Predicated region
    $region29: #{forward.2} parent=5 // pred_check
      %p275 = pneg %p274
    $region30: #{forward.2} parent=5 // pred_check_branch
      %277 = sbr.rel (%p275) target = $region32
    $region31: #{forward.2} parent=5 // pred_region
      // Predicated region
      $region33: #{forward.2} parent=31 // pred_check
        %p278 = pneg %p49
      $region34: #{forward.2} parent=31 // pred_check_branch
        %280 = sbr.rel (%p278) target = $region36
      $region35: #{forward.2} parent=31 // pred_region
        %s281 = smul.u32 8, %s22
        %p282 = scmp.lt.s32.totalorder %s23, 3
        %s283 = scalar_select %p282, %s23, 3
        %p284 = scmp.lt.s32.totalorder %s281, 15
        %s285 = scalar_select %p284, %s281, 15
        %s286 = smul.addr %s283, 16
        %s287 = sadd.s32 %s285, %s286
        %s288 = smul.addr %s287, 8
        %s289 = scalar_lea.vmem %s0, %s288
        %s290 = smul.u32 8, %s22
      $region36: #{forward.2} parent=31 // pred_fallthru
        _
      // Predicated region
      $region37: #{forward.2} parent=31 // pred_check
        %p291 = pneg %p159
      $region38: #{forward.2} parent=31 // pred_check_branch
        %293 = sbr.rel (%p291) target = $region40
      $region39: #{forward.2} parent=31 // pred_region
        %s294 = smul.u32 8, %s22
        %p295 = scmp.lt.s32.totalorder %s294, 15
        %s296 = scalar_select %p295, %s294, 15
        %s297 = smul.addr %s296, 8
        %s298 = scalar_lea.vmem %s5, %s297
        %s299 = smul.u32 8, %s22
      $region40: #{forward.2} parent=31 // pred_fallthru
        _
    $region32: #{forward.2} parent=5 // pred_fallthru
      _
    %p300 = scmp.le.s32.totalorder 1, %s15
    %p301 = scmp.lt.s32.totalorder %s15, 9
    %p302 = pnand %p300, %p301
    %p303 = pneg %p302
    // Predicated region
    $region41: #{forward.2} parent=5 // pred_check
      _
    $region42: #{forward.2} parent=5 // pred_check_branch
      %305 = sbr.rel (%p302) target = $region44
    $region43: #{forward.2} parent=5 // pred_region
      %s306 = ssub.s32 %s15, 1
      %s307 = smul.u32 8, %s24
      %p308 = scmp.lt.s32.totalorder %s25, 3
      %s309 = scalar_select %p308, %s25, 3
      %p310 = scmp.lt.s32.totalorder %s307, 15
      %s311 = scalar_select %p310, %s307, 15
      %s312 = smul.addr %s309, 16
      %s313 = sadd.s32 %s311, %s312
      %s314 = smul.addr %s313, 8
      %s315 = scalar_lea.vmem %s0, %s314
      %p316 = pneg %p55
      %p317 = pneg %p52
      %p318 = pneg %p76
      %p319 = pneg %p73
      %p320 = pneg %p97
      %p321 = pneg %p94
      %p322 = pneg %p118
      %p323 = pneg %p115
      %p324 = pneg %p139
      %p325 = pneg %p136
      %s326 = smul.u32 8, %s24
      %p327 = scmp.lt.s32.totalorder %s326, 15
      %s328 = scalar_select %p327, %s326, 15
      %s329 = smul.addr %s328, 8
      %s330 = scalar_lea.vmem %s5, %s329
      %p331 = pneg %p165
      %p332 = pneg %p162
      %p333 = pneg %p193
      %p334 = pneg %p190
      %s335 = smul.u32 8, %s24
      %p336 = scmp.lt.s32.totalorder %s25, 3
      %s337 = scalar_select %p336, %s25, 3
      %p338 = scmp.lt.s32.totalorder %s335, 15
      %s339 = scalar_select %p338, %s335, 15
      %s340 = smul.addr %s337, 16
      %s341 = sadd.s32 %s339, %s340
      %s342 = smul.addr %s341, 8
      %s343 = scalar_lea.vmem %s6, %s342
      %p344 = pneg %p221
      %p345 = pneg %p218
      %s346 = smul.u32 8, %s24
      %p347 = scmp.lt.s32.totalorder %s25, 3
      %s348 = scalar_select %p347, %s25, 3
      %p349 = scmp.lt.s32.totalorder %s346, 15
      %s350 = scalar_select %p349, %s346, 15
      %s351 = smul.addr %s348, 16
      %s352 = sadd.s32 %s350, %s351
      %s353 = smul.addr %s352, 8
      %s354 = scalar_lea.vmem %s7, %s353
      %p355 = pneg %p247
      %p356 = pneg %p244
      %s357 = smul.u32 8, %s24
      %p358 = scmp.lt.s32.totalorder %s357, 15
      %s359 = scalar_select %p358, %s357, 15
      %s360 = smul.addr %s359, 8
      %s361 = scalar_lea.vmem %s8, %s360
      %s362 = smul.u32 8, %s24
      %p363 = scmp.lt.s32.totalorder %s25, 3
      %s364 = scalar_select %p363, %s25, 3
      %p365 = scmp.lt.s32.totalorder %s362, 15
      %s366 = scalar_select %p365, %s362, 15
      %s367 = smul.addr %s364, 16
      %s368 = sadd.s32 %s366, %s367
      %s369 = smul.addr %s368, 8
      %s370 = scalar_lea.vmem %s0, %s369
      %s371 = smul.u32 8, %s24
      %s372 = smul.u32 8, %s24
      %p373 = scmp.lt.s32.totalorder %s372, 15
      %s374 = scalar_select %p373, %s372, 15
      %s375 = smul.addr %s374, 8
      %s376 = scalar_lea.vmem %s5, %s375
      %s377 = smul.u32 8, %s24
      %s378 = smul.u32 8, %s24
      %p379 = scmp.lt.s32.totalorder %s25, 3
      %s380 = scalar_select %p379, %s25, 3
      %p381 = scmp.lt.s32.totalorder %s378, 15
      %s382 = scalar_select %p381, %s378, 15
      %s383 = smul.addr %s380, 16
      %s384 = sadd.s32 %s382, %s383
      %s385 = smul.addr %s384, 8
      %s386 = scalar_lea.vmem %s6, %s385
      %s387 = smul.u32 8, %s24
      %s388 = smul.u32 8, %s24
      %p389 = scmp.lt.s32.totalorder %s25, 3
      %s390 = scalar_select %p389, %s25, 3
      %p391 = scmp.lt.s32.totalorder %s388, 15
      %s392 = scalar_select %p391, %s388, 15
      %s393 = smul.addr %s390, 16
      %s394 = sadd.s32 %s392, %s393
      %s395 = smul.addr %s394, 8
      %s396 = scalar_lea.vmem %s7, %s395
      %s397 = smul.u32 8, %s24
      %s398 = smul.u32 8, %s24
      %p399 = scmp.lt.s32.totalorder %s398, 15
      %s400 = scalar_select %p399, %s398, 15
      %s401 = smul.addr %s400, 8
      %s402 = scalar_lea.vmem %s8, %s401
      %s403 = smul.u32 8, %s24
      %p405 = scmp.eq.s32.totalorder %s25, 0
      // Predicated region
      $region45: #{forward.2} parent=43 // pred_check
        %p406 = pneg %p405
      $region46: #{forward.2} parent=43 // pred_check_branch
        %408 = sbr.rel (%p406) target = $region48
      $region47: #{forward.2} parent=43 // pred_region
        %vm409 = vcmask 523264
        %410 = vst.msk [vmem:[#allocation2] sm:$0xff] %vm409, 0.0
        %411 = vst.msk [vmem:[#allocation2 + $0x8] sm:$0xff] %vm409, 0.0
        %412 = vst.msk [vmem:[#allocation2 + $0x10] sm:$0xff] %vm409, 0.0
        %413 = vst.msk [vmem:[#allocation2 + $0x18] sm:$0xff] %vm409, 0.0
        %414 = vst.msk [vmem:[#allocation2 + $0x20] sm:$0xff] %vm409, 0.0
        %415 = vst.msk [vmem:[#allocation2 + $0x28] sm:$0xff] %vm409, 0.0
        %416 = vst.msk [vmem:[#allocation2 + $0x30] sm:$0xff] %vm409, 0.0
        %417 = vst.msk [vmem:[#allocation2 + $0x38] sm:$0xff] %vm409, 0.0
        %418 = vst.msk [vmem:[#allocation3] sm:$0xff] %vm409, 0.0
        %419 = vst.msk [vmem:[#allocation3 + $0x8] sm:$0xff] %vm409, 0.0
        %420 = vst.msk [vmem:[#allocation3 + $0x10] sm:$0xff] %vm409, 0.0
        %421 = vst.msk [vmem:[#allocation3 + $0x18] sm:$0xff] %vm409, 0.0
        %422 = vst.msk [vmem:[#allocation3 + $0x20] sm:$0xff] %vm409, 0.0
        %423 = vst.msk [vmem:[#allocation3 + $0x28] sm:$0xff] %vm409, 0.0
        %424 = vst.msk [vmem:[#allocation3 + $0x30] sm:$0xff] %vm409, 0.0
        %425 = vst.msk [vmem:[#allocation3 + $0x38] sm:$0xff] %vm409, 0.0
      $region48: #{forward.2} parent=43 // pred_fallthru
        _
      %v426 = vld [vmem:[%s370] sm:$0xff]
      %v427 = vld [vmem:[%s370 + $0x8] sm:$0xff]
      %v428 = vld [vmem:[%s370 + $0x10] sm:$0xff]
      %v429 = vld [vmem:[%s370 + $0x18] sm:$0xff]
      %v430 = vld [vmem:[%s370 + $0x20] sm:$0xff]
      %v431 = vld [vmem:[%s370 + $0x28] sm:$0xff]
      %v432 = vld [vmem:[%s370 + $0x30] sm:$0xff]
      %v433 = vld [vmem:[%s370 + $0x38] sm:$0xff]
      %v434 = vld [vmem:[#allocation2] sm:$0xff]
      %v435 = vld [vmem:[#allocation2 + $0x8] sm:$0xff]
      %v436 = vld [vmem:[#allocation2 + $0x10] sm:$0xff]
      %v437 = vld [vmem:[#allocation2 + $0x18] sm:$0xff]
      %v438 = vld [vmem:[#allocation2 + $0x20] sm:$0xff]
      %v439 = vld [vmem:[#allocation2 + $0x28] sm:$0xff]
      %v440 = vld [vmem:[#allocation2 + $0x30] sm:$0xff]
      %v441 = vld [vmem:[#allocation2 + $0x38] sm:$0xff]
      %450 = vrot.lane.b32.xlu0 %v434, 1
      %v451 = vpop.permute.xlu0 %450
      %452 = vrot.lane.b32.xlu0 %v435, 1
      %v453 = vpop.permute.xlu0 %452
      %454 = vrot.lane.b32.xlu0 %v436, 1
      %v455 = vpop.permute.xlu0 %454
      %456 = vrot.lane.b32.xlu0 %v437, 1
      %v457 = vpop.permute.xlu0 %456
      %458 = vrot.lane.b32.xlu0 %v438, 1
      %v459 = vpop.permute.xlu0 %458
      %460 = vrot.lane.b32.xlu0 %v439, 1
      %v461 = vpop.permute.xlu0 %460
      %462 = vrot.lane.b32.xlu0 %v440, 1
      %v463 = vpop.permute.xlu0 %462
      %464 = vrot.lane.b32.xlu0 %v441, 1
      %v465 = vpop.permute.xlu0 %464
      %vm474 = vcmask 7168
      %v475 = vsel %vm474, %v426, %v451
      %v476 = vsel %vm474, %v427, %v453
      %v477 = vsel %vm474, %v428, %v455
      %v478 = vsel %vm474, %v429, %v457
      %v479 = vsel %vm474, %v430, %v459
      %v480 = vsel %vm474, %v431, %v461
      %v481 = vsel %vm474, %v432, %v463
      %v482 = vsel %vm474, %v433, %v465
      %vm490 = vcmask 1040384
      %v491 = vrot.slane %v475, 7
      %v492 = vrot.slane %v476, 7
      %v493 = vsel %vm490, %v491, %v492
      %v494 = vrot.slane %v477, 7
      %v495 = vsel %vm490, %v492, %v494
      %v496 = vrot.slane %v478, 7
      %v497 = vsel %vm490, %v494, %v496
      %v498 = vrot.slane %v479, 7
      %v499 = vsel %vm490, %v496, %v498
      %v500 = vrot.slane %v480, 7
      %v501 = vsel %vm490, %v498, %v500
      %v502 = vrot.slane %v481, 7
      %v503 = vsel %vm490, %v500, %v502
      %v511 = vsel %vm490, 0.0, %v491
      %v512 = vld [vmem:[%s376] sm:$0xff]
      %v513 = vld [vmem:[%s376 + $0x8] sm:$0xff]
      %v514 = vld [vmem:[%s376 + $0x10] sm:$0xff]
      %v515 = vld [vmem:[%s376 + $0x18] sm:$0xff]
      %v516 = vld [vmem:[%s376 + $0x20] sm:$0xff]
      %v517 = vld [vmem:[%s376 + $0x28] sm:$0xff]
      %v518 = vld [vmem:[%s376 + $0x30] sm:$0xff]
      %v519 = vld [vmem:[%s376 + $0x38] sm:$0xff]
      %521 = vset.pattern.permute.xlu0 0
      %522 = vperm.xlu0 %521, %v512
      %v523 = vpop.permute.xlu0 %522
      %526 = vset.pattern.permute.xlu0 0
      %527 = vperm.xlu0 %526, %v513
      %v528 = vpop.permute.xlu0 %527
      %531 = vset.pattern.permute.xlu0 0
      %532 = vperm.xlu0 %531, %v514
      %v533 = vpop.permute.xlu0 %532
      %536 = vset.pattern.permute.xlu0 0
      %537 = vperm.xlu0 %536, %v515
      %v538 = vpop.permute.xlu0 %537
      %541 = vset.pattern.permute.xlu0 0
      %542 = vperm.xlu0 %541, %v516
      %v543 = vpop.permute.xlu0 %542
      %546 = vset.pattern.permute.xlu0 0
      %547 = vperm.xlu0 %546, %v517
      %v548 = vpop.permute.xlu0 %547
      %551 = vset.pattern.permute.xlu0 0
      %552 = vperm.xlu0 %551, %v518
      %v553 = vpop.permute.xlu0 %552
      %556 = vset.pattern.permute.xlu0 0
      %557 = vperm.xlu0 %556, %v519
      %v558 = vpop.permute.xlu0 %557
      %v560 = vmul.f32 %v523, 0.0
      %v561 = vmul.f32 %v511, %v528
      %v562 = vmul.f32 %v493, %v533
      %v563 = vmul.f32 %v495, %v538
      %v564 = vmul.f32 %v497, %v543
      %v565 = vmul.f32 %v499, %v548
      %v566 = vmul.f32 %v501, %v553
      %v567 = vmul.f32 %v503, %v558
      %v568 = vpack.c.bf16 %v561, %v560
      %v569 = vpack.c.bf16 %v563, %v562
      %v570 = vpack.c.bf16 %v565, %v564
      %v571 = vpack.c.bf16 %v567, %v566
      %v572 = vld [vmem:[%s1] sm:$0xff]
      %v573 = vld [vmem:[%s1 + $0x8] sm:$0xff]
      %v574 = vld [vmem:[%s1 + $0x10] sm:$0xff]
      %v575 = vld [vmem:[%s1 + $0x18] sm:$0xff]
      %v576 = vld [vmem:[%s1 + $0x20] sm:$0xff]
      %v577 = vld [vmem:[%s1 + $0x28] sm:$0xff]
      %v578 = vld [vmem:[%s1 + $0x30] sm:$0xff]
      %v579 = vld [vmem:[%s1 + $0x38] sm:$0xff]
      %v580 = vld [vmem:[%s1 + $0x40] sm:$0x11]
      %581 = vset.pattern.permute.xlu0 1
      %582 = vperm.xlu0 %581, %v512
      %v583 = vpop.permute.xlu0 %582
      %585 = vset.pattern.permute.xlu0 1
      %586 = vperm.xlu0 %585, %v513
      %v587 = vpop.permute.xlu0 %586
      %589 = vset.pattern.permute.xlu0 1
      %590 = vperm.xlu0 %589, %v514
      %v591 = vpop.permute.xlu0 %590
      %593 = vset.pattern.permute.xlu0 1
      %594 = vperm.xlu0 %593, %v515
      %v595 = vpop.permute.xlu0 %594
      %597 = vset.pattern.permute.xlu0 1
      %598 = vperm.xlu0 %597, %v516
      %v599 = vpop.permute.xlu0 %598
      %601 = vset.pattern.permute.xlu0 1
      %602 = vperm.xlu0 %601, %v517
      %v603 = vpop.permute.xlu0 %602
      %605 = vset.pattern.permute.xlu0 1
      %606 = vperm.xlu0 %605, %v518
      %v607 = vpop.permute.xlu0 %606
      %609 = vset.pattern.permute.xlu0 1
      %610 = vperm.xlu0 %609, %v519
      %v611 = vpop.permute.xlu0 %610
      %v613 = vmul.f32 %v583, 0.0
      %v614 = vmul.f32 %v475, %v587
      %v615 = vmul.f32 %v476, %v591
      %v616 = vmul.f32 %v477, %v595
      %v617 = vmul.f32 %v478, %v599
      %v618 = vmul.f32 %v479, %v603
      %v619 = vmul.f32 %v480, %v607
      %v620 = vmul.f32 %v481, %v611
      %v621 = vpack.c.bf16 %v614, %v613
      %v622 = vpack.c.bf16 %v616, %v615
      %v623 = vpack.c.bf16 %v618, %v617
      %v624 = vpack.c.bf16 %v620, %v619
      %s625 = scalar_lea.vmem %s1, 72
      %v626 = vld [vmem:[%s625] sm:$0xff]
      %v627 = vld [vmem:[%s625 + $0x8] sm:$0xff]
      %v628 = vld [vmem:[%s625 + $0x10] sm:$0xff]
      %v629 = vld [vmem:[%s625 + $0x18] sm:$0xff]
      %v630 = vld [vmem:[%s625 + $0x20] sm:$0xff]
      %v631 = vld [vmem:[%s625 + $0x28] sm:$0xff]
      %v632 = vld [vmem:[%s625 + $0x30] sm:$0xff]
      %v633 = vld [vmem:[%s625 + $0x38] sm:$0xff]
      %v634 = vld [vmem:[%s625 + $0x40] sm:$0x11]
      %v644 = vunpack.c.l.b16 %v626
      %v645 = vunpack.c.h.b16 %v626
      %v646 = vunpack.c.l.b16 %v627
      %v647 = vunpack.c.h.b16 %v627
      %v648 = vunpack.c.l.b16 %v628
      %v649 = vunpack.c.h.b16 %v628
      %v650 = vunpack.c.l.b16 %v629
      %v651 = vunpack.c.h.b16 %v629
      %v652 = vunpack.c.l.b16 %v630
      %v653 = vunpack.c.h.b16 %v630
      %v654 = vunpack.c.l.b16 %v631
      %v655 = vunpack.c.h.b16 %v631
      %v656 = vunpack.c.l.b16 %v632
      %v657 = vunpack.c.h.b16 %v632
      %v658 = vunpack.c.l.b16 %v633
      %v659 = vunpack.c.h.b16 %v633
      %v660 = vunpack.c.l.b16 %v634
      %v661 = vunpack.c.h.b16 %v634
      %v662 = vpack.c.b16 %v646, %v644
      %v663 = vpack.c.b16 %v647, %v645
      %v664 = vpack.c.b16 %v650, %v648
      %v665 = vpack.c.b16 %v651, %v649
      %v666 = vpack.c.b16 %v654, %v652
      %v667 = vpack.c.b16 %v655, %v653
      %v668 = vpack.c.b16 %v658, %v656
      %v669 = vpack.c.b16 %v659, %v657
      %v670 = vpack.c.b16 %v660, %v660
      %v671 = vpack.c.b16 %v661, %v661
      %vm680 = vcmask 531456
      %v682 = vsel %vm680, %v621, 0
      %v685 = vsel %vm680, %v622, 0
      %v688 = vsel %vm680, %v623, 0
      %v691 = vsel %vm680, %v624, 0
      %v693 = vsel 0, 4294967295, 65535
      %v694 = vsel %vm490, %v693, 0
      %v696 = vand.u32 %v670, %v694
      %v699 = vand.u32 %v671, %v694
      %701 = vmatprep.subr.bf16.mxu0 %v663
      %702 = vmatpush1.bf16.msra.mxu0 %v662
      %703 = vmatprep.subr.bf16.mxu0 %v665
      %704 = vmatpush1.bf16.msra.mxu0 %v664
      %705 = vmatprep.subr.bf16.mxu0 %v667
      %706 = vmatpush1.bf16.msra.mxu0 %v666
      %707 = vmatprep.subr.bf16.mxu0 %v669
      %708 = vmatpush1.bf16.msra.mxu0 %v668
      %709 = vmatprep.subr.bf16.mxu0 %v699
      %710 = vmatpush1.bf16.msra.mxu0 %v696
      %711 = vmatprep.subr.bf16.mxu0 0
      %712 = vmatpush1.bf16.msra.mxu0 0
      %713 = vmatprep.subr.bf16.mxu0 0
      %714 = vmatpush1.bf16.msra.mxu0 0
      %715 = vmatprep.subr.bf16.mxu0 0
      %716 = vmatpush1.bf16.msra.mxu0 0
      %717 = vmatprep.subr.bf16.mxu0 0
      %718 = vmatpush1.bf16.msra.mxu0 0
      %719 = vmatprep.subr.bf16.mxu0 0
      %720 = vmatpush1.bf16.msra.mxu0 0
      %721 = vmatprep.subr.bf16.mxu0 0
      %722 = vmatpush1.bf16.msra.mxu0 0
      %723 = vmatprep.subr.bf16.mxu0 0
      %724 = vmatpush1.bf16.msra.mxu0 0
      %725 = vmatprep.subr.bf16.mxu0 0
      %726 = vmatpush1.bf16.msra.mxu0 0
      %727 = vmatprep.subr.bf16.mxu0 0
      %728 = vmatpush1.bf16.msra.mxu0 0
      %729 = vmatprep.subr.bf16.mxu0 0
      %730 = vmatpush1.bf16.msra.mxu0 0
      %731 = vmatprep.subr.bf16.mxu0 0
      %732 = vmatpush1.bf16.msra.mxu0 0
      %733 = vmatprep.mubr.bf16.mxu0 0
      %734 = vmatmul.mubr.bf16.gmra.mrb[0].mxu0 %v682
      %v735 = vpop.f32.mrb[0].mxu0
      %v736 = vadd.f32 0.0, %v735
      %v737 = vpop.f32.mrb[0].mxu0
      %v738 = vadd.f32 0.0, %v737
      %v739 = vpop.f32.mrb[0].mxu0
      %v740 = vadd.f32 0.0, %v739
      %v741 = vpop.f32.mrb[0].mxu0
      %v742 = vadd.f32 0.0, %v741
      %743 = vmatprep.mubr.bf16.mxu0 0
      %744 = vmatmul.mubr.bf16.gmra.mrb[0].mxu0 %v685
      %v745 = vpop.f32.mrb[0].mxu0
      %v746 = vadd.f32 0.0, %v745
      %v747 = vpop.f32.mrb[0].mxu0
      %v748 = vadd.f32 0.0, %v747
      %v749 = vpop.f32.mrb[0].mxu0
      %v750 = vadd.f32 0.0, %v749
      %v751 = vpop.f32.mrb[0].mxu0
      %v752 = vadd.f32 0.0, %v751
      %753 = vmatprep.mubr.bf16.mxu0 0
      %754 = vmatmul.mubr.bf16.gmra.mrb[0].mxu0 %v688
      %v755 = vpop.f32.mrb[0].mxu0
      %v756 = vadd.f32 0.0, %v755
      %v757 = vpop.f32.mrb[0].mxu0
      %v758 = vadd.f32 0.0, %v757
      %v759 = vpop.f32.mrb[0].mxu0
      %v760 = vadd.f32 0.0, %v759
      %v761 = vpop.f32.mrb[0].mxu0
      %v762 = vadd.f32 0.0, %v761
      %763 = vmatprep.mubr.bf16.mxu0 0
      %764 = vmatmul.mubr.bf16.gmra.mrb[0].mxu0 %v691
      %v765 = vpop.f32.mrb[0].mxu0
      %v766 = vadd.f32 0.0, %v765
      %v767 = vpop.f32.mrb[0].mxu0
      %v768 = vadd.f32 0.0, %v767
      %v769 = vpop.f32.mrb[0].mxu0
      %v770 = vadd.f32 0.0, %v769
      %v771 = vpop.f32.mrb[0].mxu0
      %v772 = vadd.f32 0.0, %v771
      %773 = vdwg.mxu0
      %v783 = vunpack.c.l.b16 %v572
      %v784 = vunpack.c.h.b16 %v572
      %v785 = vunpack.c.l.b16 %v573
      %v786 = vunpack.c.h.b16 %v573
      %v787 = vunpack.c.l.b16 %v574
      %v788 = vunpack.c.h.b16 %v574
      %v789 = vunpack.c.l.b16 %v575
      %v790 = vunpack.c.h.b16 %v575
      %v791 = vunpack.c.l.b16 %v576
      %v792 = vunpack.c.h.b16 %v576
      %v793 = vunpack.c.l.b16 %v577
      %v794 = vunpack.c.h.b16 %v577
      %v795 = vunpack.c.l.b16 %v578
      %v796 = vunpack.c.h.b16 %v578
      %v797 = vunpack.c.l.b16 %v579
      %v798 = vunpack.c.h.b16 %v579
      %v799 = vunpack.c.l.b16 %v580
      %v800 = vunpack.c.h.b16 %v580
      %v801 = vpack.c.b16 %v785, %v783
      %v802 = vpack.c.b16 %v786, %v784
      %v803 = vpack.c.b16 %v789, %v787
      %v804 = vpack.c.b16 %v790, %v788
      %v805 = vpack.c.b16 %v793, %v791
      %v806 = vpack.c.b16 %v794, %v792
      %v807 = vpack.c.b16 %v797, %v795
      %v808 = vpack.c.b16 %v798, %v796
      %v809 = vpack.c.b16 %v799, %v799
      %v810 = vpack.c.b16 %v800, %v800
      %v820 = vsel %vm680, %v568, 0
      %v823 = vsel %vm680, %v569, 0
      %v826 = vsel %vm680, %v570, 0
      %v829 = vsel %vm680, %v571, 0
      %v832 = vand.u32 %v809, %v694
      %v835 = vand.u32 %v810, %v694
      %837 = vmatprep.subr.bf16.mxu0 %v802
      %838 = vmatpush1.bf16.msra.mxu0 %v801
      %839 = vmatprep.subr.bf16.mxu0 %v804
      %840 = vmatpush1.bf16.msra.mxu0 %v803
      %841 = vmatprep.subr.bf16.mxu0 %v806
      %842 = vmatpush1.bf16.msra.mxu0 %v805
      %843 = vmatprep.subr.bf16.mxu0 %v808
      %844 = vmatpush1.bf16.msra.mxu0 %v807
      %845 = vmatprep.subr.bf16.mxu0 %v835
      %846 = vmatpush1.bf16.msra.mxu0 %v832
      %847 = vmatprep.subr.bf16.mxu0 0
      %848 = vmatpush1.bf16.msra.mxu0 0
      %849 = vmatprep.subr.bf16.mxu0 0
      %850 = vmatpush1.bf16.msra.mxu0 0
      %851 = vmatprep.subr.bf16.mxu0 0
      %852 = vmatpush1.bf16.msra.mxu0 0
      %853 = vmatprep.subr.bf16.mxu0 0
      %854 = vmatpush1.bf16.msra.mxu0 0
      %855 = vmatprep.subr.bf16.mxu0 0
      %856 = vmatpush1.bf16.msra.mxu0 0
      %857 = vmatprep.subr.bf16.mxu0 0
      %858 = vmatpush1.bf16.msra.mxu0 0
      %859 = vmatprep.subr.bf16.mxu0 0
      %860 = vmatpush1.bf16.msra.mxu0 0
      %861 = vmatprep.subr.bf16.mxu0 0
      %862 = vmatpush1.bf16.msra.mxu0 0
      %863 = vmatprep.subr.bf16.mxu0 0
      %864 = vmatpush1.bf16.msra.mxu0 0
      %865 = vmatprep.subr.bf16.mxu0 0
      %866 = vmatpush1.bf16.msra.mxu0 0
      %867 = vmatprep.subr.bf16.mxu0 0
      %868 = vmatpush1.bf16.msra.mxu0 0
      %869 = vmatprep.mubr.bf16.mxu0 0
      %870 = vmatmul.mubr.bf16.gmra.mrb[0].mxu0 %v820
      %v871 = vpop.f32.mrb[0].mxu0
      %v872 = vadd.f32 %v736, %v871
      %v873 = vpop.f32.mrb[0].mxu0
      %v874 = vadd.f32 %v738, %v873
      %v875 = vpop.f32.mrb[0].mxu0
      %v876 = vadd.f32 %v740, %v875
      %v877 = vpop.f32.mrb[0].mxu0
      %v878 = vadd.f32 %v742, %v877
      %879 = vmatprep.mubr.bf16.mxu0 0
      %880 = vmatmul.mubr.bf16.gmra.mrb[0].mxu0 %v823
      %v881 = vpop.f32.mrb[0].mxu0
      %v882 = vadd.f32 %v746, %v881
      %v883 = vpop.f32.mrb[0].mxu0
      %v884 = vadd.f32 %v748, %v883
      %v885 = vpop.f32.mrb[0].mxu0
      %v886 = vadd.f32 %v750, %v885
      %v887 = vpop.f32.mrb[0].mxu0
      %v888 = vadd.f32 %v752, %v887
      %889 = vmatprep.mubr.bf16.mxu0 0
      %890 = vmatmul.mubr.bf16.gmra.mrb[0].mxu0 %v826
      %v891 = vpop.f32.mrb[0].mxu0
      %v892 = vadd.f32 %v756, %v891
      %v893 = vpop.f32.mrb[0].mxu0
      %v894 = vadd.f32 %v758, %v893
      %v895 = vpop.f32.mrb[0].mxu0
      %v896 = vadd.f32 %v760, %v895
      %v897 = vpop.f32.mrb[0].mxu0
      %v898 = vadd.f32 %v762, %v897
      %899 = vmatprep.mubr.bf16.mxu0 0
      %900 = vmatmul.mubr.bf16.gmra.mrb[0].mxu0 %v829
      %v901 = vpop.f32.mrb[0].mxu0
      %v902 = vadd.f32 %v766, %v901
      %v903 = vpop.f32.mrb[0].mxu0
      %v904 = vadd.f32 %v768, %v903
      %v905 = vpop.f32.mrb[0].mxu0
      %v906 = vadd.f32 %v770, %v905
      %v907 = vpop.f32.mrb[0].mxu0
      %v908 = vadd.f32 %v772, %v907
      %909 = vdwg.mxu0
      %vm911 = vcmask 1046528
      %v912 = vrot.slane %v475, 1
      %v913 = vrot.slane %v476, 1
      %v914 = vsel %vm911, %v912, %v913
      %v915 = vrot.slane %v477, 1
      %v916 = vsel %vm911, %v913, %v915
      %v917 = vrot.slane %v478, 1
      %v918 = vsel %vm911, %v915, %v917
      %v919 = vrot.slane %v479, 1
      %v920 = vsel %vm911, %v917, %v919
      %v921 = vrot.slane %v480, 1
      %v922 = vsel %vm911, %v919, %v921
      %v923 = vrot.slane %v481, 1
      %v924 = vsel %vm911, %v921, %v923
      %v925 = vrot.slane %v482, 1
      %v926 = vsel %vm911, %v923, %v925
      %v935 = vsel %vm911, 0.0, %v912
      %936 = vset.pattern.permute.xlu0 2
      %937 = vperm.xlu0 %936, %v512
      %v938 = vpop.permute.xlu0 %937
      %940 = vset.pattern.permute.xlu0 2
      %941 = vperm.xlu0 %940, %v513
      %v942 = vpop.permute.xlu0 %941
      %944 = vset.pattern.permute.xlu0 2
      %945 = vperm.xlu0 %944, %v514
      %v946 = vpop.permute.xlu0 %945
      %948 = vset.pattern.permute.xlu0 2
      %949 = vperm.xlu0 %948, %v515
      %v950 = vpop.permute.xlu0 %949
      %952 = vset.pattern.permute.xlu0 2
      %953 = vperm.xlu0 %952, %v516
      %v954 = vpop.permute.xlu0 %953
      %956 = vset.pattern.permute.xlu0 2
      %957 = vperm.xlu0 %956, %v517
      %v958 = vpop.permute.xlu0 %957
      %960 = vset.pattern.permute.xlu0 2
      %961 = vperm.xlu0 %960, %v518
      %v962 = vpop.permute.xlu0 %961
      %964 = vset.pattern.permute.xlu0 2
      %965 = vperm.xlu0 %964, %v519
      %v966 = vpop.permute.xlu0 %965
      %v968 = vmul.f32 %v935, %v938
      %v969 = vmul.f32 %v914, %v942
      %v970 = vmul.f32 %v916, %v946
      %v971 = vmul.f32 %v918, %v950
      %v972 = vmul.f32 %v920, %v954
      %v973 = vmul.f32 %v922, %v958
      %v974 = vmul.f32 %v924, %v962
      %v975 = vmul.f32 %v926, %v966
      %v976 = vpack.c.bf16 %v969, %v968
      %v977 = vpack.c.bf16 %v971, %v970
      %v978 = vpack.c.bf16 %v973, %v972
      %v979 = vpack.c.bf16 %v975, %v974
      %s980 = scalar_lea.vmem %s1, 144
      %v981 = vld [vmem:[%s980] sm:$0xff]
      %v982 = vld [vmem:[%s980 + $0x8] sm:$0xff]
      %v983 = vld [vmem:[%s980 + $0x10] sm:$0xff]
      %v984 = vld [vmem:[%s980 + $0x18] sm:$0xff]
      %v985 = vld [vmem:[%s980 + $0x20] sm:$0xff]
      %v986 = vld [vmem:[%s980 + $0x28] sm:$0xff]
      %v987 = vld [vmem:[%s980 + $0x30] sm:$0xff]
      %v988 = vld [vmem:[%s980 + $0x38] sm:$0xff]
      %v989 = vld [vmem:[%s980 + $0x40] sm:$0x11]
      %v999 = vunpack.c.l.b16 %v981
      %v1000 = vunpack.c.h.b16 %v981
      %v1001 = vunpack.c.l.b16 %v982
      %v1002 = vunpack.c.h.b16 %v982
      %v1003 = vunpack.c.l.b16 %v983
      %v1004 = vunpack.c.h.b16 %v983
      %v1005 = vunpack.c.l.b16 %v984
      %v1006 = vunpack.c.h.b16 %v984
      %v1007 = vunpack.c.l.b16 %v985
      %v1008 = vunpack.c.h.b16 %v985
      %v1009 = vunpack.c.l.b16 %v986
      %v1010 = vunpack.c.h.b16 %v986
      %v1011 = vunpack.c.l.b16 %v987
      %v1012 = vunpack.c.h.b16 %v987
      %v1013 = vunpack.c.l.b16 %v988
      %v1014 = vunpack.c.h.b16 %v988
      %v1015 = vunpack.c.l.b16 %v989
      %v1016 = vunpack.c.h.b16 %v989
      %v1017 = vpack.c.b16 %v1001, %v999
      %v1018 = vpack.c.b16 %v1002, %v1000
      %v1019 = vpack.c.b16 %v1005, %v1003
      %v1020 = vpack.c.b16 %v1006, %v1004
      %v1021 = vpack.c.b16 %v1009, %v1007
      %v1022 = vpack.c.b16 %v1010, %v1008
      %v1023 = vpack.c.b16 %v1013, %v1011
      %v1024 = vpack.c.b16 %v1014, %v1012
      %v1025 = vpack.c.b16 %v1015, %v1015
      %v1026 = vpack.c.b16 %v1016, %v1016
      %v1036 = vsel %vm680, %v976, 0
      %v1039 = vsel %vm680, %v977, 0
      %v1042 = vsel %vm680, %v978, 0
      %v1045 = vsel %vm680, %v979, 0
      %v1048 = vand.u32 %v1025, %v694
      %v1051 = vand.u32 %v1026, %v694
      %1053 = vmatprep.subr.bf16.mxu0 %v1018
      %1054 = vmatpush1.bf16.msra.mxu0 %v1017
      %1055 = vmatprep.subr.bf16.mxu0 %v1020
      %1056 = vmatpush1.bf16.msra.mxu0 %v1019
      %1057 = vmatprep.subr.bf16.mxu0 %v1022
      %1058 = vmatpush1.bf16.msra.mxu0 %v1021
      %1059 = vmatprep.subr.bf16.mxu0 %v1024
      %1060 = vmatpush1.bf16.msra.mxu0 %v1023
      %1061 = vmatprep.subr.bf16.mxu0 %v1051
      %1062 = vmatpush1.bf16.msra.mxu0 %v1048
      %1063 = vmatprep.subr.bf16.mxu0 0
      %1064 = vmatpush1.bf16.msra.mxu0 0
      %1065 = vmatprep.subr.bf16.mxu0 0
      %1066 = vmatpush1.bf16.msra.mxu0 0
      %1067 = vmatprep.subr.bf16.mxu0 0
      %1068 = vmatpush1.bf16.msra.mxu0 0
      %1069 = vmatprep.subr.bf16.mxu0 0
      %1070 = vmatpush1.bf16.msra.mxu0 0
      %1071 = vmatprep.subr.bf16.mxu0 0
      %1072 = vmatpush1.bf16.msra.mxu0 0
      %1073 = vmatprep.subr.bf16.mxu0 0
      %1074 = vmatpush1.bf16.msra.mxu0 0
      %1075 = vmatprep.subr.bf16.mxu0 0
      %1076 = vmatpush1.bf16.msra.mxu0 0
      %1077 = vmatprep.subr.bf16.mxu0 0
      %1078 = vmatpush1.bf16.msra.mxu0 0
      %1079 = vmatprep.subr.bf16.mxu0 0
      %1080 = vmatpush1.bf16.msra.mxu0 0
      %1081 = vmatprep.subr.bf16.mxu0 0
      %1082 = vmatpush1.bf16.msra.mxu0 0
      %1083 = vmatprep.subr.bf16.mxu0 0
      %1084 = vmatpush1.bf16.msra.mxu0 0
      %1085 = vmatprep.mubr.bf16.mxu0 0
      %1086 = vmatmul.mubr.bf16.gmra.mrb[0].mxu0 %v1036
      %v1087 = vpop.f32.mrb[0].mxu0
      %v1088 = vadd.f32 0.0, %v1087
      %v1089 = vpop.f32.mrb[0].mxu0
      %v1090 = vadd.f32 0.0, %v1089
      %v1091 = vpop.f32.mrb[0].mxu0
      %v1092 = vadd.f32 0.0, %v1091
      %v1093 = vpop.f32.mrb[0].mxu0
      %v1094 = vadd.f32 0.0, %v1093
      %1095 = vmatprep.mubr.bf16.mxu0 0
      %1096 = vmatmul.mubr.bf16.gmra.mrb[0].mxu0 %v1039
      %v1097 = vpop.f32.mrb[0].mxu0
      %v1098 = vadd.f32 0.0, %v1097
      %v1099 = vpop.f32.mrb[0].mxu0
      %v1100 = vadd.f32 0.0, %v1099
      %v1101 = vpop.f32.mrb[0].mxu0
      %v1102 = vadd.f32 0.0, %v1101
      %v1103 = vpop.f32.mrb[0].mxu0
      %v1104 = vadd.f32 0.0, %v1103
      %1105 = vmatprep.mubr.bf16.mxu0 0
      %1106 = vmatmul.mubr.bf16.gmra.mrb[0].mxu0 %v1042
      %v1107 = vpop.f32.mrb[0].mxu0
      %v1108 = vadd.f32 0.0, %v1107
      %v1109 = vpop.f32.mrb[0].mxu0
      %v1110 = vadd.f32 0.0, %v1109
      %v1111 = vpop.f32.mrb[0].mxu0
      %v1112 = vadd.f32 0.0, %v1111
      %v1113 = vpop.f32.mrb[0].mxu0
      %v1114 = vadd.f32 0.0, %v1113
      %1115 = vmatprep.mubr.bf16.mxu0 0
      %1116 = vmatmul.mubr.bf16.gmra.mrb[0].mxu0 %v1045
      %v1117 = vpop.f32.mrb[0].mxu0
      %v1118 = vadd.f32 0.0, %v1117
      %v1119 = vpop.f32.mrb[0].mxu0
      %v1120 = vadd.f32 0.0, %v1119
      %v1121 = vpop.f32.mrb[0].mxu0
      %v1122 = vadd.f32 0.0, %v1121
      %v1123 = vpop.f32.mrb[0].mxu0
      %v1124 = vadd.f32 0.0, %v1123
      %1125 = vdwg.mxu0
      %v1126 = vadd.f32 %v872, %v1088
      %v1127 = vadd.f32 %v874, %v1090
      %v1128 = vadd.f32 %v876, %v1092
      %v1129 = vadd.f32 %v878, %v1094
      %v1130 = vadd.f32 %v882, %v1098
      %v1131 = vadd.f32 %v884, %v1100
      %v1132 = vadd.f32 %v886, %v1102
      %v1133 = vadd.f32 %v888, %v1104
      %v1134 = vadd.f32 %v892, %v1108
      %v1135 = vadd.f32 %v894, %v1110
      %v1136 = vadd.f32 %v896, %v1112
      %v1137 = vadd.f32 %v898, %v1114
      %v1138 = vadd.f32 %v902, %v1118
      %v1139 = vadd.f32 %v904, %v1120
      %v1140 = vadd.f32 %v906, %v1122
      %v1141 = vadd.f32 %v908, %v1124
      %v1142 = vrot.slane %v482, 7
      %v1143 = vsel %vm490, %v502, %v1142
      %1145 = vset.pattern.permute.xlu0 3
      %1146 = vperm.xlu0 %1145, %v512
      %v1147 = vpop.permute.xlu0 %1146
      %1149 = vset.pattern.permute.xlu0 3
      %1150 = vperm.xlu0 %1149, %v513
      %v1151 = vpop.permute.xlu0 %1150
      %1153 = vset.pattern.permute.xlu0 3
      %1154 = vperm.xlu0 %1153, %v514
      %v1155 = vpop.permute.xlu0 %1154
      %1157 = vset.pattern.permute.xlu0 3
      %1158 = vperm.xlu0 %1157, %v515
      %v1159 = vpop.permute.xlu0 %1158
      %1161 = vset.pattern.permute.xlu0 3
      %1162 = vperm.xlu0 %1161, %v516
      %v1163 = vpop.permute.xlu0 %1162
      %1165 = vset.pattern.permute.xlu0 3
      %1166 = vperm.xlu0 %1165, %v517
      %v1167 = vpop.permute.xlu0 %1166
      %1169 = vset.pattern.permute.xlu0 3
      %1170 = vperm.xlu0 %1169, %v518
      %v1171 = vpop.permute.xlu0 %1170
      %1173 = vset.pattern.permute.xlu0 3
      %1174 = vperm.xlu0 %1173, %v519
      %v1175 = vpop.permute.xlu0 %1174
      %v1177 = vmul.f32 %v511, %v1147
      %v1178 = vmul.f32 %v493, %v1151
      %v1179 = vmul.f32 %v495, %v1155
      %v1180 = vmul.f32 %v497, %v1159
      %v1181 = vmul.f32 %v499, %v1163
      %v1182 = vmul.f32 %v501, %v1167
      %v1183 = vmul.f32 %v503, %v1171
      %v1184 = vmul.f32 %v1143, %v1175
      %v1185 = vpack.c.bf16 %v1178, %v1177
      %v1186 = vpack.c.bf16 %v1180, %v1179
      %v1187 = vpack.c.bf16 %v1182, %v1181
      %v1188 = vpack.c.bf16 %v1184, %v1183
      %s1189 = scalar_lea.vmem %s1, 216
      %v1190 = vld [vmem:[%s1189] sm:$0xff]
      %v1191 = vld [vmem:[%s1189 + $0x8] sm:$0xff]
      %v1192 = vld [vmem:[%s1189 + $0x10] sm:$0xff]
      %v1193 = vld [vmem:[%s1189 + $0x18] sm:$0xff]
      %v1194 = vld [vmem:[%s1189 + $0x20] sm:$0xff]
      %v1195 = vld [vmem:[%s1189 + $0x28] sm:$0xff]
      %v1196 = vld [vmem:[%s1189 + $0x30] sm:$0xff]
      %v1197 = vld [vmem:[%s1189 + $0x38] sm:$0xff]
      %v1198 = vld [vmem:[%s1189 + $0x40] sm:$0x11]
      %v1208 = vunpack.c.l.b16 %v1190
      %v1209 = vunpack.c.h.b16 %v1190
      %v1210 = vunpack.c.l.b16 %v1191
      %v1211 = vunpack.c.h.b16 %v1191
      %v1212 = vunpack.c.l.b16 %v1192
      %v1213 = vunpack.c.h.b16 %v1192
      %v1214 = vunpack.c.l.b16 %v1193
      %v1215 = vunpack.c.h.b16 %v1193
      %v1216 = vunpack.c.l.b16 %v1194
      %v1217 = vunpack.c.h.b16 %v1194
      %v1218 = vunpack.c.l.b16 %v1195
      %v1219 = vunpack.c.h.b16 %v1195
      %v1220 = vunpack.c.l.b16 %v1196
      %v1221 = vunpack.c.h.b16 %v1196
      %v1222 = vunpack.c.l.b16 %v1197
      %v1223 = vunpack.c.h.b16 %v1197
      %v1224 = vunpack.c.l.b16 %v1198
      %v1225 = vunpack.c.h.b16 %v1198
      %v1226 = vpack.c.b16 %v1210, %v1208
      %v1227 = vpack.c.b16 %v1211, %v1209
      %v1228 = vpack.c.b16 %v1214, %v1212
      %v1229 = vpack.c.b16 %v1215, %v1213
      %v1230 = vpack.c.b16 %v1218, %v1216
      %v1231 = vpack.c.b16 %v1219, %v1217
      %v1232 = vpack.c.b16 %v1222, %v1220
      %v1233 = vpack.c.b16 %v1223, %v1221
      %v1234 = vpack.c.b16 %v1224, %v1224
      %v1235 = vpack.c.b16 %v1225, %v1225
      %v1245 = vsel %vm680, %v1185, 0
      %v1248 = vsel %vm680, %v1186, 0
      %v1251 = vsel %vm680, %v1187, 0
      %v1254 = vsel %vm680, %v1188, 0
      %v1257 = vand.u32 %v1234, %v694
      %v1260 = vand.u32 %v1235, %v694
      %1262 = vmatprep.subr.bf16.mxu0 %v1227
      %1263 = vmatpush1.bf16.msra.mxu0 %v1226
      %1264 = vmatprep.subr.bf16.mxu0 %v1229
      %1265 = vmatpush1.bf16.msra.mxu0 %v1228
      %1266 = vmatprep.subr.bf16.mxu0 %v1231
      %1267 = vmatpush1.bf16.msra.mxu0 %v1230
      %1268 = vmatprep.subr.bf16.mxu0 %v1233
      %1269 = vmatpush1.bf16.msra.mxu0 %v1232
      %1270 = vmatprep.subr.bf16.mxu0 %v1260
      %1271 = vmatpush1.bf16.msra.mxu0 %v1257
      %1272 = vmatprep.subr.bf16.mxu0 0
      %1273 = vmatpush1.bf16.msra.mxu0 0
      %1274 = vmatprep.subr.bf16.mxu0 0
      %1275 = vmatpush1.bf16.msra.mxu0 0
      %1276 = vmatprep.subr.bf16.mxu0 0
      %1277 = vmatpush1.bf16.msra.mxu0 0
      %1278 = vmatprep.subr.bf16.mxu0 0
      %1279 = vmatpush1.bf16.msra.mxu0 0
      %1280 = vmatprep.subr.bf16.mxu0 0
      %1281 = vmatpush1.bf16.msra.mxu0 0
      %1282 = vmatprep.subr.bf16.mxu0 0
      %1283 = vmatpush1.bf16.msra.mxu0 0
      %1284 = vmatprep.subr.bf16.mxu0 0
      %1285 = vmatpush1.bf16.msra.mxu0 0
      %1286 = vmatprep.subr.bf16.mxu0 0
      %1287 = vmatpush1.bf16.msra.mxu0 0
      %1288 = vmatprep.subr.bf16.mxu0 0
      %1289 = vmatpush1.bf16.msra.mxu0 0
      %1290 = vmatprep.subr.bf16.mxu0 0
      %1291 = vmatpush1.bf16.msra.mxu0 0
      %1292 = vmatprep.subr.bf16.mxu0 0
      %1293 = vmatpush1.bf16.msra.mxu0 0
      %1294 = vmatprep.mubr.bf16.mxu0 0
      %1295 = vmatmul.mubr.bf16.gmra.mrb[0].mxu0 %v1245
      %v1296 = vpop.f32.mrb[0].mxu0
      %v1297 = vadd.f32 0.0, %v1296
      %v1298 = vpop.f32.mrb[0].mxu0
      %v1299 = vadd.f32 0.0, %v1298
      %v1300 = vpop.f32.mrb[0].mxu0
      %v1301 = vadd.f32 0.0, %v1300
      %v1302 = vpop.f32.mrb[0].mxu0
      %v1303 = vadd.f32 0.0, %v1302
      %1304 = vmatprep.mubr.bf16.mxu0 0
      %1305 = vmatmul.mubr.bf16.gmra.mrb[0].mxu0 %v1248
      %v1306 = vpop.f32.mrb[0].mxu0
      %v1307 = vadd.f32 0.0, %v1306
      %v1308 = vpop.f32.mrb[0].mxu0
      %v1309 = vadd.f32 0.0, %v1308
      %v1310 = vpop.f32.mrb[0].mxu0
      %v1311 = vadd.f32 0.0, %v1310
      %v1312 = vpop.f32.mrb[0].mxu0
      %v1313 = vadd.f32 0.0, %v1312
      %1314 = vmatprep.mubr.bf16.mxu0 0
      %1315 = vmatmul.mubr.bf16.gmra.mrb[0].mxu0 %v1251
      %v1316 = vpop.f32.mrb[0].mxu0
      %v1317 = vadd.f32 0.0, %v1316
      %v1318 = vpop.f32.mrb[0].mxu0
      %v1319 = vadd.f32 0.0, %v1318
      %v1320 = vpop.f32.mrb[0].mxu0
      %v1321 = vadd.f32 0.0, %v1320
      %v1322 = vpop.f32.mrb[0].mxu0
      %v1323 = vadd.f32 0.0, %v1322
      %1324 = vmatprep.mubr.bf16.mxu0 0
      %1325 = vmatmul.mubr.bf16.gmra.mrb[0].mxu0 %v1254
      %v1326 = vpop.f32.mrb[0].mxu0
      %v1327 = vadd.f32 0.0, %v1326
      %v1328 = vpop.f32.mrb[0].mxu0
      %v1329 = vadd.f32 0.0, %v1328
      %v1330 = vpop.f32.mrb[0].mxu0
      %v1331 = vadd.f32 0.0, %v1330
      %v1332 = vpop.f32.mrb[0].mxu0
      %v1333 = vadd.f32 0.0, %v1332
      %1334 = vdwg.mxu0
      %v1335 = vadd.f32 %v1126, %v1297
      %v1336 = vadd.f32 %v1127, %v1299
      %v1337 = vadd.f32 %v1128, %v1301
      %v1338 = vadd.f32 %v1129, %v1303
      %v1339 = vadd.f32 %v1130, %v1307
      %v1340 = vadd.f32 %v1131, %v1309
      %v1341 = vadd.f32 %v1132, %v1311
      %v1342 = vadd.f32 %v1133, %v1313
      %v1343 = vadd.f32 %v1134, %v1317
      %v1344 = vadd.f32 %v1135, %v1319
      %v1345 = vadd.f32 %v1136, %v1321
      %v1346 = vadd.f32 %v1137, %v1323
      %v1347 = vadd.f32 %v1138, %v1327
      %v1348 = vadd.f32 %v1139, %v1329
      %v1349 = vadd.f32 %v1140, %v1331
      %v1350 = vadd.f32 %v1141, %v1333
      %v1351 = vpack.c.bf16 %v476, %v475
      %v1352 = vpack.c.bf16 %v478, %v477
      %v1353 = vpack.c.bf16 %v480, %v479
      %v1354 = vpack.c.bf16 %v482, %v481
      %s1355 = scalar_lea.vmem %s1, 288
      %v1356 = vld [vmem:[%s1355] sm:$0xff]
      %v1357 = vld [vmem:[%s1355 + $0x8] sm:$0xff]
      %v1358 = vld [vmem:[%s1355 + $0x10] sm:$0xff]
      %v1359 = vld [vmem:[%s1355 + $0x18] sm:$0xff]
      %v1360 = vld [vmem:[%s1355 + $0x20] sm:$0xff]
      %v1361 = vld [vmem:[%s1355 + $0x28] sm:$0xff]
      %v1362 = vld [vmem:[%s1355 + $0x30] sm:$0xff]
      %v1363 = vld [vmem:[%s1355 + $0x38] sm:$0xff]
      %v1364 = vld [vmem:[%s1355 + $0x40] sm:$0x11]
      %v1374 = vunpack.c.l.b16 %v1356
      %v1375 = vunpack.c.h.b16 %v1356
      %v1376 = vunpack.c.l.b16 %v1357
      %v1377 = vunpack.c.h.b16 %v1357
      %v1378 = vunpack.c.l.b16 %v1358
      %v1379 = vunpack.c.h.b16 %v1358
      %v1380 = vunpack.c.l.b16 %v1359
      %v1381 = vunpack.c.h.b16 %v1359
      %v1382 = vunpack.c.l.b16 %v1360
      %v1383 = vunpack.c.h.b16 %v1360
      %v1384 = vunpack.c.l.b16 %v1361
      %v1385 = vunpack.c.h.b16 %v1361
      %v1386 = vunpack.c.l.b16 %v1362
      %v1387 = vunpack.c.h.b16 %v1362
      %v1388 = vunpack.c.l.b16 %v1363
      %v1389 = vunpack.c.h.b16 %v1363
      %v1390 = vunpack.c.l.b16 %v1364
      %v1391 = vunpack.c.h.b16 %v1364
      %v1392 = vpack.c.b16 %v1376, %v1374
      %v1393 = vpack.c.b16 %v1377, %v1375
      %v1394 = vpack.c.b16 %v1380, %v1378
      %v1395 = vpack.c.b16 %v1381, %v1379
      %v1396 = vpack.c.b16 %v1384, %v1382
      %v1397 = vpack.c.b16 %v1385, %v1383
      %v1398 = vpack.c.b16 %v1388, %v1386
      %v1399 = vpack.c.b16 %v1389, %v1387
      %v1400 = vpack.c.b16 %v1390, %v1390
      %v1401 = vpack.c.b16 %v1391, %v1391
      %v1411 = vsel %vm680, %v1351, 0
      %v1414 = vsel %vm680, %v1352, 0
      %v1417 = vsel %vm680, %v1353, 0
      %v1420 = vsel %vm680, %v1354, 0
      %v1423 = vand.u32 %v1400, %v694
      %v1426 = vand.u32 %v1401, %v694
      %1428 = vmatprep.subr.bf16.mxu0 %v1393
      %1429 = vmatpush1.bf16.msra.mxu0 %v1392
      %1430 = vmatprep.subr.bf16.mxu0 %v1395
      %1431 = vmatpush1.bf16.msra.mxu0 %v1394
      %1432 = vmatprep.subr.bf16.mxu0 %v1397
      %1433 = vmatpush1.bf16.msra.mxu0 %v1396
      %1434 = vmatprep.subr.bf16.mxu0 %v1399
      %1435 = vmatpush1.bf16.msra.mxu0 %v1398
      %1436 = vmatprep.subr.bf16.mxu0 %v1426
      %1437 = vmatpush1.bf16.msra.mxu0 %v1423
      %1438 = vmatprep.subr.bf16.mxu0 0
      %1439 = vmatpush1.bf16.msra.mxu0 0
      %1440 = vmatprep.subr.bf16.mxu0 0
      %1441 = vmatpush1.bf16.msra.mxu0 0
      %1442 = vmatprep.subr.bf16.mxu0 0
      %1443 = vmatpush1.bf16.msra.mxu0 0
      %1444 = vmatprep.subr.bf16.mxu0 0
      %1445 = vmatpush1.bf16.msra.mxu0 0
      %1446 = vmatprep.subr.bf16.mxu0 0
      %1447 = vmatpush1.bf16.msra.mxu0 0
      %1448 = vmatprep.subr.bf16.mxu0 0
      %1449 = vmatpush1.bf16.msra.mxu0 0
      %1450 = vmatprep.subr.bf16.mxu0 0
      %1451 = vmatpush1.bf16.msra.mxu0 0
      %1452 = vmatprep.subr.bf16.mxu0 0
      %1453 = vmatpush1.bf16.msra.mxu0 0
      %1454 = vmatprep.subr.bf16.mxu0 0
      %1455 = vmatpush1.bf16.msra.mxu0 0
      %1456 = vmatprep.subr.bf16.mxu0 0
      %1457 = vmatpush1.bf16.msra.mxu0 0
      %1458 = vmatprep.subr.bf16.mxu0 0
      %1459 = vmatpush1.bf16.msra.mxu0 0
      %1460 = vmatprep.mubr.bf16.mxu0 0
      %1461 = vmatmul.mubr.bf16.gmra.mrb[0].mxu0 %v1411
      %v1462 = vpop.f32.mrb[0].mxu0
      %v1463 = vadd.f32 0.0, %v1462
      %v1464 = vpop.f32.mrb[0].mxu0
      %v1465 = vadd.f32 0.0, %v1464
      %v1466 = vpop.f32.mrb[0].mxu0
      %v1467 = vadd.f32 0.0, %v1466
      %v1468 = vpop.f32.mrb[0].mxu0
      %v1469 = vadd.f32 0.0, %v1468
      %1470 = vmatprep.mubr.bf16.mxu0 0
      %1471 = vmatmul.mubr.bf16.gmra.mrb[0].mxu0 %v1414
      %v1472 = vpop.f32.mrb[0].mxu0
      %v1473 = vadd.f32 0.0, %v1472
      %v1474 = vpop.f32.mrb[0].mxu0
      %v1475 = vadd.f32 0.0, %v1474
      %v1476 = vpop.f32.mrb[0].mxu0
      %v1477 = vadd.f32 0.0, %v1476
      %v1478 = vpop.f32.mrb[0].mxu0
      %v1479 = vadd.f32 0.0, %v1478
      %1480 = vmatprep.mubr.bf16.mxu0 0
      %1481 = vmatmul.mubr.bf16.gmra.mrb[0].mxu0 %v1417
      %v1482 = vpop.f32.mrb[0].mxu0
      %v1483 = vadd.f32 0.0, %v1482
      %v1484 = vpop.f32.mrb[0].mxu0
      %v1485 = vadd.f32 0.0, %v1484
      %v1486 = vpop.f32.mrb[0].mxu0
      %v1487 = vadd.f32 0.0, %v1486
      %v1488 = vpop.f32.mrb[0].mxu0
      %v1489 = vadd.f32 0.0, %v1488
      %1490 = vmatprep.mubr.bf16.mxu0 0
      %1491 = vmatmul.mubr.bf16.gmra.mrb[0].mxu0 %v1420
      %v1492 = vpop.f32.mrb[0].mxu0
      %v1493 = vadd.f32 0.0, %v1492
      %v1494 = vpop.f32.mrb[0].mxu0
      %v1495 = vadd.f32 0.0, %v1494
      %v1496 = vpop.f32.mrb[0].mxu0
      %v1497 = vadd.f32 0.0, %v1496
      %v1498 = vpop.f32.mrb[0].mxu0
      %v1499 = vadd.f32 0.0, %v1498
      %1500 = vdwg.mxu0
      %v1501 = vadd.f32 %v1335, %v1463
      %v1502 = vadd.f32 %v1336, %v1465
      %v1503 = vadd.f32 %v1337, %v1467
      %v1504 = vadd.f32 %v1338, %v1469
      %v1505 = vadd.f32 %v1339, %v1473
      %v1506 = vadd.f32 %v1340, %v1475
      %v1507 = vadd.f32 %v1341, %v1477
      %v1508 = vadd.f32 %v1342, %v1479
      %v1509 = vadd.f32 %v1343, %v1483
      %v1510 = vadd.f32 %v1344, %v1485
      %v1511 = vadd.f32 %v1345, %v1487
      %v1512 = vadd.f32 %v1346, %v1489
      %v1513 = vadd.f32 %v1347, %v1493
      %v1514 = vadd.f32 %v1348, %v1495
      %v1515 = vadd.f32 %v1349, %v1497
      %v1516 = vadd.f32 %v1350, %v1499
      %v1518 = vsel %vm911, %v925, 0.0
      %1519 = vset.pattern.permute.xlu0 5
      %1520 = vperm.xlu0 %1519, %v512
      %v1521 = vpop.permute.xlu0 %1520
      %1523 = vset.pattern.permute.xlu0 5
      %1524 = vperm.xlu0 %1523, %v513
      %v1525 = vpop.permute.xlu0 %1524
      %1527 = vset.pattern.permute.xlu0 5
      %1528 = vperm.xlu0 %1527, %v514
      %v1529 = vpop.permute.xlu0 %1528
      %1531 = vset.pattern.permute.xlu0 5
      %1532 = vperm.xlu0 %1531, %v515
      %v1533 = vpop.permute.xlu0 %1532
      %1535 = vset.pattern.permute.xlu0 5
      %1536 = vperm.xlu0 %1535, %v516
      %v1537 = vpop.permute.xlu0 %1536
      %1539 = vset.pattern.permute.xlu0 5
      %1540 = vperm.xlu0 %1539, %v517
      %v1541 = vpop.permute.xlu0 %1540
      %1543 = vset.pattern.permute.xlu0 5
      %1544 = vperm.xlu0 %1543, %v518
      %v1545 = vpop.permute.xlu0 %1544
      %1547 = vset.pattern.permute.xlu0 5
      %1548 = vperm.xlu0 %1547, %v519
      %v1549 = vpop.permute.xlu0 %1548
      %v1551 = vmul.f32 %v914, %v1521
      %v1552 = vmul.f32 %v916, %v1525
      %v1553 = vmul.f32 %v918, %v1529
      %v1554 = vmul.f32 %v920, %v1533
      %v1555 = vmul.f32 %v922, %v1537
      %v1556 = vmul.f32 %v924, %v1541
      %v1557 = vmul.f32 %v926, %v1545
      %v1558 = vmul.f32 %v1518, %v1549
      %v1559 = vpack.c.bf16 %v1552, %v1551
      %v1560 = vpack.c.bf16 %v1554, %v1553
      %v1561 = vpack.c.bf16 %v1556, %v1555
      %v1562 = vpack.c.bf16 %v1558, %v1557
      %s1563 = scalar_lea.vmem %s1, 360
      %v1564 = vld [vmem:[%s1563] sm:$0xff]
      %v1565 = vld [vmem:[%s1563 + $0x8] sm:$0xff]
      %v1566 = vld [vmem:[%s1563 + $0x10] sm:$0xff]
      %v1567 = vld [vmem:[%s1563 + $0x18] sm:$0xff]
      %v1568 = vld [vmem:[%s1563 + $0x20] sm:$0xff]
      %v1569 = vld [vmem:[%s1563 + $0x28] sm:$0xff]
      %v1570 = vld [vmem:[%s1563 + $0x30] sm:$0xff]
      %v1571 = vld [vmem:[%s1563 + $0x38] sm:$0xff]
      %v1572 = vld [vmem:[%s1563 + $0x40] sm:$0x11]
      %v1582 = vunpack.c.l.b16 %v1564
      %v1583 = vunpack.c.h.b16 %v1564
      %v1584 = vunpack.c.l.b16 %v1565
      %v1585 = vunpack.c.h.b16 %v1565
      %v1586 = vunpack.c.l.b16 %v1566
      %v1587 = vunpack.c.h.b16 %v1566
      %v1588 = vunpack.c.l.b16 %v1567
      %v1589 = vunpack.c.h.b16 %v1567
      %v1590 = vunpack.c.l.b16 %v1568
      %v1591 = vunpack.c.h.b16 %v1568
      %v1592 = vunpack.c.l.b16 %v1569
      %v1593 = vunpack.c.h.b16 %v1569
      %v1594 = vunpack.c.l.b16 %v1570
      %v1595 = vunpack.c.h.b16 %v1570
      %v1596 = vunpack.c.l.b16 %v1571
      %v1597 = vunpack.c.h.b16 %v1571
      %v1598 = vunpack.c.l.b16 %v1572
      %v1599 = vunpack.c.h.b16 %v1572
      %v1600 = vpack.c.b16 %v1584, %v1582
      %v1601 = vpack.c.b16 %v1585, %v1583
      %v1602 = vpack.c.b16 %v1588, %v1586
      %v1603 = vpack.c.b16 %v1589, %v1587
      %v1604 = vpack.c.b16 %v1592, %v1590
      %v1605 = vpack.c.b16 %v1593, %v1591
      %v1606 = vpack.c.b16 %v1596, %v1594
      %v1607 = vpack.c.b16 %v1597, %v1595
      %v1608 = vpack.c.b16 %v1598, %v1598
      %v1609 = vpack.c.b16 %v1599, %v1599
      %v1619 = vsel %vm680, %v1559, 0
      %v1622 = vsel %vm680, %v1560, 0
      %v1625 = vsel %vm680, %v1561, 0
      %v1628 = vsel %vm680, %v1562, 0
      %v1631 = vand.u32 %v1608, %v694
      %v1634 = vand.u32 %v1609, %v694
      %1636 = vmatprep.subr.bf16.mxu0 %v1601
      %1637 = vmatpush1.bf16.msra.mxu0 %v1600
      %1638 = vmatprep.subr.bf16.mxu0 %v1603
      %1639 = vmatpush1.bf16.msra.mxu0 %v1602
      %1640 = vmatprep.subr.bf16.mxu0 %v1605
      %1641 = vmatpush1.bf16.msra.mxu0 %v1604
      %1642 = vmatprep.subr.bf16.mxu0 %v1607
      %1643 = vmatpush1.bf16.msra.mxu0 %v1606
      %1644 = vmatprep.subr.bf16.mxu0 %v1634
      %1645 = vmatpush1.bf16.msra.mxu0 %v1631
      %1646 = vmatprep.subr.bf16.mxu0 0
      %1647 = vmatpush1.bf16.msra.mxu0 0
      %1648 = vmatprep.subr.bf16.mxu0 0
      %1649 = vmatpush1.bf16.msra.mxu0 0
      %1650 = vmatprep.subr.bf16.mxu0 0
      %1651 = vmatpush1.bf16.msra.mxu0 0
      %1652 = vmatprep.subr.bf16.mxu0 0
      %1653 = vmatpush1.bf16.msra.mxu0 0
      %1654 = vmatprep.subr.bf16.mxu0 0
      %1655 = vmatpush1.bf16.msra.mxu0 0
      %1656 = vmatprep.subr.bf16.mxu0 0
      %1657 = vmatpush1.bf16.msra.mxu0 0
      %1658 = vmatprep.subr.bf16.mxu0 0
      %1659 = vmatpush1.bf16.msra.mxu0 0
      %1660 = vmatprep.subr.bf16.mxu0 0
      %1661 = vmatpush1.bf16.msra.mxu0 0
      %1662 = vmatprep.subr.bf16.mxu0 0
      %1663 = vmatpush1.bf16.msra.mxu0 0
      %1664 = vmatprep.subr.bf16.mxu0 0
      %1665 = vmatpush1.bf16.msra.mxu0 0
      %1666 = vmatprep.subr.bf16.mxu0 0
      %1667 = vmatpush1.bf16.msra.mxu0 0
      %1668 = vmatprep.mubr.bf16.mxu0 0
      %1669 = vmatmul.mubr.bf16.gmra.mrb[0].mxu0 %v1619
      %v1670 = vpop.f32.mrb[0].mxu0
      %v1671 = vadd.f32 0.0, %v1670
      %v1672 = vpop.f32.mrb[0].mxu0
      %v1673 = vadd.f32 0.0, %v1672
      %v1674 = vpop.f32.mrb[0].mxu0
      %v1675 = vadd.f32 0.0, %v1674
      %v1676 = vpop.f32.mrb[0].mxu0
      %v1677 = vadd.f32 0.0, %v1676
      %1678 = vmatprep.mubr.bf16.mxu0 0
      %1679 = vmatmul.mubr.bf16.gmra.mrb[0].mxu0 %v1622
      %v1680 = vpop.f32.mrb[0].mxu0
      %v1681 = vadd.f32 0.0, %v1680
      %v1682 = vpop.f32.mrb[0].mxu0
      %v1683 = vadd.f32 0.0, %v1682
      %v1684 = vpop.f32.mrb[0].mxu0
      %v1685 = vadd.f32 0.0, %v1684
      %v1686 = vpop.f32.mrb[0].mxu0
      %v1687 = vadd.f32 0.0, %v1686
      %1688 = vmatprep.mubr.bf16.mxu0 0
      %1689 = vmatmul.mubr.bf16.gmra.mrb[0].mxu0 %v1625
      %v1690 = vpop.f32.mrb[0].mxu0
      %v1691 = vadd.f32 0.0, %v1690
      %v1692 = vpop.f32.mrb[0].mxu0
      %v1693 = vadd.f32 0.0, %v1692
      %v1694 = vpop.f32.mrb[0].mxu0
      %v1695 = vadd.f32 0.0, %v1694
      %v1696 = vpop.f32.mrb[0].mxu0
      %v1697 = vadd.f32 0.0, %v1696
      %1698 = vmatprep.mubr.bf16.mxu0 0
      %1699 = vmatmul.mubr.bf16.gmra.mrb[0].mxu0 %v1628
      %v1700 = vpop.f32.mrb[0].mxu0
      %v1701 = vadd.f32 0.0, %v1700
      %v1702 = vpop.f32.mrb[0].mxu0
      %v1703 = vadd.f32 0.0, %v1702
      %v1704 = vpop.f32.mrb[0].mxu0
      %v1705 = vadd.f32 0.0, %v1704
      %v1706 = vpop.f32.mrb[0].mxu0
      %v1707 = vadd.f32 0.0, %v1706
      %1708 = vdwg.mxu0
      %v1709 = vadd.f32 %v1501, %v1671
      %v1710 = vadd.f32 %v1502, %v1673
      %v1711 = vadd.f32 %v1503, %v1675
      %v1712 = vadd.f32 %v1504, %v1677
      %v1713 = vadd.f32 %v1505, %v1681
      %v1714 = vadd.f32 %v1506, %v1683
      %v1715 = vadd.f32 %v1507, %v1685
      %v1716 = vadd.f32 %v1508, %v1687
      %v1717 = vadd.f32 %v1509, %v1691
      %v1718 = vadd.f32 %v1510, %v1693
      %v1719 = vadd.f32 %v1511, %v1695
      %v1720 = vadd.f32 %v1512, %v1697
      %v1721 = vadd.f32 %v1513, %v1701
      %v1722 = vadd.f32 %v1514, %v1703
      %v1723 = vadd.f32 %v1515, %v1705
      %v1724 = vadd.f32 %v1516, %v1707
      %v1726 = vsel %vm490, %v1142, 0.0
      %1727 = vset.pattern.permute.xlu0 6
      %1728 = vperm.xlu0 %1727, %v512
      %v1729 = vpop.permute.xlu0 %1728
      %1731 = vset.pattern.permute.xlu0 6
      %1732 = vperm.xlu0 %1731, %v513
      %v1733 = vpop.permute.xlu0 %1732
      %1735 = vset.pattern.permute.xlu0 6
      %1736 = vperm.xlu0 %1735, %v514
      %v1737 = vpop.permute.xlu0 %1736
      %1739 = vset.pattern.permute.xlu0 6
      %1740 = vperm.xlu0 %1739, %v515
      %v1741 = vpop.permute.xlu0 %1740
      %1743 = vset.pattern.permute.xlu0 6
      %1744 = vperm.xlu0 %1743, %v516
      %v1745 = vpop.permute.xlu0 %1744
      %1747 = vset.pattern.permute.xlu0 6
      %1748 = vperm.xlu0 %1747, %v517
      %v1749 = vpop.permute.xlu0 %1748
      %1751 = vset.pattern.permute.xlu0 6
      %1752 = vperm.xlu0 %1751, %v518
      %v1753 = vpop.permute.xlu0 %1752
      %1755 = vset.pattern.permute.xlu0 6
      %1756 = vperm.xlu0 %1755, %v519
      %v1757 = vpop.permute.xlu0 %1756
      %v1759 = vmul.f32 %v493, %v1729
      %v1760 = vmul.f32 %v495, %v1733
      %v1761 = vmul.f32 %v497, %v1737
      %v1762 = vmul.f32 %v499, %v1741
      %v1763 = vmul.f32 %v501, %v1745
      %v1764 = vmul.f32 %v503, %v1749
      %v1765 = vmul.f32 %v1143, %v1753
      %v1766 = vmul.f32 %v1726, %v1757
      %v1767 = vpack.c.bf16 %v1760, %v1759
      %v1768 = vpack.c.bf16 %v1762, %v1761
      %v1769 = vpack.c.bf16 %v1764, %v1763
      %v1770 = vpack.c.bf16 %v1766, %v1765
      %s1771 = scalar_lea.vmem %s1, 432
      %v1772 = vld [vmem:[%s1771] sm:$0xff]
      %v1773 = vld [vmem:[%s1771 + $0x8] sm:$0xff]
      %v1774 = vld [vmem:[%s1771 + $0x10] sm:$0xff]
      %v1775 = vld [vmem:[%s1771 + $0x18] sm:$0xff]
      %v1776 = vld [vmem:[%s1771 + $0x20] sm:$0xff]
      %v1777 = vld [vmem:[%s1771 + $0x28] sm:$0xff]
      %v1778 = vld [vmem:[%s1771 + $0x30] sm:$0xff]
      %v1779 = vld [vmem:[%s1771 + $0x38] sm:$0xff]
      %v1780 = vld [vmem:[%s1771 + $0x40] sm:$0x11]
      %v1790 = vunpack.c.l.b16 %v1772
      %v1791 = vunpack.c.h.b16 %v1772
      %v1792 = vunpack.c.l.b16 %v1773
      %v1793 = vunpack.c.h.b16 %v1773
      %v1794 = vunpack.c.l.b16 %v1774
      %v1795 = vunpack.c.h.b16 %v1774
      %v1796 = vunpack.c.l.b16 %v1775
      %v1797 = vunpack.c.h.b16 %v1775
      %v1798 = vunpack.c.l.b16 %v1776
      %v1799 = vunpack.c.h.b16 %v1776
      %v1800 = vunpack.c.l.b16 %v1777
      %v1801 = vunpack.c.h.b16 %v1777
      %v1802 = vunpack.c.l.b16 %v1778
      %v1803 = vunpack.c.h.b16 %v1778
      %v1804 = vunpack.c.l.b16 %v1779
      %v1805 = vunpack.c.h.b16 %v1779
      %v1806 = vunpack.c.l.b16 %v1780
      %v1807 = vunpack.c.h.b16 %v1780
      %v1808 = vpack.c.b16 %v1792, %v1790
      %v1809 = vpack.c.b16 %v1793, %v1791
      %v1810 = vpack.c.b16 %v1796, %v1794
      %v1811 = vpack.c.b16 %v1797, %v1795
      %v1812 = vpack.c.b16 %v1800, %v1798
      %v1813 = vpack.c.b16 %v1801, %v1799
      %v1814 = vpack.c.b16 %v1804, %v1802
      %v1815 = vpack.c.b16 %v1805, %v1803
      %v1816 = vpack.c.b16 %v1806, %v1806
      %v1817 = vpack.c.b16 %v1807, %v1807
      %v1827 = vsel %vm680, %v1767, 0
      %v1830 = vsel %vm680, %v1768, 0
      %v1833 = vsel %vm680, %v1769, 0
      %v1836 = vsel %vm680, %v1770, 0
      %v1839 = vand.u32 %v1816, %v694
      %v1842 = vand.u32 %v1817, %v694
      %1844 = vmatprep.subr.bf16.mxu0 %v1809
      %1845 = vmatpush1.bf16.msra.mxu0 %v1808
      %1846 = vmatprep.subr.bf16.mxu0 %v1811
      %1847 = vmatpush1.bf16.msra.mxu0 %v1810
      %1848 = vmatprep.subr.bf16.mxu0 %v1813
      %1849 = vmatpush1.bf16.msra.mxu0 %v1812
      %1850 = vmatprep.subr.bf16.mxu0 %v1815
      %1851 = vmatpush1.bf16.msra.mxu0 %v1814
      %1852 = vmatprep.subr.bf16.mxu0 %v1842
      %1853 = vmatpush1.bf16.msra.mxu0 %v1839
      %1854 = vmatprep.subr.bf16.mxu0 0
      %1855 = vmatpush1.bf16.msra.mxu0 0
      %1856 = vmatprep.subr.bf16.mxu0 0
      %1857 = vmatpush1.bf16.msra.mxu0 0
      %1858 = vmatprep.subr.bf16.mxu0 0
      %1859 = vmatpush1.bf16.msra.mxu0 0
      %1860 = vmatprep.subr.bf16.mxu0 0
      %1861 = vmatpush1.bf16.msra.mxu0 0
      %1862 = vmatprep.subr.bf16.mxu0 0
      %1863 = vmatpush1.bf16.msra.mxu0 0
      %1864 = vmatprep.subr.bf16.mxu0 0
      %1865 = vmatpush1.bf16.msra.mxu0 0
      %1866 = vmatprep.subr.bf16.mxu0 0
      %1867 = vmatpush1.bf16.msra.mxu0 0
      %1868 = vmatprep.subr.bf16.mxu0 0
      %1869 = vmatpush1.bf16.msra.mxu0 0
      %1870 = vmatprep.subr.bf16.mxu0 0
      %1871 = vmatpush1.bf16.msra.mxu0 0
      %1872 = vmatprep.subr.bf16.mxu0 0
      %1873 = vmatpush1.bf16.msra.mxu0 0
      %1874 = vmatprep.subr.bf16.mxu0 0
      %1875 = vmatpush1.bf16.msra.mxu0 0
      %1876 = vmatprep.mubr.bf16.mxu0 0
      %1877 = vmatmul.mubr.bf16.gmra.mrb[0].mxu0 %v1827
      %v1878 = vpop.f32.mrb[0].mxu0
      %v1879 = vadd.f32 0.0, %v1878
      %v1880 = vpop.f32.mrb[0].mxu0
      %v1881 = vadd.f32 0.0, %v1880
      %v1882 = vpop.f32.mrb[0].mxu0
      %v1883 = vadd.f32 0.0, %v1882
      %v1884 = vpop.f32.mrb[0].mxu0
      %v1885 = vadd.f32 0.0, %v1884
      %1886 = vmatprep.mubr.bf16.mxu0 0
      %1887 = vmatmul.mubr.bf16.gmra.mrb[0].mxu0 %v1830
      %v1888 = vpop.f32.mrb[0].mxu0
      %v1889 = vadd.f32 0.0, %v1888
      %v1890 = vpop.f32.mrb[0].mxu0
      %v1891 = vadd.f32 0.0, %v1890
      %v1892 = vpop.f32.mrb[0].mxu0
      %v1893 = vadd.f32 0.0, %v1892
      %v1894 = vpop.f32.mrb[0].mxu0
      %v1895 = vadd.f32 0.0, %v1894
      %1896 = vmatprep.mubr.bf16.mxu0 0
      %1897 = vmatmul.mubr.bf16.gmra.mrb[0].mxu0 %v1833
      %v1898 = vpop.f32.mrb[0].mxu0
      %v1899 = vadd.f32 0.0, %v1898
      %v1900 = vpop.f32.mrb[0].mxu0
      %v1901 = vadd.f32 0.0, %v1900
      %v1902 = vpop.f32.mrb[0].mxu0
      %v1903 = vadd.f32 0.0, %v1902
      %v1904 = vpop.f32.mrb[0].mxu0
      %v1905 = vadd.f32 0.0, %v1904
      %1906 = vmatprep.mubr.bf16.mxu0 0
      %1907 = vmatmul.mubr.bf16.gmra.mrb[0].mxu0 %v1836
      %v1908 = vpop.f32.mrb[0].mxu0
      %v1909 = vadd.f32 0.0, %v1908
      %v1910 = vpop.f32.mrb[0].mxu0
      %v1911 = vadd.f32 0.0, %v1910
      %v1912 = vpop.f32.mrb[0].mxu0
      %v1913 = vadd.f32 0.0, %v1912
      %v1914 = vpop.f32.mrb[0].mxu0
      %v1915 = vadd.f32 0.0, %v1914
      %1916 = vdwg.mxu0
      %v1917 = vadd.f32 %v1709, %v1879
      %v1918 = vadd.f32 %v1710, %v1881
      %v1919 = vadd.f32 %v1711, %v1883
      %v1920 = vadd.f32 %v1712, %v1885
      %v1921 = vadd.f32 %v1713, %v1889
      %v1922 = vadd.f32 %v1714, %v1891
      %v1923 = vadd.f32 %v1715, %v1893
      %v1924 = vadd.f32 %v1716, %v1895
      %v1925 = vadd.f32 %v1717, %v1899
      %v1926 = vadd.f32 %v1718, %v1901
      %v1927 = vadd.f32 %v1719, %v1903
      %v1928 = vadd.f32 %v1720, %v1905
      %v1929 = vadd.f32 %v1721, %v1909
      %v1930 = vadd.f32 %v1722, %v1911
      %v1931 = vadd.f32 %v1723, %v1913
      %v1932 = vadd.f32 %v1724, %v1915
      %1933 = vset.pattern.permute.xlu0 7
      %1934 = vperm.xlu0 %1933, %v512
      %v1935 = vpop.permute.xlu0 %1934
      %1937 = vset.pattern.permute.xlu0 7
      %1938 = vperm.xlu0 %1937, %v513
      %v1939 = vpop.permute.xlu0 %1938
      %1941 = vset.pattern.permute.xlu0 7
      %1942 = vperm.xlu0 %1941, %v514
      %v1943 = vpop.permute.xlu0 %1942
      %1945 = vset.pattern.permute.xlu0 7
      %1946 = vperm.xlu0 %1945, %v515
      %v1947 = vpop.permute.xlu0 %1946
      %1949 = vset.pattern.permute.xlu0 7
      %1950 = vperm.xlu0 %1949, %v516
      %v1951 = vpop.permute.xlu0 %1950
      %1953 = vset.pattern.permute.xlu0 7
      %1954 = vperm.xlu0 %1953, %v517
      %v1955 = vpop.permute.xlu0 %1954
      %1957 = vset.pattern.permute.xlu0 7
      %1958 = vperm.xlu0 %1957, %v518
      %v1959 = vpop.permute.xlu0 %1958
      %1961 = vset.pattern.permute.xlu0 7
      %1962 = vperm.xlu0 %1961, %v519
      %v1963 = vpop.permute.xlu0 %1962
      %v1965 = vmul.f32 %v476, %v1935
      %v1966 = vmul.f32 %v477, %v1939
      %v1967 = vmul.f32 %v478, %v1943
      %v1968 = vmul.f32 %v479, %v1947
      %v1969 = vmul.f32 %v480, %v1951
      %v1970 = vmul.f32 %v481, %v1955
      %v1971 = vmul.f32 %v482, %v1959
      %v1972 = vmul.f32 %v1963, 0.0
      %v1973 = vpack.c.bf16 %v1966, %v1965
      %v1974 = vpack.c.bf16 %v1968, %v1967
      %v1975 = vpack.c.bf16 %v1970, %v1969
      %v1976 = vpack.c.bf16 %v1972, %v1971
      %s1977 = scalar_lea.vmem %s1, 504
      %v1978 = vld [vmem:[%s1977] sm:$0xff]
      %v1979 = vld [vmem:[%s1977 + $0x8] sm:$0xff]
      %v1980 = vld [vmem:[%s1977 + $0x10] sm:$0xff]
      %v1981 = vld [vmem:[%s1977 + $0x18] sm:$0xff]
      %v1982 = vld [vmem:[%s1977 + $0x20] sm:$0xff]
      %v1983 = vld [vmem:[%s1977 + $0x28] sm:$0xff]
      %v1984 = vld [vmem:[%s1977 + $0x30] sm:$0xff]
      %v1985 = vld [vmem:[%s1977 + $0x38] sm:$0xff]
      %v1986 = vld [vmem:[%s1977 + $0x40] sm:$0x11]
      %v1996 = vunpack.c.l.b16 %v1978
      %v1997 = vunpack.c.h.b16 %v1978
      %v1998 = vunpack.c.l.b16 %v1979
      %v1999 = vunpack.c.h.b16 %v1979
      %v2000 = vunpack.c.l.b16 %v1980
      %v2001 = vunpack.c.h.b16 %v1980
      %v2002 = vunpack.c.l.b16 %v1981
      %v2003 = vunpack.c.h.b16 %v1981
      %v2004 = vunpack.c.l.b16 %v1982
      %v2005 = vunpack.c.h.b16 %v1982
      %v2006 = vunpack.c.l.b16 %v1983
      %v2007 = vunpack.c.h.b16 %v1983
      %v2008 = vunpack.c.l.b16 %v1984
      %v2009 = vunpack.c.h.b16 %v1984
      %v2010 = vunpack.c.l.b16 %v1985
      %v2011 = vunpack.c.h.b16 %v1985
      %v2012 = vunpack.c.l.b16 %v1986
      %v2013 = vunpack.c.h.b16 %v1986
      %v2014 = vpack.c.b16 %v1998, %v1996
      %v2015 = vpack.c.b16 %v1999, %v1997
      %v2016 = vpack.c.b16 %v2002, %v2000
      %v2017 = vpack.c.b16 %v2003, %v2001
      %v2018 = vpack.c.b16 %v2006, %v2004
      %v2019 = vpack.c.b16 %v2007, %v2005
      %v2020 = vpack.c.b16 %v2010, %v2008
      %v2021 = vpack.c.b16 %v2011, %v2009
      %v2022 = vpack.c.b16 %v2012, %v2012
      %v2023 = vpack.c.b16 %v2013, %v2013
      %v2033 = vsel %vm680, %v1973, 0
      %v2036 = vsel %vm680, %v1974, 0
      %v2039 = vsel %vm680, %v1975, 0
      %v2042 = vsel %vm680, %v1976, 0
      %v2045 = vand.u32 %v2022, %v694
      %v2048 = vand.u32 %v2023, %v694
      %2050 = vmatprep.subr.bf16.mxu0 %v2015
      %2051 = vmatpush1.bf16.msra.mxu0 %v2014
      %2052 = vmatprep.subr.bf16.mxu0 %v2017
      %2053 = vmatpush1.bf16.msra.mxu0 %v2016
      %2054 = vmatprep.subr.bf16.mxu0 %v2019
      %2055 = vmatpush1.bf16.msra.mxu0 %v2018
      %2056 = vmatprep.subr.bf16.mxu0 %v2021
      %2057 = vmatpush1.bf16.msra.mxu0 %v2020
      %2058 = vmatprep.subr.bf16.mxu0 %v2048
      %2059 = vmatpush1.bf16.msra.mxu0 %v2045
      %2060 = vmatprep.subr.bf16.mxu0 0
      %2061 = vmatpush1.bf16.msra.mxu0 0
      %2062 = vmatprep.subr.bf16.mxu0 0
      %2063 = vmatpush1.bf16.msra.mxu0 0
      %2064 = vmatprep.subr.bf16.mxu0 0
      %2065 = vmatpush1.bf16.msra.mxu0 0
      %2066 = vmatprep.subr.bf16.mxu0 0
      %2067 = vmatpush1.bf16.msra.mxu0 0
      %2068 = vmatprep.subr.bf16.mxu0 0
      %2069 = vmatpush1.bf16.msra.mxu0 0
      %2070 = vmatprep.subr.bf16.mxu0 0
      %2071 = vmatpush1.bf16.msra.mxu0 0
      %2072 = vmatprep.subr.bf16.mxu0 0
      %2073 = vmatpush1.bf16.msra.mxu0 0
      %2074 = vmatprep.subr.bf16.mxu0 0
      %2075 = vmatpush1.bf16.msra.mxu0 0
      %2076 = vmatprep.subr.bf16.mxu0 0
      %2077 = vmatpush1.bf16.msra.mxu0 0
      %2078 = vmatprep.subr.bf16.mxu0 0
      %2079 = vmatpush1.bf16.msra.mxu0 0
      %2080 = vmatprep.subr.bf16.mxu0 0
      %2081 = vmatpush1.bf16.msra.mxu0 0
      %2082 = vmatprep.mubr.bf16.mxu0 0
      %2083 = vmatmul.mubr.bf16.gmra.mrb[0].mxu0 %v2033
      %v2084 = vpop.f32.mrb[0].mxu0
      %v2085 = vadd.f32 0.0, %v2084
      %v2086 = vpop.f32.mrb[0].mxu0
      %v2087 = vadd.f32 0.0, %v2086
      %v2088 = vpop.f32.mrb[0].mxu0
      %v2089 = vadd.f32 0.0, %v2088
      %v2090 = vpop.f32.mrb[0].mxu0
      %v2091 = vadd.f32 0.0, %v2090
      %2092 = vmatprep.mubr.bf16.mxu0 0
      %2093 = vmatmul.mubr.bf16.gmra.mrb[0].mxu0 %v2036
      %v2094 = vpop.f32.mrb[0].mxu0
      %v2095 = vadd.f32 0.0, %v2094
      %v2096 = vpop.f32.mrb[0].mxu0
      %v2097 = vadd.f32 0.0, %v2096
      %v2098 = vpop.f32.mrb[0].mxu0
      %v2099 = vadd.f32 0.0, %v2098
      %v2100 = vpop.f32.mrb[0].mxu0
      %v2101 = vadd.f32 0.0, %v2100
      %2102 = vmatprep.mubr.bf16.mxu0 0
      %2103 = vmatmul.mubr.bf16.gmra.mrb[0].mxu0 %v2039
      %v2104 = vpop.f32.mrb[0].mxu0
      %v2105 = vadd.f32 0.0, %v2104
      %v2106 = vpop.f32.mrb[0].mxu0
      %v2107 = vadd.f32 0.0, %v2106
      %v2108 = vpop.f32.mrb[0].mxu0
      %v2109 = vadd.f32 0.0, %v2108
      %v2110 = vpop.f32.mrb[0].mxu0
      %v2111 = vadd.f32 0.0, %v2110
      %2112 = vmatprep.mubr.bf16.mxu0 0
      %2113 = vmatmul.mubr.bf16.gmra.mrb[0].mxu0 %v2042
      %v2114 = vpop.f32.mrb[0].mxu0
      %v2115 = vadd.f32 0.0, %v2114
      %v2116 = vpop.f32.mrb[0].mxu0
      %v2117 = vadd.f32 0.0, %v2116
      %v2118 = vpop.f32.mrb[0].mxu0
      %v2119 = vadd.f32 0.0, %v2118
      %v2120 = vpop.f32.mrb[0].mxu0
      %v2121 = vadd.f32 0.0, %v2120
      %2122 = vdwg.mxu0
      %v2123 = vadd.f32 %v1917, %v2085
      %v2124 = vadd.f32 %v1918, %v2087
      %v2125 = vadd.f32 %v1919, %v2089
      %v2126 = vadd.f32 %v1920, %v2091
      %v2127 = vadd.f32 %v1921, %v2095
      %v2128 = vadd.f32 %v1922, %v2097
      %v2129 = vadd.f32 %v1923, %v2099
      %v2130 = vadd.f32 %v1924, %v2101
      %v2131 = vadd.f32 %v1925, %v2105
      %v2132 = vadd.f32 %v1926, %v2107
      %v2133 = vadd.f32 %v1927, %v2109
      %v2134 = vadd.f32 %v1928, %v2111
      %v2135 = vadd.f32 %v1929, %v2115
      %v2136 = vadd.f32 %v1930, %v2117
      %v2137 = vadd.f32 %v1931, %v2119
      %v2138 = vadd.f32 %v1932, %v2121
      %2139 = vset.pattern.permute.xlu0 8
      %2140 = vperm.xlu0 %2139, %v512
      %v2141 = vpop.permute.xlu0 %2140
      %2143 = vset.pattern.permute.xlu0 8
      %2144 = vperm.xlu0 %2143, %v513
      %v2145 = vpop.permute.xlu0 %2144
      %2147 = vset.pattern.permute.xlu0 8
      %2148 = vperm.xlu0 %2147, %v514
      %v2149 = vpop.permute.xlu0 %2148
      %2151 = vset.pattern.permute.xlu0 8
      %2152 = vperm.xlu0 %2151, %v515
      %v2153 = vpop.permute.xlu0 %2152
      %2155 = vset.pattern.permute.xlu0 8
      %2156 = vperm.xlu0 %2155, %v516
      %v2157 = vpop.permute.xlu0 %2156
      %2159 = vset.pattern.permute.xlu0 8
      %2160 = vperm.xlu0 %2159, %v517
      %v2161 = vpop.permute.xlu0 %2160
      %2163 = vset.pattern.permute.xlu0 8
      %2164 = vperm.xlu0 %2163, %v518
      %v2165 = vpop.permute.xlu0 %2164
      %2167 = vset.pattern.permute.xlu0 8
      %2168 = vperm.xlu0 %2167, %v519
      %v2169 = vpop.permute.xlu0 %2168
      %v2171 = vmul.f32 %v916, %v2141
      %v2172 = vmul.f32 %v918, %v2145
      %v2173 = vmul.f32 %v920, %v2149
      %v2174 = vmul.f32 %v922, %v2153
      %v2175 = vmul.f32 %v924, %v2157
      %v2176 = vmul.f32 %v926, %v2161
      %v2177 = vmul.f32 %v1518, %v2165
      %v2178 = vmul.f32 %v2169, 0.0
      %v2179 = vpack.c.bf16 %v2172, %v2171
      %v2180 = vpack.c.bf16 %v2174, %v2173
      %v2181 = vpack.c.bf16 %v2176, %v2175
      %v2182 = vpack.c.bf16 %v2178, %v2177
      %s2183 = scalar_lea.vmem %s1, 576
      %v2184 = vld [vmem:[%s2183] sm:$0xff]
      %v2185 = vld [vmem:[%s2183 + $0x8] sm:$0xff]
      %v2186 = vld [vmem:[%s2183 + $0x10] sm:$0xff]
      %v2187 = vld [vmem:[%s2183 + $0x18] sm:$0xff]
      %v2188 = vld [vmem:[%s2183 + $0x20] sm:$0xff]
      %v2189 = vld [vmem:[%s2183 + $0x28] sm:$0xff]
      %v2190 = vld [vmem:[%s2183 + $0x30] sm:$0xff]
      %v2191 = vld [vmem:[%s2183 + $0x38] sm:$0xff]
      %v2192 = vld [vmem:[%s2183 + $0x40] sm:$0x11]
      %v2202 = vunpack.c.l.b16 %v2184
      %v2203 = vunpack.c.h.b16 %v2184
      %v2204 = vunpack.c.l.b16 %v2185
      %v2205 = vunpack.c.h.b16 %v2185
      %v2206 = vunpack.c.l.b16 %v2186
      %v2207 = vunpack.c.h.b16 %v2186
      %v2208 = vunpack.c.l.b16 %v2187
      %v2209 = vunpack.c.h.b16 %v2187
      %v2210 = vunpack.c.l.b16 %v2188
      %v2211 = vunpack.c.h.b16 %v2188
      %v2212 = vunpack.c.l.b16 %v2189
      %v2213 = vunpack.c.h.b16 %v2189
      %v2214 = vunpack.c.l.b16 %v2190
      %v2215 = vunpack.c.h.b16 %v2190
      %v2216 = vunpack.c.l.b16 %v2191
      %v2217 = vunpack.c.h.b16 %v2191
      %v2218 = vunpack.c.l.b16 %v2192
      %v2219 = vunpack.c.h.b16 %v2192
      %v2220 = vpack.c.b16 %v2204, %v2202
      %v2221 = vpack.c.b16 %v2205, %v2203
      %v2222 = vpack.c.b16 %v2208, %v2206
      %v2223 = vpack.c.b16 %v2209, %v2207
      %v2224 = vpack.c.b16 %v2212, %v2210
      %v2225 = vpack.c.b16 %v2213, %v2211
      %v2226 = vpack.c.b16 %v2216, %v2214
      %v2227 = vpack.c.b16 %v2217, %v2215
      %v2228 = vpack.c.b16 %v2218, %v2218
      %v2229 = vpack.c.b16 %v2219, %v2219
      %v2239 = vsel %vm680, %v2179, 0
      %v2242 = vsel %vm680, %v2180, 0
      %v2245 = vsel %vm680, %v2181, 0
      %v2248 = vsel %vm680, %v2182, 0
      %v2251 = vand.u32 %v2228, %v694
      %v2254 = vand.u32 %v2229, %v694
      %2256 = vmatprep.subr.bf16.mxu0 %v2221
      %2257 = vmatpush1.bf16.msra.mxu0 %v2220
      %2258 = vmatprep.subr.bf16.mxu0 %v2223
      %2259 = vmatpush1.bf16.msra.mxu0 %v2222
      %2260 = vmatprep.subr.bf16.mxu0 %v2225
      %2261 = vmatpush1.bf16.msra.mxu0 %v2224
      %2262 = vmatprep.subr.bf16.mxu0 %v2227
      %2263 = vmatpush1.bf16.msra.mxu0 %v2226
      %2264 = vmatprep.subr.bf16.mxu0 %v2254
      %2265 = vmatpush1.bf16.msra.mxu0 %v2251
      %2266 = vmatprep.subr.bf16.mxu0 0
      %2267 = vmatpush1.bf16.msra.mxu0 0
      %2268 = vmatprep.subr.bf16.mxu0 0
      %2269 = vmatpush1.bf16.msra.mxu0 0
      %2270 = vmatprep.subr.bf16.mxu0 0
      %2271 = vmatpush1.bf16.msra.mxu0 0
      %2272 = vmatprep.subr.bf16.mxu0 0
      %2273 = vmatpush1.bf16.msra.mxu0 0
      %2274 = vmatprep.subr.bf16.mxu0 0
      %2275 = vmatpush1.bf16.msra.mxu0 0
      %2276 = vmatprep.subr.bf16.mxu0 0
      %2277 = vmatpush1.bf16.msra.mxu0 0
      %2278 = vmatprep.subr.bf16.mxu0 0
      %2279 = vmatpush1.bf16.msra.mxu0 0
      %2280 = vmatprep.subr.bf16.mxu0 0
      %2281 = vmatpush1.bf16.msra.mxu0 0
      %2282 = vmatprep.subr.bf16.mxu0 0
      %2283 = vmatpush1.bf16.msra.mxu0 0
      %2284 = vmatprep.subr.bf16.mxu0 0
      %2285 = vmatpush1.bf16.msra.mxu0 0
      %2286 = vmatprep.subr.bf16.mxu0 0
      %2287 = vmatpush1.bf16.msra.mxu0 0
      %2288 = vmatprep.mubr.bf16.mxu0 0
      %2289 = vmatmul.mubr.bf16.gmra.mrb[0].mxu0 %v2239
      %v2290 = vpop.f32.mrb[0].mxu0
      %v2291 = vadd.f32 0.0, %v2290
      %v2292 = vpop.f32.mrb[0].mxu0
      %v2293 = vadd.f32 0.0, %v2292
      %v2294 = vpop.f32.mrb[0].mxu0
      %v2295 = vadd.f32 0.0, %v2294
      %v2296 = vpop.f32.mrb[0].mxu0
      %v2297 = vadd.f32 0.0, %v2296
      %2298 = vmatprep.mubr.bf16.mxu0 0
      %2299 = vmatmul.mubr.bf16.gmra.mrb[0].mxu0 %v2242
      %v2300 = vpop.f32.mrb[0].mxu0
      %v2301 = vadd.f32 0.0, %v2300
      %v2302 = vpop.f32.mrb[0].mxu0
      %v2303 = vadd.f32 0.0, %v2302
      %v2304 = vpop.f32.mrb[0].mxu0
      %v2305 = vadd.f32 0.0, %v2304
      %v2306 = vpop.f32.mrb[0].mxu0
      %v2307 = vadd.f32 0.0, %v2306
      %2308 = vmatprep.mubr.bf16.mxu0 0
      %2309 = vmatmul.mubr.bf16.gmra.mrb[0].mxu0 %v2245
      %v2310 = vpop.f32.mrb[0].mxu0
      %v2311 = vadd.f32 0.0, %v2310
      %v2312 = vpop.f32.mrb[0].mxu0
      %v2313 = vadd.f32 0.0, %v2312
      %v2314 = vpop.f32.mrb[0].mxu0
      %v2315 = vadd.f32 0.0, %v2314
      %v2316 = vpop.f32.mrb[0].mxu0
      %v2317 = vadd.f32 0.0, %v2316
      %2318 = vmatprep.mubr.bf16.mxu0 0
      %2319 = vmatmul.mubr.bf16.gmra.mrb[0].mxu0 %v2248
      %v2320 = vpop.f32.mrb[0].mxu0
      %v2321 = vadd.f32 0.0, %v2320
      %v2322 = vpop.f32.mrb[0].mxu0
      %v2323 = vadd.f32 0.0, %v2322
      %v2324 = vpop.f32.mrb[0].mxu0
      %v2325 = vadd.f32 0.0, %v2324
      %v2326 = vpop.f32.mrb[0].mxu0
      %v2327 = vadd.f32 0.0, %v2326
      %2328 = vdwg.mxu0
      %v2329 = vadd.f32 %v2123, %v2291
      %v2330 = vadd.f32 %v2124, %v2293
      %v2331 = vadd.f32 %v2125, %v2295
      %v2332 = vadd.f32 %v2126, %v2297
      %v2333 = vadd.f32 %v2127, %v2301
      %v2334 = vadd.f32 %v2128, %v2303
      %v2335 = vadd.f32 %v2129, %v2305
      %v2336 = vadd.f32 %v2130, %v2307
      %v2337 = vadd.f32 %v2131, %v2311
      %v2338 = vadd.f32 %v2132, %v2313
      %v2339 = vadd.f32 %v2133, %v2315
      %v2340 = vadd.f32 %v2134, %v2317
      %v2341 = vadd.f32 %v2135, %v2321
      %v2342 = vadd.f32 %v2136, %v2323
      %v2343 = vadd.f32 %v2137, %v2325
      %v2344 = vadd.f32 %v2138, %v2327
      %v2345 = vld [vmem:[%s2] sm:$0x3]
      %v2347 = vlaneseq
      %v2348 = vshrl.u32 %v2347, 7
      %v2349 = vsub.s32 0, %v2348
      %v2350 = vrot.slane %v2345, %v2349
      %v2351 = vlaneseq
      %v2352 = vshrl.u32 %v2351, 7
      %v2353 = vsub.s32 1, %v2352
      %v2354 = vrot.slane %v2345, %v2353
      %v2357 = vadd.f32 %v2329, %v2350
      %v2358 = vadd.f32 %v2330, %v2354
      %v2359 = vadd.f32 %v2331, %v2350
      %v2360 = vadd.f32 %v2332, %v2354
      %v2361 = vadd.f32 %v2333, %v2350
      %v2362 = vadd.f32 %v2334, %v2354
      %v2363 = vadd.f32 %v2335, %v2350
      %v2364 = vadd.f32 %v2336, %v2354
      %v2365 = vadd.f32 %v2337, %v2350
      %v2366 = vadd.f32 %v2338, %v2354
      %v2367 = vadd.f32 %v2339, %v2350
      %v2368 = vadd.f32 %v2340, %v2354
      %v2369 = vadd.f32 %v2341, %v2350
      %v2370 = vadd.f32 %v2342, %v2354
      %v2371 = vadd.f32 %v2343, %v2350
      %v2372 = vadd.f32 %v2344, %v2354
      %v2373 = vld [vmem:[#allocation3] sm:$0xff]
      %v2374 = vld [vmem:[#allocation3 + $0x8] sm:$0xff]
      %v2375 = vld [vmem:[#allocation3 + $0x10] sm:$0xff]
      %v2376 = vld [vmem:[#allocation3 + $0x18] sm:$0xff]
      %v2377 = vld [vmem:[#allocation3 + $0x20] sm:$0xff]
      %v2378 = vld [vmem:[#allocation3 + $0x28] sm:$0xff]
      %v2379 = vld [vmem:[#allocation3 + $0x30] sm:$0xff]
      %v2380 = vld [vmem:[#allocation3 + $0x38] sm:$0xff]
      %v2381 = vxor.u32 %v2357, 2147483648
      %v2382 = vxor.u32 %v2359, 2147483648
      %v2383 = vxor.u32 %v2361, 2147483648
      %v2384 = vxor.u32 %v2363, 2147483648
      %v2385 = vxor.u32 %v2365, 2147483648
      %v2386 = vxor.u32 %v2367, 2147483648
      %v2387 = vxor.u32 %v2369, 2147483648
      %v2388 = vxor.u32 %v2371, 2147483648
      %v2389 = vmul.f32 %v2381, 1.442695
      %v2390 = vpow.pop %v2389
      %v2391 = vmul.f32 %v2382, 1.442695
      %v2392 = vpow.pop %v2391
      %v2393 = vmul.f32 %v2383, 1.442695
      %v2394 = vpow.pop %v2393
      %v2395 = vmul.f32 %v2384, 1.442695
      %v2396 = vpow.pop %v2395
      %v2397 = vmul.f32 %v2385, 1.442695
      %v2398 = vpow.pop %v2397
      %v2399 = vmul.f32 %v2386, 1.442695
      %v2400 = vpow.pop %v2399
      %v2401 = vmul.f32 %v2387, 1.442695
      %v2402 = vpow.pop %v2401
      %v2403 = vmul.f32 %v2388, 1.442695
      %v2404 = vpow.pop %v2403
      %v2405 = vadd.f32 %v2390, 1.0
      %v2406 = vadd.f32 %v2392, 1.0
      %v2407 = vadd.f32 %v2394, 1.0
      %v2408 = vadd.f32 %v2396, 1.0
      %v2409 = vadd.f32 %v2398, 1.0
      %v2410 = vadd.f32 %v2400, 1.0
      %v2411 = vadd.f32 %v2402, 1.0
      %v2412 = vadd.f32 %v2404, 1.0
      %v2413 = vrcp.pop %v2405
      %v2414 = vmul.f32 1.0, %v2413
      %v2415 = vrcp.pop %v2406
      %v2416 = vmul.f32 1.0, %v2415
      %v2417 = vrcp.pop %v2407
      %v2418 = vmul.f32 1.0, %v2417
      %v2419 = vrcp.pop %v2408
      %v2420 = vmul.f32 1.0, %v2419
      %v2421 = vrcp.pop %v2409
      %v2422 = vmul.f32 1.0, %v2421
      %v2423 = vrcp.pop %v2410
      %v2424 = vmul.f32 1.0, %v2423
      %v2425 = vrcp.pop %v2411
      %v2426 = vmul.f32 1.0, %v2425
      %v2427 = vrcp.pop %v2412
      %v2428 = vmul.f32 1.0, %v2427
      %v2429 = vxor.u32 %v2358, 2147483648
      %v2430 = vxor.u32 %v2360, 2147483648
      %v2431 = vxor.u32 %v2362, 2147483648
      %v2432 = vxor.u32 %v2364, 2147483648
      %v2433 = vxor.u32 %v2366, 2147483648
      %v2434 = vxor.u32 %v2368, 2147483648
      %v2435 = vxor.u32 %v2370, 2147483648
      %v2436 = vxor.u32 %v2372, 2147483648
      %v2437 = vmul.f32 %v2429, 1.442695
      %v2438 = vpow.pop %v2437
      %v2439 = vmul.f32 %v2430, 1.442695
      %v2440 = vpow.pop %v2439
      %v2441 = vmul.f32 %v2431, 1.442695
      %v2442 = vpow.pop %v2441
      %v2443 = vmul.f32 %v2432, 1.442695
      %v2444 = vpow.pop %v2443
      %v2445 = vmul.f32 %v2433, 1.442695
      %v2446 = vpow.pop %v2445
      %v2447 = vmul.f32 %v2434, 1.442695
      %v2448 = vpow.pop %v2447
      %v2449 = vmul.f32 %v2435, 1.442695
      %v2450 = vpow.pop %v2449
      %v2451 = vmul.f32 %v2436, 1.442695
      %v2452 = vpow.pop %v2451
      %v2453 = vadd.f32 %v2438, 1.0
      %v2454 = vadd.f32 %v2440, 1.0
      %v2455 = vadd.f32 %v2442, 1.0
      %v2456 = vadd.f32 %v2444, 1.0
      %v2457 = vadd.f32 %v2446, 1.0
      %v2458 = vadd.f32 %v2448, 1.0
      %v2459 = vadd.f32 %v2450, 1.0
      %v2460 = vadd.f32 %v2452, 1.0
      %v2461 = vrcp.pop %v2453
      %v2462 = vmul.f32 1.0, %v2461
      %v2463 = vrcp.pop %v2454
      %v2464 = vmul.f32 1.0, %v2463
      %v2465 = vrcp.pop %v2455
      %v2466 = vmul.f32 1.0, %v2465
      %v2467 = vrcp.pop %v2456
      %v2468 = vmul.f32 1.0, %v2467
      %v2469 = vrcp.pop %v2457
      %v2470 = vmul.f32 1.0, %v2469
      %v2471 = vrcp.pop %v2458
      %v2472 = vmul.f32 1.0, %v2471
      %v2473 = vrcp.pop %v2459
      %v2474 = vmul.f32 1.0, %v2473
      %v2475 = vrcp.pop %v2460
      %v2476 = vmul.f32 1.0, %v2475
      %v2477 = vtanh.pop %v2358
      %v2478 = vtanh.pop %v2360
      %v2479 = vtanh.pop %v2362
      %v2480 = vtanh.pop %v2364
      %v2481 = vtanh.pop %v2366
      %v2482 = vtanh.pop %v2368
      %v2483 = vtanh.pop %v2370
      %v2484 = vtanh.pop %v2372
      %2493 = vrot.lane.b32.xlu0 %v2373, 64
      %v2494 = vpop.permute.xlu0 %2493
      %2495 = vrot.lane.b32.xlu0 %v2374, 64
      %v2496 = vpop.permute.xlu0 %2495
      %2497 = vrot.lane.b32.xlu0 %v2375, 64
      %v2498 = vpop.permute.xlu0 %2497
      %2499 = vrot.lane.b32.xlu0 %v2376, 64
      %v2500 = vpop.permute.xlu0 %2499
      %2501 = vrot.lane.b32.xlu0 %v2377, 64
      %v2502 = vpop.permute.xlu0 %2501
      %2503 = vrot.lane.b32.xlu0 %v2378, 64
      %v2504 = vpop.permute.xlu0 %2503
      %2505 = vrot.lane.b32.xlu0 %v2379, 64
      %v2506 = vpop.permute.xlu0 %2505
      %2507 = vrot.lane.b32.xlu0 %v2380, 64
      %v2508 = vpop.permute.xlu0 %2507
      %v2517 = vmul.f32 %v2414, %v2494
      %v2518 = vmul.f32 %v2416, %v2496
      %v2519 = vmul.f32 %v2418, %v2498
      %v2520 = vmul.f32 %v2420, %v2500
      %v2521 = vmul.f32 %v2422, %v2502
      %v2522 = vmul.f32 %v2424, %v2504
      %v2523 = vmul.f32 %v2426, %v2506
      %v2524 = vmul.f32 %v2428, %v2508
      %2533 = vrot.lane.b32.xlu0 %v2477, 64
      %v2534 = vpop.permute.xlu0 %2533
      %2535 = vrot.lane.b32.xlu0 %v2478, 64
      %v2536 = vpop.permute.xlu0 %2535
      %2537 = vrot.lane.b32.xlu0 %v2479, 64
      %v2538 = vpop.permute.xlu0 %2537
      %2539 = vrot.lane.b32.xlu0 %v2480, 64
      %v2540 = vpop.permute.xlu0 %2539
      %2541 = vrot.lane.b32.xlu0 %v2481, 64
      %v2542 = vpop.permute.xlu0 %2541
      %2543 = vrot.lane.b32.xlu0 %v2482, 64
      %v2544 = vpop.permute.xlu0 %2543
      %2545 = vrot.lane.b32.xlu0 %v2483, 64
      %v2546 = vpop.permute.xlu0 %2545
      %2547 = vrot.lane.b32.xlu0 %v2484, 64
      %v2548 = vpop.permute.xlu0 %2547
      %v2557 = vmul.f32 %v2414, %v2534
      %v2558 = vmul.f32 %v2416, %v2536
      %v2559 = vmul.f32 %v2418, %v2538
      %v2560 = vmul.f32 %v2420, %v2540
      %v2561 = vmul.f32 %v2422, %v2542
      %v2562 = vmul.f32 %v2424, %v2544
      %v2563 = vmul.f32 %v2426, %v2546
      %v2564 = vmul.f32 %v2428, %v2548
      %2573 = vrot.lane.b32.xlu0 %v2557, 64
      %v2574 = vpop.permute.xlu0 %2573
      %2575 = vrot.lane.b32.xlu0 %v2558, 64
      %v2576 = vpop.permute.xlu0 %2575
      %2577 = vrot.lane.b32.xlu0 %v2559, 64
      %v2578 = vpop.permute.xlu0 %2577
      %2579 = vrot.lane.b32.xlu0 %v2560, 64
      %v2580 = vpop.permute.xlu0 %2579
      %2581 = vrot.lane.b32.xlu0 %v2561, 64
      %v2582 = vpop.permute.xlu0 %2581
      %2583 = vrot.lane.b32.xlu0 %v2562, 64
      %v2584 = vpop.permute.xlu0 %2583
      %2585 = vrot.lane.b32.xlu0 %v2563, 64
      %v2586 = vpop.permute.xlu0 %2585
      %2587 = vrot.lane.b32.xlu0 %v2564, 64
      %v2588 = vpop.permute.xlu0 %2587
      %v2597 = vadd.f32 %v2517, %v2574
      %v2598 = vadd.f32 %v2518, %v2576
      %v2599 = vadd.f32 %v2519, %v2578
      %v2600 = vadd.f32 %v2520, %v2580
      %v2601 = vadd.f32 %v2521, %v2582
      %v2602 = vadd.f32 %v2522, %v2584
      %v2603 = vadd.f32 %v2523, %v2586
      %v2604 = vadd.f32 %v2524, %v2588
      %v2605 = vtanh.pop %v2597
      %v2606 = vtanh.pop %v2598
      %v2607 = vtanh.pop %v2599
      %v2608 = vtanh.pop %v2600
      %v2609 = vtanh.pop %v2601
      %v2610 = vtanh.pop %v2602
      %v2611 = vtanh.pop %v2603
      %v2612 = vtanh.pop %v2604
      %2621 = vrot.lane.b32.xlu0 %v2605, 64
      %v2622 = vpop.permute.xlu0 %2621
      %2623 = vrot.lane.b32.xlu0 %v2606, 64
      %v2624 = vpop.permute.xlu0 %2623
      %2625 = vrot.lane.b32.xlu0 %v2607, 64
      %v2626 = vpop.permute.xlu0 %2625
      %2627 = vrot.lane.b32.xlu0 %v2608, 64
      %v2628 = vpop.permute.xlu0 %2627
      %2629 = vrot.lane.b32.xlu0 %v2609, 64
      %v2630 = vpop.permute.xlu0 %2629
      %2631 = vrot.lane.b32.xlu0 %v2610, 64
      %v2632 = vpop.permute.xlu0 %2631
      %2633 = vrot.lane.b32.xlu0 %v2611, 64
      %v2634 = vpop.permute.xlu0 %2633
      %2635 = vrot.lane.b32.xlu0 %v2612, 64
      %v2636 = vpop.permute.xlu0 %2635
      %v2645 = vmul.f32 %v2462, %v2622
      %v2646 = vmul.f32 %v2464, %v2624
      %v2647 = vmul.f32 %v2466, %v2626
      %v2648 = vmul.f32 %v2468, %v2628
      %v2649 = vmul.f32 %v2470, %v2630
      %v2650 = vmul.f32 %v2472, %v2632
      %v2651 = vmul.f32 %v2474, %v2634
      %v2652 = vmul.f32 %v2476, %v2636
      %vm2653 = vcmask 523264
      %2654 = vst.msk [vmem:[#allocation2] sm:$0xff] %vm2653, %v2645
      %2655 = vst.msk [vmem:[#allocation2 + $0x8] sm:$0xff] %vm2653, %v2646
      %2656 = vst.msk [vmem:[#allocation2 + $0x10] sm:$0xff] %vm2653, %v2647
      %2657 = vst.msk [vmem:[#allocation2 + $0x18] sm:$0xff] %vm2653, %v2648
      %2658 = vst.msk [vmem:[#allocation2 + $0x20] sm:$0xff] %vm2653, %v2649
      %2659 = vst.msk [vmem:[#allocation2 + $0x28] sm:$0xff] %vm2653, %v2650
      %2660 = vst.msk [vmem:[#allocation2 + $0x30] sm:$0xff] %vm2653, %v2651
      %2661 = vst.msk [vmem:[#allocation2 + $0x38] sm:$0xff] %vm2653, %v2652
      %2670 = vrot.lane.b32.xlu0 %v2597, 64
      %v2671 = vpop.permute.xlu0 %2670
      %2672 = vrot.lane.b32.xlu0 %v2598, 64
      %v2673 = vpop.permute.xlu0 %2672
      %2674 = vrot.lane.b32.xlu0 %v2599, 64
      %v2675 = vpop.permute.xlu0 %2674
      %2676 = vrot.lane.b32.xlu0 %v2600, 64
      %v2677 = vpop.permute.xlu0 %2676
      %2678 = vrot.lane.b32.xlu0 %v2601, 64
      %v2679 = vpop.permute.xlu0 %2678
      %2680 = vrot.lane.b32.xlu0 %v2602, 64
      %v2681 = vpop.permute.xlu0 %2680
      %2682 = vrot.lane.b32.xlu0 %v2603, 64
      %v2683 = vpop.permute.xlu0 %2682
      %2684 = vrot.lane.b32.xlu0 %v2604, 64
      %v2685 = vpop.permute.xlu0 %2684
      %2694 = vst.msk [vmem:[#allocation3] sm:$0xff] %vm2653, %v2671
      %2695 = vst.msk [vmem:[#allocation3 + $0x8] sm:$0xff] %vm2653, %v2673
      %2696 = vst.msk [vmem:[#allocation3 + $0x10] sm:$0xff] %vm2653, %v2675
      %2697 = vst.msk [vmem:[#allocation3 + $0x18] sm:$0xff] %vm2653, %v2677
      %2698 = vst.msk [vmem:[#allocation3 + $0x20] sm:$0xff] %vm2653, %v2679
      %2699 = vst.msk [vmem:[#allocation3 + $0x28] sm:$0xff] %vm2653, %v2681
      %2700 = vst.msk [vmem:[#allocation3 + $0x30] sm:$0xff] %vm2653, %v2683
      %2701 = vst.msk [vmem:[#allocation3 + $0x38] sm:$0xff] %vm2653, %v2685
      %2702 = vst.msk [vmem:[%s386] sm:$0xff] %vm2653, %v2645
      %2703 = vst.msk [vmem:[%s386 + $0x8] sm:$0xff] %vm2653, %v2646
      %2704 = vst.msk [vmem:[%s386 + $0x10] sm:$0xff] %vm2653, %v2647
      %2705 = vst.msk [vmem:[%s386 + $0x18] sm:$0xff] %vm2653, %v2648
      %2706 = vst.msk [vmem:[%s386 + $0x20] sm:$0xff] %vm2653, %v2649
      %2707 = vst.msk [vmem:[%s386 + $0x28] sm:$0xff] %vm2653, %v2650
      %2708 = vst.msk [vmem:[%s386 + $0x30] sm:$0xff] %vm2653, %v2651
      %2709 = vst.msk [vmem:[%s386 + $0x38] sm:$0xff] %vm2653, %v2652
      %v2710 = vld [vmem:[%s3] sm:$0xff]
      %v2711 = vld [vmem:[%s3 + $0x8] sm:$0xff]
      %v2712 = vld [vmem:[%s3 + $0x10] sm:$0xff]
      %v2713 = vld [vmem:[%s3 + $0x18] sm:$0xff]
      %v2714 = vld [vmem:[%s3 + $0x20] sm:$0xff]
      %v2715 = vld [vmem:[%s3 + $0x28] sm:$0xff]
      %v2716 = vld [vmem:[%s3 + $0x30] sm:$0xff]
      %v2717 = vld [vmem:[%s3 + $0x38] sm:$0xff]
      %v2718 = vld [vmem:[%s4] sm:$0x1]
      %v2720 = vlaneseq
      %v2721 = vshrl.u32 %v2720, 7
      %v2722 = vsub.s32 0, %v2721
      %v2723 = vrot.slane %v2718, %v2722
      %v2726 = vsel %vm2653, %v2645, 0
      %v2729 = vsel %vm2653, %v2646, 0
      %v2732 = vsel %vm2653, %v2647, 0
      %v2735 = vsel %vm2653, %v2648, 0
      %v2738 = vsel %vm2653, %v2649, 0
      %v2741 = vsel %vm2653, %v2650, 0
      %v2744 = vsel %vm2653, %v2651, 0
      %v2747 = vsel %vm2653, %v2652, 0
      %2749 = vmatprep.subr.mxu0 0.0
      %2750 = vmatpush1.msra.mxu0 %v2710
      %2751 = vmatprep.subr.mxu0 0.0
      %2752 = vmatpush1.msra.mxu0 %v2711
      %2753 = vmatprep.subr.mxu0 0.0
      %2754 = vmatpush1.msra.mxu0 %v2712
      %2755 = vmatprep.subr.mxu0 0.0
      %2756 = vmatpush1.msra.mxu0 %v2713
      %2757 = vmatprep.subr.mxu0 0.0
      %2758 = vmatpush1.msra.mxu0 %v2714
      %2759 = vmatprep.subr.mxu0 0.0
      %2760 = vmatpush1.msra.mxu0 %v2715
      %2761 = vmatprep.subr.mxu0 0.0
      %2762 = vmatpush1.msra.mxu0 %v2716
      %2763 = vmatprep.subr.mxu0 0.0
      %2764 = vmatpush1.msra.mxu0 %v2717
      %2765 = vmatprep.subr.mxu0 0.0
      %2766 = vmatpush1.msra.mxu0 0.0
      %2767 = vmatprep.subr.mxu0 0.0
      %2768 = vmatpush1.msra.mxu0 0.0
      %2769 = vmatprep.subr.mxu0 0.0
      %2770 = vmatpush1.msra.mxu0 0.0
      %2771 = vmatprep.subr.mxu0 0.0
      %2772 = vmatpush1.msra.mxu0 0.0
      %2773 = vmatprep.subr.mxu0 0.0
      %2774 = vmatpush1.msra.mxu0 0.0
      %2775 = vmatprep.subr.mxu0 0.0
      %2776 = vmatpush1.msra.mxu0 0.0
      %2777 = vmatprep.subr.mxu0 0.0
      %2778 = vmatpush1.msra.mxu0 0.0
      %2779 = vmatprep.subr.mxu0 0.0
      %2780 = vmatpush1.msra.mxu0 0.0
      %2781 = vmatprep.subr.mxu0 0.0
      %2782 = vmatpush1.msra.mxu0 0.0
      %2783 = vmatprep.subr.mxu0 0.0
      %2784 = vmatpush1.msra.mxu0 0.0
      %2785 = vmatprep.subr.mxu0 0.0
      %2786 = vmatpush1.msra.mxu0 0.0
      %2787 = vmatprep.subr.mxu0 0.0
      %2788 = vmatpush1.msra.mxu0 0.0
      %2789 = vmatprep.subr.mxu0 0.0
      %2790 = vmatpush1.msra.mxu0 0.0
      %2791 = vmatprep.subr.mxu0 0.0
      %2792 = vmatpush1.msra.mxu0 0.0
      %2793 = vmatprep.subr.mxu0 0.0
      %2794 = vmatpush1.msra.mxu0 0.0
      %2795 = vmatprep.subr.mxu0 0.0
      %2796 = vmatpush1.msra.mxu0 0.0
      %2797 = vmatprep.subr.mxu0 0.0
      %2798 = vmatpush1.msra.mxu0 0.0
      %2799 = vmatprep.subr.mxu0 0.0
      %2800 = vmatpush1.msra.mxu0 0.0
      %2801 = vmatprep.subr.mxu0 0.0
      %2802 = vmatpush1.msra.mxu0 0.0
      %2803 = vmatprep.subr.mxu0 0.0
      %2804 = vmatpush1.msra.mxu0 0.0
      %2805 = vmatprep.subr.mxu0 0.0
      %2806 = vmatpush1.msra.mxu0 0.0
      %2807 = vmatprep.subr.mxu0 0.0
      %2808 = vmatpush1.msra.mxu0 0.0
      %2809 = vmatprep.subr.mxu0 0.0
      %2810 = vmatpush1.msra.mxu0 0.0
      %2811 = vmatprep.subr.mxu0 0.0
      %2812 = vmatpush1.msra.mxu0 0.0
      %2813 = vmatprep.mubr.f32.mxu0 0.0
      %2814 = vmatmul.mubr.f32.gmra.mrb[0].mxu0 %v2726
      %v2815 = vpop.f32.mrb[0].mxu0
      %v2816 = vadd.f32 %v2723, %v2815
      %v2817 = vpop.f32.mrb[0].mxu0
      %2818 = vmatprep.mubr.f32.mxu0 0.0
      %2819 = vmatmul.mubr.f32.gmra.mrb[0].mxu0 %v2729
      %v2820 = vpop.f32.mrb[0].mxu0
      %v2821 = vadd.f32 %v2723, %v2820
      %v2822 = vpop.f32.mrb[0].mxu0
      %2823 = vmatprep.mubr.f32.mxu0 0.0
      %2824 = vmatmul.mubr.f32.gmra.mrb[0].mxu0 %v2732
      %v2825 = vpop.f32.mrb[0].mxu0
      %v2826 = vadd.f32 %v2723, %v2825
      %v2827 = vpop.f32.mrb[0].mxu0
      %2828 = vmatprep.mubr.f32.mxu0 0.0
      %2829 = vmatmul.mubr.f32.gmra.mrb[0].mxu0 %v2735
      %v2830 = vpop.f32.mrb[0].mxu0
      %v2831 = vadd.f32 %v2723, %v2830
      %v2832 = vpop.f32.mrb[0].mxu0
      %2833 = vmatprep.mubr.f32.mxu0 0.0
      %2834 = vmatmul.mubr.f32.gmra.mrb[0].mxu0 %v2738
      %v2835 = vpop.f32.mrb[0].mxu0
      %v2836 = vadd.f32 %v2723, %v2835
      %v2837 = vpop.f32.mrb[0].mxu0
      %2838 = vmatprep.mubr.f32.mxu0 0.0
      %2839 = vmatmul.mubr.f32.gmra.mrb[0].mxu0 %v2741
      %v2840 = vpop.f32.mrb[0].mxu0
      %v2841 = vadd.f32 %v2723, %v2840
      %v2842 = vpop.f32.mrb[0].mxu0
      %2843 = vmatprep.mubr.f32.mxu0 0.0
      %2844 = vmatmul.mubr.f32.gmra.mrb[0].mxu0 %v2744
      %v2845 = vpop.f32.mrb[0].mxu0
      %v2846 = vadd.f32 %v2723, %v2845
      %v2847 = vpop.f32.mrb[0].mxu0
      %2848 = vmatprep.mubr.f32.mxu0 0.0
      %2849 = vmatmul.mubr.f32.gmra.mrb[0].mxu0 %v2747
      %v2850 = vpop.f32.mrb[0].mxu0
      %v2851 = vadd.f32 %v2723, %v2850
      %v2852 = vpop.f32.mrb[0].mxu0
      %2853 = vdwg.mxu0
      %vm2854 = vcmask 261120
      %2855 = vst.msk [vmem:[%s396] sm:$0xff] %vm2854, %v2816
      %2856 = vst.msk [vmem:[%s396 + $0x8] sm:$0xff] %vm2854, %v2821
      %2857 = vst.msk [vmem:[%s396 + $0x10] sm:$0xff] %vm2854, %v2826
      %2858 = vst.msk [vmem:[%s396 + $0x18] sm:$0xff] %vm2854, %v2831
      %2859 = vst.msk [vmem:[%s396 + $0x20] sm:$0xff] %vm2854, %v2836
      %2860 = vst.msk [vmem:[%s396 + $0x28] sm:$0xff] %vm2854, %v2841
      %2861 = vst.msk [vmem:[%s396 + $0x30] sm:$0xff] %vm2854, %v2846
      %2862 = vst.msk [vmem:[%s396 + $0x38] sm:$0xff] %vm2854, %v2851
      %2863 = vst.msk [vmem:[%s402] sm:$0xff] %vm2653, %v2671
      %2864 = vst.msk [vmem:[%s402 + $0x8] sm:$0xff] %vm2653, %v2673
      %2865 = vst.msk [vmem:[%s402 + $0x10] sm:$0xff] %vm2653, %v2675
      %2866 = vst.msk [vmem:[%s402 + $0x18] sm:$0xff] %vm2653, %v2677
      %2867 = vst.msk [vmem:[%s402 + $0x20] sm:$0xff] %vm2653, %v2679
      %2868 = vst.msk [vmem:[%s402 + $0x28] sm:$0xff] %vm2653, %v2681
      %2869 = vst.msk [vmem:[%s402 + $0x30] sm:$0xff] %vm2653, %v2683
      %2870 = vst.msk [vmem:[%s402 + $0x38] sm:$0xff] %vm2653, %v2685
      %s2871 = smul.u32 8, %s24
      %p2872 = scmp.lt.s32.totalorder %s25, 3
      %s2873 = scalar_select %p2872, %s25, 3
      %p2874 = scmp.lt.s32.totalorder %s2871, 15
      %s2875 = scalar_select %p2874, %s2871, 15
      %s2876 = smul.addr %s2873, 16
      %s2877 = sadd.s32 %s2875, %s2876
      %s2878 = smul.addr %s2877, 8
      %s2879 = scalar_lea.vmem %s6, %s2878
      %s2880 = smul.u32 8, %s24
      %p2881 = scmp.lt.s32.totalorder %s25, 3
      %s2882 = scalar_select %p2881, %s25, 3
      %p2883 = scmp.lt.s32.totalorder %s2880, 15
      %s2884 = scalar_select %p2883, %s2880, 15
      %s2885 = smul.addr %s2882, 16
      %s2886 = sadd.s32 %s2884, %s2885
      %s2887 = smul.addr %s2886, 8
      %s2888 = scalar_lea.vmem %s7, %s2887
      %s2889 = smul.u32 8, %s24
      %p2890 = scmp.lt.s32.totalorder %s2889, 15
      %s2891 = scalar_select %p2890, %s2889, 15
      %s2892 = smul.addr %s2891, 8
      %s2893 = scalar_lea.vmem %s8, %s2892
      // Predicated region
      $region49: #{forward.2} parent=43 // pred_check
        %p2894 = pneg %p190
      $region50: #{forward.2} parent=43 // pred_check_branch
        %2896 = sbr.rel (%p2894) target = $region52
      $region51: #{forward.2} parent=43 // pred_region
        %s2897 = smul.u32 8, %s24
      $region52: #{forward.2} parent=43 // pred_fallthru
        _
      // Predicated region
      $region53: #{forward.2} parent=43 // pred_check
        %p2898 = pneg %p218
      $region54: #{forward.2} parent=43 // pred_check_branch
        %2900 = sbr.rel (%p2898) target = $region56
      $region55: #{forward.2} parent=43 // pred_region
        %s2901 = smul.u32 8, %s24
      $region56: #{forward.2} parent=43 // pred_fallthru
        _
      // Predicated region
      $region57: #{forward.2} parent=43 // pred_check
        %p2902 = pneg %p244
      $region58: #{forward.2} parent=43 // pred_check_branch
        %2904 = sbr.rel (%p2902) target = $region60
      $region59: #{forward.2} parent=43 // pred_region
        %s2905 = smul.u32 8, %s24
      $region60: #{forward.2} parent=43 // pred_fallthru
        _
    $region44: #{forward.2} parent=5 // pred_fallthru
      _
    %p2906 = scmp.le.s32.totalorder 2, %s15
    // Predicated region
    $region61: #{forward.2} parent=5 // pred_check
      %p2907 = pneg %p2906
    $region62: #{forward.2} parent=5 // pred_check_branch
      %2909 = sbr.rel (%p2907) target = $region64
    $region63: #{forward.2} parent=5 // pred_region
      %s2910 = ssub.s32 %s15, 2
      // Predicated region
      $region65: #{forward.2} parent=63 // pred_check
        %p2911 = pneg %p196
      $region66: #{forward.2} parent=63 // pred_check_branch
        %2913 = sbr.rel (%p2911) target = $region68
      $region67: #{forward.2} parent=63 // pred_region
        %s2914 = smul.u32 8, %s26
        %p2915 = scmp.lt.s32.totalorder %s27, 3
        %s2916 = scalar_select %p2915, %s27, 3
        %p2917 = scmp.lt.s32.totalorder %s2914, 15
        %s2918 = scalar_select %p2917, %s2914, 15
        %s2919 = smul.addr %s2916, 16
        %s2920 = sadd.s32 %s2918, %s2919
        %s2921 = smul.addr %s2920, 8
        %s2922 = scalar_lea.vmem %s6, %s2921
      $region68: #{forward.2} parent=63 // pred_fallthru
        _
      // Predicated region
      $region69: #{forward.2} parent=63 // pred_check
        %p2923 = pneg %p224
      $region70: #{forward.2} parent=63 // pred_check_branch
        %2925 = sbr.rel (%p2923) target = $region72
      $region71: #{forward.2} parent=63 // pred_region
        %s2926 = smul.u32 8, %s26
        %p2927 = scmp.lt.s32.totalorder %s27, 3
        %s2928 = scalar_select %p2927, %s27, 3
        %p2929 = scmp.lt.s32.totalorder %s2926, 15
        %s2930 = scalar_select %p2929, %s2926, 15
        %s2931 = smul.addr %s2928, 16
        %s2932 = sadd.s32 %s2930, %s2931
        %s2933 = smul.addr %s2932, 8
        %s2934 = scalar_lea.vmem %s7, %s2933
      $region72: #{forward.2} parent=63 // pred_fallthru
        _
      // Predicated region
      $region73: #{forward.2} parent=63 // pred_check
        %p2935 = pneg %p250
      $region74: #{forward.2} parent=63 // pred_check_branch
        %2937 = sbr.rel (%p2935) target = $region76
      $region75: #{forward.2} parent=63 // pred_region
        %s2938 = smul.u32 8, %s26
        %p2939 = scmp.lt.s32.totalorder %s2938, 15
        %s2940 = scalar_select %p2939, %s2938, 15
        %s2941 = smul.addr %s2940, 8
        %s2942 = scalar_lea.vmem %s8, %s2941
      $region76: #{forward.2} parent=63 // pred_fallthru
        _
    $region64: #{forward.2} parent=5 // pred_fallthru
      _
  $region6: #{forward.2} parent=0 // loop_footer
    %s19 = sadd.s32 1, %s15
  $region7: #{forward.2} parent=0 // loop_footer_branch
    %14 = sbr.rel target = $region3
  $region8: #{forward.2} parent=0 // loop_exit
    _

// kernel: forward.3
$region0: #{forward.3}
  #allocation0 [shape = 'u32[]', space=smem, size = 0x4, offset = 0x4, fixed_abs, tag = 'smem constant byte address 0x4 - core index']
  #allocation1 [shape = 'u32[144,128]{1,0:T(1,128)}', space=vmem, size = 0x12000, scoped, tag = 'internal scratch']
  #allocation2 [shape = 'f32[64,64]{1,0:T(8,128)}', space=vmem, size = 0x8000, scoped, tag = 'scratch operand']
  #allocation3 [shape = 'f32[64,64]{1,0:T(8,128)}', space=vmem, size = 0x8000, scoped, tag = 'scratch operand']
  #allocation4 [shape = 'f32[64,1]{1,0:T(8,128)}', space=vmem, size = 0x8000, scoped, tag = 'scratch operand']
  #allocation5 [shape = 'f32[1,1]{1,0:T(1,128)S(1)}', space=vmem, size = 0x200, scoped, tag = 'scoped memory for forward.3']
  #allocation6 [shape = 'f32[1,1]{1,0:T(1,128)S(1)}', space=vmem, size = 0x200, scoped, tag = 'scoped memory for forward.3']
  %s0 = inlined_call_operand.vmem [shape: f32[128,1], index: 0, kind: input, shape index: {}]
  %s1 = inlined_call_operand.vmem [shape: f32[128,64], index: 1, kind: input, shape index: {}]
  %s2 = inlined_call_operand.vmem [shape: f32[4,128,64], index: 2, kind: input, shape index: {}]
  %s3 = inlined_call_operand.vmem [shape: f32[4,128,32], index: 3, kind: input, shape index: {}]
  %s4 = inlined_call_operand.vmem [shape: f32[64,32], index: 4, kind: input, shape index: {}]
  %s5 = inlined_call_operand.vmem [shape: f32[1,32], index: 5, kind: input, shape index: {}]
  %s6 = inlined_call_operand.<no memory space> [shape: f32[1,1], index: 6, kind: input, shape index: {}]
  %s7 = inlined_call_operand.vmem [shape: bf16[9,129,256], index: 7, kind: input, shape index: {}]
  %s8 = inlined_call_operand.vmem [shape: f32[1,256], index: 8, kind: input, shape index: {}]
  %s9 = inlined_call_operand.vmem [shape: f32[64,1], index: 9, kind: input, shape index: {}]
  %s10 = inlined_call_operand.<no memory space> [shape: f32[1,1], index: 10, kind: input, shape index: {}]
  %s11 = inlined_call_operand.vmem [shape: f32[128,9], index: 11, kind: input, shape index: {}]
  %s12 = inlined_call_operand.vmem [shape: f32[3,128,1], index: 12, kind: output, shape index: {}]
  %s13 = sld [smem:[#allocation0]]
  $region161: #{forward.3} parent=0
    _
  %s15 = ssub.s32 1, %s13
  %s16 = scalar_select 0, %s15, %s13
  %v17 = vstv %s6
  %18 = vst [vmem:[#allocation5] sm:$0x1] %v17
  %v19 = vstv %s10
  %20 = vst [vmem:[#allocation6] sm:$0x1] %v19
  $region1: #{forward.3} parent=0
    #allocation7 [shape = 'u8[262144]{0}', space=vmem, size = 0x40000, scoped, tag = 'input window, operand 2']
    #allocation8 [shape = 'u8[262144]{0}', space=vmem, size = 0x40000, scoped, tag = 'input window, operand 3']
    loop: start=0, step=1, limit=8
    $region2: #{forward.3} parent=1 // loop_pre_header
      _
    $region3: #{forward.3} parent=1 // loop_header
      %s22 = sphi 0, %s26
      %p23 = scmp.ge.s32.totalorder %s22, 8
      %s29 = sphi 0, %s41
      %s30 = sphi 0, %s37
      %s31 = sphi 0, %s29
      %s32 = sphi 0, %s30
      %s33 = sphi 0, %s31
      %s34 = sphi 0, %s32
      %s44 = sphi 0, %s46
      %s47 = sphi 0, %s44
      %s48 = sphi 0, %s47
      %s64 = sphi 0, %s48
      %s70 = sphi 0, %s72
      %s73 = sphi 0, %s70
      %s74 = sphi 0, %s73
      %s90 = sphi 0, %s74
      %s96 = sphi 0, %s98
      %s99 = sphi 0, %s96
      %s100 = sphi 0, %s99
      %s116 = sphi 0, %s100
      %s122 = sphi 0, %s124
      %s125 = sphi 0, %s122
      %s126 = sphi 0, %s125
      %s142 = sphi 0, %s126
      %s146 = sphi 0, %s146
      %s148 = sphi 0, %s146
      %s149 = sphi 0, %s148
      %s163 = sphi 0, %s149
      %s167 = sphi 0, %s167
      %s169 = sphi 0, %s167
      %s170 = sphi 0, %s169
      %s184 = sphi 0, %s170
      %s188 = sphi 0, %s188
      %s190 = sphi 0, %s188
      %s191 = sphi 0, %s190
      %s205 = sphi 0, %s191
      %s209 = sphi 0, %s209
      %s211 = sphi 0, %s209
      %s212 = sphi 0, %s211
      %s226 = sphi 0, %s212
      %s230 = sphi 0, %s230
      %s232 = sphi 0, %s230
      %s233 = sphi 0, %s232
      %s247 = sphi 0, %s233
      %s251 = sphi 0, %s251
      %s253 = sphi 0, %s251
      %s254 = sphi 0, %s253
      %s268 = sphi 0, %s254
      %s272 = sphi 0, %s272
      %s274 = sphi 0, %s272
      %s275 = sphi 0, %s274
      %s289 = sphi 0, %s275
      %s295 = sphi 0, %s297
      %s298 = sphi 0, %s295
      %s299 = sphi 0, %s298
      %s315 = sphi 0, %s299
      %s323 = sphi 0, %s325
      %s326 = sphi 0, %s323
      %s327 = sphi 0, %s326
      %s343 = sphi 0, %s327
    $region4: #{forward.3} parent=1 // loop_header_branch
      %25 = sbr.rel (%p23) target = $region8
    $region5: #{forward.3} parent=1 // loop_body
      %s27 = ssub.s32 %s22, 1
      %s28 = ssub.s32 %s22, 2
      %s35 = sadd.s32 1, %s30
      %p36 = scmp.ge.s32.totalorder %s35, 3
      %s37 = scalar_select %p36, 0, %s35
      %s38 = sadd.s32 1, %s29
      %s39 = scalar_select %p36, %s38, %s29
      %p40 = scmp.ge.s32.totalorder %s39, 2
      %s41 = scalar_select %p40, 0, %s39
      %s42 = ssub.s32 %s29, %s41
      %p43 = scmp.eq.s32.totalorder %s42, 0
      %s45 = sadd.s32 %s44, 1
      %s46 = scalar_select %p43, %s44, %s45
      %p49 = pneg %p43
      %p50 = scmp.eq.s32.totalorder %s22, 5
      %p51 = por %p49, %p50
      %p52 = scmp.ne.s32.totalorder %s44, %s47
      %p53 = scmp.eq.s32.totalorder %s22, 0
      %p54 = por %p52, %p53
      %p55 = scmp.ne.s32.totalorder %s44, %s47
      %p56 = scmp.eq.s32.totalorder %s27, 5
      %p57 = por %p55, %p56
      %p58 = scmp.ne.s32.totalorder %s47, %s48
      %p59 = scmp.eq.s32.totalorder %s27, 0
      %p60 = por %p58, %p59
      %p61 = scmp.ne.s32.totalorder %s47, %s48
      %p62 = scmp.eq.s32.totalorder %s28, 5
      %p63 = por %p61, %p62
      %p65 = scmp.ne.s32.totalorder %s48, %s64
      %p66 = scmp.eq.s32.totalorder %s28, 0
      %p67 = por %p65, %p66
      %s68 = ssub.s32 %s29, %s41
      %p69 = scmp.eq.s32.totalorder %s68, 0
      %s71 = sadd.s32 %s70, 1
      %s72 = scalar_select %p69, %s70, %s71
      %p75 = pneg %p69
      %p76 = scmp.eq.s32.totalorder %s22, 5
      %p77 = por %p75, %p76
      %p78 = scmp.ne.s32.totalorder %s70, %s73
      %p79 = scmp.eq.s32.totalorder %s22, 0
      %p80 = por %p78, %p79
      %p81 = scmp.ne.s32.totalorder %s70, %s73
      %p82 = scmp.eq.s32.totalorder %s27, 5
      %p83 = por %p81, %p82
      %p84 = scmp.ne.s32.totalorder %s73, %s74
      %p85 = scmp.eq.s32.totalorder %s27, 0
      %p86 = por %p84, %p85
      %p87 = scmp.ne.s32.totalorder %s73, %s74
      %p88 = scmp.eq.s32.totalorder %s28, 5
      %p89 = por %p87, %p88
      %p91 = scmp.ne.s32.totalorder %s74, %s90
      %p92 = scmp.eq.s32.totalorder %s28, 0
      %p93 = por %p91, %p92
      %s94 = ssub.s32 %s29, %s41
      %p95 = scmp.eq.s32.totalorder %s94, 0
      %s97 = sadd.s32 %s96, 1
      %s98 = scalar_select %p95, %s96, %s97
      %p101 = pneg %p95
      %p102 = scmp.eq.s32.totalorder %s22, 5
      %p103 = por %p101, %p102
      %p104 = scmp.ne.s32.totalorder %s96, %s99
      %p105 = scmp.eq.s32.totalorder %s22, 0
      %p106 = por %p104, %p105
      %p107 = scmp.ne.s32.totalorder %s96, %s99
      %p108 = scmp.eq.s32.totalorder %s27, 5
      %p109 = por %p107, %p108
      %p110 = scmp.ne.s32.totalorder %s99, %s100
      %p111 = scmp.eq.s32.totalorder %s27, 0
      %p112 = por %p110, %p111
      %p113 = scmp.ne.s32.totalorder %s99, %s100
      %p114 = scmp.eq.s32.totalorder %s28, 5
      %p115 = por %p113, %p114
      %p117 = scmp.ne.s32.totalorder %s100, %s116
      %p118 = scmp.eq.s32.totalorder %s28, 0
      %p119 = por %p117, %p118
      %s120 = ssub.s32 %s29, %s41
      %p121 = scmp.eq.s32.totalorder %s120, 0
      %s123 = sadd.s32 %s122, 1
      %s124 = scalar_select %p121, %s122, %s123
      %p127 = pneg %p121
      %p128 = scmp.eq.s32.totalorder %s22, 5
      %p129 = por %p127, %p128
      %p130 = scmp.ne.s32.totalorder %s122, %s125
      %p131 = scmp.eq.s32.totalorder %s22, 0
      %p132 = por %p130, %p131
      %p133 = scmp.ne.s32.totalorder %s122, %s125
      %p134 = scmp.eq.s32.totalorder %s27, 5
      %p135 = por %p133, %p134
      %p136 = scmp.ne.s32.totalorder %s125, %s126
      %p137 = scmp.eq.s32.totalorder %s27, 0
      %p138 = por %p136, %p137
      %p139 = scmp.ne.s32.totalorder %s125, %s126
      %p140 = scmp.eq.s32.totalorder %s28, 5
      %p141 = por %p139, %p140
      %p143 = scmp.ne.s32.totalorder %s126, %s142
      %p144 = scmp.eq.s32.totalorder %s28, 0
      %p145 = por %p143, %p144
      %s147 = sadd.s32 %s146, 1
      %p150 = scmp.eq.s32.totalorder %s22, 5
      %p151 = scmp.ne.s32.totalorder %s146, %s148
      %p152 = scmp.eq.s32.totalorder %s22, 0
      %p153 = por %p151, %p152
      %p154 = scmp.ne.s32.totalorder %s146, %s148
      %p155 = scmp.eq.s32.totalorder %s27, 5
      %p156 = por %p154, %p155
      %p157 = scmp.ne.s32.totalorder %s148, %s149
      %p158 = scmp.eq.s32.totalorder %s27, 0
      %p159 = por %p157, %p158
      %p160 = scmp.ne.s32.totalorder %s148, %s149
      %p161 = scmp.eq.s32.totalorder %s28, 5
      %p162 = por %p160, %p161
      %p164 = scmp.ne.s32.totalorder %s149, %s163
      %p165 = scmp.eq.s32.totalorder %s28, 0
      %p166 = por %p164, %p165
      %s168 = sadd.s32 %s167, 1
      %p171 = scmp.eq.s32.totalorder %s22, 5
      %p172 = scmp.ne.s32.totalorder %s167, %s169
      %p173 = scmp.eq.s32.totalorder %s22, 0
      %p174 = por %p172, %p173
      %p175 = scmp.ne.s32.totalorder %s167, %s169
      %p176 = scmp.eq.s32.totalorder %s27, 5
      %p177 = por %p175, %p176
      %p178 = scmp.ne.s32.totalorder %s169, %s170
      %p179 = scmp.eq.s32.totalorder %s27, 0
      %p180 = por %p178, %p179
      %p181 = scmp.ne.s32.totalorder %s169, %s170
      %p182 = scmp.eq.s32.totalorder %s28, 5
      %p183 = por %p181, %p182
      %p185 = scmp.ne.s32.totalorder %s170, %s184
      %p186 = scmp.eq.s32.totalorder %s28, 0
      %p187 = por %p185, %p186
      %s189 = sadd.s32 %s188, 1
      %p192 = scmp.eq.s32.totalorder %s22, 5
      %p193 = scmp.ne.s32.totalorder %s188, %s190
      %p194 = scmp.eq.s32.totalorder %s22, 0
      %p195 = por %p193, %p194
      %p196 = scmp.ne.s32.totalorder %s188, %s190
      %p197 = scmp.eq.s32.totalorder %s27, 5
      %p198 = por %p196, %p197
      %p199 = scmp.ne.s32.totalorder %s190, %s191
      %p200 = scmp.eq.s32.totalorder %s27, 0
      %p201 = por %p199, %p200
      %p202 = scmp.ne.s32.totalorder %s190, %s191
      %p203 = scmp.eq.s32.totalorder %s28, 5
      %p204 = por %p202, %p203
      %p206 = scmp.ne.s32.totalorder %s191, %s205
      %p207 = scmp.eq.s32.totalorder %s28, 0
      %p208 = por %p206, %p207
      %s210 = sadd.s32 %s209, 1
      %p213 = scmp.eq.s32.totalorder %s22, 5
      %p214 = scmp.ne.s32.totalorder %s209, %s211
      %p215 = scmp.eq.s32.totalorder %s22, 0
      %p216 = por %p214, %p215
      %p217 = scmp.ne.s32.totalorder %s209, %s211
      %p218 = scmp.eq.s32.totalorder %s27, 5
      %p219 = por %p217, %p218
      %p220 = scmp.ne.s32.totalorder %s211, %s212
      %p221 = scmp.eq.s32.totalorder %s27, 0
      %p222 = por %p220, %p221
      %p223 = scmp.ne.s32.totalorder %s211, %s212
      %p224 = scmp.eq.s32.totalorder %s28, 5
      %p225 = por %p223, %p224
      %p227 = scmp.ne.s32.totalorder %s212, %s226
      %p228 = scmp.eq.s32.totalorder %s28, 0
      %p229 = por %p227, %p228
      %s231 = sadd.s32 %s230, 1
      %p234 = scmp.eq.s32.totalorder %s22, 5
      %p235 = scmp.ne.s32.totalorder %s230, %s232
      %p236 = scmp.eq.s32.totalorder %s22, 0
      %p237 = por %p235, %p236
      %p238 = scmp.ne.s32.totalorder %s230, %s232
      %p239 = scmp.eq.s32.totalorder %s27, 5
      %p240 = por %p238, %p239
      %p241 = scmp.ne.s32.totalorder %s232, %s233
      %p242 = scmp.eq.s32.totalorder %s27, 0
      %p243 = por %p241, %p242
      %p244 = scmp.ne.s32.totalorder %s232, %s233
      %p245 = scmp.eq.s32.totalorder %s28, 5
      %p246 = por %p244, %p245
      %p248 = scmp.ne.s32.totalorder %s233, %s247
      %p249 = scmp.eq.s32.totalorder %s28, 0
      %p250 = por %p248, %p249
      %s252 = sadd.s32 %s251, 1
      %p255 = scmp.eq.s32.totalorder %s22, 5
      %p256 = scmp.ne.s32.totalorder %s251, %s253
      %p257 = scmp.eq.s32.totalorder %s22, 0
      %p258 = por %p256, %p257
      %p259 = scmp.ne.s32.totalorder %s251, %s253
      %p260 = scmp.eq.s32.totalorder %s27, 5
      %p261 = por %p259, %p260
      %p262 = scmp.ne.s32.totalorder %s253, %s254
      %p263 = scmp.eq.s32.totalorder %s27, 0
      %p264 = por %p262, %p263
      %p265 = scmp.ne.s32.totalorder %s253, %s254
      %p266 = scmp.eq.s32.totalorder %s28, 5
      %p267 = por %p265, %p266
      %p269 = scmp.ne.s32.totalorder %s254, %s268
      %p270 = scmp.eq.s32.totalorder %s28, 0
      %p271 = por %p269, %p270
      %s273 = sadd.s32 %s272, 1
      %p276 = scmp.eq.s32.totalorder %s22, 5
      %p277 = scmp.ne.s32.totalorder %s272, %s274
      %p278 = scmp.eq.s32.totalorder %s22, 0
      %p279 = por %p277, %p278
      %p280 = scmp.ne.s32.totalorder %s272, %s274
      %p281 = scmp.eq.s32.totalorder %s27, 5
      %p282 = por %p280, %p281
      %p283 = scmp.ne.s32.totalorder %s274, %s275
      %p284 = scmp.eq.s32.totalorder %s27, 0
      %p285 = por %p283, %p284
      %p286 = scmp.ne.s32.totalorder %s274, %s275
      %p287 = scmp.eq.s32.totalorder %s28, 5
      %p288 = por %p286, %p287
      %p290 = scmp.ne.s32.totalorder %s275, %s289
      %p291 = scmp.eq.s32.totalorder %s28, 0
      %p292 = por %p290, %p291
      %s293 = ssub.s32 %s29, %s41
      %p294 = scmp.eq.s32.totalorder %s293, 0
      %s296 = sadd.s32 %s295, 1
      %s297 = scalar_select %p294, %s295, %s296
      %p300 = pneg %p294
      %p301 = scmp.eq.s32.totalorder %s22, 5
      %p302 = por %p300, %p301
      %p303 = scmp.ne.s32.totalorder %s295, %s298
      %p304 = scmp.eq.s32.totalorder %s22, 0
      %p305 = por %p303, %p304
      %p306 = scmp.ne.s32.totalorder %s295, %s298
      %p307 = scmp.eq.s32.totalorder %s27, 5
      %p308 = por %p306, %p307
      %p309 = scmp.ne.s32.totalorder %s298, %s299
      %p310 = scmp.eq.s32.totalorder %s27, 0
      %p311 = por %p309, %p310
      %p312 = scmp.ne.s32.totalorder %s298, %s299
      %p313 = scmp.eq.s32.totalorder %s28, 5
      %p314 = por %p312, %p313
      %p316 = scmp.ne.s32.totalorder %s299, %s315
      %p317 = scmp.eq.s32.totalorder %s28, 0
      %p318 = por %p316, %p317
      %s319 = ssub.s32 %s30, %s37
      %s320 = ssub.s32 %s29, %s41
      %s321 = sor.u32 %s319, %s320
      %p322 = scmp.eq.s32.totalorder %s321, 0
      %s324 = sadd.s32 %s323, 1
      %s325 = scalar_select %p322, %s323, %s324
      %p328 = pneg %p322
      %p329 = scmp.eq.s32.totalorder %s22, 5
      %p330 = por %p328, %p329
      %p331 = scmp.ne.s32.totalorder %s323, %s326
      %p332 = scmp.eq.s32.totalorder %s22, 0
      %p333 = por %p331, %p332
      %p334 = scmp.ne.s32.totalorder %s323, %s326
      %p335 = scmp.eq.s32.totalorder %s27, 5
      %p336 = por %p334, %p335
      %p337 = scmp.ne.s32.totalorder %s326, %s327
      %p338 = scmp.eq.s32.totalorder %s27, 0
      %p339 = por %p337, %p338
      %p340 = scmp.ne.s32.totalorder %s326, %s327
      %p341 = scmp.eq.s32.totalorder %s28, 5
      %p342 = por %p340, %p341
      %p344 = scmp.ne.s32.totalorder %s327, %s343
      %p345 = scmp.eq.s32.totalorder %s28, 0
      %p346 = por %p344, %p345
      %p347 = scmp.le.s32.totalorder 1, %s22
      %p348 = scmp.lt.s32.totalorder %s22, 7
      %p349 = pnand %p347, %p348
      %p350 = pneg %p349
      // Predicated region
      $region9: #{forward.3} parent=5 // pred_check
        _
      $region10: #{forward.3} parent=5 // pred_check_branch
        %352 = sbr.rel (%p349) target = $region12
      $region11: #{forward.3} parent=5 // pred_region
        %s353 = ssub.s32 %s22, 1
        // Predicated region
        $region13: #{forward.3} parent=11 // pred_check
          %p354 = pneg %p159
        $region14: #{forward.3} parent=11 // pred_check_branch
          %356 = sbr.rel (%p354) target = $region16
        $region15: #{forward.3} parent=11 // pred_region
          _
        $region16: #{forward.3} parent=11 // pred_fallthru
          _
        // Predicated region
        $region17: #{forward.3} parent=11 // pred_check
          %p357 = pneg %p180
        $region18: #{forward.3} parent=11 // pred_check_branch
          %359 = sbr.rel (%p357) target = $region20
        $region19: #{forward.3} parent=11 // pred_region
          _
        $region20: #{forward.3} parent=11 // pred_fallthru
          _
        // Predicated region
        $region21: #{forward.3} parent=11 // pred_check
          %p360 = pneg %p201
        $region22: #{forward.3} parent=11 // pred_check_branch
          %362 = sbr.rel (%p360) target = $region24
        $region23: #{forward.3} parent=11 // pred_region
          _
        $region24: #{forward.3} parent=11 // pred_fallthru
          _
        // Predicated region
        $region25: #{forward.3} parent=11 // pred_check
          %p363 = pneg %p222
        $region26: #{forward.3} parent=11 // pred_check_branch
          %365 = sbr.rel (%p363) target = $region28
        $region27: #{forward.3} parent=11 // pred_region
          _
        $region28: #{forward.3} parent=11 // pred_fallthru
          _
        // Predicated region
        $region29: #{forward.3} parent=11 // pred_check
          %p366 = pneg %p243
        $region30: #{forward.3} parent=11 // pred_check_branch
          %368 = sbr.rel (%p366) target = $region32
        $region31: #{forward.3} parent=11 // pred_region
          _
        $region32: #{forward.3} parent=11 // pred_fallthru
          _
        // Predicated region
        $region33: #{forward.3} parent=11 // pred_check
          %p369 = pneg %p264
        $region34: #{forward.3} parent=11 // pred_check_branch
          %371 = sbr.rel (%p369) target = $region36
        $region35: #{forward.3} parent=11 // pred_region
          _
        $region36: #{forward.3} parent=11 // pred_fallthru
          _
        // Predicated region
        $region37: #{forward.3} parent=11 // pred_check
          %p372 = pneg %p285
        $region38: #{forward.3} parent=11 // pred_check_branch
          %374 = sbr.rel (%p372) target = $region40
        $region39: #{forward.3} parent=11 // pred_region
          _
        $region40: #{forward.3} parent=11 // pred_fallthru
          _
      $region12: #{forward.3} parent=5 // pred_fallthru
        _
      %p375 = scmp.lt.s32.totalorder %s22, 6
      // Predicated region
      $region41: #{forward.3} parent=5 // pred_check
        %p376 = pneg %p375
      $region42: #{forward.3} parent=5 // pred_check_branch
        %378 = sbr.rel (%p376) target = $region44
      $region43: #{forward.3} parent=5 // pred_region
        // Predicated region
        $region45: #{forward.3} parent=43 // pred_check
          %p379 = pneg %p54
        $region46: #{forward.3} parent=43 // pred_check_branch
          %381 = sbr.rel (%p379) target = $region48
        $region47: #{forward.3} parent=43 // pred_region
          %s382 = smul.u32 8, %s29
          %p383 = scmp.lt.s32.totalorder %s382, 15
          %s384 = scalar_select %p383, %s382, 15
          %s385 = smul.addr %s384, 8
          %s386 = scalar_lea.vmem %s0, %s385
          %s387 = smul.u32 8, %s29
        $region48: #{forward.3} parent=43 // pred_fallthru
          _
        // Predicated region
        $region49: #{forward.3} parent=43 // pred_check
          %p388 = pneg %p80
        $region50: #{forward.3} parent=43 // pred_check_branch
          %390 = sbr.rel (%p388) target = $region52
        $region51: #{forward.3} parent=43 // pred_region
          %s391 = smul.u32 8, %s29
          %p392 = scmp.lt.s32.totalorder %s391, 15
          %s393 = scalar_select %p392, %s391, 15
          %s394 = smul.addr %s393, 8
          %s395 = scalar_lea.vmem %s1, %s394
          %s396 = smul.u32 8, %s29
        $region52: #{forward.3} parent=43 // pred_fallthru
          _
        // Predicated region
        $region53: #{forward.3} parent=43 // pred_check
          %p397 = pneg %p106
        $region54: #{forward.3} parent=43 // pred_check_branch
          %399 = sbr.rel (%p397) target = $region56
        $region55: #{forward.3} parent=43 // pred_region
          %s400 = sand.u32 %s96, 1
          %s401 = sand.u32 %s96, 1
          %s402 = smul.addr %s401, 256
          %s403 = scalar_lea.vmem [#allocation7], %s402
          %s404 = smul.u32 8, %s29
          %s405 = smul.addr %s404, 8
          %s406 = scalar_lea.vmem %s2, %s405
          // Predicated region
          $region57: #{forward.3} parent=55 // pred_check
            _
          $region58: #{forward.3} parent=55 // pred_check_branch
            %408 = sbr.rel (0) target = $region60
          $region59: #{forward.3} parent=55 // pred_region
            // Predicated region
            $region61: #{forward.3} parent=59 // pred_check
              _
            $region62: #{forward.3} parent=59 // pred_check_branch
              %410 = sbr.rel (0) target = $region64
            $region63: #{forward.3} parent=59 // pred_region
              // Predicated region
              $region76: #{forward.3} parent=63 // pred_check
                _
              $region77: #{forward.3} parent=63 // pred_check_branch
                %487 = sbr.rel (0) target = $region79
              $region78: #{forward.3} parent=63 // pred_region
                loop: start=0, step=1, limit=1
                $region80: #{forward.3} parent=78 // loop_pre_header
                  _
                $region81: #{forward.3} parent=78 // loop_header
                  %s489 = sphi 0, %s493
                  %p490 = scmp.ge.s32.totalorder %s489, 1
                  %s494 = sphi %s406, %s406
                  %s495 = sphi %s403, %s403
                $region82: #{forward.3} parent=78 // loop_header_branch
                  %492 = sbr.rel (%p490) target = $region86
                $region83: #{forward.3} parent=78 // loop_body
                  %v496 = vld [vmem:[%s494] sm:$0xff]
                  %497 = vst [vmem:[%s495] sm:$0xff] %v496
                  %v498 = vld [vmem:[%s494 + $0x8] sm:$0xff]
                  %499 = vst [vmem:[%s495 + $0x8] sm:$0xff] %v498
                  %v500 = vld [vmem:[%s494 + $0x10] sm:$0xff]
                  %501 = vst [vmem:[%s495 + $0x10] sm:$0xff] %v500
                  %v502 = vld [vmem:[%s494 + $0x18] sm:$0xff]
                  %503 = vst [vmem:[%s495 + $0x18] sm:$0xff] %v502
                  %v504 = vld [vmem:[%s494 + $0x20] sm:$0xff]
                  %505 = vst [vmem:[%s495 + $0x20] sm:$0xff] %v504
                  %v506 = vld [vmem:[%s494 + $0x28] sm:$0xff]
                  %507 = vst [vmem:[%s495 + $0x28] sm:$0xff] %v506
                  %v508 = vld [vmem:[%s494 + $0x30] sm:$0xff]
                  %509 = vst [vmem:[%s495 + $0x30] sm:$0xff] %v508
                  %v510 = vld [vmem:[%s494 + $0x38] sm:$0xff]
                  %511 = vst [vmem:[%s495 + $0x38] sm:$0xff] %v510
                  %v512 = vld [vmem:[%s494 + $0x80] sm:$0xff]
                  %513 = vst [vmem:[%s495 + $0x40] sm:$0xff] %v512
                  %v514 = vld [vmem:[%s494 + $0x88] sm:$0xff]
                  %515 = vst [vmem:[%s495 + $0x48] sm:$0xff] %v514
                  %v516 = vld [vmem:[%s494 + $0x90] sm:$0xff]
                  %517 = vst [vmem:[%s495 + $0x50] sm:$0xff] %v516
                  %v518 = vld [vmem:[%s494 + $0x98] sm:$0xff]
                  %519 = vst [vmem:[%s495 + $0x58] sm:$0xff] %v518
                  %v520 = vld [vmem:[%s494 + $0xa0] sm:$0xff]
                  %521 = vst [vmem:[%s495 + $0x60] sm:$0xff] %v520
                  %v522 = vld [vmem:[%s494 + $0xa8] sm:$0xff]
                  %523 = vst [vmem:[%s495 + $0x68] sm:$0xff] %v522
                  %v524 = vld [vmem:[%s494 + $0xb0] sm:$0xff]
                  %525 = vst [vmem:[%s495 + $0x70] sm:$0xff] %v524
                  %v526 = vld [vmem:[%s494 + $0xb8] sm:$0xff]
                  %527 = vst [vmem:[%s495 + $0x78] sm:$0xff] %v526
                  %v528 = vld [vmem:[%s494 + $0x100] sm:$0xff]
                  %529 = vst [vmem:[%s495 + $0x80] sm:$0xff] %v528
                  %v530 = vld [vmem:[%s494 + $0x108] sm:$0xff]
                  %531 = vst [vmem:[%s495 + $0x88] sm:$0xff] %v530
                  %v532 = vld [vmem:[%s494 + $0x110] sm:$0xff]
                  %533 = vst [vmem:[%s495 + $0x90] sm:$0xff] %v532
                  %v534 = vld [vmem:[%s494 + $0x118] sm:$0xff]
                  %535 = vst [vmem:[%s495 + $0x98] sm:$0xff] %v534
                  %v536 = vld [vmem:[%s494 + $0x120] sm:$0xff]
                  %537 = vst [vmem:[%s495 + $0xa0] sm:$0xff] %v536
                  %v538 = vld [vmem:[%s494 + $0x128] sm:$0xff]
                  %539 = vst [vmem:[%s495 + $0xa8] sm:$0xff] %v538
                  %v540 = vld [vmem:[%s494 + $0x130] sm:$0xff]
                  %541 = vst [vmem:[%s495 + $0xb0] sm:$0xff] %v540
                  %v542 = vld [vmem:[%s494 + $0x138] sm:$0xff]
                  %543 = vst [vmem:[%s495 + $0xb8] sm:$0xff] %v542
                  %v544 = vld [vmem:[%s494 + $0x180] sm:$0xff]
                  %545 = vst [vmem:[%s495 + $0xc0] sm:$0xff] %v544
                  %v546 = vld [vmem:[%s494 + $0x188] sm:$0xff]
                  %547 = vst [vmem:[%s495 + $0xc8] sm:$0xff] %v546
                  %v548 = vld [vmem:[%s494 + $0x190] sm:$0xff]
                  %549 = vst [vmem:[%s495 + $0xd0] sm:$0xff] %v548
                  %v550 = vld [vmem:[%s494 + $0x198] sm:$0xff]
                  %551 = vst [vmem:[%s495 + $0xd8] sm:$0xff] %v550
                  %v552 = vld [vmem:[%s494 + $0x1a0] sm:$0xff]
                  %553 = vst [vmem:[%s495 + $0xe0] sm:$0xff] %v552
                  %v554 = vld [vmem:[%s494 + $0x1a8] sm:$0xff]
                  %555 = vst [vmem:[%s495 + $0xe8] sm:$0xff] %v554
                  %v556 = vld [vmem:[%s494 + $0x1b0] sm:$0xff]
                  %557 = vst [vmem:[%s495 + $0xf0] sm:$0xff] %v556
                  %v558 = vld [vmem:[%s494 + $0x1b8] sm:$0xff]
                  %559 = vst [vmem:[%s495 + $0xf8] sm:$0xff] %v558
                $region84: #{forward.3} parent=78 // loop_footer
                  %s493 = sadd.s32 1, %s489
                $region85: #{forward.3} parent=78 // loop_footer_branch
                  %488 = sbr.rel target = $region81
                $region86: #{forward.3} parent=78 // loop_exit
                  _
              $region79: #{forward.3} parent=63 // pred_fallthru
                _
              // Predicated region
              $region87: #{forward.3} parent=63 // pred_check
                _
              $region88: #{forward.3} parent=63 // pred_check_branch
                %561 = sbr.rel target = $region90
              $region89: #{forward.3} parent=63 // pred_region
                _
              $region90: #{forward.3} parent=63 // pred_fallthru
                _
            $region64: #{forward.3} parent=59 // pred_fallthru
              _
            // Predicated region
            $region65: #{forward.3} parent=59 // pred_check
              _
            $region66: #{forward.3} parent=59 // pred_check_branch
              %412 = sbr.rel target = $region68
            $region67: #{forward.3} parent=59 // pred_region
              loop: start=0, step=1, limit=1
              $region69: #{forward.3} parent=67 // loop_pre_header
                _
              $region70: #{forward.3} parent=67 // loop_header
                %s415 = sphi 0, %s419
                %p416 = scmp.ge.s32.totalorder %s415, 1
                %s420 = sphi %s406, %s406
                %s421 = sphi %s403, %s403
              $region71: #{forward.3} parent=67 // loop_header_branch
                %418 = sbr.rel (%p416) target = $region75
              $region72: #{forward.3} parent=67 // loop_body
                %v422 = vld [vmem:[%s420] sm:$0xff]
                %423 = vst [vmem:[%s421] sm:$0xff] %v422
                %v424 = vld [vmem:[%s420 + $0x8] sm:$0xff]
                %425 = vst [vmem:[%s421 + $0x8] sm:$0xff] %v424
                %v426 = vld [vmem:[%s420 + $0x10] sm:$0xff]
                %427 = vst [vmem:[%s421 + $0x10] sm:$0xff] %v426
                %v428 = vld [vmem:[%s420 + $0x18] sm:$0xff]
                %429 = vst [vmem:[%s421 + $0x18] sm:$0xff] %v428
                %v430 = vld [vmem:[%s420 + $0x20] sm:$0xff]
                %431 = vst [vmem:[%s421 + $0x20] sm:$0xff] %v430
                %v432 = vld [vmem:[%s420 + $0x28] sm:$0xff]
                %433 = vst [vmem:[%s421 + $0x28] sm:$0xff] %v432
                %v434 = vld [vmem:[%s420 + $0x30] sm:$0xff]
                %435 = vst [vmem:[%s421 + $0x30] sm:$0xff] %v434
                %v436 = vld [vmem:[%s420 + $0x38] sm:$0xff]
                %437 = vst [vmem:[%s421 + $0x38] sm:$0xff] %v436
                %v438 = vld [vmem:[%s420 + $0x80] sm:$0xff]
                %439 = vst [vmem:[%s421 + $0x40] sm:$0xff] %v438
                %v440 = vld [vmem:[%s420 + $0x88] sm:$0xff]
                %441 = vst [vmem:[%s421 + $0x48] sm:$0xff] %v440
                %v442 = vld [vmem:[%s420 + $0x90] sm:$0xff]
                %443 = vst [vmem:[%s421 + $0x50] sm:$0xff] %v442
                %v444 = vld [vmem:[%s420 + $0x98] sm:$0xff]
                %445 = vst [vmem:[%s421 + $0x58] sm:$0xff] %v444
                %v446 = vld [vmem:[%s420 + $0xa0] sm:$0xff]
                %447 = vst [vmem:[%s421 + $0x60] sm:$0xff] %v446
                %v448 = vld [vmem:[%s420 + $0xa8] sm:$0xff]
                %449 = vst [vmem:[%s421 + $0x68] sm:$0xff] %v448
                %v450 = vld [vmem:[%s420 + $0xb0] sm:$0xff]
                %451 = vst [vmem:[%s421 + $0x70] sm:$0xff] %v450
                %v452 = vld [vmem:[%s420 + $0xb8] sm:$0xff]
                %453 = vst [vmem:[%s421 + $0x78] sm:$0xff] %v452
                %v454 = vld [vmem:[%s420 + $0x100] sm:$0xff]
                %455 = vst [vmem:[%s421 + $0x80] sm:$0xff] %v454
                %v456 = vld [vmem:[%s420 + $0x108] sm:$0xff]
                %457 = vst [vmem:[%s421 + $0x88] sm:$0xff] %v456
                %v458 = vld [vmem:[%s420 + $0x110] sm:$0xff]
                %459 = vst [vmem:[%s421 + $0x90] sm:$0xff] %v458
                %v460 = vld [vmem:[%s420 + $0x118] sm:$0xff]
                %461 = vst [vmem:[%s421 + $0x98] sm:$0xff] %v460
                %v462 = vld [vmem:[%s420 + $0x120] sm:$0xff]
                %463 = vst [vmem:[%s421 + $0xa0] sm:$0xff] %v462
                %v464 = vld [vmem:[%s420 + $0x128] sm:$0xff]
                %465 = vst [vmem:[%s421 + $0xa8] sm:$0xff] %v464
                %v466 = vld [vmem:[%s420 + $0x130] sm:$0xff]
                %467 = vst [vmem:[%s421 + $0xb0] sm:$0xff] %v466
                %v468 = vld [vmem:[%s420 + $0x138] sm:$0xff]
                %469 = vst [vmem:[%s421 + $0xb8] sm:$0xff] %v468
                %v470 = vld [vmem:[%s420 + $0x180] sm:$0xff]
                %471 = vst [vmem:[%s421 + $0xc0] sm:$0xff] %v470
                %v472 = vld [vmem:[%s420 + $0x188] sm:$0xff]
                %473 = vst [vmem:[%s421 + $0xc8] sm:$0xff] %v472
                %v474 = vld [vmem:[%s420 + $0x190] sm:$0xff]
                %475 = vst [vmem:[%s421 + $0xd0] sm:$0xff] %v474
                %v476 = vld [vmem:[%s420 + $0x198] sm:$0xff]
                %477 = vst [vmem:[%s421 + $0xd8] sm:$0xff] %v476
                %v478 = vld [vmem:[%s420 + $0x1a0] sm:$0xff]
                %479 = vst [vmem:[%s421 + $0xe0] sm:$0xff] %v478
                %v480 = vld [vmem:[%s420 + $0x1a8] sm:$0xff]
                %481 = vst [vmem:[%s421 + $0xe8] sm:$0xff] %v480
                %v482 = vld [vmem:[%s420 + $0x1b0] sm:$0xff]
                %483 = vst [vmem:[%s421 + $0xf0] sm:$0xff] %v482
                %v484 = vld [vmem:[%s420 + $0x1b8] sm:$0xff]
                %485 = vst [vmem:[%s421 + $0xf8] sm:$0xff] %v484
              $region73: #{forward.3} parent=67 // loop_footer
                %s419 = sadd.s32 1, %s415
              $region74: #{forward.3} parent=67 // loop_footer_branch
                %414 = sbr.rel target = $region70
              $region75: #{forward.3} parent=67 // loop_exit
                _
            $region68: #{forward.3} parent=59 // pred_fallthru
              _
          $region60: #{forward.3} parent=55 // pred_fallthru
            _
          %562 = vnop
        $region56: #{forward.3} parent=43 // pred_fallthru
          _
        // Predicated region
        $region91: #{forward.3} parent=43 // pred_check
          %p563 = pneg %p132
        $region92: #{forward.3} parent=43 // pred_check_branch
          %565 = sbr.rel (%p563) target = $region94
        $region93: #{forward.3} parent=43 // pred_region
          %s566 = sand.u32 %s122, 1
          %s567 = sand.u32 %s122, 1
          %s568 = smul.addr %s567, 256
          %s569 = scalar_lea.vmem [#allocation8], %s568
          %s570 = smul.u32 8, %s29
          %s571 = smul.addr %s570, 8
          %s572 = scalar_lea.vmem %s3, %s571
          // Predicated region
          $region95: #{forward.3} parent=93 // pred_check
            _
          $region96: #{forward.3} parent=93 // pred_check_branch
            %574 = sbr.rel (0) target = $region98
          $region97: #{forward.3} parent=93 // pred_region
            // Predicated region
            $region99: #{forward.3} parent=97 // pred_check
              _
            $region100: #{forward.3} parent=97 // pred_check_branch
              %576 = sbr.rel (0) target = $region102
            $region101: #{forward.3} parent=97 // pred_region
              // Predicated region
              $region114: #{forward.3} parent=101 // pred_check
                _
              $region115: #{forward.3} parent=101 // pred_check_branch
                %653 = sbr.rel (0) target = $region117
              $region116: #{forward.3} parent=101 // pred_region
                loop: start=0, step=1, limit=1
                $region118: #{forward.3} parent=116 // loop_pre_header
                  _
                $region119: #{forward.3} parent=116 // loop_header
                  %s655 = sphi 0, %s659
                  %p656 = scmp.ge.s32.totalorder %s655, 1
                  %s660 = sphi %s572, %s572
                  %s661 = sphi %s569, %s569
                $region120: #{forward.3} parent=116 // loop_header_branch
                  %658 = sbr.rel (%p656) target = $region124
                $region121: #{forward.3} parent=116 // loop_body
                  %v662 = vld [vmem:[%s660] sm:$0xff]
                  %663 = vst [vmem:[%s661] sm:$0xff] %v662
                  %v664 = vld [vmem:[%s660 + $0x8] sm:$0xff]
                  %665 = vst [vmem:[%s661 + $0x8] sm:$0xff] %v664
                  %v666 = vld [vmem:[%s660 + $0x10] sm:$0xff]
                  %667 = vst [vmem:[%s661 + $0x10] sm:$0xff] %v666
                  %v668 = vld [vmem:[%s660 + $0x18] sm:$0xff]
                  %669 = vst [vmem:[%s661 + $0x18] sm:$0xff] %v668
                  %v670 = vld [vmem:[%s660 + $0x20] sm:$0xff]
                  %671 = vst [vmem:[%s661 + $0x20] sm:$0xff] %v670
                  %v672 = vld [vmem:[%s660 + $0x28] sm:$0xff]
                  %673 = vst [vmem:[%s661 + $0x28] sm:$0xff] %v672
                  %v674 = vld [vmem:[%s660 + $0x30] sm:$0xff]
                  %675 = vst [vmem:[%s661 + $0x30] sm:$0xff] %v674
                  %v676 = vld [vmem:[%s660 + $0x38] sm:$0xff]
                  %677 = vst [vmem:[%s661 + $0x38] sm:$0xff] %v676
                  %v678 = vld [vmem:[%s660 + $0x80] sm:$0xff]
                  %679 = vst [vmem:[%s661 + $0x40] sm:$0xff] %v678
                  %v680 = vld [vmem:[%s660 + $0x88] sm:$0xff]
                  %681 = vst [vmem:[%s661 + $0x48] sm:$0xff] %v680
                  %v682 = vld [vmem:[%s660 + $0x90] sm:$0xff]
                  %683 = vst [vmem:[%s661 + $0x50] sm:$0xff] %v682
                  %v684 = vld [vmem:[%s660 + $0x98] sm:$0xff]
                  %685 = vst [vmem:[%s661 + $0x58] sm:$0xff] %v684
                  %v686 = vld [vmem:[%s660 + $0xa0] sm:$0xff]
                  %687 = vst [vmem:[%s661 + $0x60] sm:$0xff] %v686
                  %v688 = vld [vmem:[%s660 + $0xa8] sm:$0xff]
                  %689 = vst [vmem:[%s661 + $0x68] sm:$0xff] %v688
                  %v690 = vld [vmem:[%s660 + $0xb0] sm:$0xff]
                  %691 = vst [vmem:[%s661 + $0x70] sm:$0xff] %v690
                  %v692 = vld [vmem:[%s660 + $0xb8] sm:$0xff]
                  %693 = vst [vmem:[%s661 + $0x78] sm:$0xff] %v692
                  %v694 = vld [vmem:[%s660 + $0x100] sm:$0xff]
                  %695 = vst [vmem:[%s661 + $0x80] sm:$0xff] %v694
                  %v696 = vld [vmem:[%s660 + $0x108] sm:$0xff]
                  %697 = vst [vmem:[%s661 + $0x88] sm:$0xff] %v696
                  %v698 = vld [vmem:[%s660 + $0x110] sm:$0xff]
                  %699 = vst [vmem:[%s661 + $0x90] sm:$0xff] %v698
                  %v700 = vld [vmem:[%s660 + $0x118] sm:$0xff]
                  %701 = vst [vmem:[%s661 + $0x98] sm:$0xff] %v700
                  %v702 = vld [vmem:[%s660 + $0x120] sm:$0xff]
                  %703 = vst [vmem:[%s661 + $0xa0] sm:$0xff] %v702
                  %v704 = vld [vmem:[%s660 + $0x128] sm:$0xff]
                  %705 = vst [vmem:[%s661 + $0xa8] sm:$0xff] %v704
                  %v706 = vld [vmem:[%s660 + $0x130] sm:$0xff]
                  %707 = vst [vmem:[%s661 + $0xb0] sm:$0xff] %v706
                  %v708 = vld [vmem:[%s660 + $0x138] sm:$0xff]
                  %709 = vst [vmem:[%s661 + $0xb8] sm:$0xff] %v708
                  %v710 = vld [vmem:[%s660 + $0x180] sm:$0xff]
                  %711 = vst [vmem:[%s661 + $0xc0] sm:$0xff] %v710
                  %v712 = vld [vmem:[%s660 + $0x188] sm:$0xff]
                  %713 = vst [vmem:[%s661 + $0xc8] sm:$0xff] %v712
                  %v714 = vld [vmem:[%s660 + $0x190] sm:$0xff]
                  %715 = vst [vmem:[%s661 + $0xd0] sm:$0xff] %v714
                  %v716 = vld [vmem:[%s660 + $0x198] sm:$0xff]
                  %717 = vst [vmem:[%s661 + $0xd8] sm:$0xff] %v716
                  %v718 = vld [vmem:[%s660 + $0x1a0] sm:$0xff]
                  %719 = vst [vmem:[%s661 + $0xe0] sm:$0xff] %v718
                  %v720 = vld [vmem:[%s660 + $0x1a8] sm:$0xff]
                  %721 = vst [vmem:[%s661 + $0xe8] sm:$0xff] %v720
                  %v722 = vld [vmem:[%s660 + $0x1b0] sm:$0xff]
                  %723 = vst [vmem:[%s661 + $0xf0] sm:$0xff] %v722
                  %v724 = vld [vmem:[%s660 + $0x1b8] sm:$0xff]
                  %725 = vst [vmem:[%s661 + $0xf8] sm:$0xff] %v724
                $region122: #{forward.3} parent=116 // loop_footer
                  %s659 = sadd.s32 1, %s655
                $region123: #{forward.3} parent=116 // loop_footer_branch
                  %654 = sbr.rel target = $region119
                $region124: #{forward.3} parent=116 // loop_exit
                  _
              $region117: #{forward.3} parent=101 // pred_fallthru
                _
              // Predicated region
              $region125: #{forward.3} parent=101 // pred_check
                _
              $region126: #{forward.3} parent=101 // pred_check_branch
                %727 = sbr.rel target = $region128
              $region127: #{forward.3} parent=101 // pred_region
                _
              $region128: #{forward.3} parent=101 // pred_fallthru
                _
            $region102: #{forward.3} parent=97 // pred_fallthru
              _
            // Predicated region
            $region103: #{forward.3} parent=97 // pred_check
              _
            $region104: #{forward.3} parent=97 // pred_check_branch
              %578 = sbr.rel target = $region106
            $region105: #{forward.3} parent=97 // pred_region
              loop: start=0, step=1, limit=1
              $region107: #{forward.3} parent=105 // loop_pre_header
                _
              $region108: #{forward.3} parent=105 // loop_header
                %s581 = sphi 0, %s585
                %p582 = scmp.ge.s32.totalorder %s581, 1
                %s586 = sphi %s572, %s572
                %s587 = sphi %s569, %s569
              $region109: #{forward.3} parent=105 // loop_header_branch
                %584 = sbr.rel (%p582) target = $region113
              $region110: #{forward.3} parent=105 // loop_body
                %v588 = vld [vmem:[%s586] sm:$0xff]
                %589 = vst [vmem:[%s587] sm:$0xff] %v588
                %v590 = vld [vmem:[%s586 + $0x8] sm:$0xff]
                %591 = vst [vmem:[%s587 + $0x8] sm:$0xff] %v590
                %v592 = vld [vmem:[%s586 + $0x10] sm:$0xff]
                %593 = vst [vmem:[%s587 + $0x10] sm:$0xff] %v592
                %v594 = vld [vmem:[%s586 + $0x18] sm:$0xff]
                %595 = vst [vmem:[%s587 + $0x18] sm:$0xff] %v594
                %v596 = vld [vmem:[%s586 + $0x20] sm:$0xff]
                %597 = vst [vmem:[%s587 + $0x20] sm:$0xff] %v596
                %v598 = vld [vmem:[%s586 + $0x28] sm:$0xff]
                %599 = vst [vmem:[%s587 + $0x28] sm:$0xff] %v598
                %v600 = vld [vmem:[%s586 + $0x30] sm:$0xff]
                %601 = vst [vmem:[%s587 + $0x30] sm:$0xff] %v600
                %v602 = vld [vmem:[%s586 + $0x38] sm:$0xff]
                %603 = vst [vmem:[%s587 + $0x38] sm:$0xff] %v602
                %v604 = vld [vmem:[%s586 + $0x80] sm:$0xff]
                %605 = vst [vmem:[%s587 + $0x40] sm:$0xff] %v604
                %v606 = vld [vmem:[%s586 + $0x88] sm:$0xff]
                %607 = vst [vmem:[%s587 + $0x48] sm:$0xff] %v606
                %v608 = vld [vmem:[%s586 + $0x90] sm:$0xff]
                %609 = vst [vmem:[%s587 + $0x50] sm:$0xff] %v608
                %v610 = vld [vmem:[%s586 + $0x98] sm:$0xff]
                %611 = vst [vmem:[%s587 + $0x58] sm:$0xff] %v610
                %v612 = vld [vmem:[%s586 + $0xa0] sm:$0xff]
                %613 = vst [vmem:[%s587 + $0x60] sm:$0xff] %v612
                %v614 = vld [vmem:[%s586 + $0xa8] sm:$0xff]
                %615 = vst [vmem:[%s587 + $0x68] sm:$0xff] %v614
                %v616 = vld [vmem:[%s586 + $0xb0] sm:$0xff]
                %617 = vst [vmem:[%s587 + $0x70] sm:$0xff] %v616
                %v618 = vld [vmem:[%s586 + $0xb8] sm:$0xff]
                %619 = vst [vmem:[%s587 + $0x78] sm:$0xff] %v618
                %v620 = vld [vmem:[%s586 + $0x100] sm:$0xff]
                %621 = vst [vmem:[%s587 + $0x80] sm:$0xff] %v620
                %v622 = vld [vmem:[%s586 + $0x108] sm:$0xff]
                %623 = vst [vmem:[%s587 + $0x88] sm:$0xff] %v622
                %v624 = vld [vmem:[%s586 + $0x110] sm:$0xff]
                %625 = vst [vmem:[%s587 + $0x90] sm:$0xff] %v624
                %v626 = vld [vmem:[%s586 + $0x118] sm:$0xff]
                %627 = vst [vmem:[%s587 + $0x98] sm:$0xff] %v626
                %v628 = vld [vmem:[%s586 + $0x120] sm:$0xff]
                %629 = vst [vmem:[%s587 + $0xa0] sm:$0xff] %v628
                %v630 = vld [vmem:[%s586 + $0x128] sm:$0xff]
                %631 = vst [vmem:[%s587 + $0xa8] sm:$0xff] %v630
                %v632 = vld [vmem:[%s586 + $0x130] sm:$0xff]
                %633 = vst [vmem:[%s587 + $0xb0] sm:$0xff] %v632
                %v634 = vld [vmem:[%s586 + $0x138] sm:$0xff]
                %635 = vst [vmem:[%s587 + $0xb8] sm:$0xff] %v634
                %v636 = vld [vmem:[%s586 + $0x180] sm:$0xff]
                %637 = vst [vmem:[%s587 + $0xc0] sm:$0xff] %v636
                %v638 = vld [vmem:[%s586 + $0x188] sm:$0xff]
                %639 = vst [vmem:[%s587 + $0xc8] sm:$0xff] %v638
                %v640 = vld [vmem:[%s586 + $0x190] sm:$0xff]
                %641 = vst [vmem:[%s587 + $0xd0] sm:$0xff] %v640
                %v642 = vld [vmem:[%s586 + $0x198] sm:$0xff]
                %643 = vst [vmem:[%s587 + $0xd8] sm:$0xff] %v642
                %v644 = vld [vmem:[%s586 + $0x1a0] sm:$0xff]
                %645 = vst [vmem:[%s587 + $0xe0] sm:$0xff] %v644
                %v646 = vld [vmem:[%s586 + $0x1a8] sm:$0xff]
                %647 = vst [vmem:[%s587 + $0xe8] sm:$0xff] %v646
                %v648 = vld [vmem:[%s586 + $0x1b0] sm:$0xff]
                %649 = vst [vmem:[%s587 + $0xf0] sm:$0xff] %v648
                %v650 = vld [vmem:[%s586 + $0x1b8] sm:$0xff]
                %651 = vst [vmem:[%s587 + $0xf8] sm:$0xff] %v650
              $region111: #{forward.3} parent=105 // loop_footer
                %s585 = sadd.s32 1, %s581
              $region112: #{forward.3} parent=105 // loop_footer_branch
                %580 = sbr.rel target = $region108
              $region113: #{forward.3} parent=105 // loop_exit
                _
            $region106: #{forward.3} parent=97 // pred_fallthru
              _
          $region98: #{forward.3} parent=93 // pred_fallthru
            _
          %728 = vnop
        $region94: #{forward.3} parent=43 // pred_fallthru
          _
        // Predicated region
        $region129: #{forward.3} parent=43 // pred_check
          %p729 = pneg %p305
        $region130: #{forward.3} parent=43 // pred_check_branch
          %731 = sbr.rel (%p729) target = $region132
        $region131: #{forward.3} parent=43 // pred_region
          %s732 = smul.u32 8, %s29
          %p733 = scmp.lt.s32.totalorder %s732, 15
          %s734 = scalar_select %p733, %s732, 15
          %s735 = smul.addr %s734, 8
          %s736 = scalar_lea.vmem %s11, %s735
          %s737 = smul.u32 8, %s29
        $region132: #{forward.3} parent=43 // pred_fallthru
          _
      $region44: #{forward.3} parent=5 // pred_fallthru
        _
      %p738 = scmp.le.s32.totalorder 1, %s22
      %p739 = scmp.lt.s32.totalorder %s22, 7
      %p740 = pnand %p738, %p739
      %p741 = pneg %p740
      // Predicated region
      $region133: #{forward.3} parent=5 // pred_check
        _
      $region134: #{forward.3} parent=5 // pred_check_branch
        %743 = sbr.rel (%p740) target = $region136
      $region135: #{forward.3} parent=5 // pred_region
        %s744 = ssub.s32 %s22, 1
        %s745 = sand.u32 %s99, 1
        %s746 = sand.u32 %s99, 1
        %s747 = smul.addr %s746, 256
        %s748 = scalar_lea.vmem [#allocation7], %s747
        // Predicated region
        $region137: #{forward.3} parent=135 // pred_check
          %p749 = pneg %p112
        $region138: #{forward.3} parent=135 // pred_check_branch
          %751 = sbr.rel (%p749) target = $region140
        $region139: #{forward.3} parent=135 // pred_region
          _
        $region140: #{forward.3} parent=135 // pred_fallthru
          _
        %s752 = sand.u32 %s125, 1
        %s753 = sand.u32 %s125, 1
        %s754 = smul.addr %s753, 256
        %s755 = scalar_lea.vmem [#allocation8], %s754
        // Predicated region
        $region141: #{forward.3} parent=135 // pred_check
          %p756 = pneg %p138
        $region142: #{forward.3} parent=135 // pred_check_branch
          %758 = sbr.rel (%p756) target = $region144
        $region143: #{forward.3} parent=135 // pred_region
          _
        $region144: #{forward.3} parent=135 // pred_fallthru
          _
        %s759 = smul.u32 8, %s31
        %p760 = scmp.lt.s32.totalorder %s759, 15
        %s761 = scalar_select %p760, %s759, 15
        %s762 = smul.addr %s761, 8
        %s763 = scalar_lea.vmem %s0, %s762
        %p764 = pneg %p60
        %p765 = pneg %p57
        %s766 = smul.u32 8, %s31
        %p767 = scmp.lt.s32.totalorder %s766, 15
        %s768 = scalar_select %p767, %s766, 15
        %s769 = smul.addr %s768, 8
        %s770 = scalar_lea.vmem %s1, %s769
        %p771 = pneg %p86
        %p772 = pneg %p83
        %s773 = sand.u32 %s99, 1
        %s774 = sand.u32 %s99, 1
        %s775 = smul.addr %s774, 256
        %s776 = scalar_lea.vmem [#allocation7], %s775
        %p777 = pneg %p112
        %p778 = pneg %p109
        %s779 = sand.u32 %s125, 1
        %s780 = sand.u32 %s125, 1
        %s781 = smul.addr %s780, 256
        %s782 = scalar_lea.vmem [#allocation8], %s781
        %p783 = pneg %p138
        %p784 = pneg %p135
        %p785 = pneg %p159
        %p786 = pneg %p156
        %p787 = pneg %p180
        %p788 = pneg %p177
        %p789 = pneg %p201
        %p790 = pneg %p198
        %p791 = pneg %p222
        %p792 = pneg %p219
        %p793 = pneg %p243
        %p794 = pneg %p240
        %p795 = pneg %p264
        %p796 = pneg %p261
        %p797 = pneg %p285
        %p798 = pneg %p282
        %s799 = smul.u32 8, %s31
        %p800 = scmp.lt.s32.totalorder %s799, 15
        %s801 = scalar_select %p800, %s799, 15
        %s802 = smul.addr %s801, 8
        %s803 = scalar_lea.vmem %s11, %s802
        %p804 = pneg %p311
        %p805 = pneg %p308
        %p806 = pneg %p339
        %p807 = pneg %p336
        %s808 = smul.u32 8, %s31
        %p809 = scmp.lt.s32.totalorder %s32, 2
        %s810 = scalar_select %p809, %s32, 2
        %p811 = scmp.lt.s32.totalorder %s808, 15
        %s812 = scalar_select %p811, %s808, 15
        %s813 = smul.addr %s810, 16
        %s814 = sadd.s32 %s812, %s813
        %s815 = smul.addr %s814, 8
        %s816 = scalar_lea.vmem %s12, %s815
        %s817 = smul.u32 8, %s31
        %p818 = scmp.lt.s32.totalorder %s817, 15
        %s819 = scalar_select %p818, %s817, 15
        %s820 = smul.addr %s819, 8
        %s821 = scalar_lea.vmem %s0, %s820
        %s822 = smul.u32 8, %s31
        %s823 = smul.u32 8, %s31
        %p824 = scmp.lt.s32.totalorder %s823, 15
        %s825 = scalar_select %p824, %s823, 15
        %s826 = smul.addr %s825, 8
        %s827 = scalar_lea.vmem %s1, %s826
        %s828 = smul.u32 8, %s31
        %s829 = smul.u32 8, %s31
        %s830 = smul.u32 8, %s31
        %s831 = smul.u32 8, %s31
        %p832 = scmp.lt.s32.totalorder %s831, 15
        %s833 = scalar_select %p832, %s831, 15
        %s834 = smul.addr %s833, 8
        %s835 = scalar_lea.vmem %s11, %s834
        %s836 = smul.u32 8, %s31
        %s837 = smul.u32 8, %s31
        %p838 = scmp.lt.s32.totalorder %s32, 2
        %s839 = scalar_select %p838, %s32, 2
        %p840 = scmp.lt.s32.totalorder %s837, 15
        %s841 = scalar_select %p840, %s837, 15
        %s842 = smul.addr %s839, 16
        %s843 = sadd.s32 %s841, %s842
        %s844 = smul.addr %s843, 8
        %s845 = scalar_lea.vmem %s12, %s844
        %s846 = smul.u32 8, %s31
        %p848 = scmp.eq.s32.totalorder %s32, 0
        // Predicated region
        $region145: #{forward.3} parent=135 // pred_check
          %p849 = pneg %p848
        $region146: #{forward.3} parent=135 // pred_check_branch
          %851 = sbr.rel (%p849) target = $region148
        $region147: #{forward.3} parent=135 // pred_region
          %s852 = scalar_lea.vmem %s748, 192 [#allocation7]
          %v853 = vld [vmem:[%s852] sm:$0xff]
          %v854 = vld [vmem:[%s852 + $0x8] sm:$0xff]
          %v855 = vld [vmem:[%s852 + $0x10] sm:$0xff]
          %v856 = vld [vmem:[%s852 + $0x18] sm:$0xff]
          %v857 = vld [vmem:[%s852 + $0x20] sm:$0xff]
          %v858 = vld [vmem:[%s852 + $0x28] sm:$0xff]
          %v859 = vld [vmem:[%s852 + $0x30] sm:$0xff]
          %v860 = vld [vmem:[%s852 + $0x38] sm:$0xff]
          %vm861 = vcmask 523264
          %862 = vst.msk [vmem:[#allocation2] sm:$0xff] %vm861, %v853
          %863 = vst.msk [vmem:[#allocation2 + $0x8] sm:$0xff] %vm861, %v854
          %864 = vst.msk [vmem:[#allocation2 + $0x10] sm:$0xff] %vm861, %v855
          %865 = vst.msk [vmem:[#allocation2 + $0x18] sm:$0xff] %vm861, %v856
          %866 = vst.msk [vmem:[#allocation2 + $0x20] sm:$0xff] %vm861, %v857
          %867 = vst.msk [vmem:[#allocation2 + $0x28] sm:$0xff] %vm861, %v858
          %868 = vst.msk [vmem:[#allocation2 + $0x30] sm:$0xff] %vm861, %v859
          %869 = vst.msk [vmem:[#allocation2 + $0x38] sm:$0xff] %vm861, %v860
          %v870 = vld [vmem:[%s827] sm:$0xff]
          %v871 = vld [vmem:[%s827 + $0x8] sm:$0xff]
          %v872 = vld [vmem:[%s827 + $0x10] sm:$0xff]
          %v873 = vld [vmem:[%s827 + $0x18] sm:$0xff]
          %v874 = vld [vmem:[%s827 + $0x20] sm:$0xff]
          %v875 = vld [vmem:[%s827 + $0x28] sm:$0xff]
          %v876 = vld [vmem:[%s827 + $0x30] sm:$0xff]
          %v877 = vld [vmem:[%s827 + $0x38] sm:$0xff]
          %878 = vst.msk [vmem:[#allocation3] sm:$0xff] %vm861, %v870
          %879 = vst.msk [vmem:[#allocation3 + $0x8] sm:$0xff] %vm861, %v871
          %880 = vst.msk [vmem:[#allocation3 + $0x10] sm:$0xff] %vm861, %v872
          %881 = vst.msk [vmem:[#allocation3 + $0x18] sm:$0xff] %vm861, %v873
          %882 = vst.msk [vmem:[#allocation3 + $0x20] sm:$0xff] %vm861, %v874
          %883 = vst.msk [vmem:[#allocation3 + $0x28] sm:$0xff] %vm861, %v875
          %884 = vst.msk [vmem:[#allocation3 + $0x30] sm:$0xff] %vm861, %v876
          %885 = vst.msk [vmem:[#allocation3 + $0x38] sm:$0xff] %vm861, %v877
          %v886 = vld [vmem:[%s821] sm:$0xff]
          %v887 = vld [vmem:[%s821 + $0x8] sm:$0xff]
          %v888 = vld [vmem:[%s821 + $0x10] sm:$0xff]
          %v889 = vld [vmem:[%s821 + $0x18] sm:$0xff]
          %v890 = vld [vmem:[%s821 + $0x20] sm:$0xff]
          %v891 = vld [vmem:[%s821 + $0x28] sm:$0xff]
          %v892 = vld [vmem:[%s821 + $0x30] sm:$0xff]
          %v893 = vld [vmem:[%s821 + $0x38] sm:$0xff]
          %vm894 = vcmask 7168
          %895 = vst.msk [vmem:[#allocation4] sm:$0xff] %vm894, %v886
          %896 = vst.msk [vmem:[#allocation4 + $0x8] sm:$0xff] %vm894, %v887
          %897 = vst.msk [vmem:[#allocation4 + $0x10] sm:$0xff] %vm894, %v888
          %898 = vst.msk [vmem:[#allocation4 + $0x18] sm:$0xff] %vm894, %v889
          %899 = vst.msk [vmem:[#allocation4 + $0x20] sm:$0xff] %vm894, %v890
          %900 = vst.msk [vmem:[#allocation4 + $0x28] sm:$0xff] %vm894, %v891
          %901 = vst.msk [vmem:[#allocation4 + $0x30] sm:$0xff] %vm894, %v892
          %902 = vst.msk [vmem:[#allocation4 + $0x38] sm:$0xff] %vm894, %v893
        $region148: #{forward.3} parent=135 // pred_fallthru
          _
        %v903 = vld [vmem:[#allocation2] sm:$0xff]
        %v904 = vld [vmem:[#allocation2 + $0x8] sm:$0xff]
        %v905 = vld [vmem:[#allocation2 + $0x10] sm:$0xff]
        %v906 = vld [vmem:[#allocation2 + $0x18] sm:$0xff]
        %v907 = vld [vmem:[#allocation2 + $0x20] sm:$0xff]
        %v908 = vld [vmem:[#allocation2 + $0x28] sm:$0xff]
        %v909 = vld [vmem:[#allocation2 + $0x30] sm:$0xff]
        %v910 = vld [vmem:[#allocation2 + $0x38] sm:$0xff]
        %v911 = vld [vmem:[%s4] sm:$0xff]
        %v912 = vld [vmem:[%s4 + $0x8] sm:$0xff]
        %v913 = vld [vmem:[%s4 + $0x10] sm:$0xff]
        %v914 = vld [vmem:[%s4 + $0x18] sm:$0xff]
        %v915 = vld [vmem:[%s4 + $0x20] sm:$0xff]
        %v916 = vld [vmem:[%s4 + $0x28] sm:$0xff]
        %v917 = vld [vmem:[%s4 + $0x30] sm:$0xff]
        %v918 = vld [vmem:[%s4 + $0x38] sm:$0xff]
        %vm919 = vcmask 523264
        %v921 = vsel %vm919, %v903, 0
        %v924 = vsel %vm919, %v904, 0
        %v927 = vsel %vm919, %v905, 0
        %v930 = vsel %vm919, %v906, 0
        %v933 = vsel %vm919, %v907, 0
        %v936 = vsel %vm919, %v908, 0
        %v939 = vsel %vm919, %v909, 0
        %v942 = vsel %vm919, %v910, 0
        %944 = vmatprep.subr.mxu0 0.0
        %945 = vmatpush1.msra.mxu0 %v911
        %946 = vmatprep.subr.mxu0 0.0
        %947 = vmatpush1.msra.mxu0 %v912
        %948 = vmatprep.subr.mxu0 0.0
        %949 = vmatpush1.msra.mxu0 %v913
        %950 = vmatprep.subr.mxu0 0.0
        %951 = vmatpush1.msra.mxu0 %v914
        %952 = vmatprep.subr.mxu0 0.0
        %953 = vmatpush1.msra.mxu0 %v915
        %954 = vmatprep.subr.mxu0 0.0
        %955 = vmatpush1.msra.mxu0 %v916
        %956 = vmatprep.subr.mxu0 0.0
        %957 = vmatpush1.msra.mxu0 %v917
        %958 = vmatprep.subr.mxu0 0.0
        %959 = vmatpush1.msra.mxu0 %v918
        %960 = vmatprep.subr.mxu0 0.0
        %961 = vmatpush1.msra.mxu0 0.0
        %962 = vmatprep.subr.mxu0 0.0
        %963 = vmatpush1.msra.mxu0 0.0
        %964 = vmatprep.subr.mxu0 0.0
        %965 = vmatpush1.msra.mxu0 0.0
        %966 = vmatprep.subr.mxu0 0.0
        %967 = vmatpush1.msra.mxu0 0.0
        %968 = vmatprep.subr.mxu0 0.0
        %969 = vmatpush1.msra.mxu0 0.0
        %970 = vmatprep.subr.mxu0 0.0
        %971 = vmatpush1.msra.mxu0 0.0
        %972 = vmatprep.subr.mxu0 0.0
        %973 = vmatpush1.msra.mxu0 0.0
        %974 = vmatprep.subr.mxu0 0.0
        %975 = vmatpush1.msra.mxu0 0.0
        %976 = vmatprep.subr.mxu0 0.0
        %977 = vmatpush1.msra.mxu0 0.0
        %978 = vmatprep.subr.mxu0 0.0
        %979 = vmatpush1.msra.mxu0 0.0
        %980 = vmatprep.subr.mxu0 0.0
        %981 = vmatpush1.msra.mxu0 0.0
        %982 = vmatprep.subr.mxu0 0.0
        %983 = vmatpush1.msra.mxu0 0.0
        %984 = vmatprep.subr.mxu0 0.0
        %985 = vmatpush1.msra.mxu0 0.0
        %986 = vmatprep.subr.mxu0 0.0
        %987 = vmatpush1.msra.mxu0 0.0
        %988 = vmatprep.subr.mxu0 0.0
        %989 = vmatpush1.msra.mxu0 0.0
        %990 = vmatprep.subr.mxu0 0.0
        %991 = vmatpush1.msra.mxu0 0.0
        %992 = vmatprep.subr.mxu0 0.0
        %993 = vmatpush1.msra.mxu0 0.0
        %994 = vmatprep.subr.mxu0 0.0
        %995 = vmatpush1.msra.mxu0 0.0
        %996 = vmatprep.subr.mxu0 0.0
        %997 = vmatpush1.msra.mxu0 0.0
        %998 = vmatprep.subr.mxu0 0.0
        %999 = vmatpush1.msra.mxu0 0.0
        %1000 = vmatprep.subr.mxu0 0.0
        %1001 = vmatpush1.msra.mxu0 0.0
        %1002 = vmatprep.subr.mxu0 0.0
        %1003 = vmatpush1.msra.mxu0 0.0
        %1004 = vmatprep.subr.mxu0 0.0
        %1005 = vmatpush1.msra.mxu0 0.0
        %1006 = vmatprep.subr.mxu0 0.0
        %1007 = vmatpush1.msra.mxu0 0.0
        %1008 = vmatprep.mubr.f32.mxu0 0.0
        %1009 = vmatmul.mubr.f32.gmra.mrb[0].mxu0 %v921
        %v1010 = vpop.f32.mrb[0].mxu0
        %v1011 = vadd.f32 0.0, %v1010
        %v1012 = vpop.f32.mrb[0].mxu0
        %1013 = vmatprep.mubr.f32.mxu0 0.0
        %1014 = vmatmul.mubr.f32.gmra.mrb[0].mxu0 %v924
        %v1015 = vpop.f32.mrb[0].mxu0
        %v1016 = vadd.f32 0.0, %v1015
        %v1017 = vpop.f32.mrb[0].mxu0
        %1018 = vmatprep.mubr.f32.mxu0 0.0
        %1019 = vmatmul.mubr.f32.gmra.mrb[0].mxu0 %v927
        %v1020 = vpop.f32.mrb[0].mxu0
        %v1021 = vadd.f32 0.0, %v1020
        %v1022 = vpop.f32.mrb[0].mxu0
        %1023 = vmatprep.mubr.f32.mxu0 0.0
        %1024 = vmatmul.mubr.f32.gmra.mrb[0].mxu0 %v930
        %v1025 = vpop.f32.mrb[0].mxu0
        %v1026 = vadd.f32 0.0, %v1025
        %v1027 = vpop.f32.mrb[0].mxu0
        %1028 = vmatprep.mubr.f32.mxu0 0.0
        %1029 = vmatmul.mubr.f32.gmra.mrb[0].mxu0 %v933
        %v1030 = vpop.f32.mrb[0].mxu0
        %v1031 = vadd.f32 0.0, %v1030
        %v1032 = vpop.f32.mrb[0].mxu0
        %1033 = vmatprep.mubr.f32.mxu0 0.0
        %1034 = vmatmul.mubr.f32.gmra.mrb[0].mxu0 %v936
        %v1035 = vpop.f32.mrb[0].mxu0
        %v1036 = vadd.f32 0.0, %v1035
        %v1037 = vpop.f32.mrb[0].mxu0
        %1038 = vmatprep.mubr.f32.mxu0 0.0
        %1039 = vmatmul.mubr.f32.gmra.mrb[0].mxu0 %v939
        %v1040 = vpop.f32.mrb[0].mxu0
        %v1041 = vadd.f32 0.0, %v1040
        %v1042 = vpop.f32.mrb[0].mxu0
        %1043 = vmatprep.mubr.f32.mxu0 0.0
        %1044 = vmatmul.mubr.f32.gmra.mrb[0].mxu0 %v942
        %v1045 = vpop.f32.mrb[0].mxu0
        %v1046 = vadd.f32 0.0, %v1045
        %v1047 = vpop.f32.mrb[0].mxu0
        %1048 = vdwg.mxu0
        %v1049 = vld [vmem:[%s755] sm:$0xff]
        %v1050 = vld [vmem:[%s755 + $0x8] sm:$0xff]
        %v1051 = vld [vmem:[%s755 + $0x10] sm:$0xff]
        %v1052 = vld [vmem:[%s755 + $0x18] sm:$0xff]
        %v1053 = vld [vmem:[%s755 + $0x20] sm:$0xff]
        %v1054 = vld [vmem:[%s755 + $0x28] sm:$0xff]
        %v1055 = vld [vmem:[%s755 + $0x30] sm:$0xff]
        %v1056 = vld [vmem:[%s755 + $0x38] sm:$0xff]
        %v1057 = vadd.f32 %v1011, %v1049
        %v1058 = vadd.f32 %v1016, %v1050
        %v1059 = vadd.f32 %v1021, %v1051
        %v1060 = vadd.f32 %v1026, %v1052
        %v1061 = vadd.f32 %v1031, %v1053
        %v1062 = vadd.f32 %v1036, %v1054
        %v1063 = vadd.f32 %v1041, %v1055
        %v1064 = vadd.f32 %v1046, %v1056
        %v1065 = vtanh.pop %v1057
        %v1066 = vtanh.pop %v1058
        %v1067 = vtanh.pop %v1059
        %v1068 = vtanh.pop %v1060
        %v1069 = vtanh.pop %v1061
        %v1070 = vtanh.pop %v1062
        %v1071 = vtanh.pop %v1063
        %v1072 = vtanh.pop %v1064
        %vm1073 = vcmask 261120
        %v1074 = vsel %vm1073, %v1065, 0.0
        %v1075 = vsel %vm1073, %v1066, 0.0
        %v1076 = vadd.f32 %v1074, %v1075
        %v1077 = vsel %vm1073, %v1067, 0.0
        %v1078 = vadd.f32 %v1076, %v1077
        %v1079 = vsel %vm1073, %v1068, 0.0
        %v1080 = vadd.f32 %v1078, %v1079
        %v1081 = vsel %vm1073, %v1069, 0.0
        %v1082 = vadd.f32 %v1080, %v1081
        %v1083 = vsel %vm1073, %v1070, 0.0
        %v1084 = vadd.f32 %v1082, %v1083
        %v1085 = vsel %vm1073, %v1071, 0.0
        %v1086 = vadd.f32 %v1084, %v1085
        %v1087 = vsel %vm1073, %v1072, 0.0
        %v1088 = vadd.f32 %v1086, %v1087
        %v1089 = vrot.slane %v1088, 4
        %v1090 = vadd.f32 %v1088, %v1089
        %v1091 = vrot.slane %v1090, 2
        %v1092 = vadd.f32 %v1090, %v1091
        %v1093 = vrot.slane %v1092, 1
        %v1094 = vadd.f32 %v1092, %v1093
        %v1095 = vmul.f32 %v1094, 0.015625
        %v1096 = vld [vmem:[%s5] sm:$0x1]
        %v1097 = vmul.f32 %v1095, %v1096
        %vm1098 = vcmask 253952
        %v1099 = vsel %vm1098, %v1097, 0.0
        %1100 = vadd.xlane.f32.xlu0 %v1099
        %v1101 = vpop.xlane.xlu0 %1100
        %v1102 = vld [vmem:[#allocation5] sm:$0x1]
        %v1103 = vadd.f32 %v1101, %v1102
        %s1104 = scalar_lea.vmem %s755, 64 [#allocation8]
        %v1105 = vld [vmem:[%s1104] sm:$0xff]
        %v1106 = vld [vmem:[%s1104 + $0x8] sm:$0xff]
        %v1107 = vld [vmem:[%s1104 + $0x10] sm:$0xff]
        %v1108 = vld [vmem:[%s1104 + $0x18] sm:$0xff]
        %v1109 = vld [vmem:[%s1104 + $0x20] sm:$0xff]
        %v1110 = vld [vmem:[%s1104 + $0x28] sm:$0xff]
        %v1111 = vld [vmem:[%s1104 + $0x30] sm:$0xff]
        %v1112 = vld [vmem:[%s1104 + $0x38] sm:$0xff]
        %v1113 = vadd.f32 %v1011, %v1105
        %v1114 = vadd.f32 %v1016, %v1106
        %v1115 = vadd.f32 %v1021, %v1107
        %v1116 = vadd.f32 %v1026, %v1108
        %v1117 = vadd.f32 %v1031, %v1109
        %v1118 = vadd.f32 %v1036, %v1110
        %v1119 = vadd.f32 %v1041, %v1111
        %v1120 = vadd.f32 %v1046, %v1112
        %v1121 = vtanh.pop %v1113
        %v1122 = vtanh.pop %v1114
        %v1123 = vtanh.pop %v1115
        %v1124 = vtanh.pop %v1116
        %v1125 = vtanh.pop %v1117
        %v1126 = vtanh.pop %v1118
        %v1127 = vtanh.pop %v1119
        %v1128 = vtanh.pop %v1120
        %v1129 = vsel %vm1073, %v1121, 0.0
        %v1130 = vsel %vm1073, %v1122, 0.0
        %v1131 = vadd.f32 %v1129, %v1130
        %v1132 = vsel %vm1073, %v1123, 0.0
        %v1133 = vadd.f32 %v1131, %v1132
        %v1134 = vsel %vm1073, %v1124, 0.0
        %v1135 = vadd.f32 %v1133, %v1134
        %v1136 = vsel %vm1073, %v1125, 0.0
        %v1137 = vadd.f32 %v1135, %v1136
        %v1138 = vsel %vm1073, %v1126, 0.0
        %v1139 = vadd.f32 %v1137, %v1138
        %v1140 = vsel %vm1073, %v1127, 0.0
        %v1141 = vadd.f32 %v1139, %v1140
        %v1142 = vsel %vm1073, %v1128, 0.0
        %v1143 = vadd.f32 %v1141, %v1142
        %v1144 = vrot.slane %v1143, 4
        %v1145 = vadd.f32 %v1143, %v1144
        %v1146 = vrot.slane %v1145, 2
        %v1147 = vadd.f32 %v1145, %v1146
        %v1148 = vrot.slane %v1147, 1
        %v1149 = vadd.f32 %v1147, %v1148
        %v1150 = vmul.f32 %v1149, 0.015625
        %v1151 = vmul.f32 %v1150, %v1096
        %v1152 = vsel %vm1098, %v1151, 0.0
        %1153 = vadd.xlane.f32.xlu0 %v1152
        %v1154 = vpop.xlane.xlu0 %1153
        %v1155 = vadd.f32 %v1154, %v1102
        %s1156 = scalar_lea.vmem %s755, 128 [#allocation8]
        %v1157 = vld [vmem:[%s1156] sm:$0xff]
        %v1158 = vld [vmem:[%s1156 + $0x8] sm:$0xff]
        %v1159 = vld [vmem:[%s1156 + $0x10] sm:$0xff]
        %v1160 = vld [vmem:[%s1156 + $0x18] sm:$0xff]
        %v1161 = vld [vmem:[%s1156 + $0x20] sm:$0xff]
        %v1162 = vld [vmem:[%s1156 + $0x28] sm:$0xff]
        %v1163 = vld [vmem:[%s1156 + $0x30] sm:$0xff]
        %v1164 = vld [vmem:[%s1156 + $0x38] sm:$0xff]
        %v1165 = vadd.f32 %v1011, %v1157
        %v1166 = vadd.f32 %v1016, %v1158
        %v1167 = vadd.f32 %v1021, %v1159
        %v1168 = vadd.f32 %v1026, %v1160
        %v1169 = vadd.f32 %v1031, %v1161
        %v1170 = vadd.f32 %v1036, %v1162
        %v1171 = vadd.f32 %v1041, %v1163
        %v1172 = vadd.f32 %v1046, %v1164
        %v1173 = vtanh.pop %v1165
        %v1174 = vtanh.pop %v1166
        %v1175 = vtanh.pop %v1167
        %v1176 = vtanh.pop %v1168
        %v1177 = vtanh.pop %v1169
        %v1178 = vtanh.pop %v1170
        %v1179 = vtanh.pop %v1171
        %v1180 = vtanh.pop %v1172
        %v1181 = vsel %vm1073, %v1173, 0.0
        %v1182 = vsel %vm1073, %v1174, 0.0
        %v1183 = vadd.f32 %v1181, %v1182
        %v1184 = vsel %vm1073, %v1175, 0.0
        %v1185 = vadd.f32 %v1183, %v1184
        %v1186 = vsel %vm1073, %v1176, 0.0
        %v1187 = vadd.f32 %v1185, %v1186
        %v1188 = vsel %vm1073, %v1177, 0.0
        %v1189 = vadd.f32 %v1187, %v1188
        %v1190 = vsel %vm1073, %v1178, 0.0
        %v1191 = vadd.f32 %v1189, %v1190
        %v1192 = vsel %vm1073, %v1179, 0.0
        %v1193 = vadd.f32 %v1191, %v1192
        %v1194 = vsel %vm1073, %v1180, 0.0
        %v1195 = vadd.f32 %v1193, %v1194
        %v1196 = vrot.slane %v1195, 4
        %v1197 = vadd.f32 %v1195, %v1196
        %v1198 = vrot.slane %v1197, 2
        %v1199 = vadd.f32 %v1197, %v1198
        %v1200 = vrot.slane %v1199, 1
        %v1201 = vadd.f32 %v1199, %v1200
        %v1202 = vmul.f32 %v1201, 0.015625
        %v1203 = vmul.f32 %v1202, %v1096
        %v1204 = vsel %vm1098, %v1203, 0.0
        %1205 = vadd.xlane.f32.xlu0 %v1204
        %v1206 = vpop.xlane.xlu0 %1205
        %v1207 = vadd.f32 %v1206, %v1102
        %s1208 = scalar_lea.vmem %s755, 192 [#allocation8]
        %v1209 = vld [vmem:[%s1208] sm:$0xff]
        %v1210 = vld [vmem:[%s1208 + $0x8] sm:$0xff]
        %v1211 = vld [vmem:[%s1208 + $0x10] sm:$0xff]
        %v1212 = vld [vmem:[%s1208 + $0x18] sm:$0xff]
        %v1213 = vld [vmem:[%s1208 + $0x20] sm:$0xff]
        %v1214 = vld [vmem:[%s1208 + $0x28] sm:$0xff]
        %v1215 = vld [vmem:[%s1208 + $0x30] sm:$0xff]
        %v1216 = vld [vmem:[%s1208 + $0x38] sm:$0xff]
        %v1217 = vadd.f32 %v1011, %v1209
        %v1218 = vadd.f32 %v1016, %v1210
        %v1219 = vadd.f32 %v1021, %v1211
        %v1220 = vadd.f32 %v1026, %v1212
        %v1221 = vadd.f32 %v1031, %v1213
        %v1222 = vadd.f32 %v1036, %v1214
        %v1223 = vadd.f32 %v1041, %v1215
        %v1224 = vadd.f32 %v1046, %v1216
        %v1225 = vtanh.pop %v1217
        %v1226 = vtanh.pop %v1218
        %v1227 = vtanh.pop %v1219
        %v1228 = vtanh.pop %v1220
        %v1229 = vtanh.pop %v1221
        %v1230 = vtanh.pop %v1222
        %v1231 = vtanh.pop %v1223
        %v1232 = vtanh.pop %v1224
        %v1233 = vsel %vm1073, %v1225, 0.0
        %v1234 = vsel %vm1073, %v1226, 0.0
        %v1235 = vadd.f32 %v1233, %v1234
        %v1236 = vsel %vm1073, %v1227, 0.0
        %v1237 = vadd.f32 %v1235, %v1236
        %v1238 = vsel %vm1073, %v1228, 0.0
        %v1239 = vadd.f32 %v1237, %v1238
        %v1240 = vsel %vm1073, %v1229, 0.0
        %v1241 = vadd.f32 %v1239, %v1240
        %v1242 = vsel %vm1073, %v1230, 0.0
        %v1243 = vadd.f32 %v1241, %v1242
        %v1244 = vsel %vm1073, %v1231, 0.0
        %v1245 = vadd.f32 %v1243, %v1244
        %v1246 = vsel %vm1073, %v1232, 0.0
        %v1247 = vadd.f32 %v1245, %v1246
        %v1248 = vrot.slane %v1247, 4
        %v1249 = vadd.f32 %v1247, %v1248
        %v1250 = vrot.slane %v1249, 2
        %v1251 = vadd.f32 %v1249, %v1250
        %v1252 = vrot.slane %v1251, 1
        %v1253 = vadd.f32 %v1251, %v1252
        %v1254 = vmul.f32 %v1253, 0.015625
        %v1255 = vmul.f32 %v1254, %v1096
        %v1256 = vsel %vm1098, %v1255, 0.0
        %1257 = vadd.xlane.f32.xlu0 %v1256
        %v1258 = vpop.xlane.xlu0 %1257
        %v1259 = vadd.f32 %v1258, %v1102
        %1261 = vrot.lane.b32.xlu0 %v1155, 1
        %v1262 = vpop.permute.xlu0 %1261
        %1265 = vrot.lane.b32.xlu0 %v1207, 2
        %v1266 = vpop.permute.xlu0 %1265
        %1269 = vrot.lane.b32.xlu0 %v1259, 3
        %v1270 = vpop.permute.xlu0 %1269
        %vm1272 = vcmask 7168
        %v1273 = vsel %vm1272, %v1103, %v1262
        %vm1274 = vcmask 15360
        %v1275 = vsel %vm1274, %v1273, %v1266
        %vm1276 = vcmask 23552
        %v1277 = vsel %vm1276, %v1275, %v1270
        %vm1278 = vcmask 24576
        %v1279 = vsel %vm1278, %v1277, -inf
        %1280 = vmax.xlane.f32.xlu0 %v1279
        %v1281 = vpop.xlane.xlu0 %1280
        %v1282 = vsub.f32 %v1277, %v1281
        %v1283 = vmul.f32 %v1282, 1.442695
        %v1284 = vpow.pop %v1283
        %v1285 = vsel %vm1278, %v1284, 0.0
        %1286 = vadd.xlane.f32.xlu0 %v1285
        %v1287 = vpop.xlane.xlu0 %1286
        %v1288 = vrcp.pop %v1287
        %v1289 = vmul.f32 %v1284, %v1288
        %v1290 = vld [vmem:[%s748] sm:$0xff]
        %v1291 = vld [vmem:[%s748 + $0x8] sm:$0xff]
        %v1292 = vld [vmem:[%s748 + $0x10] sm:$0xff]
        %v1293 = vld [vmem:[%s748 + $0x18] sm:$0xff]
        %v1294 = vld [vmem:[%s748 + $0x20] sm:$0xff]
        %v1295 = vld [vmem:[%s748 + $0x28] sm:$0xff]
        %v1296 = vld [vmem:[%s748 + $0x30] sm:$0xff]
        %v1297 = vld [vmem:[%s748 + $0x38] sm:$0xff]
        %s1299 = vtos %v1289
        %v1300 = vstv %s1299
        %v1302 = vmul.f32 %v1290, %v1300
        %v1303 = vmul.f32 %v1291, %v1300
        %v1304 = vmul.f32 %v1292, %v1300
        %v1305 = vmul.f32 %v1293, %v1300
        %v1306 = vmul.f32 %v1294, %v1300
        %v1307 = vmul.f32 %v1295, %v1300
        %v1308 = vmul.f32 %v1296, %v1300
        %v1309 = vmul.f32 %v1297, %v1300
        %v1310 = vadd.f32 %v1302, 0.0
        %v1311 = vadd.f32 %v1303, 0.0
        %v1312 = vadd.f32 %v1304, 0.0
        %v1313 = vadd.f32 %v1305, 0.0
        %v1314 = vadd.f32 %v1306, 0.0
        %v1315 = vadd.f32 %v1307, 0.0
        %v1316 = vadd.f32 %v1308, 0.0
        %v1317 = vadd.f32 %v1309, 0.0
        %s1318 = scalar_lea.vmem %s748, 64 [#allocation7]
        %v1319 = vld [vmem:[%s1318] sm:$0xff]
        %v1320 = vld [vmem:[%s1318 + $0x8] sm:$0xff]
        %v1321 = vld [vmem:[%s1318 + $0x10] sm:$0xff]
        %v1322 = vld [vmem:[%s1318 + $0x18] sm:$0xff]
        %v1323 = vld [vmem:[%s1318 + $0x20] sm:$0xff]
        %v1324 = vld [vmem:[%s1318 + $0x28] sm:$0xff]
        %v1325 = vld [vmem:[%s1318 + $0x30] sm:$0xff]
        %v1326 = vld [vmem:[%s1318 + $0x38] sm:$0xff]
        %1327 = vrot.lane.b32.xlu0 %v1289, 127
        %v1328 = vpop.permute.xlu0 %1327
        %s1329 = vtos %v1328
        %v1330 = vstv %s1329
        %v1332 = vmul.f32 %v1319, %v1330
        %v1333 = vmul.f32 %v1320, %v1330
        %v1334 = vmul.f32 %v1321, %v1330
        %v1335 = vmul.f32 %v1322, %v1330
        %v1336 = vmul.f32 %v1323, %v1330
        %v1337 = vmul.f32 %v1324, %v1330
        %v1338 = vmul.f32 %v1325, %v1330
        %v1339 = vmul.f32 %v1326, %v1330
        %v1340 = vadd.f32 %v1310, %v1332
        %v1341 = vadd.f32 %v1311, %v1333
        %v1342 = vadd.f32 %v1312, %v1334
        %v1343 = vadd.f32 %v1313, %v1335
        %v1344 = vadd.f32 %v1314, %v1336
        %v1345 = vadd.f32 %v1315, %v1337
        %v1346 = vadd.f32 %v1316, %v1338
        %v1347 = vadd.f32 %v1317, %v1339
        %s1348 = scalar_lea.vmem %s748, 128 [#allocation7]
        %v1349 = vld [vmem:[%s1348] sm:$0xff]
        %v1350 = vld [vmem:[%s1348 + $0x8] sm:$0xff]
        %v1351 = vld [vmem:[%s1348 + $0x10] sm:$0xff]
        %v1352 = vld [vmem:[%s1348 + $0x18] sm:$0xff]
        %v1353 = vld [vmem:[%s1348 + $0x20] sm:$0xff]
        %v1354 = vld [vmem:[%s1348 + $0x28] sm:$0xff]
        %v1355 = vld [vmem:[%s1348 + $0x30] sm:$0xff]
        %v1356 = vld [vmem:[%s1348 + $0x38] sm:$0xff]
        %1357 = vrot.lane.b32.xlu0 %v1289, 126
        %v1358 = vpop.permute.xlu0 %1357
        %s1359 = vtos %v1358
        %v1360 = vstv %s1359
        %v1362 = vmul.f32 %v1349, %v1360
        %v1363 = vmul.f32 %v1350, %v1360
        %v1364 = vmul.f32 %v1351, %v1360
        %v1365 = vmul.f32 %v1352, %v1360
        %v1366 = vmul.f32 %v1353, %v1360
        %v1367 = vmul.f32 %v1354, %v1360
        %v1368 = vmul.f32 %v1355, %v1360
        %v1369 = vmul.f32 %v1356, %v1360
        %v1370 = vadd.f32 %v1340, %v1362
        %v1371 = vadd.f32 %v1341, %v1363
        %v1372 = vadd.f32 %v1342, %v1364
        %v1373 = vadd.f32 %v1343, %v1365
        %v1374 = vadd.f32 %v1344, %v1366
        %v1375 = vadd.f32 %v1345, %v1367
        %v1376 = vadd.f32 %v1346, %v1368
        %v1377 = vadd.f32 %v1347, %v1369
        %s1378 = scalar_lea.vmem %s748, 192 [#allocation7]
        %v1379 = vld [vmem:[%s1378] sm:$0xff]
        %v1380 = vld [vmem:[%s1378 + $0x8] sm:$0xff]
        %v1381 = vld [vmem:[%s1378 + $0x10] sm:$0xff]
        %v1382 = vld [vmem:[%s1378 + $0x18] sm:$0xff]
        %v1383 = vld [vmem:[%s1378 + $0x20] sm:$0xff]
        %v1384 = vld [vmem:[%s1378 + $0x28] sm:$0xff]
        %v1385 = vld [vmem:[%s1378 + $0x30] sm:$0xff]
        %v1386 = vld [vmem:[%s1378 + $0x38] sm:$0xff]
        %1387 = vrot.lane.b32.xlu0 %v1289, 125
        %v1388 = vpop.permute.xlu0 %1387
        %s1389 = vtos %v1388
        %v1390 = vstv %s1389
        %v1392 = vmul.f32 %v1379, %v1390
        %v1393 = vmul.f32 %v1380, %v1390
        %v1394 = vmul.f32 %v1381, %v1390
        %v1395 = vmul.f32 %v1382, %v1390
        %v1396 = vmul.f32 %v1383, %v1390
        %v1397 = vmul.f32 %v1384, %v1390
        %v1398 = vmul.f32 %v1385, %v1390
        %v1399 = vmul.f32 %v1386, %v1390
        %v1400 = vadd.f32 %v1370, %v1392
        %v1401 = vadd.f32 %v1371, %v1393
        %v1402 = vadd.f32 %v1372, %v1394
        %v1403 = vadd.f32 %v1373, %v1395
        %v1404 = vadd.f32 %v1374, %v1396
        %v1405 = vadd.f32 %v1375, %v1397
        %v1406 = vadd.f32 %v1376, %v1398
        %v1407 = vadd.f32 %v1377, %v1399
        %v1408 = vld [vmem:[#allocation4] sm:$0xff]
        %v1409 = vld [vmem:[#allocation4 + $0x8] sm:$0xff]
        %v1410 = vld [vmem:[#allocation4 + $0x10] sm:$0xff]
        %v1411 = vld [vmem:[#allocation4 + $0x18] sm:$0xff]
        %v1412 = vld [vmem:[#allocation4 + $0x20] sm:$0xff]
        %v1413 = vld [vmem:[#allocation4 + $0x28] sm:$0xff]
        %v1414 = vld [vmem:[#allocation4 + $0x30] sm:$0xff]
        %v1415 = vld [vmem:[#allocation4 + $0x38] sm:$0xff]
        %1424 = vrot.lane.b32.xlu0 %v1400, 1
        %v1425 = vpop.permute.xlu0 %1424
        %1426 = vrot.lane.b32.xlu0 %v1401, 1
        %v1427 = vpop.permute.xlu0 %1426
        %1428 = vrot.lane.b32.xlu0 %v1402, 1
        %v1429 = vpop.permute.xlu0 %1428
        %1430 = vrot.lane.b32.xlu0 %v1403, 1
        %v1431 = vpop.permute.xlu0 %1430
        %1432 = vrot.lane.b32.xlu0 %v1404, 1
        %v1433 = vpop.permute.xlu0 %1432
        %1434 = vrot.lane.b32.xlu0 %v1405, 1
        %v1435 = vpop.permute.xlu0 %1434
        %1436 = vrot.lane.b32.xlu0 %v1406, 1
        %v1437 = vpop.permute.xlu0 %1436
        %1438 = vrot.lane.b32.xlu0 %v1407, 1
        %v1439 = vpop.permute.xlu0 %1438
        %1448 = vrot.lane.b32.xlu0 %v903, 65
        %v1449 = vpop.permute.xlu0 %1448
        %1450 = vrot.lane.b32.xlu0 %v904, 65
        %v1451 = vpop.permute.xlu0 %1450
        %1452 = vrot.lane.b32.xlu0 %v905, 65
        %v1453 = vpop.permute.xlu0 %1452
        %1454 = vrot.lane.b32.xlu0 %v906, 65
        %v1455 = vpop.permute.xlu0 %1454
        %1456 = vrot.lane.b32.xlu0 %v907, 65
        %v1457 = vpop.permute.xlu0 %1456
        %1458 = vrot.lane.b32.xlu0 %v908, 65
        %v1459 = vpop.permute.xlu0 %1458
        %1460 = vrot.lane.b32.xlu0 %v909, 65
        %v1461 = vpop.permute.xlu0 %1460
        %1462 = vrot.lane.b32.xlu0 %v910, 65
        %v1463 = vpop.permute.xlu0 %1462
        %v1472 = vsel %vm1272, %v1408, %v1425
        %v1473 = vsel %vm1272, %v1409, %v1427
        %v1474 = vsel %vm1272, %v1410, %v1429
        %v1475 = vsel %vm1272, %v1411, %v1431
        %v1476 = vsel %vm1272, %v1412, %v1433
        %v1477 = vsel %vm1272, %v1413, %v1435
        %v1478 = vsel %vm1272, %v1414, %v1437
        %v1479 = vsel %vm1272, %v1415, %v1439
        %vm1480 = vcmask 531456
        %v1481 = vsel %vm1480, %v1472, %v1449
        %v1482 = vsel %vm1480, %v1473, %v1451
        %v1483 = vsel %vm1480, %v1474, %v1453
        %v1484 = vsel %vm1480, %v1475, %v1455
        %v1485 = vsel %vm1480, %v1476, %v1457
        %v1486 = vsel %vm1480, %v1477, %v1459
        %v1487 = vsel %vm1480, %v1478, %v1461
        %v1488 = vsel %vm1480, %v1479, %v1463
        %vm1496 = vcmask 1040384
        %v1497 = vrot.slane %v1481, 7
        %v1498 = vrot.slane %v1449, 7
        %v1499 = vrot.slane %v1482, 7
        %v1500 = vsel %vm1496, %v1497, %v1499
        %v1501 = vrot.slane %v1451, 7
        %v1502 = vsel %vm1496, %v1498, %v1501
        %v1503 = vrot.slane %v1483, 7
        %v1504 = vsel %vm1496, %v1499, %v1503
        %v1505 = vrot.slane %v1453, 7
        %v1506 = vsel %vm1496, %v1501, %v1505
        %v1507 = vrot.slane %v1484, 7
        %v1508 = vsel %vm1496, %v1503, %v1507
        %v1509 = vrot.slane %v1455, 7
        %v1510 = vsel %vm1496, %v1505, %v1509
        %v1511 = vrot.slane %v1485, 7
        %v1512 = vsel %vm1496, %v1507, %v1511
        %v1513 = vrot.slane %v1457, 7
        %v1514 = vsel %vm1496, %v1509, %v1513
        %v1515 = vrot.slane %v1486, 7
        %v1516 = vsel %vm1496, %v1511, %v1515
        %v1517 = vrot.slane %v1459, 7
        %v1518 = vsel %vm1496, %v1513, %v1517
        %v1519 = vrot.slane %v1487, 7
        %v1520 = vsel %vm1496, %v1515, %v1519
        %v1521 = vrot.slane %v1461, 7
        %v1522 = vsel %vm1496, %v1517, %v1521
        %v1537 = vsel %vm1496, 0.0, %v1497
        %v1538 = vsel %vm1496, 0.0, %v1498
        %v1539 = vld [vmem:[%s835] sm:$0xff]
        %v1540 = vld [vmem:[%s835 + $0x8] sm:$0xff]
        %v1541 = vld [vmem:[%s835 + $0x10] sm:$0xff]
        %v1542 = vld [vmem:[%s835 + $0x18] sm:$0xff]
        %v1543 = vld [vmem:[%s835 + $0x20] sm:$0xff]
        %v1544 = vld [vmem:[%s835 + $0x28] sm:$0xff]
        %v1545 = vld [vmem:[%s835 + $0x30] sm:$0xff]
        %v1546 = vld [vmem:[%s835 + $0x38] sm:$0xff]
        %1548 = vset.pattern.permute.xlu0 0
        %1549 = vperm.xlu0 %1548, %v1539
        %v1550 = vpop.permute.xlu0 %1549
        %1553 = vset.pattern.permute.xlu0 0
        %1554 = vperm.xlu0 %1553, %v1540
        %v1555 = vpop.permute.xlu0 %1554
        %1558 = vset.pattern.permute.xlu0 0
        %1559 = vperm.xlu0 %1558, %v1541
        %v1560 = vpop.permute.xlu0 %1559
        %1563 = vset.pattern.permute.xlu0 0
        %1564 = vperm.xlu0 %1563, %v1542
        %v1565 = vpop.permute.xlu0 %1564
        %1568 = vset.pattern.permute.xlu0 0
        %1569 = vperm.xlu0 %1568, %v1543
        %v1570 = vpop.permute.xlu0 %1569
        %1573 = vset.pattern.permute.xlu0 0
        %1574 = vperm.xlu0 %1573, %v1544
        %v1575 = vpop.permute.xlu0 %1574
        %1578 = vset.pattern.permute.xlu0 0
        %1579 = vperm.xlu0 %1578, %v1545
        %v1580 = vpop.permute.xlu0 %1579
        %1583 = vset.pattern.permute.xlu0 0
        %1584 = vperm.xlu0 %1583, %v1546
        %v1585 = vpop.permute.xlu0 %1584
        %v1587 = vmul.f32 %v1550, 0.0
        %v1588 = vmul.f32 %v1537, %v1555
        %v1589 = vmul.f32 %v1538, %v1555
        %v1590 = vmul.f32 %v1500, %v1560
        %v1591 = vmul.f32 %v1502, %v1560
        %v1592 = vmul.f32 %v1504, %v1565
        %v1593 = vmul.f32 %v1506, %v1565
        %v1594 = vmul.f32 %v1508, %v1570
        %v1595 = vmul.f32 %v1510, %v1570
        %v1596 = vmul.f32 %v1512, %v1575
        %v1597 = vmul.f32 %v1514, %v1575
        %v1598 = vmul.f32 %v1516, %v1580
        %v1599 = vmul.f32 %v1518, %v1580
        %v1600 = vmul.f32 %v1520, %v1585
        %v1601 = vmul.f32 %v1522, %v1585
        %v1602 = vpack.c.bf16 %v1588, %v1587
        %v1603 = vpack.c.bf16 %v1589, %v1587
        %v1604 = vpack.c.bf16 %v1592, %v1590
        %v1605 = vpack.c.bf16 %v1593, %v1591
        %v1606 = vpack.c.bf16 %v1596, %v1594
        %v1607 = vpack.c.bf16 %v1597, %v1595
        %v1608 = vpack.c.bf16 %v1600, %v1598
        %v1609 = vpack.c.bf16 %v1601, %v1599
        %v1610 = vld [vmem:[%s7] sm:$0xff]
        %v1611 = vld [vmem:[%s7 + $0x8] sm:$0xff]
        %v1612 = vld [vmem:[%s7 + $0x10] sm:$0xff]
        %v1613 = vld [vmem:[%s7 + $0x18] sm:$0xff]
        %v1614 = vld [vmem:[%s7 + $0x20] sm:$0xff]
        %v1615 = vld [vmem:[%s7 + $0x28] sm:$0xff]
        %v1616 = vld [vmem:[%s7 + $0x30] sm:$0xff]
        %v1617 = vld [vmem:[%s7 + $0x38] sm:$0xff]
        %v1618 = vld [vmem:[%s7 + $0x40] sm:$0xff]
        %v1619 = vld [vmem:[%s7 + $0x48] sm:$0xff]
        %v1620 = vld [vmem:[%s7 + $0x50] sm:$0xff]
        %v1621 = vld [vmem:[%s7 + $0x58] sm:$0xff]
        %v1622 = vld [vmem:[%s7 + $0x60] sm:$0xff]
        %v1623 = vld [vmem:[%s7 + $0x68] sm:$0xff]
        %v1624 = vld [vmem:[%s7 + $0x70] sm:$0xff]
        %v1625 = vld [vmem:[%s7 + $0x78] sm:$0xff]
        %v1626 = vld [vmem:[%s7 + $0x80] sm:$0x11]
        %1627 = vset.pattern.permute.xlu0 1
        %1628 = vperm.xlu0 %1627, %v1539
        %v1629 = vpop.permute.xlu0 %1628
        %1631 = vset.pattern.permute.xlu0 1
        %1632 = vperm.xlu0 %1631, %v1540
        %v1633 = vpop.permute.xlu0 %1632
        %1635 = vset.pattern.permute.xlu0 1
        %1636 = vperm.xlu0 %1635, %v1541
        %v1637 = vpop.permute.xlu0 %1636
        %1639 = vset.pattern.permute.xlu0 1
        %1640 = vperm.xlu0 %1639, %v1542
        %v1641 = vpop.permute.xlu0 %1640
        %1643 = vset.pattern.permute.xlu0 1
        %1644 = vperm.xlu0 %1643, %v1543
        %v1645 = vpop.permute.xlu0 %1644
        %1647 = vset.pattern.permute.xlu0 1
        %1648 = vperm.xlu0 %1647, %v1544
        %v1649 = vpop.permute.xlu0 %1648
        %1651 = vset.pattern.permute.xlu0 1
        %1652 = vperm.xlu0 %1651, %v1545
        %v1653 = vpop.permute.xlu0 %1652
        %1655 = vset.pattern.permute.xlu0 1
        %1656 = vperm.xlu0 %1655, %v1546
        %v1657 = vpop.permute.xlu0 %1656
        %v1659 = vmul.f32 %v1629, 0.0
        %v1660 = vmul.f32 %v1481, %v1633
        %v1661 = vmul.f32 %v1449, %v1633
        %v1662 = vmul.f32 %v1482, %v1637
        %v1663 = vmul.f32 %v1451, %v1637
        %v1664 = vmul.f32 %v1483, %v1641
        %v1665 = vmul.f32 %v1453, %v1641
        %v1666 = vmul.f32 %v1484, %v1645
        %v1667 = vmul.f32 %v1455, %v1645
        %v1668 = vmul.f32 %v1485, %v1649
        %v1669 = vmul.f32 %v1457, %v1649
        %v1670 = vmul.f32 %v1486, %v1653
        %v1671 = vmul.f32 %v1459, %v1653
        %v1672 = vmul.f32 %v1487, %v1657
        %v1673 = vmul.f32 %v1461, %v1657
        %v1674 = vpack.c.bf16 %v1660, %v1659
        %v1675 = vpack.c.bf16 %v1661, %v1659
        %v1676 = vpack.c.bf16 %v1664, %v1662
        %v1677 = vpack.c.bf16 %v1665, %v1663
        %v1678 = vpack.c.bf16 %v1668, %v1666
        %v1679 = vpack.c.bf16 %v1669, %v1667
        %v1680 = vpack.c.bf16 %v1672, %v1670
        %v1681 = vpack.c.bf16 %v1673, %v1671
        %s1682 = scalar_lea.vmem %s7, 136
        %v1683 = vld [vmem:[%s1682] sm:$0xff]
        %v1684 = vld [vmem:[%s1682 + $0x8] sm:$0xff]
        %v1685 = vld [vmem:[%s1682 + $0x10] sm:$0xff]
        %v1686 = vld [vmem:[%s1682 + $0x18] sm:$0xff]
        %v1687 = vld [vmem:[%s1682 + $0x20] sm:$0xff]
        %v1688 = vld [vmem:[%s1682 + $0x28] sm:$0xff]
        %v1689 = vld [vmem:[%s1682 + $0x30] sm:$0xff]
        %v1690 = vld [vmem:[%s1682 + $0x38] sm:$0xff]
        %v1691 = vld [vmem:[%s1682 + $0x40] sm:$0xff]
        %v1692 = vld [vmem:[%s1682 + $0x48] sm:$0xff]
        %v1693 = vld [vmem:[%s1682 + $0x50] sm:$0xff]
        %v1694 = vld [vmem:[%s1682 + $0x58] sm:$0xff]
        %v1695 = vld [vmem:[%s1682 + $0x60] sm:$0xff]
        %v1696 = vld [vmem:[%s1682 + $0x68] sm:$0xff]
        %v1697 = vld [vmem:[%s1682 + $0x70] sm:$0xff]
        %v1698 = vld [vmem:[%s1682 + $0x78] sm:$0xff]
        %v1699 = vld [vmem:[%s1682 + $0x80] sm:$0x11]
        %v1717 = vunpack.c.l.b16 %v1683
        %v1718 = vunpack.c.h.b16 %v1683
        %v1719 = vunpack.c.l.b16 %v1684
        %v1720 = vunpack.c.h.b16 %v1684
        %v1721 = vunpack.c.l.b16 %v1685
        %v1722 = vunpack.c.h.b16 %v1685
        %v1723 = vunpack.c.l.b16 %v1686
        %v1724 = vunpack.c.h.b16 %v1686
        %v1725 = vunpack.c.l.b16 %v1687
        %v1726 = vunpack.c.h.b16 %v1687
        %v1727 = vunpack.c.l.b16 %v1688
        %v1728 = vunpack.c.h.b16 %v1688
        %v1729 = vunpack.c.l.b16 %v1689
        %v1730 = vunpack.c.h.b16 %v1689
        %v1731 = vunpack.c.l.b16 %v1690
        %v1732 = vunpack.c.h.b16 %v1690
        %v1733 = vunpack.c.l.b16 %v1691
        %v1734 = vunpack.c.h.b16 %v1691
        %v1735 = vunpack.c.l.b16 %v1692
        %v1736 = vunpack.c.h.b16 %v1692
        %v1737 = vunpack.c.l.b16 %v1693
        %v1738 = vunpack.c.h.b16 %v1693
        %v1739 = vunpack.c.l.b16 %v1694
        %v1740 = vunpack.c.h.b16 %v1694
        %v1741 = vunpack.c.l.b16 %v1695
        %v1742 = vunpack.c.h.b16 %v1695
        %v1743 = vunpack.c.l.b16 %v1696
        %v1744 = vunpack.c.h.b16 %v1696
        %v1745 = vunpack.c.l.b16 %v1697
        %v1746 = vunpack.c.h.b16 %v1697
        %v1747 = vunpack.c.l.b16 %v1698
        %v1748 = vunpack.c.h.b16 %v1698
        %v1749 = vunpack.c.l.b16 %v1699
        %v1750 = vunpack.c.h.b16 %v1699
        %v1751 = vpack.c.b16 %v1719, %v1717
        %v1752 = vpack.c.b16 %v1720, %v1718
        %v1753 = vpack.c.b16 %v1723, %v1721
        %v1754 = vpack.c.b16 %v1724, %v1722
        %v1755 = vpack.c.b16 %v1727, %v1725
        %v1756 = vpack.c.b16 %v1728, %v1726
        %v1757 = vpack.c.b16 %v1731, %v1729
        %v1758 = vpack.c.b16 %v1732, %v1730
        %v1759 = vpack.c.b16 %v1735, %v1733
        %v1760 = vpack.c.b16 %v1736, %v1734
        %v1761 = vpack.c.b16 %v1739, %v1737
        %v1762 = vpack.c.b16 %v1740, %v1738
        %v1763 = vpack.c.b16 %v1743, %v1741
        %v1764 = vpack.c.b16 %v1744, %v1742
        %v1765 = vpack.c.b16 %v1747, %v1745
        %v1766 = vpack.c.b16 %v1748, %v1746
        %v1767 = vpack.c.b16 %v1749, %v1749
        %v1768 = vpack.c.b16 %v1750, %v1750
        %v1786 = vsel %vm1272, %v1675, 0
        %v1789 = vsel %vm1272, %v1677, 0
        %v1792 = vsel %vm1272, %v1679, 0
        %v1795 = vsel %vm1272, %v1681, 0
        %v1797 = vsel 0, 4294967295, 65535
        %v1798 = vsel %vm1496, %v1797, 0
        %v1800 = vand.u32 %v1767, %v1798
        %v1803 = vand.u32 %v1768, %v1798
        %1805 = vmatprep.subr.bf16.mxu0 %v1752
        %1806 = vmatpush1.bf16.msra.mxu0 %v1751
        %1807 = vmatprep.subr.bf16.mxu0 %v1754
        %1808 = vmatpush1.bf16.msra.mxu0 %v1753
        %1809 = vmatprep.subr.bf16.mxu0 %v1756
        %1810 = vmatpush1.bf16.msra.mxu0 %v1755
        %1811 = vmatprep.subr.bf16.mxu0 %v1758
        %1812 = vmatpush1.bf16.msra.mxu0 %v1757
        %1813 = vmatprep.subr.bf16.mxu0 %v1760
        %1814 = vmatpush1.bf16.msra.mxu0 %v1759
        %1815 = vmatprep.subr.bf16.mxu0 %v1762
        %1816 = vmatpush1.bf16.msra.mxu0 %v1761
        %1817 = vmatprep.subr.bf16.mxu0 %v1764
        %1818 = vmatpush1.bf16.msra.mxu0 %v1763
        %1819 = vmatprep.subr.bf16.mxu0 %v1766
        %1820 = vmatpush1.bf16.msra.mxu0 %v1765
        %1821 = vmatprep.subr.bf16.mxu0 %v1803
        %1822 = vmatpush1.bf16.msra.mxu0 %v1800
        %1823 = vmatprep.subr.bf16.mxu0 0
        %1824 = vmatpush1.bf16.msra.mxu0 0
        %1825 = vmatprep.subr.bf16.mxu0 0
        %1826 = vmatpush1.bf16.msra.mxu0 0
        %1827 = vmatprep.subr.bf16.mxu0 0
        %1828 = vmatpush1.bf16.msra.mxu0 0
        %1829 = vmatprep.subr.bf16.mxu0 0
        %1830 = vmatpush1.bf16.msra.mxu0 0
        %1831 = vmatprep.subr.bf16.mxu0 0
        %1832 = vmatpush1.bf16.msra.mxu0 0
        %1833 = vmatprep.subr.bf16.mxu0 0
        %1834 = vmatpush1.bf16.msra.mxu0 0
        %1835 = vmatprep.subr.bf16.mxu0 0
        %1836 = vmatpush1.bf16.msra.mxu0 0
        %1837 = vmatprep.mubr.bf16.mxu0 %v1786
        %1838 = vmatmul.mubr.bf16.gmra.mrb[0].mxu0 %v1674
        %v1839 = vpop.f32.mrb[0].mxu0
        %v1840 = vadd.f32 0.0, %v1839
        %v1841 = vpop.f32.mrb[0].mxu0
        %v1842 = vadd.f32 0.0, %v1841
        %v1843 = vpop.f32.mrb[0].mxu0
        %v1844 = vadd.f32 0.0, %v1843
        %v1845 = vpop.f32.mrb[0].mxu0
        %v1846 = vadd.f32 0.0, %v1845
        %1847 = vmatprep.mubr.bf16.mxu0 %v1789
        %1848 = vmatmul.mubr.bf16.gmra.mrb[0].mxu0 %v1676
        %v1849 = vpop.f32.mrb[0].mxu0
        %v1850 = vadd.f32 0.0, %v1849
        %v1851 = vpop.f32.mrb[0].mxu0
        %v1852 = vadd.f32 0.0, %v1851
        %v1853 = vpop.f32.mrb[0].mxu0
        %v1854 = vadd.f32 0.0, %v1853
        %v1855 = vpop.f32.mrb[0].mxu0
        %v1856 = vadd.f32 0.0, %v1855
        %1857 = vmatprep.mubr.bf16.mxu0 %v1792
        %1858 = vmatmul.mubr.bf16.gmra.mrb[0].mxu0 %v1678
        %v1859 = vpop.f32.mrb[0].mxu0
        %v1860 = vadd.f32 0.0, %v1859
        %v1861 = vpop.f32.mrb[0].mxu0
        %v1862 = vadd.f32 0.0, %v1861
        %v1863 = vpop.f32.mrb[0].mxu0
        %v1864 = vadd.f32 0.0, %v1863
        %v1865 = vpop.f32.mrb[0].mxu0
        %v1866 = vadd.f32 0.0, %v1865
        %1867 = vmatprep.mubr.bf16.mxu0 %v1795
        %1868 = vmatmul.mubr.bf16.gmra.mrb[0].mxu0 %v1680
        %v1869 = vpop.f32.mrb[0].mxu0
        %v1870 = vadd.f32 0.0, %v1869
        %v1871 = vpop.f32.mrb[0].mxu0
        %v1872 = vadd.f32 0.0, %v1871
        %v1873 = vpop.f32.mrb[0].mxu0
        %v1874 = vadd.f32 0.0, %v1873
        %v1875 = vpop.f32.mrb[0].mxu0
        %v1876 = vadd.f32 0.0, %v1875
        %1877 = vdwg.mxu0
        %v1895 = vunpack.c.l.b16 %v1610
        %v1896 = vunpack.c.h.b16 %v1610
        %v1897 = vunpack.c.l.b16 %v1611
        %v1898 = vunpack.c.h.b16 %v1611
        %v1899 = vunpack.c.l.b16 %v1612
        %v1900 = vunpack.c.h.b16 %v1612
        %v1901 = vunpack.c.l.b16 %v1613
        %v1902 = vunpack.c.h.b16 %v1613
        %v1903 = vunpack.c.l.b16 %v1614
        %v1904 = vunpack.c.h.b16 %v1614
        %v1905 = vunpack.c.l.b16 %v1615
        %v1906 = vunpack.c.h.b16 %v1615
        %v1907 = vunpack.c.l.b16 %v1616
        %v1908 = vunpack.c.h.b16 %v1616
        %v1909 = vunpack.c.l.b16 %v1617
        %v1910 = vunpack.c.h.b16 %v1617
        %v1911 = vunpack.c.l.b16 %v1618
        %v1912 = vunpack.c.h.b16 %v1618
        %v1913 = vunpack.c.l.b16 %v1619
        %v1914 = vunpack.c.h.b16 %v1619
        %v1915 = vunpack.c.l.b16 %v1620
        %v1916 = vunpack.c.h.b16 %v1620
        %v1917 = vunpack.c.l.b16 %v1621
        %v1918 = vunpack.c.h.b16 %v1621
        %v1919 = vunpack.c.l.b16 %v1622
        %v1920 = vunpack.c.h.b16 %v1622
        %v1921 = vunpack.c.l.b16 %v1623
        %v1922 = vunpack.c.h.b16 %v1623
        %v1923 = vunpack.c.l.b16 %v1624
        %v1924 = vunpack.c.h.b16 %v1624
        %v1925 = vunpack.c.l.b16 %v1625
        %v1926 = vunpack.c.h.b16 %v1625
        %v1927 = vunpack.c.l.b16 %v1626
        %v1928 = vunpack.c.h.b16 %v1626
        %v1929 = vpack.c.b16 %v1897, %v1895
        %v1930 = vpack.c.b16 %v1898, %v1896
        %v1931 = vpack.c.b16 %v1901, %v1899
        %v1932 = vpack.c.b16 %v1902, %v1900
        %v1933 = vpack.c.b16 %v1905, %v1903
        %v1934 = vpack.c.b16 %v1906, %v1904
        %v1935 = vpack.c.b16 %v1909, %v1907
        %v1936 = vpack.c.b16 %v1910, %v1908
        %v1937 = vpack.c.b16 %v1913, %v1911
        %v1938 = vpack.c.b16 %v1914, %v1912
        %v1939 = vpack.c.b16 %v1917, %v1915
        %v1940 = vpack.c.b16 %v1918, %v1916
        %v1941 = vpack.c.b16 %v1921, %v1919
        %v1942 = vpack.c.b16 %v1922, %v1920
        %v1943 = vpack.c.b16 %v1925, %v1923
        %v1944 = vpack.c.b16 %v1926, %v1924
        %v1945 = vpack.c.b16 %v1927, %v1927
        %v1946 = vpack.c.b16 %v1928, %v1928
        %v1964 = vsel %vm1272, %v1603, 0
        %v1967 = vsel %vm1272, %v1605, 0
        %v1970 = vsel %vm1272, %v1607, 0
        %v1973 = vsel %vm1272, %v1609, 0
        %v1976 = vand.u32 %v1945, %v1798
        %v1979 = vand.u32 %v1946, %v1798
        %1981 = vmatprep.subr.bf16.mxu0 %v1930
        %1982 = vmatpush1.bf16.msra.mxu0 %v1929
        %1983 = vmatprep.subr.bf16.mxu0 %v1932
        %1984 = vmatpush1.bf16.msra.mxu0 %v1931
        %1985 = vmatprep.subr.bf16.mxu0 %v1934
        %1986 = vmatpush1.bf16.msra.mxu0 %v1933
        %1987 = vmatprep.subr.bf16.mxu0 %v1936
        %1988 = vmatpush1.bf16.msra.mxu0 %v1935
        %1989 = vmatprep.subr.bf16.mxu0 %v1938
        %1990 = vmatpush1.bf16.msra.mxu0 %v1937
        %1991 = vmatprep.subr.bf16.mxu0 %v1940
        %1992 = vmatpush1.bf16.msra.mxu0 %v1939
        %1993 = vmatprep.subr.bf16.mxu0 %v1942
        %1994 = vmatpush1.bf16.msra.mxu0 %v1941
        %1995 = vmatprep.subr.bf16.mxu0 %v1944
        %1996 = vmatpush1.bf16.msra.mxu0 %v1943
        %1997 = vmatprep.subr.bf16.mxu0 %v1979
        %1998 = vmatpush1.bf16.msra.mxu0 %v1976
        %1999 = vmatprep.subr.bf16.mxu0 0
        %2000 = vmatpush1.bf16.msra.mxu0 0
        %2001 = vmatprep.subr.bf16.mxu0 0
        %2002 = vmatpush1.bf16.msra.mxu0 0
        %2003 = vmatprep.subr.bf16.mxu0 0
        %2004 = vmatpush1.bf16.msra.mxu0 0
        %2005 = vmatprep.subr.bf16.mxu0 0
        %2006 = vmatpush1.bf16.msra.mxu0 0
        %2007 = vmatprep.subr.bf16.mxu0 0
        %2008 = vmatpush1.bf16.msra.mxu0 0
        %2009 = vmatprep.subr.bf16.mxu0 0
        %2010 = vmatpush1.bf16.msra.mxu0 0
        %2011 = vmatprep.subr.bf16.mxu0 0
        %2012 = vmatpush1.bf16.msra.mxu0 0
        %2013 = vmatprep.mubr.bf16.mxu0 %v1964
        %2014 = vmatmul.mubr.bf16.gmra.mrb[0].mxu0 %v1602
        %v2015 = vpop.f32.mrb[0].mxu0
        %v2016 = vadd.f32 %v1840, %v2015
        %v2017 = vpop.f32.mrb[0].mxu0
        %v2018 = vadd.f32 %v1842, %v2017
        %v2019 = vpop.f32.mrb[0].mxu0
        %v2020 = vadd.f32 %v1844, %v2019
        %v2021 = vpop.f32.mrb[0].mxu0
        %v2022 = vadd.f32 %v1846, %v2021
        %2023 = vmatprep.mubr.bf16.mxu0 %v1967
        %2024 = vmatmul.mubr.bf16.gmra.mrb[0].mxu0 %v1604
        %v2025 = vpop.f32.mrb[0].mxu0
        %v2026 = vadd.f32 %v1850, %v2025
        %v2027 = vpop.f32.mrb[0].mxu0
        %v2028 = vadd.f32 %v1852, %v2027
        %v2029 = vpop.f32.mrb[0].mxu0
        %v2030 = vadd.f32 %v1854, %v2029
        %v2031 = vpop.f32.mrb[0].mxu0
        %v2032 = vadd.f32 %v1856, %v2031
        %2033 = vmatprep.mubr.bf16.mxu0 %v1970
        %2034 = vmatmul.mubr.bf16.gmra.mrb[0].mxu0 %v1606
        %v2035 = vpop.f32.mrb[0].mxu0
        %v2036 = vadd.f32 %v1860, %v2035
        %v2037 = vpop.f32.mrb[0].mxu0
        %v2038 = vadd.f32 %v1862, %v2037
        %v2039 = vpop.f32.mrb[0].mxu0
        %v2040 = vadd.f32 %v1864, %v2039
        %v2041 = vpop.f32.mrb[0].mxu0
        %v2042 = vadd.f32 %v1866, %v2041
        %2043 = vmatprep.mubr.bf16.mxu0 %v1973
        %2044 = vmatmul.mubr.bf16.gmra.mrb[0].mxu0 %v1608
        %v2045 = vpop.f32.mrb[0].mxu0
        %v2046 = vadd.f32 %v1870, %v2045
        %v2047 = vpop.f32.mrb[0].mxu0
        %v2048 = vadd.f32 %v1872, %v2047
        %v2049 = vpop.f32.mrb[0].mxu0
        %v2050 = vadd.f32 %v1874, %v2049
        %v2051 = vpop.f32.mrb[0].mxu0
        %v2052 = vadd.f32 %v1876, %v2051
        %2053 = vdwg.mxu0
        %vm2055 = vcmask 1046528
        %v2056 = vrot.slane %v1481, 1
        %v2057 = vrot.slane %v1449, 1
        %v2058 = vrot.slane %v1482, 1
        %v2059 = vsel %vm2055, %v2056, %v2058
        %v2060 = vrot.slane %v1451, 1
        %v2061 = vsel %vm2055, %v2057, %v2060
        %v2062 = vrot.slane %v1483, 1
        %v2063 = vsel %vm2055, %v2058, %v2062
        %v2064 = vrot.slane %v1453, 1
        %v2065 = vsel %vm2055, %v2060, %v2064
        %v2066 = vrot.slane %v1484, 1
        %v2067 = vsel %vm2055, %v2062, %v2066
        %v2068 = vrot.slane %v1455, 1
        %v2069 = vsel %vm2055, %v2064, %v2068
        %v2070 = vrot.slane %v1485, 1
        %v2071 = vsel %vm2055, %v2066, %v2070
        %v2072 = vrot.slane %v1457, 1
        %v2073 = vsel %vm2055, %v2068, %v2072
        %v2074 = vrot.slane %v1486, 1
        %v2075 = vsel %vm2055, %v2070, %v2074
        %v2076 = vrot.slane %v1459, 1
        %v2077 = vsel %vm2055, %v2072, %v2076
        %v2078 = vrot.slane %v1487, 1
        %v2079 = vsel %vm2055, %v2074, %v2078
        %v2080 = vrot.slane %v1461, 1
        %v2081 = vsel %vm2055, %v2076, %v2080
        %v2082 = vrot.slane %v1488, 1
        %v2083 = vsel %vm2055, %v2078, %v2082
        %v2084 = vrot.slane %v1463, 1
        %v2085 = vsel %vm2055, %v2080, %v2084
        %v2102 = vsel %vm2055, 0.0, %v2056
        %v2103 = vsel %vm2055, 0.0, %v2057
        %2104 = vset.pattern.permute.xlu0 2
        %2105 = vperm.xlu0 %2104, %v1539
        %v2106 = vpop.permute.xlu0 %2105
        %2108 = vset.pattern.permute.xlu0 2
        %2109 = vperm.xlu0 %2108, %v1540
        %v2110 = vpop.permute.xlu0 %2109
        %2112 = vset.pattern.permute.xlu0 2
        %2113 = vperm.xlu0 %2112, %v1541
        %v2114 = vpop.permute.xlu0 %2113
        %2116 = vset.pattern.permute.xlu0 2
        %2117 = vperm.xlu0 %2116, %v1542
        %v2118 = vpop.permute.xlu0 %2117
        %2120 = vset.pattern.permute.xlu0 2
        %2121 = vperm.xlu0 %2120, %v1543
        %v2122 = vpop.permute.xlu0 %2121
        %2124 = vset.pattern.permute.xlu0 2
        %2125 = vperm.xlu0 %2124, %v1544
        %v2126 = vpop.permute.xlu0 %2125
        %2128 = vset.pattern.permute.xlu0 2
        %2129 = vperm.xlu0 %2128, %v1545
        %v2130 = vpop.permute.xlu0 %2129
        %2132 = vset.pattern.permute.xlu0 2
        %2133 = vperm.xlu0 %2132, %v1546
        %v2134 = vpop.permute.xlu0 %2133
        %v2136 = vmul.f32 %v2102, %v2106
        %v2137 = vmul.f32 %v2103, %v2106
        %v2138 = vmul.f32 %v2059, %v2110
        %v2139 = vmul.f32 %v2061, %v2110
        %v2140 = vmul.f32 %v2063, %v2114
        %v2141 = vmul.f32 %v2065, %v2114
        %v2142 = vmul.f32 %v2067, %v2118
        %v2143 = vmul.f32 %v2069, %v2118
        %v2144 = vmul.f32 %v2071, %v2122
        %v2145 = vmul.f32 %v2073, %v2122
        %v2146 = vmul.f32 %v2075, %v2126
        %v2147 = vmul.f32 %v2077, %v2126
        %v2148 = vmul.f32 %v2079, %v2130
        %v2149 = vmul.f32 %v2081, %v2130
        %v2150 = vmul.f32 %v2083, %v2134
        %v2151 = vmul.f32 %v2085, %v2134
        %v2152 = vpack.c.bf16 %v2138, %v2136
        %v2153 = vpack.c.bf16 %v2139, %v2137
        %v2154 = vpack.c.bf16 %v2142, %v2140
        %v2155 = vpack.c.bf16 %v2143, %v2141
        %v2156 = vpack.c.bf16 %v2146, %v2144
        %v2157 = vpack.c.bf16 %v2147, %v2145
        %v2158 = vpack.c.bf16 %v2150, %v2148
        %v2159 = vpack.c.bf16 %v2151, %v2149
        %s2160 = scalar_lea.vmem %s7, 272
        %v2161 = vld [vmem:[%s2160] sm:$0xff]
        %v2162 = vld [vmem:[%s2160 + $0x8] sm:$0xff]
        %v2163 = vld [vmem:[%s2160 + $0x10] sm:$0xff]
        %v2164 = vld [vmem:[%s2160 + $0x18] sm:$0xff]
        %v2165 = vld [vmem:[%s2160 + $0x20] sm:$0xff]
        %v2166 = vld [vmem:[%s2160 + $0x28] sm:$0xff]
        %v2167 = vld [vmem:[%s2160 + $0x30] sm:$0xff]
        %v2168 = vld [vmem:[%s2160 + $0x38] sm:$0xff]
        %v2169 = vld [vmem:[%s2160 + $0x40] sm:$0xff]
        %v2170 = vld [vmem:[%s2160 + $0x48] sm:$0xff]
        %v2171 = vld [vmem:[%s2160 + $0x50] sm:$0xff]
        %v2172 = vld [vmem:[%s2160 + $0x58] sm:$0xff]
        %v2173 = vld [vmem:[%s2160 + $0x60] sm:$0xff]
        %v2174 = vld [vmem:[%s2160 + $0x68] sm:$0xff]
        %v2175 = vld [vmem:[%s2160 + $0x70] sm:$0xff]
        %v2176 = vld [vmem:[%s2160 + $0x78] sm:$0xff]
        %v2177 = vld [vmem:[%s2160 + $0x80] sm:$0x11]
        %v2195 = vunpack.c.l.b16 %v2161
        %v2196 = vunpack.c.h.b16 %v2161
        %v2197 = vunpack.c.l.b16 %v2162
        %v2198 = vunpack.c.h.b16 %v2162
        %v2199 = vunpack.c.l.b16 %v2163
        %v2200 = vunpack.c.h.b16 %v2163
        %v2201 = vunpack.c.l.b16 %v2164
        %v2202 = vunpack.c.h.b16 %v2164
        %v2203 = vunpack.c.l.b16 %v2165
        %v2204 = vunpack.c.h.b16 %v2165
        %v2205 = vunpack.c.l.b16 %v2166
        %v2206 = vunpack.c.h.b16 %v2166
        %v2207 = vunpack.c.l.b16 %v2167
        %v2208 = vunpack.c.h.b16 %v2167
        %v2209 = vunpack.c.l.b16 %v2168
        %v2210 = vunpack.c.h.b16 %v2168
        %v2211 = vunpack.c.l.b16 %v2169
        %v2212 = vunpack.c.h.b16 %v2169
        %v2213 = vunpack.c.l.b16 %v2170
        %v2214 = vunpack.c.h.b16 %v2170
        %v2215 = vunpack.c.l.b16 %v2171
        %v2216 = vunpack.c.h.b16 %v2171
        %v2217 = vunpack.c.l.b16 %v2172
        %v2218 = vunpack.c.h.b16 %v2172
        %v2219 = vunpack.c.l.b16 %v2173
        %v2220 = vunpack.c.h.b16 %v2173
        %v2221 = vunpack.c.l.b16 %v2174
        %v2222 = vunpack.c.h.b16 %v2174
        %v2223 = vunpack.c.l.b16 %v2175
        %v2224 = vunpack.c.h.b16 %v2175
        %v2225 = vunpack.c.l.b16 %v2176
        %v2226 = vunpack.c.h.b16 %v2176
        %v2227 = vunpack.c.l.b16 %v2177
        %v2228 = vunpack.c.h.b16 %v2177
        %v2229 = vpack.c.b16 %v2197, %v2195
        %v2230 = vpack.c.b16 %v2198, %v2196
        %v2231 = vpack.c.b16 %v2201, %v2199
        %v2232 = vpack.c.b16 %v2202, %v2200
        %v2233 = vpack.c.b16 %v2205, %v2203
        %v2234 = vpack.c.b16 %v2206, %v2204
        %v2235 = vpack.c.b16 %v2209, %v2207
        %v2236 = vpack.c.b16 %v2210, %v2208
        %v2237 = vpack.c.b16 %v2213, %v2211
        %v2238 = vpack.c.b16 %v2214, %v2212
        %v2239 = vpack.c.b16 %v2217, %v2215
        %v2240 = vpack.c.b16 %v2218, %v2216
        %v2241 = vpack.c.b16 %v2221, %v2219
        %v2242 = vpack.c.b16 %v2222, %v2220
        %v2243 = vpack.c.b16 %v2225, %v2223
        %v2244 = vpack.c.b16 %v2226, %v2224
        %v2245 = vpack.c.b16 %v2227, %v2227
        %v2246 = vpack.c.b16 %v2228, %v2228
        %v2264 = vsel %vm1272, %v2153, 0
        %v2267 = vsel %vm1272, %v2155, 0
        %v2270 = vsel %vm1272, %v2157, 0
        %v2273 = vsel %vm1272, %v2159, 0
        %v2276 = vand.u32 %v2245, %v1798
        %v2279 = vand.u32 %v2246, %v1798
        %2281 = vmatprep.subr.bf16.mxu0 %v2230
        %2282 = vmatpush1.bf16.msra.mxu0 %v2229
        %2283 = vmatprep.subr.bf16.mxu0 %v2232
        %2284 = vmatpush1.bf16.msra.mxu0 %v2231
        %2285 = vmatprep.subr.bf16.mxu0 %v2234
        %2286 = vmatpush1.bf16.msra.mxu0 %v2233
        %2287 = vmatprep.subr.bf16.mxu0 %v2236
        %2288 = vmatpush1.bf16.msra.mxu0 %v2235
        %2289 = vmatprep.subr.bf16.mxu0 %v2238
        %2290 = vmatpush1.bf16.msra.mxu0 %v2237
        %2291 = vmatprep.subr.bf16.mxu0 %v2240
        %2292 = vmatpush1.bf16.msra.mxu0 %v2239
        %2293 = vmatprep.subr.bf16.mxu0 %v2242
        %2294 = vmatpush1.bf16.msra.mxu0 %v2241
        %2295 = vmatprep.subr.bf16.mxu0 %v2244
        %2296 = vmatpush1.bf16.msra.mxu0 %v2243
        %2297 = vmatprep.subr.bf16.mxu0 %v2279
        %2298 = vmatpush1.bf16.msra.mxu0 %v2276
        %2299 = vmatprep.subr.bf16.mxu0 0
        %2300 = vmatpush1.bf16.msra.mxu0 0
        %2301 = vmatprep.subr.bf16.mxu0 0
        %2302 = vmatpush1.bf16.msra.mxu0 0
        %2303 = vmatprep.subr.bf16.mxu0 0
        %2304 = vmatpush1.bf16.msra.mxu0 0
        %2305 = vmatprep.subr.bf16.mxu0 0
        %2306 = vmatpush1.bf16.msra.mxu0 0
        %2307 = vmatprep.subr.bf16.mxu0 0
        %2308 = vmatpush1.bf16.msra.mxu0 0
        %2309 = vmatprep.subr.bf16.mxu0 0
        %2310 = vmatpush1.bf16.msra.mxu0 0
        %2311 = vmatprep.subr.bf16.mxu0 0
        %2312 = vmatpush1.bf16.msra.mxu0 0
        %2313 = vmatprep.mubr.bf16.mxu0 %v2264
        %2314 = vmatmul.mubr.bf16.gmra.mrb[0].mxu0 %v2152
        %v2315 = vpop.f32.mrb[0].mxu0
        %v2316 = vadd.f32 0.0, %v2315
        %v2317 = vpop.f32.mrb[0].mxu0
        %v2318 = vadd.f32 0.0, %v2317
        %v2319 = vpop.f32.mrb[0].mxu0
        %v2320 = vadd.f32 0.0, %v2319
        %v2321 = vpop.f32.mrb[0].mxu0
        %v2322 = vadd.f32 0.0, %v2321
        %2323 = vmatprep.mubr.bf16.mxu0 %v2267
        %2324 = vmatmul.mubr.bf16.gmra.mrb[0].mxu0 %v2154
        %v2325 = vpop.f32.mrb[0].mxu0
        %v2326 = vadd.f32 0.0, %v2325
        %v2327 = vpop.f32.mrb[0].mxu0
        %v2328 = vadd.f32 0.0, %v2327
        %v2329 = vpop.f32.mrb[0].mxu0
        %v2330 = vadd.f32 0.0, %v2329
        %v2331 = vpop.f32.mrb[0].mxu0
        %v2332 = vadd.f32 0.0, %v2331
        %2333 = vmatprep.mubr.bf16.mxu0 %v2270
        %2334 = vmatmul.mubr.bf16.gmra.mrb[0].mxu0 %v2156
        %v2335 = vpop.f32.mrb[0].mxu0
        %v2336 = vadd.f32 0.0, %v2335
        %v2337 = vpop.f32.mrb[0].mxu0
        %v2338 = vadd.f32 0.0, %v2337
        %v2339 = vpop.f32.mrb[0].mxu0
        %v2340 = vadd.f32 0.0, %v2339
        %v2341 = vpop.f32.mrb[0].mxu0
        %v2342 = vadd.f32 0.0, %v2341
        %2343 = vmatprep.mubr.bf16.mxu0 %v2273
        %2344 = vmatmul.mubr.bf16.gmra.mrb[0].mxu0 %v2158
        %v2345 = vpop.f32.mrb[0].mxu0
        %v2346 = vadd.f32 0.0, %v2345
        %v2347 = vpop.f32.mrb[0].mxu0
        %v2348 = vadd.f32 0.0, %v2347
        %v2349 = vpop.f32.mrb[0].mxu0
        %v2350 = vadd.f32 0.0, %v2349
        %v2351 = vpop.f32.mrb[0].mxu0
        %v2352 = vadd.f32 0.0, %v2351
        %2353 = vdwg.mxu0
        %v2354 = vadd.f32 %v2016, %v2316
        %v2355 = vadd.f32 %v2018, %v2318
        %v2356 = vadd.f32 %v2020, %v2320
        %v2357 = vadd.f32 %v2022, %v2322
        %v2358 = vadd.f32 %v2026, %v2326
        %v2359 = vadd.f32 %v2028, %v2328
        %v2360 = vadd.f32 %v2030, %v2330
        %v2361 = vadd.f32 %v2032, %v2332
        %v2362 = vadd.f32 %v2036, %v2336
        %v2363 = vadd.f32 %v2038, %v2338
        %v2364 = vadd.f32 %v2040, %v2340
        %v2365 = vadd.f32 %v2042, %v2342
        %v2366 = vadd.f32 %v2046, %v2346
        %v2367 = vadd.f32 %v2048, %v2348
        %v2368 = vadd.f32 %v2050, %v2350
        %v2369 = vadd.f32 %v2052, %v2352
        %v2370 = vrot.slane %v1488, 7
        %v2371 = vsel %vm1496, %v1519, %v2370
        %v2372 = vrot.slane %v1463, 7
        %v2373 = vsel %vm1496, %v1521, %v2372
        %2376 = vset.pattern.permute.xlu0 3
        %2377 = vperm.xlu0 %2376, %v1539
        %v2378 = vpop.permute.xlu0 %2377
        %2380 = vset.pattern.permute.xlu0 3
        %2381 = vperm.xlu0 %2380, %v1540
        %v2382 = vpop.permute.xlu0 %2381
        %2384 = vset.pattern.permute.xlu0 3
        %2385 = vperm.xlu0 %2384, %v1541
        %v2386 = vpop.permute.xlu0 %2385
        %2388 = vset.pattern.permute.xlu0 3
        %2389 = vperm.xlu0 %2388, %v1542
        %v2390 = vpop.permute.xlu0 %2389
        %2392 = vset.pattern.permute.xlu0 3
        %2393 = vperm.xlu0 %2392, %v1543
        %v2394 = vpop.permute.xlu0 %2393
        %2396 = vset.pattern.permute.xlu0 3
        %2397 = vperm.xlu0 %2396, %v1544
        %v2398 = vpop.permute.xlu0 %2397
        %2400 = vset.pattern.permute.xlu0 3
        %2401 = vperm.xlu0 %2400, %v1545
        %v2402 = vpop.permute.xlu0 %2401
        %2404 = vset.pattern.permute.xlu0 3
        %2405 = vperm.xlu0 %2404, %v1546
        %v2406 = vpop.permute.xlu0 %2405
        %v2408 = vmul.f32 %v1537, %v2378
        %v2409 = vmul.f32 %v1538, %v2378
        %v2410 = vmul.f32 %v1500, %v2382
        %v2411 = vmul.f32 %v1502, %v2382
        %v2412 = vmul.f32 %v1504, %v2386
        %v2413 = vmul.f32 %v1506, %v2386
        %v2414 = vmul.f32 %v1508, %v2390
        %v2415 = vmul.f32 %v1510, %v2390
        %v2416 = vmul.f32 %v1512, %v2394
        %v2417 = vmul.f32 %v1514, %v2394
        %v2418 = vmul.f32 %v1516, %v2398
        %v2419 = vmul.f32 %v1518, %v2398
        %v2420 = vmul.f32 %v1520, %v2402
        %v2421 = vmul.f32 %v1522, %v2402
        %v2422 = vmul.f32 %v2371, %v2406
        %v2423 = vmul.f32 %v2373, %v2406
        %v2424 = vpack.c.bf16 %v2410, %v2408
        %v2425 = vpack.c.bf16 %v2411, %v2409
        %v2426 = vpack.c.bf16 %v2414, %v2412
        %v2427 = vpack.c.bf16 %v2415, %v2413
        %v2428 = vpack.c.bf16 %v2418, %v2416
        %v2429 = vpack.c.bf16 %v2419, %v2417
        %v2430 = vpack.c.bf16 %v2422, %v2420
        %v2431 = vpack.c.bf16 %v2423, %v2421
        %s2432 = scalar_lea.vmem %s7, 408
        %v2433 = vld [vmem:[%s2432] sm:$0xff]
        %v2434 = vld [vmem:[%s2432 + $0x8] sm:$0xff]
        %v2435 = vld [vmem:[%s2432 + $0x10] sm:$0xff]
        %v2436 = vld [vmem:[%s2432 + $0x18] sm:$0xff]
        %v2437 = vld [vmem:[%s2432 + $0x20] sm:$0xff]
        %v2438 = vld [vmem:[%s2432 + $0x28] sm:$0xff]
        %v2439 = vld [vmem:[%s2432 + $0x30] sm:$0xff]
        %v2440 = vld [vmem:[%s2432 + $0x38] sm:$0xff]
        %v2441 = vld [vmem:[%s2432 + $0x40] sm:$0xff]
        %v2442 = vld [vmem:[%s2432 + $0x48] sm:$0xff]
        %v2443 = vld [vmem:[%s2432 + $0x50] sm:$0xff]
        %v2444 = vld [vmem:[%s2432 + $0x58] sm:$0xff]
        %v2445 = vld [vmem:[%s2432 + $0x60] sm:$0xff]
        %v2446 = vld [vmem:[%s2432 + $0x68] sm:$0xff]
        %v2447 = vld [vmem:[%s2432 + $0x70] sm:$0xff]
        %v2448 = vld [vmem:[%s2432 + $0x78] sm:$0xff]
        %v2449 = vld [vmem:[%s2432 + $0x80] sm:$0x11]
        %v2467 = vunpack.c.l.b16 %v2433
        %v2468 = vunpack.c.h.b16 %v2433
        %v2469 = vunpack.c.l.b16 %v2434
        %v2470 = vunpack.c.h.b16 %v2434
        %v2471 = vunpack.c.l.b16 %v2435
        %v2472 = vunpack.c.h.b16 %v2435
        %v2473 = vunpack.c.l.b16 %v2436
        %v2474 = vunpack.c.h.b16 %v2436
        %v2475 = vunpack.c.l.b16 %v2437
        %v2476 = vunpack.c.h.b16 %v2437
        %v2477 = vunpack.c.l.b16 %v2438
        %v2478 = vunpack.c.h.b16 %v2438
        %v2479 = vunpack.c.l.b16 %v2439
        %v2480 = vunpack.c.h.b16 %v2439
        %v2481 = vunpack.c.l.b16 %v2440
        %v2482 = vunpack.c.h.b16 %v2440
        %v2483 = vunpack.c.l.b16 %v2441
        %v2484 = vunpack.c.h.b16 %v2441
        %v2485 = vunpack.c.l.b16 %v2442
        %v2486 = vunpack.c.h.b16 %v2442
        %v2487 = vunpack.c.l.b16 %v2443
        %v2488 = vunpack.c.h.b16 %v2443
        %v2489 = vunpack.c.l.b16 %v2444
        %v2490 = vunpack.c.h.b16 %v2444
        %v2491 = vunpack.c.l.b16 %v2445
        %v2492 = vunpack.c.h.b16 %v2445
        %v2493 = vunpack.c.l.b16 %v2446
        %v2494 = vunpack.c.h.b16 %v2446
        %v2495 = vunpack.c.l.b16 %v2447
        %v2496 = vunpack.c.h.b16 %v2447
        %v2497 = vunpack.c.l.b16 %v2448
        %v2498 = vunpack.c.h.b16 %v2448
        %v2499 = vunpack.c.l.b16 %v2449
        %v2500 = vunpack.c.h.b16 %v2449
        %v2501 = vpack.c.b16 %v2469, %v2467
        %v2502 = vpack.c.b16 %v2470, %v2468
        %v2503 = vpack.c.b16 %v2473, %v2471
        %v2504 = vpack.c.b16 %v2474, %v2472
        %v2505 = vpack.c.b16 %v2477, %v2475
        %v2506 = vpack.c.b16 %v2478, %v2476
        %v2507 = vpack.c.b16 %v2481, %v2479
        %v2508 = vpack.c.b16 %v2482, %v2480
        %v2509 = vpack.c.b16 %v2485, %v2483
        %v2510 = vpack.c.b16 %v2486, %v2484
        %v2511 = vpack.c.b16 %v2489, %v2487
        %v2512 = vpack.c.b16 %v2490, %v2488
        %v2513 = vpack.c.b16 %v2493, %v2491
        %v2514 = vpack.c.b16 %v2494, %v2492
        %v2515 = vpack.c.b16 %v2497, %v2495
        %v2516 = vpack.c.b16 %v2498, %v2496
        %v2517 = vpack.c.b16 %v2499, %v2499
        %v2518 = vpack.c.b16 %v2500, %v2500
        %v2536 = vsel %vm1272, %v2425, 0
        %v2539 = vsel %vm1272, %v2427, 0
        %v2542 = vsel %vm1272, %v2429, 0
        %v2545 = vsel %vm1272, %v2431, 0
        %v2548 = vand.u32 %v2517, %v1798
        %v2551 = vand.u32 %v2518, %v1798
        %2553 = vmatprep.subr.bf16.mxu0 %v2502
        %2554 = vmatpush1.bf16.msra.mxu0 %v2501
        %2555 = vmatprep.subr.bf16.mxu0 %v2504
        %2556 = vmatpush1.bf16.msra.mxu0 %v2503
        %2557 = vmatprep.subr.bf16.mxu0 %v2506
        %2558 = vmatpush1.bf16.msra.mxu0 %v2505
        %2559 = vmatprep.subr.bf16.mxu0 %v2508
        %2560 = vmatpush1.bf16.msra.mxu0 %v2507
        %2561 = vmatprep.subr.bf16.mxu0 %v2510
        %2562 = vmatpush1.bf16.msra.mxu0 %v2509
        %2563 = vmatprep.subr.bf16.mxu0 %v2512
        %2564 = vmatpush1.bf16.msra.mxu0 %v2511
        %2565 = vmatprep.subr.bf16.mxu0 %v2514
        %2566 = vmatpush1.bf16.msra.mxu0 %v2513
        %2567 = vmatprep.subr.bf16.mxu0 %v2516
        %2568 = vmatpush1.bf16.msra.mxu0 %v2515
        %2569 = vmatprep.subr.bf16.mxu0 %v2551
        %2570 = vmatpush1.bf16.msra.mxu0 %v2548
        %2571 = vmatprep.subr.bf16.mxu0 0
        %2572 = vmatpush1.bf16.msra.mxu0 0
        %2573 = vmatprep.subr.bf16.mxu0 0
        %2574 = vmatpush1.bf16.msra.mxu0 0
        %2575 = vmatprep.subr.bf16.mxu0 0
        %2576 = vmatpush1.bf16.msra.mxu0 0
        %2577 = vmatprep.subr.bf16.mxu0 0
        %2578 = vmatpush1.bf16.msra.mxu0 0
        %2579 = vmatprep.subr.bf16.mxu0 0
        %2580 = vmatpush1.bf16.msra.mxu0 0
        %2581 = vmatprep.subr.bf16.mxu0 0
        %2582 = vmatpush1.bf16.msra.mxu0 0
        %2583 = vmatprep.subr.bf16.mxu0 0
        %2584 = vmatpush1.bf16.msra.mxu0 0
        %2585 = vmatprep.mubr.bf16.mxu0 %v2536
        %2586 = vmatmul.mubr.bf16.gmra.mrb[0].mxu0 %v2424
        %v2587 = vpop.f32.mrb[0].mxu0
        %v2588 = vadd.f32 0.0, %v2587
        %v2589 = vpop.f32.mrb[0].mxu0
        %v2590 = vadd.f32 0.0, %v2589
        %v2591 = vpop.f32.mrb[0].mxu0
        %v2592 = vadd.f32 0.0, %v2591
        %v2593 = vpop.f32.mrb[0].mxu0
        %v2594 = vadd.f32 0.0, %v2593
        %2595 = vmatprep.mubr.bf16.mxu0 %v2539
        %2596 = vmatmul.mubr.bf16.gmra.mrb[0].mxu0 %v2426
        %v2597 = vpop.f32.mrb[0].mxu0
        %v2598 = vadd.f32 0.0, %v2597
        %v2599 = vpop.f32.mrb[0].mxu0
        %v2600 = vadd.f32 0.0, %v2599
        %v2601 = vpop.f32.mrb[0].mxu0
        %v2602 = vadd.f32 0.0, %v2601
        %v2603 = vpop.f32.mrb[0].mxu0
        %v2604 = vadd.f32 0.0, %v2603
        %2605 = vmatprep.mubr.bf16.mxu0 %v2542
        %2606 = vmatmul.mubr.bf16.gmra.mrb[0].mxu0 %v2428
        %v2607 = vpop.f32.mrb[0].mxu0
        %v2608 = vadd.f32 0.0, %v2607
        %v2609 = vpop.f32.mrb[0].mxu0
        %v2610 = vadd.f32 0.0, %v2609
        %v2611 = vpop.f32.mrb[0].mxu0
        %v2612 = vadd.f32 0.0, %v2611
        %v2613 = vpop.f32.mrb[0].mxu0
        %v2614 = vadd.f32 0.0, %v2613
        %2615 = vmatprep.mubr.bf16.mxu0 %v2545
        %2616 = vmatmul.mubr.bf16.gmra.mrb[0].mxu0 %v2430
        %v2617 = vpop.f32.mrb[0].mxu0
        %v2618 = vadd.f32 0.0, %v2617
        %v2619 = vpop.f32.mrb[0].mxu0
        %v2620 = vadd.f32 0.0, %v2619
        %v2621 = vpop.f32.mrb[0].mxu0
        %v2622 = vadd.f32 0.0, %v2621
        %v2623 = vpop.f32.mrb[0].mxu0
        %v2624 = vadd.f32 0.0, %v2623
        %2625 = vdwg.mxu0
        %v2626 = vadd.f32 %v2354, %v2588
        %v2627 = vadd.f32 %v2355, %v2590
        %v2628 = vadd.f32 %v2356, %v2592
        %v2629 = vadd.f32 %v2357, %v2594
        %v2630 = vadd.f32 %v2358, %v2598
        %v2631 = vadd.f32 %v2359, %v2600
        %v2632 = vadd.f32 %v2360, %v2602
        %v2633 = vadd.f32 %v2361, %v2604
        %v2634 = vadd.f32 %v2362, %v2608
        %v2635 = vadd.f32 %v2363, %v2610
        %v2636 = vadd.f32 %v2364, %v2612
        %v2637 = vadd.f32 %v2365, %v2614
        %v2638 = vadd.f32 %v2366, %v2618
        %v2639 = vadd.f32 %v2367, %v2620
        %v2640 = vadd.f32 %v2368, %v2622
        %v2641 = vadd.f32 %v2369, %v2624
        %v2642 = vpack.c.bf16 %v1482, %v1481
        %v2643 = vpack.c.bf16 %v1451, %v1449
        %v2644 = vpack.c.bf16 %v1484, %v1483
        %v2645 = vpack.c.bf16 %v1455, %v1453
        %v2646 = vpack.c.bf16 %v1486, %v1485
        %v2647 = vpack.c.bf16 %v1459, %v1457
        %v2648 = vpack.c.bf16 %v1488, %v1487
        %v2649 = vpack.c.bf16 %v1463, %v1461
        %s2650 = scalar_lea.vmem %s7, 544
        %v2651 = vld [vmem:[%s2650] sm:$0xff]
        %v2652 = vld [vmem:[%s2650 + $0x8] sm:$0xff]
        %v2653 = vld [vmem:[%s2650 + $0x10] sm:$0xff]
        %v2654 = vld [vmem:[%s2650 + $0x18] sm:$0xff]
        %v2655 = vld [vmem:[%s2650 + $0x20] sm:$0xff]
        %v2656 = vld [vmem:[%s2650 + $0x28] sm:$0xff]
        %v2657 = vld [vmem:[%s2650 + $0x30] sm:$0xff]
        %v2658 = vld [vmem:[%s2650 + $0x38] sm:$0xff]
        %v2659 = vld [vmem:[%s2650 + $0x40] sm:$0xff]
        %v2660 = vld [vmem:[%s2650 + $0x48] sm:$0xff]
        %v2661 = vld [vmem:[%s2650 + $0x50] sm:$0xff]
        %v2662 = vld [vmem:[%s2650 + $0x58] sm:$0xff]
        %v2663 = vld [vmem:[%s2650 + $0x60] sm:$0xff]
        %v2664 = vld [vmem:[%s2650 + $0x68] sm:$0xff]
        %v2665 = vld [vmem:[%s2650 + $0x70] sm:$0xff]
        %v2666 = vld [vmem:[%s2650 + $0x78] sm:$0xff]
        %v2667 = vld [vmem:[%s2650 + $0x80] sm:$0x11]
        %v2685 = vunpack.c.l.b16 %v2651
        %v2686 = vunpack.c.h.b16 %v2651
        %v2687 = vunpack.c.l.b16 %v2652
        %v2688 = vunpack.c.h.b16 %v2652
        %v2689 = vunpack.c.l.b16 %v2653
        %v2690 = vunpack.c.h.b16 %v2653
        %v2691 = vunpack.c.l.b16 %v2654
        %v2692 = vunpack.c.h.b16 %v2654
        %v2693 = vunpack.c.l.b16 %v2655
        %v2694 = vunpack.c.h.b16 %v2655
        %v2695 = vunpack.c.l.b16 %v2656
        %v2696 = vunpack.c.h.b16 %v2656
        %v2697 = vunpack.c.l.b16 %v2657
        %v2698 = vunpack.c.h.b16 %v2657
        %v2699 = vunpack.c.l.b16 %v2658
        %v2700 = vunpack.c.h.b16 %v2658
        %v2701 = vunpack.c.l.b16 %v2659
        %v2702 = vunpack.c.h.b16 %v2659
        %v2703 = vunpack.c.l.b16 %v2660
        %v2704 = vunpack.c.h.b16 %v2660
        %v2705 = vunpack.c.l.b16 %v2661
        %v2706 = vunpack.c.h.b16 %v2661
        %v2707 = vunpack.c.l.b16 %v2662
        %v2708 = vunpack.c.h.b16 %v2662
        %v2709 = vunpack.c.l.b16 %v2663
        %v2710 = vunpack.c.h.b16 %v2663
        %v2711 = vunpack.c.l.b16 %v2664
        %v2712 = vunpack.c.h.b16 %v2664
        %v2713 = vunpack.c.l.b16 %v2665
        %v2714 = vunpack.c.h.b16 %v2665
        %v2715 = vunpack.c.l.b16 %v2666
        %v2716 = vunpack.c.h.b16 %v2666
        %v2717 = vunpack.c.l.b16 %v2667
        %v2718 = vunpack.c.h.b16 %v2667
        %v2719 = vpack.c.b16 %v2687, %v2685
        %v2720 = vpack.c.b16 %v2688, %v2686
        %v2721 = vpack.c.b16 %v2691, %v2689
        %v2722 = vpack.c.b16 %v2692, %v2690
        %v2723 = vpack.c.b16 %v2695, %v2693
        %v2724 = vpack.c.b16 %v2696, %v2694
        %v2725 = vpack.c.b16 %v2699, %v2697
        %v2726 = vpack.c.b16 %v2700, %v2698
        %v2727 = vpack.c.b16 %v2703, %v2701
        %v2728 = vpack.c.b16 %v2704, %v2702
        %v2729 = vpack.c.b16 %v2707, %v2705
        %v2730 = vpack.c.b16 %v2708, %v2706
        %v2731 = vpack.c.b16 %v2711, %v2709
        %v2732 = vpack.c.b16 %v2712, %v2710
        %v2733 = vpack.c.b16 %v2715, %v2713
        %v2734 = vpack.c.b16 %v2716, %v2714
        %v2735 = vpack.c.b16 %v2717, %v2717
        %v2736 = vpack.c.b16 %v2718, %v2718
        %v2754 = vsel %vm1272, %v2643, 0
        %v2757 = vsel %vm1272, %v2645, 0
        %v2760 = vsel %vm1272, %v2647, 0
        %v2763 = vsel %vm1272, %v2649, 0
        %v2766 = vand.u32 %v2735, %v1798
        %v2769 = vand.u32 %v2736, %v1798
        %2771 = vmatprep.subr.bf16.mxu0 %v2720
        %2772 = vmatpush1.bf16.msra.mxu0 %v2719
        %2773 = vmatprep.subr.bf16.mxu0 %v2722
        %2774 = vmatpush1.bf16.msra.mxu0 %v2721
        %2775 = vmatprep.subr.bf16.mxu0 %v2724
        %2776 = vmatpush1.bf16.msra.mxu0 %v2723
        %2777 = vmatprep.subr.bf16.mxu0 %v2726
        %2778 = vmatpush1.bf16.msra.mxu0 %v2725
        %2779 = vmatprep.subr.bf16.mxu0 %v2728
        %2780 = vmatpush1.bf16.msra.mxu0 %v2727
        %2781 = vmatprep.subr.bf16.mxu0 %v2730
        %2782 = vmatpush1.bf16.msra.mxu0 %v2729
        %2783 = vmatprep.subr.bf16.mxu0 %v2732
        %2784 = vmatpush1.bf16.msra.mxu0 %v2731
        %2785 = vmatprep.subr.bf16.mxu0 %v2734
        %2786 = vmatpush1.bf16.msra.mxu0 %v2733
        %2787 = vmatprep.subr.bf16.mxu0 %v2769
        %2788 = vmatpush1.bf16.msra.mxu0 %v2766
        %2789 = vmatprep.subr.bf16.mxu0 0
        %2790 = vmatpush1.bf16.msra.mxu0 0
        %2791 = vmatprep.subr.bf16.mxu0 0
        %2792 = vmatpush1.bf16.msra.mxu0 0
        %2793 = vmatprep.subr.bf16.mxu0 0
        %2794 = vmatpush1.bf16.msra.mxu0 0
        %2795 = vmatprep.subr.bf16.mxu0 0
        %2796 = vmatpush1.bf16.msra.mxu0 0
        %2797 = vmatprep.subr.bf16.mxu0 0
        %2798 = vmatpush1.bf16.msra.mxu0 0
        %2799 = vmatprep.subr.bf16.mxu0 0
        %2800 = vmatpush1.bf16.msra.mxu0 0
        %2801 = vmatprep.subr.bf16.mxu0 0
        %2802 = vmatpush1.bf16.msra.mxu0 0
        %2803 = vmatprep.mubr.bf16.mxu0 %v2754
        %2804 = vmatmul.mubr.bf16.gmra.mrb[0].mxu0 %v2642
        %v2805 = vpop.f32.mrb[0].mxu0
        %v2806 = vadd.f32 0.0, %v2805
        %v2807 = vpop.f32.mrb[0].mxu0
        %v2808 = vadd.f32 0.0, %v2807
        %v2809 = vpop.f32.mrb[0].mxu0
        %v2810 = vadd.f32 0.0, %v2809
        %v2811 = vpop.f32.mrb[0].mxu0
        %v2812 = vadd.f32 0.0, %v2811
        %2813 = vmatprep.mubr.bf16.mxu0 %v2757
        %2814 = vmatmul.mubr.bf16.gmra.mrb[0].mxu0 %v2644
        %v2815 = vpop.f32.mrb[0].mxu0
        %v2816 = vadd.f32 0.0, %v2815
        %v2817 = vpop.f32.mrb[0].mxu0
        %v2818 = vadd.f32 0.0, %v2817
        %v2819 = vpop.f32.mrb[0].mxu0
        %v2820 = vadd.f32 0.0, %v2819
        %v2821 = vpop.f32.mrb[0].mxu0
        %v2822 = vadd.f32 0.0, %v2821
        %2823 = vmatprep.mubr.bf16.mxu0 %v2760
        %2824 = vmatmul.mubr.bf16.gmra.mrb[0].mxu0 %v2646
        %v2825 = vpop.f32.mrb[0].mxu0
        %v2826 = vadd.f32 0.0, %v2825
        %v2827 = vpop.f32.mrb[0].mxu0
        %v2828 = vadd.f32 0.0, %v2827
        %v2829 = vpop.f32.mrb[0].mxu0
        %v2830 = vadd.f32 0.0, %v2829
        %v2831 = vpop.f32.mrb[0].mxu0
        %v2832 = vadd.f32 0.0, %v2831
        %2833 = vmatprep.mubr.bf16.mxu0 %v2763
        %2834 = vmatmul.mubr.bf16.gmra.mrb[0].mxu0 %v2648
        %v2835 = vpop.f32.mrb[0].mxu0
        %v2836 = vadd.f32 0.0, %v2835
        %v2837 = vpop.f32.mrb[0].mxu0
        %v2838 = vadd.f32 0.0, %v2837
        %v2839 = vpop.f32.mrb[0].mxu0
        %v2840 = vadd.f32 0.0, %v2839
        %v2841 = vpop.f32.mrb[0].mxu0
        %v2842 = vadd.f32 0.0, %v2841
        %2843 = vdwg.mxu0
        %v2844 = vadd.f32 %v2626, %v2806
        %v2845 = vadd.f32 %v2627, %v2808
        %v2846 = vadd.f32 %v2628, %v2810
        %v2847 = vadd.f32 %v2629, %v2812
        %v2848 = vadd.f32 %v2630, %v2816
        %v2849 = vadd.f32 %v2631, %v2818
        %v2850 = vadd.f32 %v2632, %v2820
        %v2851 = vadd.f32 %v2633, %v2822
        %v2852 = vadd.f32 %v2634, %v2826
        %v2853 = vadd.f32 %v2635, %v2828
        %v2854 = vadd.f32 %v2636, %v2830
        %v2855 = vadd.f32 %v2637, %v2832
        %v2856 = vadd.f32 %v2638, %v2836
        %v2857 = vadd.f32 %v2639, %v2838
        %v2858 = vadd.f32 %v2640, %v2840
        %v2859 = vadd.f32 %v2641, %v2842
        %v2862 = vsel %vm2055, %v2082, 0.0
        %v2863 = vsel %vm2055, %v2084, 0.0
        %2864 = vset.pattern.permute.xlu0 5
        %2865 = vperm.xlu0 %2864, %v1539
        %v2866 = vpop.permute.xlu0 %2865
        %2868 = vset.pattern.permute.xlu0 5
        %2869 = vperm.xlu0 %2868, %v1540
        %v2870 = vpop.permute.xlu0 %2869
        %2872 = vset.pattern.permute.xlu0 5
        %2873 = vperm.xlu0 %2872, %v1541
        %v2874 = vpop.permute.xlu0 %2873
        %2876 = vset.pattern.permute.xlu0 5
        %2877 = vperm.xlu0 %2876, %v1542
        %v2878 = vpop.permute.xlu0 %2877
        %2880 = vset.pattern.permute.xlu0 5
        %2881 = vperm.xlu0 %2880, %v1543
        %v2882 = vpop.permute.xlu0 %2881
        %2884 = vset.pattern.permute.xlu0 5
        %2885 = vperm.xlu0 %2884, %v1544
        %v2886 = vpop.permute.xlu0 %2885
        %2888 = vset.pattern.permute.xlu0 5
        %2889 = vperm.xlu0 %2888, %v1545
        %v2890 = vpop.permute.xlu0 %2889
        %2892 = vset.pattern.permute.xlu0 5
        %2893 = vperm.xlu0 %2892, %v1546
        %v2894 = vpop.permute.xlu0 %2893
        %v2896 = vmul.f32 %v2059, %v2866
        %v2897 = vmul.f32 %v2061, %v2866
        %v2898 = vmul.f32 %v2063, %v2870
        %v2899 = vmul.f32 %v2065, %v2870
        %v2900 = vmul.f32 %v2067, %v2874
        %v2901 = vmul.f32 %v2069, %v2874
        %v2902 = vmul.f32 %v2071, %v2878
        %v2903 = vmul.f32 %v2073, %v2878
        %v2904 = vmul.f32 %v2075, %v2882
        %v2905 = vmul.f32 %v2077, %v2882
        %v2906 = vmul.f32 %v2079, %v2886
        %v2907 = vmul.f32 %v2081, %v2886
        %v2908 = vmul.f32 %v2083, %v2890
        %v2909 = vmul.f32 %v2085, %v2890
        %v2910 = vmul.f32 %v2862, %v2894
        %v2911 = vmul.f32 %v2863, %v2894
        %v2912 = vpack.c.bf16 %v2898, %v2896
        %v2913 = vpack.c.bf16 %v2899, %v2897
        %v2914 = vpack.c.bf16 %v2902, %v2900
        %v2915 = vpack.c.bf16 %v2903, %v2901
        %v2916 = vpack.c.bf16 %v2906, %v2904
        %v2917 = vpack.c.bf16 %v2907, %v2905
        %v2918 = vpack.c.bf16 %v2910, %v2908
        %v2919 = vpack.c.bf16 %v2911, %v2909
        %s2920 = scalar_lea.vmem %s7, 680
        %v2921 = vld [vmem:[%s2920] sm:$0xff]
        %v2922 = vld [vmem:[%s2920 + $0x8] sm:$0xff]
        %v2923 = vld [vmem:[%s2920 + $0x10] sm:$0xff]
        %v2924 = vld [vmem:[%s2920 + $0x18] sm:$0xff]
        %v2925 = vld [vmem:[%s2920 + $0x20] sm:$0xff]
        %v2926 = vld [vmem:[%s2920 + $0x28] sm:$0xff]
        %v2927 = vld [vmem:[%s2920 + $0x30] sm:$0xff]
        %v2928 = vld [vmem:[%s2920 + $0x38] sm:$0xff]
        %v2929 = vld [vmem:[%s2920 + $0x40] sm:$0xff]
        %v2930 = vld [vmem:[%s2920 + $0x48] sm:$0xff]
        %v2931 = vld [vmem:[%s2920 + $0x50] sm:$0xff]
        %v2932 = vld [vmem:[%s2920 + $0x58] sm:$0xff]
        %v2933 = vld [vmem:[%s2920 + $0x60] sm:$0xff]
        %v2934 = vld [vmem:[%s2920 + $0x68] sm:$0xff]
        %v2935 = vld [vmem:[%s2920 + $0x70] sm:$0xff]
        %v2936 = vld [vmem:[%s2920 + $0x78] sm:$0xff]
        %v2937 = vld [vmem:[%s2920 + $0x80] sm:$0x11]
        %v2955 = vunpack.c.l.b16 %v2921
        %v2956 = vunpack.c.h.b16 %v2921
        %v2957 = vunpack.c.l.b16 %v2922
        %v2958 = vunpack.c.h.b16 %v2922
        %v2959 = vunpack.c.l.b16 %v2923
        %v2960 = vunpack.c.h.b16 %v2923
        %v2961 = vunpack.c.l.b16 %v2924
        %v2962 = vunpack.c.h.b16 %v2924
        %v2963 = vunpack.c.l.b16 %v2925
        %v2964 = vunpack.c.h.b16 %v2925
        %v2965 = vunpack.c.l.b16 %v2926
        %v2966 = vunpack.c.h.b16 %v2926
        %v2967 = vunpack.c.l.b16 %v2927
        %v2968 = vunpack.c.h.b16 %v2927
        %v2969 = vunpack.c.l.b16 %v2928
        %v2970 = vunpack.c.h.b16 %v2928
        %v2971 = vunpack.c.l.b16 %v2929
        %v2972 = vunpack.c.h.b16 %v2929
        %v2973 = vunpack.c.l.b16 %v2930
        %v2974 = vunpack.c.h.b16 %v2930
        %v2975 = vunpack.c.l.b16 %v2931
        %v2976 = vunpack.c.h.b16 %v2931
        %v2977 = vunpack.c.l.b16 %v2932
        %v2978 = vunpack.c.h.b16 %v2932
        %v2979 = vunpack.c.l.b16 %v2933
        %v2980 = vunpack.c.h.b16 %v2933
        %v2981 = vunpack.c.l.b16 %v2934
        %v2982 = vunpack.c.h.b16 %v2934
        %v2983 = vunpack.c.l.b16 %v2935
        %v2984 = vunpack.c.h.b16 %v2935
        %v2985 = vunpack.c.l.b16 %v2936
        %v2986 = vunpack.c.h.b16 %v2936
        %v2987 = vunpack.c.l.b16 %v2937
        %v2988 = vunpack.c.h.b16 %v2937
        %v2989 = vpack.c.b16 %v2957, %v2955
        %v2990 = vpack.c.b16 %v2958, %v2956
        %v2991 = vpack.c.b16 %v2961, %v2959
        %v2992 = vpack.c.b16 %v2962, %v2960
        %v2993 = vpack.c.b16 %v2965, %v2963
        %v2994 = vpack.c.b16 %v2966, %v2964
        %v2995 = vpack.c.b16 %v2969, %v2967
        %v2996 = vpack.c.b16 %v2970, %v2968
        %v2997 = vpack.c.b16 %v2973, %v2971
        %v2998 = vpack.c.b16 %v2974, %v2972
        %v2999 = vpack.c.b16 %v2977, %v2975
        %v3000 = vpack.c.b16 %v2978, %v2976
        %v3001 = vpack.c.b16 %v2981, %v2979
        %v3002 = vpack.c.b16 %v2982, %v2980
        %v3003 = vpack.c.b16 %v2985, %v2983
        %v3004 = vpack.c.b16 %v2986, %v2984
        %v3005 = vpack.c.b16 %v2987, %v2987
        %v3006 = vpack.c.b16 %v2988, %v2988
        %v3024 = vsel %vm1272, %v2913, 0
        %v3027 = vsel %vm1272, %v2915, 0
        %v3030 = vsel %vm1272, %v2917, 0
        %v3033 = vsel %vm1272, %v2919, 0
        %v3036 = vand.u32 %v3005, %v1798
        %v3039 = vand.u32 %v3006, %v1798
        %3041 = vmatprep.subr.bf16.mxu0 %v2990
        %3042 = vmatpush1.bf16.msra.mxu0 %v2989
        %3043 = vmatprep.subr.bf16.mxu0 %v2992
        %3044 = vmatpush1.bf16.msra.mxu0 %v2991
        %3045 = vmatprep.subr.bf16.mxu0 %v2994
        %3046 = vmatpush1.bf16.msra.mxu0 %v2993
        %3047 = vmatprep.subr.bf16.mxu0 %v2996
        %3048 = vmatpush1.bf16.msra.mxu0 %v2995
        %3049 = vmatprep.subr.bf16.mxu0 %v2998
        %3050 = vmatpush1.bf16.msra.mxu0 %v2997
        %3051 = vmatprep.subr.bf16.mxu0 %v3000
        %3052 = vmatpush1.bf16.msra.mxu0 %v2999
        %3053 = vmatprep.subr.bf16.mxu0 %v3002
        %3054 = vmatpush1.bf16.msra.mxu0 %v3001
        %3055 = vmatprep.subr.bf16.mxu0 %v3004
        %3056 = vmatpush1.bf16.msra.mxu0 %v3003
        %3057 = vmatprep.subr.bf16.mxu0 %v3039
        %3058 = vmatpush1.bf16.msra.mxu0 %v3036
        %3059 = vmatprep.subr.bf16.mxu0 0
        %3060 = vmatpush1.bf16.msra.mxu0 0
        %3061 = vmatprep.subr.bf16.mxu0 0
        %3062 = vmatpush1.bf16.msra.mxu0 0
        %3063 = vmatprep.subr.bf16.mxu0 0
        %3064 = vmatpush1.bf16.msra.mxu0 0
        %3065 = vmatprep.subr.bf16.mxu0 0
        %3066 = vmatpush1.bf16.msra.mxu0 0
        %3067 = vmatprep.subr.bf16.mxu0 0
        %3068 = vmatpush1.bf16.msra.mxu0 0
        %3069 = vmatprep.subr.bf16.mxu0 0
        %3070 = vmatpush1.bf16.msra.mxu0 0
        %3071 = vmatprep.subr.bf16.mxu0 0
        %3072 = vmatpush1.bf16.msra.mxu0 0
        %3073 = vmatprep.mubr.bf16.mxu0 %v3024
        %3074 = vmatmul.mubr.bf16.gmra.mrb[0].mxu0 %v2912
        %v3075 = vpop.f32.mrb[0].mxu0
        %v3076 = vadd.f32 0.0, %v3075
        %v3077 = vpop.f32.mrb[0].mxu0
        %v3078 = vadd.f32 0.0, %v3077
        %v3079 = vpop.f32.mrb[0].mxu0
        %v3080 = vadd.f32 0.0, %v3079
        %v3081 = vpop.f32.mrb[0].mxu0
        %v3082 = vadd.f32 0.0, %v3081
        %3083 = vmatprep.mubr.bf16.mxu0 %v3027
        %3084 = vmatmul.mubr.bf16.gmra.mrb[0].mxu0 %v2914
        %v3085 = vpop.f32.mrb[0].mxu0
        %v3086 = vadd.f32 0.0, %v3085
        %v3087 = vpop.f32.mrb[0].mxu0
        %v3088 = vadd.f32 0.0, %v3087
        %v3089 = vpop.f32.mrb[0].mxu0
        %v3090 = vadd.f32 0.0, %v3089
        %v3091 = vpop.f32.mrb[0].mxu0
        %v3092 = vadd.f32 0.0, %v3091
        %3093 = vmatprep.mubr.bf16.mxu0 %v3030
        %3094 = vmatmul.mubr.bf16.gmra.mrb[0].mxu0 %v2916
        %v3095 = vpop.f32.mrb[0].mxu0
        %v3096 = vadd.f32 0.0, %v3095
        %v3097 = vpop.f32.mrb[0].mxu0
        %v3098 = vadd.f32 0.0, %v3097
        %v3099 = vpop.f32.mrb[0].mxu0
        %v3100 = vadd.f32 0.0, %v3099
        %v3101 = vpop.f32.mrb[0].mxu0
        %v3102 = vadd.f32 0.0, %v3101
        %3103 = vmatprep.mubr.bf16.mxu0 %v3033
        %3104 = vmatmul.mubr.bf16.gmra.mrb[0].mxu0 %v2918
        %v3105 = vpop.f32.mrb[0].mxu0
        %v3106 = vadd.f32 0.0, %v3105
        %v3107 = vpop.f32.mrb[0].mxu0
        %v3108 = vadd.f32 0.0, %v3107
        %v3109 = vpop.f32.mrb[0].mxu0
        %v3110 = vadd.f32 0.0, %v3109
        %v3111 = vpop.f32.mrb[0].mxu0
        %v3112 = vadd.f32 0.0, %v3111
        %3113 = vdwg.mxu0
        %v3114 = vadd.f32 %v2844, %v3076
        %v3115 = vadd.f32 %v2845, %v3078
        %v3116 = vadd.f32 %v2846, %v3080
        %v3117 = vadd.f32 %v2847, %v3082
        %v3118 = vadd.f32 %v2848, %v3086
        %v3119 = vadd.f32 %v2849, %v3088
        %v3120 = vadd.f32 %v2850, %v3090
        %v3121 = vadd.f32 %v2851, %v3092
        %v3122 = vadd.f32 %v2852, %v3096
        %v3123 = vadd.f32 %v2853, %v3098
        %v3124 = vadd.f32 %v2854, %v3100
        %v3125 = vadd.f32 %v2855, %v3102
        %v3126 = vadd.f32 %v2856, %v3106
        %v3127 = vadd.f32 %v2857, %v3108
        %v3128 = vadd.f32 %v2858, %v3110
        %v3129 = vadd.f32 %v2859, %v3112
        %v3132 = vsel %vm1496, %v2370, 0.0
        %v3133 = vsel %vm1496, %v2372, 0.0
        %3134 = vset.pattern.permute.xlu0 6
        %3135 = vperm.xlu0 %3134, %v1539
        %v3136 = vpop.permute.xlu0 %3135
        %3138 = vset.pattern.permute.xlu0 6
        %3139 = vperm.xlu0 %3138, %v1540
        %v3140 = vpop.permute.xlu0 %3139
        %3142 = vset.pattern.permute.xlu0 6
        %3143 = vperm.xlu0 %3142, %v1541
        %v3144 = vpop.permute.xlu0 %3143
        %3146 = vset.pattern.permute.xlu0 6
        %3147 = vperm.xlu0 %3146, %v1542
        %v3148 = vpop.permute.xlu0 %3147
        %3150 = vset.pattern.permute.xlu0 6
        %3151 = vperm.xlu0 %3150, %v1543
        %v3152 = vpop.permute.xlu0 %3151
        %3154 = vset.pattern.permute.xlu0 6
        %3155 = vperm.xlu0 %3154, %v1544
        %v3156 = vpop.permute.xlu0 %3155
        %3158 = vset.pattern.permute.xlu0 6
        %3159 = vperm.xlu0 %3158, %v1545
        %v3160 = vpop.permute.xlu0 %3159
        %3162 = vset.pattern.permute.xlu0 6
        %3163 = vperm.xlu0 %3162, %v1546
        %v3164 = vpop.permute.xlu0 %3163
        %v3166 = vmul.f32 %v1500, %v3136
        %v3167 = vmul.f32 %v1502, %v3136
        %v3168 = vmul.f32 %v1504, %v3140
        %v3169 = vmul.f32 %v1506, %v3140
        %v3170 = vmul.f32 %v1508, %v3144
        %v3171 = vmul.f32 %v1510, %v3144
        %v3172 = vmul.f32 %v1512, %v3148
        %v3173 = vmul.f32 %v1514, %v3148
        %v3174 = vmul.f32 %v1516, %v3152
        %v3175 = vmul.f32 %v1518, %v3152
        %v3176 = vmul.f32 %v1520, %v3156
        %v3177 = vmul.f32 %v1522, %v3156
        %v3178 = vmul.f32 %v2371, %v3160
        %v3179 = vmul.f32 %v2373, %v3160
        %v3180 = vmul.f32 %v3132, %v3164
        %v3181 = vmul.f32 %v3133, %v3164
        %v3182 = vpack.c.bf16 %v3168, %v3166
        %v3183 = vpack.c.bf16 %v3169, %v3167
        %v3184 = vpack.c.bf16 %v3172, %v3170
        %v3185 = vpack.c.bf16 %v3173, %v3171
        %v3186 = vpack.c.bf16 %v3176, %v3174
        %v3187 = vpack.c.bf16 %v3177, %v3175
        %v3188 = vpack.c.bf16 %v3180, %v3178
        %v3189 = vpack.c.bf16 %v3181, %v3179
        %s3190 = scalar_lea.vmem %s7, 816
        %v3191 = vld [vmem:[%s3190] sm:$0xff]
        %v3192 = vld [vmem:[%s3190 + $0x8] sm:$0xff]
        %v3193 = vld [vmem:[%s3190 + $0x10] sm:$0xff]
        %v3194 = vld [vmem:[%s3190 + $0x18] sm:$0xff]
        %v3195 = vld [vmem:[%s3190 + $0x20] sm:$0xff]
        %v3196 = vld [vmem:[%s3190 + $0x28] sm:$0xff]
        %v3197 = vld [vmem:[%s3190 + $0x30] sm:$0xff]
        %v3198 = vld [vmem:[%s3190 + $0x38] sm:$0xff]
        %v3199 = vld [vmem:[%s3190 + $0x40] sm:$0xff]
        %v3200 = vld [vmem:[%s3190 + $0x48] sm:$0xff]
        %v3201 = vld [vmem:[%s3190 + $0x50] sm:$0xff]
        %v3202 = vld [vmem:[%s3190 + $0x58] sm:$0xff]
        %v3203 = vld [vmem:[%s3190 + $0x60] sm:$0xff]
        %v3204 = vld [vmem:[%s3190 + $0x68] sm:$0xff]
        %v3205 = vld [vmem:[%s3190 + $0x70] sm:$0xff]
        %v3206 = vld [vmem:[%s3190 + $0x78] sm:$0xff]
        %v3207 = vld [vmem:[%s3190 + $0x80] sm:$0x11]
        %v3225 = vunpack.c.l.b16 %v3191
        %v3226 = vunpack.c.h.b16 %v3191
        %v3227 = vunpack.c.l.b16 %v3192
        %v3228 = vunpack.c.h.b16 %v3192
        %v3229 = vunpack.c.l.b16 %v3193
        %v3230 = vunpack.c.h.b16 %v3193
        %v3231 = vunpack.c.l.b16 %v3194
        %v3232 = vunpack.c.h.b16 %v3194
        %v3233 = vunpack.c.l.b16 %v3195
        %v3234 = vunpack.c.h.b16 %v3195
        %v3235 = vunpack.c.l.b16 %v3196
        %v3236 = vunpack.c.h.b16 %v3196
        %v3237 = vunpack.c.l.b16 %v3197
        %v3238 = vunpack.c.h.b16 %v3197
        %v3239 = vunpack.c.l.b16 %v3198
        %v3240 = vunpack.c.h.b16 %v3198
        %v3241 = vunpack.c.l.b16 %v3199
        %v3242 = vunpack.c.h.b16 %v3199
        %v3243 = vunpack.c.l.b16 %v3200
        %v3244 = vunpack.c.h.b16 %v3200
        %v3245 = vunpack.c.l.b16 %v3201
        %v3246 = vunpack.c.h.b16 %v3201
        %v3247 = vunpack.c.l.b16 %v3202
        %v3248 = vunpack.c.h.b16 %v3202
        %v3249 = vunpack.c.l.b16 %v3203
        %v3250 = vunpack.c.h.b16 %v3203
        %v3251 = vunpack.c.l.b16 %v3204
        %v3252 = vunpack.c.h.b16 %v3204
        %v3253 = vunpack.c.l.b16 %v3205
        %v3254 = vunpack.c.h.b16 %v3205
        %v3255 = vunpack.c.l.b16 %v3206
        %v3256 = vunpack.c.h.b16 %v3206
        %v3257 = vunpack.c.l.b16 %v3207
        %v3258 = vunpack.c.h.b16 %v3207
        %v3259 = vpack.c.b16 %v3227, %v3225
        %v3260 = vpack.c.b16 %v3228, %v3226
        %v3261 = vpack.c.b16 %v3231, %v3229
        %v3262 = vpack.c.b16 %v3232, %v3230
        %v3263 = vpack.c.b16 %v3235, %v3233
        %v3264 = vpack.c.b16 %v3236, %v3234
        %v3265 = vpack.c.b16 %v3239, %v3237
        %v3266 = vpack.c.b16 %v3240, %v3238
        %v3267 = vpack.c.b16 %v3243, %v3241
        %v3268 = vpack.c.b16 %v3244, %v3242
        %v3269 = vpack.c.b16 %v3247, %v3245
        %v3270 = vpack.c.b16 %v3248, %v3246
        %v3271 = vpack.c.b16 %v3251, %v3249
        %v3272 = vpack.c.b16 %v3252, %v3250
        %v3273 = vpack.c.b16 %v3255, %v3253
        %v3274 = vpack.c.b16 %v3256, %v3254
        %v3275 = vpack.c.b16 %v3257, %v3257
        %v3276 = vpack.c.b16 %v3258, %v3258
        %v3294 = vsel %vm1272, %v3183, 0
        %v3297 = vsel %vm1272, %v3185, 0
        %v3300 = vsel %vm1272, %v3187, 0
        %v3303 = vsel %vm1272, %v3189, 0
        %v3306 = vand.u32 %v3275, %v1798
        %v3309 = vand.u32 %v3276, %v1798
        %3311 = vmatprep.subr.bf16.mxu0 %v3260
        %3312 = vmatpush1.bf16.msra.mxu0 %v3259
        %3313 = vmatprep.subr.bf16.mxu0 %v3262
        %3314 = vmatpush1.bf16.msra.mxu0 %v3261
        %3315 = vmatprep.subr.bf16.mxu0 %v3264
        %3316 = vmatpush1.bf16.msra.mxu0 %v3263
        %3317 = vmatprep.subr.bf16.mxu0 %v3266
        %3318 = vmatpush1.bf16.msra.mxu0 %v3265
        %3319 = vmatprep.subr.bf16.mxu0 %v3268
        %3320 = vmatpush1.bf16.msra.mxu0 %v3267
        %3321 = vmatprep.subr.bf16.mxu0 %v3270
        %3322 = vmatpush1.bf16.msra.mxu0 %v3269
        %3323 = vmatprep.subr.bf16.mxu0 %v3272
        %3324 = vmatpush1.bf16.msra.mxu0 %v3271
        %3325 = vmatprep.subr.bf16.mxu0 %v3274
        %3326 = vmatpush1.bf16.msra.mxu0 %v3273
        %3327 = vmatprep.subr.bf16.mxu0 %v3309
        %3328 = vmatpush1.bf16.msra.mxu0 %v3306
        %3329 = vmatprep.subr.bf16.mxu0 0
        %3330 = vmatpush1.bf16.msra.mxu0 0
        %3331 = vmatprep.subr.bf16.mxu0 0
        %3332 = vmatpush1.bf16.msra.mxu0 0
        %3333 = vmatprep.subr.bf16.mxu0 0
        %3334 = vmatpush1.bf16.msra.mxu0 0
        %3335 = vmatprep.subr.bf16.mxu0 0
        %3336 = vmatpush1.bf16.msra.mxu0 0
        %3337 = vmatprep.subr.bf16.mxu0 0
        %3338 = vmatpush1.bf16.msra.mxu0 0
        %3339 = vmatprep.subr.bf16.mxu0 0
        %3340 = vmatpush1.bf16.msra.mxu0 0
        %3341 = vmatprep.subr.bf16.mxu0 0
        %3342 = vmatpush1.bf16.msra.mxu0 0
        %3343 = vmatprep.mubr.bf16.mxu0 %v3294
        %3344 = vmatmul.mubr.bf16.gmra.mrb[0].mxu0 %v3182
        %v3345 = vpop.f32.mrb[0].mxu0
        %v3346 = vadd.f32 0.0, %v3345
        %v3347 = vpop.f32.mrb[0].mxu0
        %v3348 = vadd.f32 0.0, %v3347
        %v3349 = vpop.f32.mrb[0].mxu0
        %v3350 = vadd.f32 0.0, %v3349
        %v3351 = vpop.f32.mrb[0].mxu0
        %v3352 = vadd.f32 0.0, %v3351
        %3353 = vmatprep.mubr.bf16.mxu0 %v3297
        %3354 = vmatmul.mubr.bf16.gmra.mrb[0].mxu0 %v3184
        %v3355 = vpop.f32.mrb[0].mxu0
        %v3356 = vadd.f32 0.0, %v3355
        %v3357 = vpop.f32.mrb[0].mxu0
        %v3358 = vadd.f32 0.0, %v3357
        %v3359 = vpop.f32.mrb[0].mxu0
        %v3360 = vadd.f32 0.0, %v3359
        %v3361 = vpop.f32.mrb[0].mxu0
        %v3362 = vadd.f32 0.0, %v3361
        %3363 = vmatprep.mubr.bf16.mxu0 %v3300
        %3364 = vmatmul.mubr.bf16.gmra.mrb[0].mxu0 %v3186
        %v3365 = vpop.f32.mrb[0].mxu0
        %v3366 = vadd.f32 0.0, %v3365
        %v3367 = vpop.f32.mrb[0].mxu0
        %v3368 = vadd.f32 0.0, %v3367
        %v3369 = vpop.f32.mrb[0].mxu0
        %v3370 = vadd.f32 0.0, %v3369
        %v3371 = vpop.f32.mrb[0].mxu0
        %v3372 = vadd.f32 0.0, %v3371
        %3373 = vmatprep.mubr.bf16.mxu0 %v3303
        %3374 = vmatmul.mubr.bf16.gmra.mrb[0].mxu0 %v3188
        %v3375 = vpop.f32.mrb[0].mxu0
        %v3376 = vadd.f32 0.0, %v3375
        %v3377 = vpop.f32.mrb[0].mxu0
        %v3378 = vadd.f32 0.0, %v3377
        %v3379 = vpop.f32.mrb[0].mxu0
        %v3380 = vadd.f32 0.0, %v3379
        %v3381 = vpop.f32.mrb[0].mxu0
        %v3382 = vadd.f32 0.0, %v3381
        %3383 = vdwg.mxu0
        %v3384 = vadd.f32 %v3114, %v3346
        %v3385 = vadd.f32 %v3115, %v3348
        %v3386 = vadd.f32 %v3116, %v3350
        %v3387 = vadd.f32 %v3117, %v3352
        %v3388 = vadd.f32 %v3118, %v3356
        %v3389 = vadd.f32 %v3119, %v3358
        %v3390 = vadd.f32 %v3120, %v3360
        %v3391 = vadd.f32 %v3121, %v3362
        %v3392 = vadd.f32 %v3122, %v3366
        %v3393 = vadd.f32 %v3123, %v3368
        %v3394 = vadd.f32 %v3124, %v3370
        %v3395 = vadd.f32 %v3125, %v3372
        %v3396 = vadd.f32 %v3126, %v3376
        %v3397 = vadd.f32 %v3127, %v3378
        %v3398 = vadd.f32 %v3128, %v3380
        %v3399 = vadd.f32 %v3129, %v3382
        %3400 = vset.pattern.permute.xlu0 7
        %3401 = vperm.xlu0 %3400, %v1539
        %v3402 = vpop.permute.xlu0 %3401
        %3404 = vset.pattern.permute.xlu0 7
        %3405 = vperm.xlu0 %3404, %v1540
        %v3406 = vpop.permute.xlu0 %3405
        %3408 = vset.pattern.permute.xlu0 7
        %3409 = vperm.xlu0 %3408, %v1541
        %v3410 = vpop.permute.xlu0 %3409
        %3412 = vset.pattern.permute.xlu0 7
        %3413 = vperm.xlu0 %3412, %v1542
        %v3414 = vpop.permute.xlu0 %3413
        %3416 = vset.pattern.permute.xlu0 7
        %3417 = vperm.xlu0 %3416, %v1543
        %v3418 = vpop.permute.xlu0 %3417
        %3420 = vset.pattern.permute.xlu0 7
        %3421 = vperm.xlu0 %3420, %v1544
        %v3422 = vpop.permute.xlu0 %3421
        %3424 = vset.pattern.permute.xlu0 7
        %3425 = vperm.xlu0 %3424, %v1545
        %v3426 = vpop.permute.xlu0 %3425
        %3428 = vset.pattern.permute.xlu0 7
        %3429 = vperm.xlu0 %3428, %v1546
        %v3430 = vpop.permute.xlu0 %3429
        %v3432 = vmul.f32 %v1482, %v3402
        %v3433 = vmul.f32 %v1451, %v3402
        %v3434 = vmul.f32 %v1483, %v3406
        %v3435 = vmul.f32 %v1453, %v3406
        %v3436 = vmul.f32 %v1484, %v3410
        %v3437 = vmul.f32 %v1455, %v3410
        %v3438 = vmul.f32 %v1485, %v3414
        %v3439 = vmul.f32 %v1457, %v3414
        %v3440 = vmul.f32 %v1486, %v3418
        %v3441 = vmul.f32 %v1459, %v3418
        %v3442 = vmul.f32 %v1487, %v3422
        %v3443 = vmul.f32 %v1461, %v3422
        %v3444 = vmul.f32 %v1488, %v3426
        %v3445 = vmul.f32 %v1463, %v3426
        %v3446 = vmul.f32 %v3430, 0.0
        %v3447 = vpack.c.bf16 %v3434, %v3432
        %v3448 = vpack.c.bf16 %v3435, %v3433
        %v3449 = vpack.c.bf16 %v3438, %v3436
        %v3450 = vpack.c.bf16 %v3439, %v3437
        %v3451 = vpack.c.bf16 %v3442, %v3440
        %v3452 = vpack.c.bf16 %v3443, %v3441
        %v3453 = vpack.c.bf16 %v3446, %v3444
        %v3454 = vpack.c.bf16 %v3446, %v3445
        %s3455 = scalar_lea.vmem %s7, 952
        %v3456 = vld [vmem:[%s3455] sm:$0xff]
        %v3457 = vld [vmem:[%s3455 + $0x8] sm:$0xff]
        %v3458 = vld [vmem:[%s3455 + $0x10] sm:$0xff]
        %v3459 = vld [vmem:[%s3455 + $0x18] sm:$0xff]
        %v3460 = vld [vmem:[%s3455 + $0x20] sm:$0xff]
        %v3461 = vld [vmem:[%s3455 + $0x28] sm:$0xff]
        %v3462 = vld [vmem:[%s3455 + $0x30] sm:$0xff]
        %v3463 = vld [vmem:[%s3455 + $0x38] sm:$0xff]
        %v3464 = vld [vmem:[%s3455 + $0x40] sm:$0xff]
        %v3465 = vld [vmem:[%s3455 + $0x48] sm:$0xff]
        %v3466 = vld [vmem:[%s3455 + $0x50] sm:$0xff]
        %v3467 = vld [vmem:[%s3455 + $0x58] sm:$0xff]
        %v3468 = vld [vmem:[%s3455 + $0x60] sm:$0xff]
        %v3469 = vld [vmem:[%s3455 + $0x68] sm:$0xff]
        %v3470 = vld [vmem:[%s3455 + $0x70] sm:$0xff]
        %v3471 = vld [vmem:[%s3455 + $0x78] sm:$0xff]
        %v3472 = vld [vmem:[%s3455 + $0x80] sm:$0x11]
        %v3490 = vunpack.c.l.b16 %v3456
        %v3491 = vunpack.c.h.b16 %v3456
        %v3492 = vunpack.c.l.b16 %v3457
        %v3493 = vunpack.c.h.b16 %v3457
        %v3494 = vunpack.c.l.b16 %v3458
        %v3495 = vunpack.c.h.b16 %v3458
        %v3496 = vunpack.c.l.b16 %v3459
        %v3497 = vunpack.c.h.b16 %v3459
        %v3498 = vunpack.c.l.b16 %v3460
        %v3499 = vunpack.c.h.b16 %v3460
        %v3500 = vunpack.c.l.b16 %v3461
        %v3501 = vunpack.c.h.b16 %v3461
        %v3502 = vunpack.c.l.b16 %v3462
        %v3503 = vunpack.c.h.b16 %v3462
        %v3504 = vunpack.c.l.b16 %v3463
        %v3505 = vunpack.c.h.b16 %v3463
        %v3506 = vunpack.c.l.b16 %v3464
        %v3507 = vunpack.c.h.b16 %v3464
        %v3508 = vunpack.c.l.b16 %v3465
        %v3509 = vunpack.c.h.b16 %v3465
        %v3510 = vunpack.c.l.b16 %v3466
        %v3511 = vunpack.c.h.b16 %v3466
        %v3512 = vunpack.c.l.b16 %v3467
        %v3513 = vunpack.c.h.b16 %v3467
        %v3514 = vunpack.c.l.b16 %v3468
        %v3515 = vunpack.c.h.b16 %v3468
        %v3516 = vunpack.c.l.b16 %v3469
        %v3517 = vunpack.c.h.b16 %v3469
        %v3518 = vunpack.c.l.b16 %v3470
        %v3519 = vunpack.c.h.b16 %v3470
        %v3520 = vunpack.c.l.b16 %v3471
        %v3521 = vunpack.c.h.b16 %v3471
        %v3522 = vunpack.c.l.b16 %v3472
        %v3523 = vunpack.c.h.b16 %v3472
        %v3524 = vpack.c.b16 %v3492, %v3490
        %v3525 = vpack.c.b16 %v3493, %v3491
        %v3526 = vpack.c.b16 %v3496, %v3494
        %v3527 = vpack.c.b16 %v3497, %v3495
        %v3528 = vpack.c.b16 %v3500, %v3498
        %v3529 = vpack.c.b16 %v3501, %v3499
        %v3530 = vpack.c.b16 %v3504, %v3502
        %v3531 = vpack.c.b16 %v3505, %v3503
        %v3532 = vpack.c.b16 %v3508, %v3506
        %v3533 = vpack.c.b16 %v3509, %v3507
        %v3534 = vpack.c.b16 %v3512, %v3510
        %v3535 = vpack.c.b16 %v3513, %v3511
        %v3536 = vpack.c.b16 %v3516, %v3514
        %v3537 = vpack.c.b16 %v3517, %v3515
        %v3538 = vpack.c.b16 %v3520, %v3518
        %v3539 = vpack.c.b16 %v3521, %v3519
        %v3540 = vpack.c.b16 %v3522, %v3522
        %v3541 = vpack.c.b16 %v3523, %v3523
        %v3559 = vsel %vm1272, %v3448, 0
        %v3562 = vsel %vm1272, %v3450, 0
        %v3565 = vsel %vm1272, %v3452, 0
        %v3568 = vsel %vm1272, %v3454, 0
        %v3571 = vand.u32 %v3540, %v1798
        %v3574 = vand.u32 %v3541, %v1798
        %3576 = vmatprep.subr.bf16.mxu0 %v3525
        %3577 = vmatpush1.bf16.msra.mxu0 %v3524
        %3578 = vmatprep.subr.bf16.mxu0 %v3527
        %3579 = vmatpush1.bf16.msra.mxu0 %v3526
        %3580 = vmatprep.subr.bf16.mxu0 %v3529
        %3581 = vmatpush1.bf16.msra.mxu0 %v3528
        %3582 = vmatprep.subr.bf16.mxu0 %v3531
        %3583 = vmatpush1.bf16.msra.mxu0 %v3530
        %3584 = vmatprep.subr.bf16.mxu0 %v3533
        %3585 = vmatpush1.bf16.msra.mxu0 %v3532
        %3586 = vmatprep.subr.bf16.mxu0 %v3535
        %3587 = vmatpush1.bf16.msra.mxu0 %v3534
        %3588 = vmatprep.subr.bf16.mxu0 %v3537
        %3589 = vmatpush1.bf16.msra.mxu0 %v3536
        %3590 = vmatprep.subr.bf16.mxu0 %v3539
        %3591 = vmatpush1.bf16.msra.mxu0 %v3538
        %3592 = vmatprep.subr.bf16.mxu0 %v3574
        %3593 = vmatpush1.bf16.msra.mxu0 %v3571
        %3594 = vmatprep.subr.bf16.mxu0 0
        %3595 = vmatpush1.bf16.msra.mxu0 0
        %3596 = vmatprep.subr.bf16.mxu0 0
        %3597 = vmatpush1.bf16.msra.mxu0 0
        %3598 = vmatprep.subr.bf16.mxu0 0
        %3599 = vmatpush1.bf16.msra.mxu0 0
        %3600 = vmatprep.subr.bf16.mxu0 0
        %3601 = vmatpush1.bf16.msra.mxu0 0
        %3602 = vmatprep.subr.bf16.mxu0 0
        %3603 = vmatpush1.bf16.msra.mxu0 0
        %3604 = vmatprep.subr.bf16.mxu0 0
        %3605 = vmatpush1.bf16.msra.mxu0 0
        %3606 = vmatprep.subr.bf16.mxu0 0
        %3607 = vmatpush1.bf16.msra.mxu0 0
        %3608 = vmatprep.mubr.bf16.mxu0 %v3559
        %3609 = vmatmul.mubr.bf16.gmra.mrb[0].mxu0 %v3447
        %v3610 = vpop.f32.mrb[0].mxu0
        %v3611 = vadd.f32 0.0, %v3610
        %v3612 = vpop.f32.mrb[0].mxu0
        %v3613 = vadd.f32 0.0, %v3612
        %v3614 = vpop.f32.mrb[0].mxu0
        %v3615 = vadd.f32 0.0, %v3614
        %v3616 = vpop.f32.mrb[0].mxu0
        %v3617 = vadd.f32 0.0, %v3616
        %3618 = vmatprep.mubr.bf16.mxu0 %v3562
        %3619 = vmatmul.mubr.bf16.gmra.mrb[0].mxu0 %v3449
        %v3620 = vpop.f32.mrb[0].mxu0
        %v3621 = vadd.f32 0.0, %v3620
        %v3622 = vpop.f32.mrb[0].mxu0
        %v3623 = vadd.f32 0.0, %v3622
        %v3624 = vpop.f32.mrb[0].mxu0
        %v3625 = vadd.f32 0.0, %v3624
        %v3626 = vpop.f32.mrb[0].mxu0
        %v3627 = vadd.f32 0.0, %v3626
        %3628 = vmatprep.mubr.bf16.mxu0 %v3565
        %3629 = vmatmul.mubr.bf16.gmra.mrb[0].mxu0 %v3451
        %v3630 = vpop.f32.mrb[0].mxu0
        %v3631 = vadd.f32 0.0, %v3630
        %v3632 = vpop.f32.mrb[0].mxu0
        %v3633 = vadd.f32 0.0, %v3632
        %v3634 = vpop.f32.mrb[0].mxu0
        %v3635 = vadd.f32 0.0, %v3634
        %v3636 = vpop.f32.mrb[0].mxu0
        %v3637 = vadd.f32 0.0, %v3636
        %3638 = vmatprep.mubr.bf16.mxu0 %v3568
        %3639 = vmatmul.mubr.bf16.gmra.mrb[0].mxu0 %v3453
        %v3640 = vpop.f32.mrb[0].mxu0
        %v3641 = vadd.f32 0.0, %v3640
        %v3642 = vpop.f32.mrb[0].mxu0
        %v3643 = vadd.f32 0.0, %v3642
        %v3644 = vpop.f32.mrb[0].mxu0
        %v3645 = vadd.f32 0.0, %v3644
        %v3646 = vpop.f32.mrb[0].mxu0
        %v3647 = vadd.f32 0.0, %v3646
        %3648 = vdwg.mxu0
        %v3649 = vadd.f32 %v3384, %v3611
        %v3650 = vadd.f32 %v3385, %v3613
        %v3651 = vadd.f32 %v3386, %v3615
        %v3652 = vadd.f32 %v3387, %v3617
        %v3653 = vadd.f32 %v3388, %v3621
        %v3654 = vadd.f32 %v3389, %v3623
        %v3655 = vadd.f32 %v3390, %v3625
        %v3656 = vadd.f32 %v3391, %v3627
        %v3657 = vadd.f32 %v3392, %v3631
        %v3658 = vadd.f32 %v3393, %v3633
        %v3659 = vadd.f32 %v3394, %v3635
        %v3660 = vadd.f32 %v3395, %v3637
        %v3661 = vadd.f32 %v3396, %v3641
        %v3662 = vadd.f32 %v3397, %v3643
        %v3663 = vadd.f32 %v3398, %v3645
        %v3664 = vadd.f32 %v3399, %v3647
        %3665 = vset.pattern.permute.xlu0 8
        %3666 = vperm.xlu0 %3665, %v1539
        %v3667 = vpop.permute.xlu0 %3666
        %3669 = vset.pattern.permute.xlu0 8
        %3670 = vperm.xlu0 %3669, %v1540
        %v3671 = vpop.permute.xlu0 %3670
        %3673 = vset.pattern.permute.xlu0 8
        %3674 = vperm.xlu0 %3673, %v1541
        %v3675 = vpop.permute.xlu0 %3674
        %3677 = vset.pattern.permute.xlu0 8
        %3678 = vperm.xlu0 %3677, %v1542
        %v3679 = vpop.permute.xlu0 %3678
        %3681 = vset.pattern.permute.xlu0 8
        %3682 = vperm.xlu0 %3681, %v1543
        %v3683 = vpop.permute.xlu0 %3682
        %3685 = vset.pattern.permute.xlu0 8
        %3686 = vperm.xlu0 %3685, %v1544
        %v3687 = vpop.permute.xlu0 %3686
        %3689 = vset.pattern.permute.xlu0 8
        %3690 = vperm.xlu0 %3689, %v1545
        %v3691 = vpop.permute.xlu0 %3690
        %3693 = vset.pattern.permute.xlu0 8
        %3694 = vperm.xlu0 %3693, %v1546
        %v3695 = vpop.permute.xlu0 %3694
        %v3697 = vmul.f32 %v2063, %v3667
        %v3698 = vmul.f32 %v2065, %v3667
        %v3699 = vmul.f32 %v2067, %v3671
        %v3700 = vmul.f32 %v2069, %v3671
        %v3701 = vmul.f32 %v2071, %v3675
        %v3702 = vmul.f32 %v2073, %v3675
        %v3703 = vmul.f32 %v2075, %v3679
        %v3704 = vmul.f32 %v2077, %v3679
        %v3705 = vmul.f32 %v2079, %v3683
        %v3706 = vmul.f32 %v2081, %v3683
        %v3707 = vmul.f32 %v2083, %v3687
        %v3708 = vmul.f32 %v2085, %v3687
        %v3709 = vmul.f32 %v2862, %v3691
        %v3710 = vmul.f32 %v2863, %v3691
        %v3711 = vmul.f32 %v3695, 0.0
        %v3712 = vpack.c.bf16 %v3699, %v3697
        %v3713 = vpack.c.bf16 %v3700, %v3698
        %v3714 = vpack.c.bf16 %v3703, %v3701
        %v3715 = vpack.c.bf16 %v3704, %v3702
        %v3716 = vpack.c.bf16 %v3707, %v3705
        %v3717 = vpack.c.bf16 %v3708, %v3706
        %v3718 = vpack.c.bf16 %v3711, %v3709
        %v3719 = vpack.c.bf16 %v3711, %v3710
        %s3720 = scalar_lea.vmem %s7, 1088
        %v3721 = vld [vmem:[%s3720] sm:$0xff]
        %v3722 = vld [vmem:[%s3720 + $0x8] sm:$0xff]
        %v3723 = vld [vmem:[%s3720 + $0x10] sm:$0xff]
        %v3724 = vld [vmem:[%s3720 + $0x18] sm:$0xff]
        %v3725 = vld [vmem:[%s3720 + $0x20] sm:$0xff]
        %v3726 = vld [vmem:[%s3720 + $0x28] sm:$0xff]
        %v3727 = vld [vmem:[%s3720 + $0x30] sm:$0xff]
        %v3728 = vld [vmem:[%s3720 + $0x38] sm:$0xff]
        %v3729 = vld [vmem:[%s3720 + $0x40] sm:$0xff]
        %v3730 = vld [vmem:[%s3720 + $0x48] sm:$0xff]
        %v3731 = vld [vmem:[%s3720 + $0x50] sm:$0xff]
        %v3732 = vld [vmem:[%s3720 + $0x58] sm:$0xff]
        %v3733 = vld [vmem:[%s3720 + $0x60] sm:$0xff]
        %v3734 = vld [vmem:[%s3720 + $0x68] sm:$0xff]
        %v3735 = vld [vmem:[%s3720 + $0x70] sm:$0xff]
        %v3736 = vld [vmem:[%s3720 + $0x78] sm:$0xff]
        %v3737 = vld [vmem:[%s3720 + $0x80] sm:$0x11]
        %v3755 = vunpack.c.l.b16 %v3721
        %v3756 = vunpack.c.h.b16 %v3721
        %v3757 = vunpack.c.l.b16 %v3722
        %v3758 = vunpack.c.h.b16 %v3722
        %v3759 = vunpack.c.l.b16 %v3723
        %v3760 = vunpack.c.h.b16 %v3723
        %v3761 = vunpack.c.l.b16 %v3724
        %v3762 = vunpack.c.h.b16 %v3724
        %v3763 = vunpack.c.l.b16 %v3725
        %v3764 = vunpack.c.h.b16 %v3725
        %v3765 = vunpack.c.l.b16 %v3726
        %v3766 = vunpack.c.h.b16 %v3726
        %v3767 = vunpack.c.l.b16 %v3727
        %v3768 = vunpack.c.h.b16 %v3727
        %v3769 = vunpack.c.l.b16 %v3728
        %v3770 = vunpack.c.h.b16 %v3728
        %v3771 = vunpack.c.l.b16 %v3729
        %v3772 = vunpack.c.h.b16 %v3729
        %v3773 = vunpack.c.l.b16 %v3730
        %v3774 = vunpack.c.h.b16 %v3730
        %v3775 = vunpack.c.l.b16 %v3731
        %v3776 = vunpack.c.h.b16 %v3731
        %v3777 = vunpack.c.l.b16 %v3732
        %v3778 = vunpack.c.h.b16 %v3732
        %v3779 = vunpack.c.l.b16 %v3733
        %v3780 = vunpack.c.h.b16 %v3733
        %v3781 = vunpack.c.l.b16 %v3734
        %v3782 = vunpack.c.h.b16 %v3734
        %v3783 = vunpack.c.l.b16 %v3735
        %v3784 = vunpack.c.h.b16 %v3735
        %v3785 = vunpack.c.l.b16 %v3736
        %v3786 = vunpack.c.h.b16 %v3736
        %v3787 = vunpack.c.l.b16 %v3737
        %v3788 = vunpack.c.h.b16 %v3737
        %v3789 = vpack.c.b16 %v3757, %v3755
        %v3790 = vpack.c.b16 %v3758, %v3756
        %v3791 = vpack.c.b16 %v3761, %v3759
        %v3792 = vpack.c.b16 %v3762, %v3760
        %v3793 = vpack.c.b16 %v3765, %v3763
        %v3794 = vpack.c.b16 %v3766, %v3764
        %v3795 = vpack.c.b16 %v3769, %v3767
        %v3796 = vpack.c.b16 %v3770, %v3768
        %v3797 = vpack.c.b16 %v3773, %v3771
        %v3798 = vpack.c.b16 %v3774, %v3772
        %v3799 = vpack.c.b16 %v3777, %v3775
        %v3800 = vpack.c.b16 %v3778, %v3776
        %v3801 = vpack.c.b16 %v3781, %v3779
        %v3802 = vpack.c.b16 %v3782, %v3780
        %v3803 = vpack.c.b16 %v3785, %v3783
        %v3804 = vpack.c.b16 %v3786, %v3784
        %v3805 = vpack.c.b16 %v3787, %v3787
        %v3806 = vpack.c.b16 %v3788, %v3788
        %v3824 = vsel %vm1272, %v3713, 0
        %v3827 = vsel %vm1272, %v3715, 0
        %v3830 = vsel %vm1272, %v3717, 0
        %v3833 = vsel %vm1272, %v3719, 0
        %v3836 = vand.u32 %v3805, %v1798
        %v3839 = vand.u32 %v3806, %v1798
        %3841 = vmatprep.subr.bf16.mxu0 %v3790
        %3842 = vmatpush1.bf16.msra.mxu0 %v3789
        %3843 = vmatprep.subr.bf16.mxu0 %v3792
        %3844 = vmatpush1.bf16.msra.mxu0 %v3791
        %3845 = vmatprep.subr.bf16.mxu0 %v3794
        %3846 = vmatpush1.bf16.msra.mxu0 %v3793
        %3847 = vmatprep.subr.bf16.mxu0 %v3796
        %3848 = vmatpush1.bf16.msra.mxu0 %v3795
        %3849 = vmatprep.subr.bf16.mxu0 %v3798
        %3850 = vmatpush1.bf16.msra.mxu0 %v3797
        %3851 = vmatprep.subr.bf16.mxu0 %v3800
        %3852 = vmatpush1.bf16.msra.mxu0 %v3799
        %3853 = vmatprep.subr.bf16.mxu0 %v3802
        %3854 = vmatpush1.bf16.msra.mxu0 %v3801
        %3855 = vmatprep.subr.bf16.mxu0 %v3804
        %3856 = vmatpush1.bf16.msra.mxu0 %v3803
        %3857 = vmatprep.subr.bf16.mxu0 %v3839
        %3858 = vmatpush1.bf16.msra.mxu0 %v3836
        %3859 = vmatprep.subr.bf16.mxu0 0
        %3860 = vmatpush1.bf16.msra.mxu0 0
        %3861 = vmatprep.subr.bf16.mxu0 0
        %3862 = vmatpush1.bf16.msra.mxu0 0
        %3863 = vmatprep.subr.bf16.mxu0 0
        %3864 = vmatpush1.bf16.msra.mxu0 0
        %3865 = vmatprep.subr.bf16.mxu0 0
        %3866 = vmatpush1.bf16.msra.mxu0 0
        %3867 = vmatprep.subr.bf16.mxu0 0
        %3868 = vmatpush1.bf16.msra.mxu0 0
        %3869 = vmatprep.subr.bf16.mxu0 0
        %3870 = vmatpush1.bf16.msra.mxu0 0
        %3871 = vmatprep.subr.bf16.mxu0 0
        %3872 = vmatpush1.bf16.msra.mxu0 0
        %3873 = vmatprep.mubr.bf16.mxu0 %v3824
        %3874 = vmatmul.mubr.bf16.gmra.mrb[0].mxu0 %v3712
        %v3875 = vpop.f32.mrb[0].mxu0
        %v3876 = vadd.f32 0.0, %v3875
        %v3877 = vpop.f32.mrb[0].mxu0
        %v3878 = vadd.f32 0.0, %v3877
        %v3879 = vpop.f32.mrb[0].mxu0
        %v3880 = vadd.f32 0.0, %v3879
        %v3881 = vpop.f32.mrb[0].mxu0
        %v3882 = vadd.f32 0.0, %v3881
        %3883 = vmatprep.mubr.bf16.mxu0 %v3827
        %3884 = vmatmul.mubr.bf16.gmra.mrb[0].mxu0 %v3714
        %v3885 = vpop.f32.mrb[0].mxu0
        %v3886 = vadd.f32 0.0, %v3885
        %v3887 = vpop.f32.mrb[0].mxu0
        %v3888 = vadd.f32 0.0, %v3887
        %v3889 = vpop.f32.mrb[0].mxu0
        %v3890 = vadd.f32 0.0, %v3889
        %v3891 = vpop.f32.mrb[0].mxu0
        %v3892 = vadd.f32 0.0, %v3891
        %3893 = vmatprep.mubr.bf16.mxu0 %v3830
        %3894 = vmatmul.mubr.bf16.gmra.mrb[0].mxu0 %v3716
        %v3895 = vpop.f32.mrb[0].mxu0
        %v3896 = vadd.f32 0.0, %v3895
        %v3897 = vpop.f32.mrb[0].mxu0
        %v3898 = vadd.f32 0.0, %v3897
        %v3899 = vpop.f32.mrb[0].mxu0
        %v3900 = vadd.f32 0.0, %v3899
        %v3901 = vpop.f32.mrb[0].mxu0
        %v3902 = vadd.f32 0.0, %v3901
        %3903 = vmatprep.mubr.bf16.mxu0 %v3833
        %3904 = vmatmul.mubr.bf16.gmra.mrb[0].mxu0 %v3718
        %v3905 = vpop.f32.mrb[0].mxu0
        %v3906 = vadd.f32 0.0, %v3905
        %v3907 = vpop.f32.mrb[0].mxu0
        %v3908 = vadd.f32 0.0, %v3907
        %v3909 = vpop.f32.mrb[0].mxu0
        %v3910 = vadd.f32 0.0, %v3909
        %v3911 = vpop.f32.mrb[0].mxu0
        %v3912 = vadd.f32 0.0, %v3911
        %3913 = vdwg.mxu0
        %v3914 = vadd.f32 %v3649, %v3876
        %v3915 = vadd.f32 %v3650, %v3878
        %v3916 = vadd.f32 %v3651, %v3880
        %v3917 = vadd.f32 %v3652, %v3882
        %v3918 = vadd.f32 %v3653, %v3886
        %v3919 = vadd.f32 %v3654, %v3888
        %v3920 = vadd.f32 %v3655, %v3890
        %v3921 = vadd.f32 %v3656, %v3892
        %v3922 = vadd.f32 %v3657, %v3896
        %v3923 = vadd.f32 %v3658, %v3898
        %v3924 = vadd.f32 %v3659, %v3900
        %v3925 = vadd.f32 %v3660, %v3902
        %v3926 = vadd.f32 %v3661, %v3906
        %v3927 = vadd.f32 %v3662, %v3908
        %v3928 = vadd.f32 %v3663, %v3910
        %v3929 = vadd.f32 %v3664, %v3912
        %v3930 = vld [vmem:[%s8] sm:$0x3]
        %v3932 = vlaneseq
        %v3933 = vshrl.u32 %v3932, 7
        %v3934 = vsub.s32 0, %v3933
        %v3935 = vrot.slane %v3930, %v3934
        %v3936 = vlaneseq
        %v3937 = vshrl.u32 %v3936, 7
        %v3938 = vsub.s32 1, %v3937
        %v3939 = vrot.slane %v3930, %v3938
        %v3942 = vadd.f32 %v3914, %v3935
        %v3943 = vadd.f32 %v3915, %v3939
        %v3944 = vadd.f32 %v3916, %v3935
        %v3945 = vadd.f32 %v3917, %v3939
        %v3946 = vadd.f32 %v3918, %v3935
        %v3947 = vadd.f32 %v3919, %v3939
        %v3948 = vadd.f32 %v3920, %v3935
        %v3949 = vadd.f32 %v3921, %v3939
        %v3950 = vadd.f32 %v3922, %v3935
        %v3951 = vadd.f32 %v3923, %v3939
        %v3952 = vadd.f32 %v3924, %v3935
        %v3953 = vadd.f32 %v3925, %v3939
        %v3954 = vadd.f32 %v3926, %v3935
        %v3955 = vadd.f32 %v3927, %v3939
        %v3956 = vadd.f32 %v3928, %v3935
        %v3957 = vadd.f32 %v3929, %v3939
        %v3958 = vld [vmem:[#allocation3] sm:$0xff]
        %v3959 = vld [vmem:[#allocation3 + $0x8] sm:$0xff]
        %v3960 = vld [vmem:[#allocation3 + $0x10] sm:$0xff]
        %v3961 = vld [vmem:[#allocation3 + $0x18] sm:$0xff]
        %v3962 = vld [vmem:[#allocation3 + $0x20] sm:$0xff]
        %v3963 = vld [vmem:[#allocation3 + $0x28] sm:$0xff]
        %v3964 = vld [vmem:[#allocation3 + $0x30] sm:$0xff]
        %v3965 = vld [vmem:[#allocation3 + $0x38] sm:$0xff]
        %v3966 = vxor.u32 %v3942, 2147483648
        %v3967 = vxor.u32 %v3944, 2147483648
        %v3968 = vxor.u32 %v3946, 2147483648
        %v3969 = vxor.u32 %v3948, 2147483648
        %v3970 = vxor.u32 %v3950, 2147483648
        %v3971 = vxor.u32 %v3952, 2147483648
        %v3972 = vxor.u32 %v3954, 2147483648
        %v3973 = vxor.u32 %v3956, 2147483648
        %v3974 = vmul.f32 %v3966, 1.442695
        %v3975 = vpow.pop %v3974
        %v3976 = vmul.f32 %v3967, 1.442695
        %v3977 = vpow.pop %v3976
        %v3978 = vmul.f32 %v3968, 1.442695
        %v3979 = vpow.pop %v3978
        %v3980 = vmul.f32 %v3969, 1.442695
        %v3981 = vpow.pop %v3980
        %v3982 = vmul.f32 %v3970, 1.442695
        %v3983 = vpow.pop %v3982
        %v3984 = vmul.f32 %v3971, 1.442695
        %v3985 = vpow.pop %v3984
        %v3986 = vmul.f32 %v3972, 1.442695
        %v3987 = vpow.pop %v3986
        %v3988 = vmul.f32 %v3973, 1.442695
        %v3989 = vpow.pop %v3988
        %v3990 = vadd.f32 %v3975, 1.0
        %v3991 = vadd.f32 %v3977, 1.0
        %v3992 = vadd.f32 %v3979, 1.0
        %v3993 = vadd.f32 %v3981, 1.0
        %v3994 = vadd.f32 %v3983, 1.0
        %v3995 = vadd.f32 %v3985, 1.0
        %v3996 = vadd.f32 %v3987, 1.0
        %v3997 = vadd.f32 %v3989, 1.0
        %v3998 = vrcp.pop %v3990
        %v3999 = vmul.f32 1.0, %v3998
        %v4000 = vrcp.pop %v3991
        %v4001 = vmul.f32 1.0, %v4000
        %v4002 = vrcp.pop %v3992
        %v4003 = vmul.f32 1.0, %v4002
        %v4004 = vrcp.pop %v3993
        %v4005 = vmul.f32 1.0, %v4004
        %v4006 = vrcp.pop %v3994
        %v4007 = vmul.f32 1.0, %v4006
        %v4008 = vrcp.pop %v3995
        %v4009 = vmul.f32 1.0, %v4008
        %v4010 = vrcp.pop %v3996
        %v4011 = vmul.f32 1.0, %v4010
        %v4012 = vrcp.pop %v3997
        %v4013 = vmul.f32 1.0, %v4012
        %v4014 = vxor.u32 %v3943, 2147483648
        %v4015 = vxor.u32 %v3945, 2147483648
        %v4016 = vxor.u32 %v3947, 2147483648
        %v4017 = vxor.u32 %v3949, 2147483648
        %v4018 = vxor.u32 %v3951, 2147483648
        %v4019 = vxor.u32 %v3953, 2147483648
        %v4020 = vxor.u32 %v3955, 2147483648
        %v4021 = vxor.u32 %v3957, 2147483648
        %v4022 = vmul.f32 %v4014, 1.442695
        %v4023 = vpow.pop %v4022
        %v4024 = vmul.f32 %v4015, 1.442695
        %v4025 = vpow.pop %v4024
        %v4026 = vmul.f32 %v4016, 1.442695
        %v4027 = vpow.pop %v4026
        %v4028 = vmul.f32 %v4017, 1.442695
        %v4029 = vpow.pop %v4028
        %v4030 = vmul.f32 %v4018, 1.442695
        %v4031 = vpow.pop %v4030
        %v4032 = vmul.f32 %v4019, 1.442695
        %v4033 = vpow.pop %v4032
        %v4034 = vmul.f32 %v4020, 1.442695
        %v4035 = vpow.pop %v4034
        %v4036 = vmul.f32 %v4021, 1.442695
        %v4037 = vpow.pop %v4036
        %v4038 = vadd.f32 %v4023, 1.0
        %v4039 = vadd.f32 %v4025, 1.0
        %v4040 = vadd.f32 %v4027, 1.0
        %v4041 = vadd.f32 %v4029, 1.0
        %v4042 = vadd.f32 %v4031, 1.0
        %v4043 = vadd.f32 %v4033, 1.0
        %v4044 = vadd.f32 %v4035, 1.0
        %v4045 = vadd.f32 %v4037, 1.0
        %v4046 = vrcp.pop %v4038
        %v4047 = vmul.f32 1.0, %v4046
        %v4048 = vrcp.pop %v4039
        %v4049 = vmul.f32 1.0, %v4048
        %v4050 = vrcp.pop %v4040
        %v4051 = vmul.f32 1.0, %v4050
        %v4052 = vrcp.pop %v4041
        %v4053 = vmul.f32 1.0, %v4052
        %v4054 = vrcp.pop %v4042
        %v4055 = vmul.f32 1.0, %v4054
        %v4056 = vrcp.pop %v4043
        %v4057 = vmul.f32 1.0, %v4056
        %v4058 = vrcp.pop %v4044
        %v4059 = vmul.f32 1.0, %v4058
        %v4060 = vrcp.pop %v4045
        %v4061 = vmul.f32 1.0, %v4060
        %v4062 = vtanh.pop %v3943
        %v4063 = vtanh.pop %v3945
        %v4064 = vtanh.pop %v3947
        %v4065 = vtanh.pop %v3949
        %v4066 = vtanh.pop %v3951
        %v4067 = vtanh.pop %v3953
        %v4068 = vtanh.pop %v3955
        %v4069 = vtanh.pop %v3957
        %4078 = vrot.lane.b32.xlu0 %v3958, 64
        %v4079 = vpop.permute.xlu0 %4078
        %4080 = vrot.lane.b32.xlu0 %v3959, 64
        %v4081 = vpop.permute.xlu0 %4080
        %4082 = vrot.lane.b32.xlu0 %v3960, 64
        %v4083 = vpop.permute.xlu0 %4082
        %4084 = vrot.lane.b32.xlu0 %v3961, 64
        %v4085 = vpop.permute.xlu0 %4084
        %4086 = vrot.lane.b32.xlu0 %v3962, 64
        %v4087 = vpop.permute.xlu0 %4086
        %4088 = vrot.lane.b32.xlu0 %v3963, 64
        %v4089 = vpop.permute.xlu0 %4088
        %4090 = vrot.lane.b32.xlu0 %v3964, 64
        %v4091 = vpop.permute.xlu0 %4090
        %4092 = vrot.lane.b32.xlu0 %v3965, 64
        %v4093 = vpop.permute.xlu0 %4092
        %v4102 = vmul.f32 %v3999, %v4079
        %v4103 = vmul.f32 %v4001, %v4081
        %v4104 = vmul.f32 %v4003, %v4083
        %v4105 = vmul.f32 %v4005, %v4085
        %v4106 = vmul.f32 %v4007, %v4087
        %v4107 = vmul.f32 %v4009, %v4089
        %v4108 = vmul.f32 %v4011, %v4091
        %v4109 = vmul.f32 %v4013, %v4093
        %4118 = vrot.lane.b32.xlu0 %v4062, 64
        %v4119 = vpop.permute.xlu0 %4118
        %4120 = vrot.lane.b32.xlu0 %v4063, 64
        %v4121 = vpop.permute.xlu0 %4120
        %4122 = vrot.lane.b32.xlu0 %v4064, 64
        %v4123 = vpop.permute.xlu0 %4122
        %4124 = vrot.lane.b32.xlu0 %v4065, 64
        %v4125 = vpop.permute.xlu0 %4124
        %4126 = vrot.lane.b32.xlu0 %v4066, 64
        %v4127 = vpop.permute.xlu0 %4126
        %4128 = vrot.lane.b32.xlu0 %v4067, 64
        %v4129 = vpop.permute.xlu0 %4128
        %4130 = vrot.lane.b32.xlu0 %v4068, 64
        %v4131 = vpop.permute.xlu0 %4130
        %4132 = vrot.lane.b32.xlu0 %v4069, 64
        %v4133 = vpop.permute.xlu0 %4132
        %v4142 = vmul.f32 %v3999, %v4119
        %v4143 = vmul.f32 %v4001, %v4121
        %v4144 = vmul.f32 %v4003, %v4123
        %v4145 = vmul.f32 %v4005, %v4125
        %v4146 = vmul.f32 %v4007, %v4127
        %v4147 = vmul.f32 %v4009, %v4129
        %v4148 = vmul.f32 %v4011, %v4131
        %v4149 = vmul.f32 %v4013, %v4133
        %4158 = vrot.lane.b32.xlu0 %v4142, 64
        %v4159 = vpop.permute.xlu0 %4158
        %4160 = vrot.lane.b32.xlu0 %v4143, 64
        %v4161 = vpop.permute.xlu0 %4160
        %4162 = vrot.lane.b32.xlu0 %v4144, 64
        %v4163 = vpop.permute.xlu0 %4162
        %4164 = vrot.lane.b32.xlu0 %v4145, 64
        %v4165 = vpop.permute.xlu0 %4164
        %4166 = vrot.lane.b32.xlu0 %v4146, 64
        %v4167 = vpop.permute.xlu0 %4166
        %4168 = vrot.lane.b32.xlu0 %v4147, 64
        %v4169 = vpop.permute.xlu0 %4168
        %4170 = vrot.lane.b32.xlu0 %v4148, 64
        %v4171 = vpop.permute.xlu0 %4170
        %4172 = vrot.lane.b32.xlu0 %v4149, 64
        %v4173 = vpop.permute.xlu0 %4172
        %v4182 = vadd.f32 %v4102, %v4159
        %v4183 = vadd.f32 %v4103, %v4161
        %v4184 = vadd.f32 %v4104, %v4163
        %v4185 = vadd.f32 %v4105, %v4165
        %v4186 = vadd.f32 %v4106, %v4167
        %v4187 = vadd.f32 %v4107, %v4169
        %v4188 = vadd.f32 %v4108, %v4171
        %v4189 = vadd.f32 %v4109, %v4173
        %v4190 = vtanh.pop %v4182
        %v4191 = vtanh.pop %v4183
        %v4192 = vtanh.pop %v4184
        %v4193 = vtanh.pop %v4185
        %v4194 = vtanh.pop %v4186
        %v4195 = vtanh.pop %v4187
        %v4196 = vtanh.pop %v4188
        %v4197 = vtanh.pop %v4189
        %4206 = vrot.lane.b32.xlu0 %v4190, 64
        %v4207 = vpop.permute.xlu0 %4206
        %4208 = vrot.lane.b32.xlu0 %v4191, 64
        %v4209 = vpop.permute.xlu0 %4208
        %4210 = vrot.lane.b32.xlu0 %v4192, 64
        %v4211 = vpop.permute.xlu0 %4210
        %4212 = vrot.lane.b32.xlu0 %v4193, 64
        %v4213 = vpop.permute.xlu0 %4212
        %4214 = vrot.lane.b32.xlu0 %v4194, 64
        %v4215 = vpop.permute.xlu0 %4214
        %4216 = vrot.lane.b32.xlu0 %v4195, 64
        %v4217 = vpop.permute.xlu0 %4216
        %4218 = vrot.lane.b32.xlu0 %v4196, 64
        %v4219 = vpop.permute.xlu0 %4218
        %4220 = vrot.lane.b32.xlu0 %v4197, 64
        %v4221 = vpop.permute.xlu0 %4220
        %v4230 = vmul.f32 %v4047, %v4207
        %v4231 = vmul.f32 %v4049, %v4209
        %v4232 = vmul.f32 %v4051, %v4211
        %v4233 = vmul.f32 %v4053, %v4213
        %v4234 = vmul.f32 %v4055, %v4215
        %v4235 = vmul.f32 %v4057, %v4217
        %v4236 = vmul.f32 %v4059, %v4219
        %v4237 = vmul.f32 %v4061, %v4221
        %4238 = vst.msk [vmem:[#allocation2] sm:$0xff] %vm919, %v4230
        %4239 = vst.msk [vmem:[#allocation2 + $0x8] sm:$0xff] %vm919, %v4231
        %4240 = vst.msk [vmem:[#allocation2 + $0x10] sm:$0xff] %vm919, %v4232
        %4241 = vst.msk [vmem:[#allocation2 + $0x18] sm:$0xff] %vm919, %v4233
        %4242 = vst.msk [vmem:[#allocation2 + $0x20] sm:$0xff] %vm919, %v4234
        %4243 = vst.msk [vmem:[#allocation2 + $0x28] sm:$0xff] %vm919, %v4235
        %4244 = vst.msk [vmem:[#allocation2 + $0x30] sm:$0xff] %vm919, %v4236
        %4245 = vst.msk [vmem:[#allocation2 + $0x38] sm:$0xff] %vm919, %v4237
        %4254 = vrot.lane.b32.xlu0 %v4182, 64
        %v4255 = vpop.permute.xlu0 %4254
        %4256 = vrot.lane.b32.xlu0 %v4183, 64
        %v4257 = vpop.permute.xlu0 %4256
        %4258 = vrot.lane.b32.xlu0 %v4184, 64
        %v4259 = vpop.permute.xlu0 %4258
        %4260 = vrot.lane.b32.xlu0 %v4185, 64
        %v4261 = vpop.permute.xlu0 %4260
        %4262 = vrot.lane.b32.xlu0 %v4186, 64
        %v4263 = vpop.permute.xlu0 %4262
        %4264 = vrot.lane.b32.xlu0 %v4187, 64
        %v4265 = vpop.permute.xlu0 %4264
        %4266 = vrot.lane.b32.xlu0 %v4188, 64
        %v4267 = vpop.permute.xlu0 %4266
        %4268 = vrot.lane.b32.xlu0 %v4189, 64
        %v4269 = vpop.permute.xlu0 %4268
        %4278 = vst.msk [vmem:[#allocation3] sm:$0xff] %vm919, %v4255
        %4279 = vst.msk [vmem:[#allocation3 + $0x8] sm:$0xff] %vm919, %v4257
        %4280 = vst.msk [vmem:[#allocation3 + $0x10] sm:$0xff] %vm919, %v4259
        %4281 = vst.msk [vmem:[#allocation3 + $0x18] sm:$0xff] %vm919, %v4261
        %4282 = vst.msk [vmem:[#allocation3 + $0x20] sm:$0xff] %vm919, %v4263
        %4283 = vst.msk [vmem:[#allocation3 + $0x28] sm:$0xff] %vm919, %v4265
        %4284 = vst.msk [vmem:[#allocation3 + $0x30] sm:$0xff] %vm919, %v4267
        %4285 = vst.msk [vmem:[#allocation3 + $0x38] sm:$0xff] %vm919, %v4269
        %v4286 = vld [vmem:[%s9] sm:$0xff]
        %v4287 = vld [vmem:[%s9 + $0x8] sm:$0xff]
        %v4288 = vld [vmem:[%s9 + $0x10] sm:$0xff]
        %v4289 = vld [vmem:[%s9 + $0x18] sm:$0xff]
        %v4290 = vld [vmem:[%s9 + $0x20] sm:$0xff]
        %v4291 = vld [vmem:[%s9 + $0x28] sm:$0xff]
        %v4292 = vld [vmem:[%s9 + $0x30] sm:$0xff]
        %v4293 = vld [vmem:[%s9 + $0x38] sm:$0xff]
        %v4294 = vld [vmem:[#allocation6] sm:$0x1]
        %v4296 = vlaneseq
        %v4297 = vshrl.u32 %v4296, 7
        %v4298 = vsub.s32 0, %v4297
        %v4299 = vrot.slane %v4294, %v4298
        %v4302 = vsel %vm919, %v4230, 0
        %v4305 = vsel %vm919, %v4231, 0
        %v4308 = vsel %vm919, %v4232, 0
        %v4311 = vsel %vm919, %v4233, 0
        %v4314 = vsel %vm919, %v4234, 0
        %v4317 = vsel %vm919, %v4235, 0
        %v4320 = vsel %vm919, %v4236, 0
        %v4323 = vsel %vm919, %v4237, 0
        %4325 = vmatprep.subr.mxu0 0.0
        %4326 = vmatpush1.msra.mxu0 %v4286
        %4327 = vmatprep.subr.mxu0 0.0
        %4328 = vmatpush1.msra.mxu0 %v4287
        %4329 = vmatprep.subr.mxu0 0.0
        %4330 = vmatpush1.msra.mxu0 %v4288
        %4331 = vmatprep.subr.mxu0 0.0
        %4332 = vmatpush1.msra.mxu0 %v4289
        %4333 = vmatprep.subr.mxu0 0.0
        %4334 = vmatpush1.msra.mxu0 %v4290
        %4335 = vmatprep.subr.mxu0 0.0
        %4336 = vmatpush1.msra.mxu0 %v4291
        %4337 = vmatprep.subr.mxu0 0.0
        %4338 = vmatpush1.msra.mxu0 %v4292
        %4339 = vmatprep.subr.mxu0 0.0
        %4340 = vmatpush1.msra.mxu0 %v4293
        %4341 = vmatprep.subr.mxu0 0.0
        %4342 = vmatpush1.msra.mxu0 0.0
        %4343 = vmatprep.subr.mxu0 0.0
        %4344 = vmatpush1.msra.mxu0 0.0
        %4345 = vmatprep.subr.mxu0 0.0
        %4346 = vmatpush1.msra.mxu0 0.0
        %4347 = vmatprep.subr.mxu0 0.0
        %4348 = vmatpush1.msra.mxu0 0.0
        %4349 = vmatprep.subr.mxu0 0.0
        %4350 = vmatpush1.msra.mxu0 0.0
        %4351 = vmatprep.subr.mxu0 0.0
        %4352 = vmatpush1.msra.mxu0 0.0
        %4353 = vmatprep.subr.mxu0 0.0
        %4354 = vmatpush1.msra.mxu0 0.0
        %4355 = vmatprep.subr.mxu0 0.0
        %4356 = vmatpush1.msra.mxu0 0.0
        %4357 = vmatprep.subr.mxu0 0.0
        %4358 = vmatpush1.msra.mxu0 0.0
        %4359 = vmatprep.subr.mxu0 0.0
        %4360 = vmatpush1.msra.mxu0 0.0
        %4361 = vmatprep.subr.mxu0 0.0
        %4362 = vmatpush1.msra.mxu0 0.0
        %4363 = vmatprep.subr.mxu0 0.0
        %4364 = vmatpush1.msra.mxu0 0.0
        %4365 = vmatprep.subr.mxu0 0.0
        %4366 = vmatpush1.msra.mxu0 0.0
        %4367 = vmatprep.subr.mxu0 0.0
        %4368 = vmatpush1.msra.mxu0 0.0
        %4369 = vmatprep.subr.mxu0 0.0
        %4370 = vmatpush1.msra.mxu0 0.0
        %4371 = vmatprep.subr.mxu0 0.0
        %4372 = vmatpush1.msra.mxu0 0.0
        %4373 = vmatprep.subr.mxu0 0.0
        %4374 = vmatpush1.msra.mxu0 0.0
        %4375 = vmatprep.subr.mxu0 0.0
        %4376 = vmatpush1.msra.mxu0 0.0
        %4377 = vmatprep.subr.mxu0 0.0
        %4378 = vmatpush1.msra.mxu0 0.0
        %4379 = vmatprep.subr.mxu0 0.0
        %4380 = vmatpush1.msra.mxu0 0.0
        %4381 = vmatprep.subr.mxu0 0.0
        %4382 = vmatpush1.msra.mxu0 0.0
        %4383 = vmatprep.subr.mxu0 0.0
        %4384 = vmatpush1.msra.mxu0 0.0
        %4385 = vmatprep.subr.mxu0 0.0
        %4386 = vmatpush1.msra.mxu0 0.0
        %4387 = vmatprep.subr.mxu0 0.0
        %4388 = vmatpush1.msra.mxu0 0.0
        %4389 = vmatprep.mubr.f32.mxu0 0.0
        %4390 = vmatmul.mubr.f32.gmra.mrb[0].mxu0 %v4302
        %v4391 = vpop.f32.mrb[0].mxu0
        %v4392 = vadd.f32 %v4299, %v4391
        %v4393 = vpop.f32.mrb[0].mxu0
        %4394 = vmatprep.mubr.f32.mxu0 0.0
        %4395 = vmatmul.mubr.f32.gmra.mrb[0].mxu0 %v4305
        %v4396 = vpop.f32.mrb[0].mxu0
        %v4397 = vadd.f32 %v4299, %v4396
        %v4398 = vpop.f32.mrb[0].mxu0
        %4399 = vmatprep.mubr.f32.mxu0 0.0
        %4400 = vmatmul.mubr.f32.gmra.mrb[0].mxu0 %v4308
        %v4401 = vpop.f32.mrb[0].mxu0
        %v4402 = vadd.f32 %v4299, %v4401
        %v4403 = vpop.f32.mrb[0].mxu0
        %4404 = vmatprep.mubr.f32.mxu0 0.0
        %4405 = vmatmul.mubr.f32.gmra.mrb[0].mxu0 %v4311
        %v4406 = vpop.f32.mrb[0].mxu0
        %v4407 = vadd.f32 %v4299, %v4406
        %v4408 = vpop.f32.mrb[0].mxu0
        %4409 = vmatprep.mubr.f32.mxu0 0.0
        %4410 = vmatmul.mubr.f32.gmra.mrb[0].mxu0 %v4314
        %v4411 = vpop.f32.mrb[0].mxu0
        %v4412 = vadd.f32 %v4299, %v4411
        %v4413 = vpop.f32.mrb[0].mxu0
        %4414 = vmatprep.mubr.f32.mxu0 0.0
        %4415 = vmatmul.mubr.f32.gmra.mrb[0].mxu0 %v4317
        %v4416 = vpop.f32.mrb[0].mxu0
        %v4417 = vadd.f32 %v4299, %v4416
        %v4418 = vpop.f32.mrb[0].mxu0
        %4419 = vmatprep.mubr.f32.mxu0 0.0
        %4420 = vmatmul.mubr.f32.gmra.mrb[0].mxu0 %v4320
        %v4421 = vpop.f32.mrb[0].mxu0
        %v4422 = vadd.f32 %v4299, %v4421
        %v4423 = vpop.f32.mrb[0].mxu0
        %4424 = vmatprep.mubr.f32.mxu0 0.0
        %4425 = vmatmul.mubr.f32.gmra.mrb[0].mxu0 %v4323
        %v4426 = vpop.f32.mrb[0].mxu0
        %v4427 = vadd.f32 %v4299, %v4426
        %v4428 = vpop.f32.mrb[0].mxu0
        %4429 = vdwg.mxu0
        %v4430 = vxor.u32 %v4392, 2147483648
        %v4431 = vxor.u32 %v4397, 2147483648
        %v4432 = vxor.u32 %v4402, 2147483648
        %v4433 = vxor.u32 %v4407, 2147483648
        %v4434 = vxor.u32 %v4412, 2147483648
        %v4435 = vxor.u32 %v4417, 2147483648
        %v4436 = vxor.u32 %v4422, 2147483648
        %v4437 = vxor.u32 %v4427, 2147483648
        %v4438 = vmul.f32 %v4430, 1.442695
        %v4439 = vpow.pop %v4438
        %v4440 = vmul.f32 %v4431, 1.442695
        %v4441 = vpow.pop %v4440
        %v4442 = vmul.f32 %v4432, 1.442695
        %v4443 = vpow.pop %v4442
        %v4444 = vmul.f32 %v4433, 1.442695
        %v4445 = vpow.pop %v4444
        %v4446 = vmul.f32 %v4434, 1.442695
        %v4447 = vpow.pop %v4446
        %v4448 = vmul.f32 %v4435, 1.442695
        %v4449 = vpow.pop %v4448
        %v4450 = vmul.f32 %v4436, 1.442695
        %v4451 = vpow.pop %v4450
        %v4452 = vmul.f32 %v4437, 1.442695
        %v4453 = vpow.pop %v4452
        %v4454 = vadd.f32 %v4439, 1.0
        %v4455 = vadd.f32 %v4441, 1.0
        %v4456 = vadd.f32 %v4443, 1.0
        %v4457 = vadd.f32 %v4445, 1.0
        %v4458 = vadd.f32 %v4447, 1.0
        %v4459 = vadd.f32 %v4449, 1.0
        %v4460 = vadd.f32 %v4451, 1.0
        %v4461 = vadd.f32 %v4453, 1.0
        %v4462 = vrcp.pop %v4454
        %v4463 = vmul.f32 1.0, %v4462
        %v4464 = vrcp.pop %v4455
        %v4465 = vmul.f32 1.0, %v4464
        %v4466 = vrcp.pop %v4456
        %v4467 = vmul.f32 1.0, %v4466
        %v4468 = vrcp.pop %v4457
        %v4469 = vmul.f32 1.0, %v4468
        %v4470 = vrcp.pop %v4458
        %v4471 = vmul.f32 1.0, %v4470
        %v4472 = vrcp.pop %v4459
        %v4473 = vmul.f32 1.0, %v4472
        %v4474 = vrcp.pop %v4460
        %v4475 = vmul.f32 1.0, %v4474
        %v4476 = vrcp.pop %v4461
        %v4477 = vmul.f32 1.0, %v4476
        %4478 = vst.msk [vmem:[#allocation4] sm:$0xff] %vm1272, %v4463
        %4479 = vst.msk [vmem:[#allocation4 + $0x8] sm:$0xff] %vm1272, %v4465
        %4480 = vst.msk [vmem:[#allocation4 + $0x10] sm:$0xff] %vm1272, %v4467
        %4481 = vst.msk [vmem:[#allocation4 + $0x18] sm:$0xff] %vm1272, %v4469
        %4482 = vst.msk [vmem:[#allocation4 + $0x20] sm:$0xff] %vm1272, %v4471
        %4483 = vst.msk [vmem:[#allocation4 + $0x28] sm:$0xff] %vm1272, %v4473
        %4484 = vst.msk [vmem:[#allocation4 + $0x30] sm:$0xff] %vm1272, %v4475
        %4485 = vst.msk [vmem:[#allocation4 + $0x38] sm:$0xff] %vm1272, %v4477
        %4486 = vst.msk [vmem:[%s845] sm:$0xff] %vm1272, %v4463
        %4487 = vst.msk [vmem:[%s845 + $0x8] sm:$0xff] %vm1272, %v4465
        %4488 = vst.msk [vmem:[%s845 + $0x10] sm:$0xff] %vm1272, %v4467
        %4489 = vst.msk [vmem:[%s845 + $0x18] sm:$0xff] %vm1272, %v4469
        %4490 = vst.msk [vmem:[%s845 + $0x20] sm:$0xff] %vm1272, %v4471
        %4491 = vst.msk [vmem:[%s845 + $0x28] sm:$0xff] %vm1272, %v4473
        %4492 = vst.msk [vmem:[%s845 + $0x30] sm:$0xff] %vm1272, %v4475
        %4493 = vst.msk [vmem:[%s845 + $0x38] sm:$0xff] %vm1272, %v4477
        %s4494 = smul.u32 8, %s31
        %p4495 = scmp.lt.s32.totalorder %s32, 2
        %s4496 = scalar_select %p4495, %s32, 2
        %p4497 = scmp.lt.s32.totalorder %s4494, 15
        %s4498 = scalar_select %p4497, %s4494, 15
        %s4499 = smul.addr %s4496, 16
        %s4500 = sadd.s32 %s4498, %s4499
        %s4501 = smul.addr %s4500, 8
        %s4502 = scalar_lea.vmem %s12, %s4501
        // Predicated region
        $region149: #{forward.3} parent=135 // pred_check
          %p4503 = pneg %p336
        $region150: #{forward.3} parent=135 // pred_check_branch
          %4505 = sbr.rel (%p4503) target = $region152
        $region151: #{forward.3} parent=135 // pred_region
          %s4506 = smul.u32 8, %s31
        $region152: #{forward.3} parent=135 // pred_fallthru
          _
      $region136: #{forward.3} parent=5 // pred_fallthru
        _
      %p4507 = scmp.le.s32.totalorder 2, %s22
      // Predicated region
      $region153: #{forward.3} parent=5 // pred_check
        %p4508 = pneg %p4507
      $region154: #{forward.3} parent=5 // pred_check_branch
        %4510 = sbr.rel (%p4508) target = $region156
      $region155: #{forward.3} parent=5 // pred_region
        %s4511 = ssub.s32 %s22, 2
        // Predicated region
        $region157: #{forward.3} parent=155 // pred_check
          %p4512 = pneg %p342
        $region158: #{forward.3} parent=155 // pred_check_branch
          %4514 = sbr.rel (%p4512) target = $region160
        $region159: #{forward.3} parent=155 // pred_region
          %s4515 = smul.u32 8, %s33
          %p4516 = scmp.lt.s32.totalorder %s34, 2
          %s4517 = scalar_select %p4516, %s34, 2
          %p4518 = scmp.lt.s32.totalorder %s4515, 15
          %s4519 = scalar_select %p4518, %s4515, 15
          %s4520 = smul.addr %s4517, 16
          %s4521 = sadd.s32 %s4519, %s4520
          %s4522 = smul.addr %s4521, 8
          %s4523 = scalar_lea.vmem %s12, %s4522
        $region160: #{forward.3} parent=155 // pred_fallthru
          _
      $region156: #{forward.3} parent=5 // pred_fallthru
        _
    $region6: #{forward.3} parent=1 // loop_footer
      %s26 = sadd.s32 1, %s22
    $region7: #{forward.3} parent=1 // loop_footer_branch
      %21 = sbr.rel target = $region3
    $region8: #{forward.3} parent=1 // loop_exit
      _

</llo_original>
